<compile_context>
chip_gen: v7x
topology: tpu7x:2x2x1
jax: 0.10.0
libtpu: 0.0.40
codegen_flags: <defaults>
</compile_context>

<pallas_src>
import functools
import math

import jax
import jax.numpy as jnp
from jax.experimental import pallas as pl
from jax.experimental.pallas import tpu as pltpu


# ----------------------------------------------------------------------------
# Fused kernel: qkv+dwconv conv, channel attention, pooled gating branch,
# upsample, gate, project_out.  One grid step == one batch image.
# ----------------------------------------------------------------------------
def _attn_fused_kernel(x_ref, mask_m_ref, mask_b_ref, u_ref, wcomb_ref,
                       scale_ref, bias_ref, wb1_ref, b1_ref, g1_ref, be1_ref,
                       wb2_ref, b2_ref, g2_ref, be2_ref, pm_ref, em_ref,
                       wproj_ref, out_ref, pat_ref, patb_ref, *,
                       c, h, w, hp, wp):
    f32 = jnp.float32
    hw = h * w

    def im2col(src, mask_ref, dst_ref, hh, ww):
        """Build the 9-tap patch matrix (9c, hh*ww) of src (c, hh*ww).

        Shifts are realized with static in-bounds slice stores (lane-dense,
        no reshape / roll); out-of-image taps are zeroed via a precomputed
        0/1 mask (this IS the conv's zero padding).
        """
        n = hh * ww
        for tap in range(9):
            dy, dx = tap // 3, tap % 3
            off = (dy - 1) * ww + (dx - 1)
            lo = max(0, -off)
            hi = n - max(0, off)
            r0, r1 = tap * c, (tap + 1) * c
            if lo > 0:
                dst_ref[r0:r1, 0:lo] = jnp.zeros((c, lo), f32)
            if hi < n:
                dst_ref[r0:r1, hi:n] = jnp.zeros((c, n - hi), f32)
            dst_ref[r0:r1, lo:hi] = (src[:, lo + off:hi + off] *
                                     mask_ref[tap:tap + 1, lo:hi])

    x2d = x_ref[0].astype(f32)                                     # (c, hw)

    # ---------------- channel attention path --------------------------------
    # qkv(1x1) + depthwise 3x3 (both bias-free) folded into one dense 3x3
    # conv == ONE matmul with K = 9c over the im2col patches.
    im2col(x2d, mask_m_ref, pat_ref, h, w)
    qkv = jnp.dot(wcomb_ref[...], pat_ref[...],
                  preferred_element_type=f32)                      # (3c, hw)
    q = qkv[0:c, :]
    k = qkv[c:2 * c, :]
    v = qkv[2 * c:3 * c, :]

    # torch.nn.functional.normalize(dim=-1), eps=1e-12
    qn = q / jnp.maximum(jnp.sqrt(jnp.sum(q * q, axis=1, keepdims=True)), 1e-12)
    kn = k / jnp.maximum(jnp.sqrt(jnp.sum(k * k, axis=1, keepdims=True)), 1e-12)

    # All heads at once: one (c, c) matmul; temperature + block-diagonal head
    # mask folded into a precomputed multiplicative scale + additive bias.
    logits = jax.lax.dot_general(qn, kn, (((1,), (1,)), ((), ())),
                                 preferred_element_type=f32)       # (c, c)
    logits = logits * scale_ref[...] + bias_ref[...]
    logits = logits - jnp.max(logits, axis=-1, keepdims=True)
    p = jnp.exp(logits)
    p = p / jnp.sum(p, axis=-1, keepdims=True)
    out_attn = jnp.dot(p, v, preferred_element_type=f32)           # (c, hw)

    # ---------------- pooled conv gating branch ------------------------------
    # AvgPool2d(2,2): pooling and the later nearest-2x upsample share U.
    y0 = 0.25 * jax.lax.dot_general(x2d, u_ref[...],
                                    (((1,), (1,)), ((), ())),
                                    preferred_element_type=f32)    # (c, hp*wp)

    def layer_norm_relu(z, g_ref, be_ref):
        # nn.LayerNorm([ch]) on NCHW == per-(channel, pooled-row) norm over the
        # pooled width (= ch); segment means via matmuls (stays lane-dense).
        mu = jnp.dot(z, pm_ref[...], preferred_element_type=f32)   # (c, hp)
        mu = jnp.dot(mu, em_ref[...], preferred_element_type=f32)  # (c, hp*wp)
        zc = z - mu
        var = jnp.dot(zc * zc, pm_ref[...], preferred_element_type=f32)
        var = jnp.dot(var, em_ref[...], preferred_element_type=f32)
        zn = zc * jax.lax.rsqrt(var + 1e-5)
        return jnp.maximum(zn * g_ref[...] + be_ref[...], 0.0)

    # conv3x3 + bias -> LN -> ReLU, twice; each conv is one K=9c matmul.
    im2col(y0, mask_b_ref, patb_ref, hp, wp)
    z1 = jnp.dot(wb1_ref[...], patb_ref[...],
                 preferred_element_type=f32) + b1_ref[...]         # (c, hp*wp)
    z1 = layer_norm_relu(z1, g1_ref, be1_ref)

    im2col(z1, mask_b_ref, patb_ref, hp, wp)
    z2 = jnp.dot(wb2_ref[...], patb_ref[...],
                 preferred_element_type=f32) + b2_ref[...]
    z2 = layer_norm_relu(z2, g2_ref, be2_ref)

    # nearest 2x upsample (in-kernel, via the shared 0/1 matrix U).
    gate = jnp.dot(z2, u_ref[...], preferred_element_type=f32)     # (c, hw)

    # ---------------- gate + project_out -------------------------------------
    res = jnp.dot(wproj_ref[...], out_attn * gate,
                  preferred_element_type=f32)                      # (c, hw)
    out_ref[0] = res.astype(out_ref.dtype)


def _conv_masks(hh, ww):
    """(9, hh*ww) 0/1 masks: tap source pixel in-bounds (== conv zero pad)."""
    p = jnp.arange(hh * ww)
    yy, xx = p // ww, p % ww
    rows = []
    for tap in range(9):
        dy, dx = tap // 3, tap % 3
        ok = ((yy + dy - 1 >= 0) & (yy + dy - 1 < hh) &
              (xx + dx - 1 >= 0) & (xx + dx - 1 < ww))
        rows.append(ok.astype(jnp.float32))
    return jnp.stack(rows, axis=0)


# ----------------------------------------------------------------------------
# Wrapper (NCHW in / NCHW out, PyTorch convention)
# ----------------------------------------------------------------------------
@functools.partial(jax.jit, static_argnames=("num_heads",))
def attention_forward(x, params, *, num_heads):
    b, c, h, w = x.shape
    assert c % num_heads == 0
    hp, wp = h // 2, w // 2
    hw, hwp = h * w, hp * wp
    c_head = c // num_heads
    # nn.LayerNorm([ch]) on an NCHW tensor only runs if the pooled width == ch.
    assert wp == c, "LayerNorm([ch]) on NCHW requires (W // 2) == ch"

    f32 = jnp.float32
    x_flat = x.reshape(b, c, hw)                                   # channel-major

    # ---- glue: fold qkv(1x1) into the depthwise 3x3 -> (3c, 9c) -------------
    wq = params["w_qkv"].astype(f32)                               # (3c, c)
    wd = params["w_dw"].astype(f32).reshape(3 * c, 9)              # (3c, 9)
    wcomb = (wd[:, :, None] * wq[:, None, :]).reshape(3 * c, 9 * c)

    def conv_flat(wt):                                             # OIHW -> (O, 9I)
        o, i = wt.shape[0], wt.shape[1]
        return jnp.transpose(wt, (0, 2, 3, 1)).reshape(o, 9 * i).astype(f32)

    wb1 = conv_flat(params["w_c1"])
    wb2 = conv_flat(params["w_c2"])
    b1 = params["b_c1"].reshape(c, 1).astype(f32)
    b2 = params["b_c2"].reshape(c, 1).astype(f32)
    g1 = jnp.tile(params["ln1_w"].astype(f32), hp).reshape(1, hwp)
    be1 = jnp.tile(params["ln1_b"].astype(f32), hp).reshape(1, hwp)
    g2 = jnp.tile(params["ln2_w"].astype(f32), hp).reshape(1, hwp)
    be2 = jnp.tile(params["ln2_b"].astype(f32), hp).reshape(1, hwp)
    w_proj = params["w_proj"].astype(f32)                          # (c, c)

    # ---- glue: temperature * block-diag head mask as scale + additive bias --
    head_id = jnp.arange(c) // c_head
    same = head_id[:, None] == head_id[None, :]
    trow = jnp.repeat(params["temperature"].reshape(num_heads).astype(f32),
                      c_head)
    scale_cc = jnp.where(same, trow[:, None], 0.0).astype(f32)     # (c, c)
    bias_cc = jnp.where(same, 0.0, -1e30).astype(f32)              # (c, c)

    # ---- glue: shared pool/upsample 0-1 matrix + LN segment-mean matrices ---
    pidx = jnp.arange(hw)
    qmap = (pidx // w // 2) * wp + (pidx % w) // 2
    u_mat = (jnp.arange(hwp)[:, None] == qmap[None, :]).astype(f32)  # (hwp, hw)

    qidx = jnp.arange(hwp)
    pm = ((qidx[:, None] // wp) == jnp.arange(hp)[None, :]).astype(f32) / wp
    em = (jnp.arange(hp)[:, None] == (qidx[None, :] // wp)).astype(f32)

    mask_m = _conv_masks(h, w)                                     # (9, hw)
    mask_b = _conv_masks(hp, wp)                                   # (9, hwp)

    const2 = lambda spec_shape: pl.BlockSpec(spec_shape, lambda i: (0, 0))

    out_cm = pl.pallas_call(
        functools.partial(_attn_fused_kernel, c=c, h=h, w=w, hp=hp, wp=wp),
        out_shape=jax.ShapeDtypeStruct((b, c, hw), x.dtype),
        grid_spec=pltpu.PrefetchScalarGridSpec(
            num_scalar_prefetch=0,
            grid=(b,),
            in_specs=[
                pl.BlockSpec((1, c, hw), lambda i: (i, 0, 0)),   # x
                const2((9, hw)),                                 # mask_m
                const2((9, hwp)),                                # mask_b
                const2((hwp, hw)),                               # U
                const2((3 * c, 9 * c)),                          # wcomb
                const2((c, c)),                                  # scale_cc
                const2((c, c)),                                  # bias_cc
                const2((c, 9 * c)),                              # wb1
                const2((c, 1)),                                  # b1
                const2((1, hwp)),                                # g1
                const2((1, hwp)),                                # be1
                const2((c, 9 * c)),                              # wb2
                const2((c, 1)),                                  # b2
                const2((1, hwp)),                                # g2
                const2((1, hwp)),                                # be2
                const2((hwp, hp)),                               # Pm
                const2((hp, hwp)),                               # Em
                const2((c, c)),                                  # w_proj
            ],
            out_specs=pl.BlockSpec((1, c, hw), lambda i: (i, 0, 0)),
            scratch_shapes=[
                pltpu.VMEM((9 * c, hw), jnp.float32),            # main patches
                pltpu.VMEM((9 * c, hwp), jnp.float32),           # branch patches
            ],
        ),
        compiler_params=pltpu.CompilerParams(
            dimension_semantics=("parallel",)),
    )(x_flat, mask_m, mask_b, u_mat, wcomb, scale_cc, bias_cc,
      wb1, b1, g1, be1, wb2, b2, g2, be2, pm, em, w_proj)

    return out_cm.reshape(b, c, h, w)


# ----------------------------------------------------------------------------
# Plain-JAX reference of the same forward (for validation)
# ----------------------------------------------------------------------------
def _reference_forward(x, params, num_heads):
    b, c, h, w = x.shape
    c_head = c // num_heads
    hp, wp = h // 2, w // 2
    prec = jax.lax.Precision.HIGHEST

    qkv = jnp.einsum('oc,bchw->bohw', params["w_qkv"], x, precision=prec)
    qkv = jax.lax.conv_general_dilated(
        qkv, params["w_dw"].reshape(3 * c, 1, 3, 3),
        window_strides=(1, 1), padding=((1, 1), (1, 1)),
        dimension_numbers=("NCHW", "OIHW", "NCHW"),
        feature_group_count=3 * c, precision=prec)
    q, k, v = jnp.split(qkv, 3, axis=1)
    q = q.reshape(b, num_heads, c_head, h * w)
    k = k.reshape(b, num_heads, c_head, h * w)
    v = v.reshape(b, num_heads, c_head, h * w)

    def l2n(t):
        n = jnp.sqrt(jnp.sum(t * t, axis=-1, keepdims=True))
        return t / jnp.maximum(n, 1e-12)

    attn = jnp.einsum('bhcd,bhed->bhce', l2n(q), l2n(k), precision=prec)
    attn = attn * params["temperature"][None, :, None, None]
    attn = jax.nn.softmax(attn, axis=-1)
    out = jnp.einsum('bhce,bhed->bhcd', attn, v,
                     precision=prec).reshape(b, c, h, w)

    y = x.reshape(b, c, hp, 2, wp, 2).mean(axis=(3, 5))

    def conv3(t, wt, bias):
        r = jax.lax.conv_general_dilated(
            t, wt, (1, 1), ((1, 1), (1, 1)),
            dimension_numbers=("NCHW", "OIHW", "NCHW"), precision=prec)
        return r + bias[None, :, None, None]

    def ln_last(t, g, bvec):
        mu = t.mean(axis=-1, keepdims=True)
        var = ((t - mu) ** 2).mean(axis=-1, keepdims=True)
        return (t - mu) / jnp.sqrt(var + 1e-5) * g + bvec

    y = jax.nn.relu(ln_last(conv3(y, params["w_c1"], params["b_c1"]),
                            params["ln1_w"], params["ln1_b"]))
    y = jax.nn.relu(ln_last(conv3(y, params["w_c2"], params["b_c2"]),
                            params["ln2_w"], params["ln2_b"]))
    y = jnp.repeat(jnp.repeat(y, 2, axis=2), 2, axis=3)

    out = y * out
    return jnp.einsum('oc,bchw->bohw', params["w_proj"], out, precision=prec)


if __name__ == "__main__":
    key = jax.random.PRNGKey(0)
    ks = jax.random.split(key, 12)

    B, CH, NUM_HEADS = 2, 16, 8
    H = W = 2 * CH      # LayerNorm([ch]) on NCHW requires pooled width == ch
    x = jax.random.normal(ks[0], (B, CH, H, W), dtype=jnp.float32)

    def unif(k, shape, fan_in):
        bound = 1.0 / math.sqrt(fan_in)
        return jax.random.uniform(k, shape, minval=-bound, maxval=bound,
                                  dtype=jnp.float32)

    params = {
        # qkv: Conv2d(ch, 3ch, 1, bias=False)
        "w_qkv": unif(ks[1], (3 * CH, CH), CH),
        # qkv_dwconv: Conv2d(3ch, 3ch, 3, padding=1, groups=3ch, bias=False)
        "w_dw": unif(ks[2], (3 * CH, 3, 3), 9),
        # project_out: Conv2d(ch, ch, 1, bias=False)
        "w_proj": unif(ks[3], (CH, CH), CH),
        # nn.Parameter(torch.ones(heads,1,1)) -- randomized to exercise the path
        "temperature": jax.random.uniform(ks[4], (NUM_HEADS,), minval=0.5,
                                          maxval=1.5, dtype=jnp.float32),
        # conv branch: Conv2d(ch, ch, 3, padding=1, bias=True) x2 + LayerNorm x2
        "w_c1": unif(ks[5], (CH, CH, 3, 3), CH * 9),
        "b_c1": unif(ks[6], (CH,), CH * 9),
        "w_c2": unif(ks[7], (CH, CH, 3, 3), CH * 9),
        "b_c2": unif(ks[8], (CH,), CH * 9),
        "ln1_w": 1.0 + 0.1 * jax.random.normal(ks[9], (CH,), dtype=jnp.float32),
        "ln1_b": 0.1 * jax.random.normal(ks[10], (CH,), dtype=jnp.float32),
        "ln2_w": 1.0 + 0.1 * jax.random.normal(ks[11], (CH,), dtype=jnp.float32),
        "ln2_b": jnp.zeros((CH,), dtype=jnp.float32),
    }

    out = attention_forward(x, params, num_heads=NUM_HEADS)
    jax.block_until_ready(out)

    ref = _reference_forward(x, params, NUM_HEADS)
    assert out.shape == (B, CH, H, W), out.shape
    max_err = float(jnp.max(jnp.abs(out - ref)))
    assert jnp.allclose(out, ref, atol=5e-4, rtol=5e-4), max_err
    print("KERNEL_OK")
</pallas_src>

<mosaic_0001>
module attributes {stable_mosaic.version = 11 : i64} {
  func.func @_attn_fused_kernel(%arg0: i32, %arg1: memref<1x16x1024xf32, #tpu.memory_space<vmem>>, %arg2: memref<9x1024xf32, #tpu.memory_space<vmem>>, %arg3: memref<9x256xf32, #tpu.memory_space<vmem>>, %arg4: memref<256x1024xf32, #tpu.memory_space<vmem>>, %arg5: memref<48x144xf32, #tpu.memory_space<vmem>>, %arg6: memref<16x16xf32, #tpu.memory_space<vmem>>, %arg7: memref<16x16xf32, #tpu.memory_space<vmem>>, %arg8: memref<16x144xf32, #tpu.memory_space<vmem>>, %arg9: memref<16x1xf32, #tpu.memory_space<vmem>>, %arg10: memref<1x256xf32, #tpu.memory_space<vmem>>, %arg11: memref<1x256xf32, #tpu.memory_space<vmem>>, %arg12: memref<16x144xf32, #tpu.memory_space<vmem>>, %arg13: memref<16x1xf32, #tpu.memory_space<vmem>>, %arg14: memref<1x256xf32, #tpu.memory_space<vmem>>, %arg15: memref<1x256xf32, #tpu.memory_space<vmem>>, %arg16: memref<256x16xf32, #tpu.memory_space<vmem>>, %arg17: memref<16x256xf32, #tpu.memory_space<vmem>>, %arg18: memref<16x16xf32, #tpu.memory_space<vmem>>, %arg19: memref<1x16x1024xf32, #tpu.memory_space<vmem>>, %arg20: memref<144x1024xf32, #tpu.memory_space<vmem>>, %arg21: memref<144x256xf32, #tpu.memory_space<vmem>>) attributes {dimension_semantics = [#tpu.dimension_semantics<parallel>], iteration_bounds = array<i64: 2>, scalar_prefetch = 0 : i64, scratch_operands = 2 : i64, tpu.core_type = #tpu.core_type<tc>, window_params = [{transform_indices = @transform_0, window_bounds = array<i64: 1, 16, 1024>}, {pipeline_mode = #tpu.pipeline_mode<synchronous>, transform_indices = @transform_1, window_bounds = array<i64: 9, 1024>}, {pipeline_mode = #tpu.pipeline_mode<synchronous>, transform_indices = @transform_2, window_bounds = array<i64: 9, 256>}, {pipeline_mode = #tpu.pipeline_mode<synchronous>, transform_indices = @transform_3, window_bounds = array<i64: 256, 1024>}, {pipeline_mode = #tpu.pipeline_mode<synchronous>, transform_indices = @transform_4, window_bounds = array<i64: 48, 144>}, {pipeline_mode = #tpu.pipeline_mode<synchronous>, transform_indices = @transform_5, window_bounds = array<i64: 16, 16>}, {pipeline_mode = #tpu.pipeline_mode<synchronous>, transform_indices = @transform_6, window_bounds = array<i64: 16, 16>}, {pipeline_mode = #tpu.pipeline_mode<synchronous>, transform_indices = @transform_7, window_bounds = array<i64: 16, 144>}, {pipeline_mode = #tpu.pipeline_mode<synchronous>, transform_indices = @transform_8, window_bounds = array<i64: 16, 1>}, {pipeline_mode = #tpu.pipeline_mode<synchronous>, transform_indices = @transform_9, window_bounds = array<i64: 1, 256>}, {pipeline_mode = #tpu.pipeline_mode<synchronous>, transform_indices = @transform_10, window_bounds = array<i64: 1, 256>}, {pipeline_mode = #tpu.pipeline_mode<synchronous>, transform_indices = @transform_11, window_bounds = array<i64: 16, 144>}, {pipeline_mode = #tpu.pipeline_mode<synchronous>, transform_indices = @transform_12, window_bounds = array<i64: 16, 1>}, {pipeline_mode = #tpu.pipeline_mode<synchronous>, transform_indices = @transform_13, window_bounds = array<i64: 1, 256>}, {pipeline_mode = #tpu.pipeline_mode<synchronous>, transform_indices = @transform_14, window_bounds = array<i64: 1, 256>}, {pipeline_mode = #tpu.pipeline_mode<synchronous>, transform_indices = @transform_15, window_bounds = array<i64: 256, 16>}, {pipeline_mode = #tpu.pipeline_mode<synchronous>, transform_indices = @transform_16, window_bounds = array<i64: 16, 256>}, {pipeline_mode = #tpu.pipeline_mode<synchronous>, transform_indices = @transform_17, window_bounds = array<i64: 16, 16>}, {transform_indices = @transform_18, window_bounds = array<i64: 1, 16, 1024>}]} {
    %c0 = arith.constant 0 : index
    %c0_0 = arith.constant 0 : index
    %c0_1 = arith.constant 0 : index
    %0 = vector.load %arg1[%c0, %c0_0, %c0_1] : memref<1x16x1024xf32, #tpu.memory_space<vmem>>, vector<1x16x1024xf32>
    %1 = vector.shape_cast %0 : vector<1x16x1024xf32> to vector<16x1024xf32>
    %cst = arith.constant 0.000000e+00 : f32
    %2 = vector.broadcast %cst : f32 to vector<16x33xf32>
    %c0_2 = arith.constant 0 : index
    %c0_3 = arith.constant 0 : index
    %3 = vector.load %arg20[%c0_2, %c0_3] : memref<144x1024xf32, #tpu.memory_space<vmem>>, vector<16x33xf32>
    tpu.vector_store %arg20[%c0_2, %c0_3], %2 {strides = array<i32>} : memref<144x1024xf32, #tpu.memory_space<vmem>>, vector<16x33xf32>,
    %4 = vector.extract_strided_slice %1 {offsets = [0, 0], sizes = [16, 991], strides = [1, 1]} : vector<16x1024xf32> to vector<16x991xf32>
    %c0_4 = arith.constant 0 : index
    %c33 = arith.constant 33 : index
    %5 = vector.load %arg2[%c0_4, %c33] : memref<9x1024xf32, #tpu.memory_space<vmem>>, vector<1x991xf32>
    %6 = vector.broadcast %5 : vector<1x991xf32> to vector<16x991xf32>
    %7 = arith.mulf %4, %6 : vector<16x991xf32>
    %c0_5 = arith.constant 0 : index
    %c33_6 = arith.constant 33 : index
    %8 = vector.load %arg20[%c0_5, %c33_6] : memref<144x1024xf32, #tpu.memory_space<vmem>>, vector<16x991xf32>
    tpu.vector_store %arg20[%c0_5, %c33_6], %7 {strides = array<i32>} : memref<144x1024xf32, #tpu.memory_space<vmem>>, vector<16x991xf32>,
    %cst_7 = arith.constant 0.000000e+00 : f32
    %9 = vector.broadcast %cst_7 : f32 to vector<16x32xf32>
    %c16 = arith.constant 16 : index
    %c0_8 = arith.constant 0 : index
    %10 = vector.load %arg20[%c16, %c0_8] : memref<144x1024xf32, #tpu.memory_space<vmem>>, vector<16x32xf32>
    tpu.vector_store %arg20[%c16, %c0_8], %9 {strides = array<i32>} : memref<144x1024xf32, #tpu.memory_space<vmem>>, vector<16x32xf32>,
    %11 = vector.extract_strided_slice %1 {offsets = [0, 0], sizes = [16, 992], strides = [1, 1]} : vector<16x1024xf32> to vector<16x992xf32>
    %c1 = arith.constant 1 : index
    %c32 = arith.constant 32 : index
    %12 = vector.load %arg2[%c1, %c32] : memref<9x1024xf32, #tpu.memory_space<vmem>>, vector<1x992xf32>
    %13 = vector.broadcast %12 : vector<1x992xf32> to vector<16x992xf32>
    %14 = arith.mulf %11, %13 : vector<16x992xf32>
    %c16_9 = arith.constant 16 : index
    %c32_10 = arith.constant 32 : index
    %15 = vector.load %arg20[%c16_9, %c32_10] : memref<144x1024xf32, #tpu.memory_space<vmem>>, vector<16x992xf32>
    tpu.vector_store %arg20[%c16_9, %c32_10], %14 {strides = array<i32>} : memref<144x1024xf32, #tpu.memory_space<vmem>>, vector<16x992xf32>,
    %cst_11 = arith.constant 0.000000e+00 : f32
    %16 = vector.broadcast %cst_11 : f32 to vector<16x31xf32>
    %c32_12 = arith.constant 32 : index
    %c0_13 = arith.constant 0 : index
    %17 = vector.load %arg20[%c32_12, %c0_13] : memref<144x1024xf32, #tpu.memory_space<vmem>>, vector<16x31xf32>
    tpu.vector_store %arg20[%c32_12, %c0_13], %16 {strides = array<i32>} : memref<144x1024xf32, #tpu.memory_space<vmem>>, vector<16x31xf32>,
    %18 = vector.extract_strided_slice %1 {offsets = [0, 0], sizes = [16, 993], strides = [1, 1]} : vector<16x1024xf32> to vector<16x993xf32>
    %c2 = arith.constant 2 : index
    %c31 = arith.constant 31 : index
    %19 = vector.load %arg2[%c2, %c31] : memref<9x1024xf32, #tpu.memory_space<vmem>>, vector<1x993xf32>
    %20 = vector.broadcast %19 : vector<1x993xf32> to vector<16x993xf32>
    %21 = arith.mulf %18, %20 : vector<16x993xf32>
    %c32_14 = arith.constant 32 : index
    %c31_15 = arith.constant 31 : index
    %22 = vector.load %arg20[%c32_14, %c31_15] : memref<144x1024xf32, #tpu.memory_space<vmem>>, vector<16x993xf32>
    tpu.vector_store %arg20[%c32_14, %c31_15], %21 {strides = array<i32>} : memref<144x1024xf32, #tpu.memory_space<vmem>>, vector<16x993xf32>,
    %cst_16 = arith.constant 0.000000e+00 : f32
    %23 = vector.broadcast %cst_16 : f32 to vector<16x1xf32>
    %c48 = arith.constant 48 : index
    %c0_17 = arith.constant 0 : index
    %24 = vector.load %arg20[%c48, %c0_17] : memref<144x1024xf32, #tpu.memory_space<vmem>>, vector<16x1xf32>
    tpu.vector_store %arg20[%c48, %c0_17], %23 {strides = array<i32>} : memref<144x1024xf32, #tpu.memory_space<vmem>>, vector<16x1xf32>,
    %25 = vector.extract_strided_slice %1 {offsets = [0, 0], sizes = [16, 1023], strides = [1, 1]} : vector<16x1024xf32> to vector<16x1023xf32>
    %c3 = arith.constant 3 : index
    %c1_18 = arith.constant 1 : index
    %26 = vector.load %arg2[%c3, %c1_18] : memref<9x1024xf32, #tpu.memory_space<vmem>>, vector<1x1023xf32>
    %27 = vector.broadcast %26 : vector<1x1023xf32> to vector<16x1023xf32>
    %28 = arith.mulf %25, %27 : vector<16x1023xf32>
    %c48_19 = arith.constant 48 : index
    %c1_20 = arith.constant 1 : index
    %29 = vector.load %arg20[%c48_19, %c1_20] : memref<144x1024xf32, #tpu.memory_space<vmem>>, vector<16x1023xf32>
    tpu.vector_store %arg20[%c48_19, %c1_20], %28 {strides = array<i32>} : memref<144x1024xf32, #tpu.memory_space<vmem>>, vector<16x1023xf32>,
    %c4 = arith.constant 4 : index
    %c0_21 = arith.constant 0 : index
    %30 = vector.load %arg2[%c4, %c0_21] : memref<9x1024xf32, #tpu.memory_space<vmem>>, vector<1x1024xf32>
    %31 = vector.broadcast %30 : vector<1x1024xf32> to vector<16x1024xf32>
    %32 = arith.mulf %1, %31 : vector<16x1024xf32>
    %c64 = arith.constant 64 : index
    %c0_22 = arith.constant 0 : index
    %33 = vector.load %arg20[%c64, %c0_22] : memref<144x1024xf32, #tpu.memory_space<vmem>>, vector<16x1024xf32>
    tpu.vector_store %arg20[%c64, %c0_22], %32 {strides = array<i32>} : memref<144x1024xf32, #tpu.memory_space<vmem>>, vector<16x1024xf32>,
    %cst_23 = arith.constant 0.000000e+00 : f32
    %34 = vector.broadcast %cst_23 : f32 to vector<16x1xf32>
    %c80 = arith.constant 80 : index
    %c1023 = arith.constant 1023 : index
    %35 = vector.load %arg20[%c80, %c1023] : memref<144x1024xf32, #tpu.memory_space<vmem>>, vector<16x1xf32>
    tpu.vector_store %arg20[%c80, %c1023], %34 {strides = array<i32>} : memref<144x1024xf32, #tpu.memory_space<vmem>>, vector<16x1xf32>,
    %36 = vector.extract_strided_slice %1 {offsets = [0, 1], sizes = [16, 1023], strides = [1, 1]} : vector<16x1024xf32> to vector<16x1023xf32>
    %c5 = arith.constant 5 : index
    %c0_24 = arith.constant 0 : index
    %37 = vector.load %arg2[%c5, %c0_24] : memref<9x1024xf32, #tpu.memory_space<vmem>>, vector<1x1023xf32>
    %38 = vector.broadcast %37 : vector<1x1023xf32> to vector<16x1023xf32>
    %39 = arith.mulf %36, %38 : vector<16x1023xf32>
    %c80_25 = arith.constant 80 : index
    %c0_26 = arith.constant 0 : index
    %40 = vector.load %arg20[%c80_25, %c0_26] : memref<144x1024xf32, #tpu.memory_space<vmem>>, vector<16x1023xf32>
    tpu.vector_store %arg20[%c80_25, %c0_26], %39 {strides = array<i32>} : memref<144x1024xf32, #tpu.memory_space<vmem>>, vector<16x1023xf32>,
    %cst_27 = arith.constant 0.000000e+00 : f32
    %41 = vector.broadcast %cst_27 : f32 to vector<16x31xf32>
    %c96 = arith.constant 96 : index
    %c993 = arith.constant 993 : index
    %42 = vector.load %arg20[%c96, %c993] : memref<144x1024xf32, #tpu.memory_space<vmem>>, vector<16x31xf32>
    tpu.vector_store %arg20[%c96, %c993], %41 {strides = array<i32>} : memref<144x1024xf32, #tpu.memory_space<vmem>>, vector<16x31xf32>,
    %43 = vector.extract_strided_slice %1 {offsets = [0, 31], sizes = [16, 993], strides = [1, 1]} : vector<16x1024xf32> to vector<16x993xf32>
    %c6 = arith.constant 6 : index
    %c0_28 = arith.constant 0 : index
    %44 = vector.load %arg2[%c6, %c0_28] : memref<9x1024xf32, #tpu.memory_space<vmem>>, vector<1x993xf32>
    %45 = vector.broadcast %44 : vector<1x993xf32> to vector<16x993xf32>
    %46 = arith.mulf %43, %45 : vector<16x993xf32>
    %c96_29 = arith.constant 96 : index
    %c0_30 = arith.constant 0 : index
    %47 = vector.load %arg20[%c96_29, %c0_30] : memref<144x1024xf32, #tpu.memory_space<vmem>>, vector<16x993xf32>
    tpu.vector_store %arg20[%c96_29, %c0_30], %46 {strides = array<i32>} : memref<144x1024xf32, #tpu.memory_space<vmem>>, vector<16x993xf32>,
    %cst_31 = arith.constant 0.000000e+00 : f32
    %48 = vector.broadcast %cst_31 : f32 to vector<16x32xf32>
    %c112 = arith.constant 112 : index
    %c992 = arith.constant 992 : index
    %49 = vector.load %arg20[%c112, %c992] : memref<144x1024xf32, #tpu.memory_space<vmem>>, vector<16x32xf32>
    tpu.vector_store %arg20[%c112, %c992], %48 {strides = array<i32>} : memref<144x1024xf32, #tpu.memory_space<vmem>>, vector<16x32xf32>,
    %50 = vector.extract_strided_slice %1 {offsets = [0, 32], sizes = [16, 992], strides = [1, 1]} : vector<16x1024xf32> to vector<16x992xf32>
    %c7 = arith.constant 7 : index
    %c0_32 = arith.constant 0 : index
    %51 = vector.load %arg2[%c7, %c0_32] : memref<9x1024xf32, #tpu.memory_space<vmem>>, vector<1x992xf32>
    %52 = vector.broadcast %51 : vector<1x992xf32> to vector<16x992xf32>
    %53 = arith.mulf %50, %52 : vector<16x992xf32>
    %c112_33 = arith.constant 112 : index
    %c0_34 = arith.constant 0 : index
    %54 = vector.load %arg20[%c112_33, %c0_34] : memref<144x1024xf32, #tpu.memory_space<vmem>>, vector<16x992xf32>
    tpu.vector_store %arg20[%c112_33, %c0_34], %53 {strides = array<i32>} : memref<144x1024xf32, #tpu.memory_space<vmem>>, vector<16x992xf32>,
    %cst_35 = arith.constant 0.000000e+00 : f32
    %55 = vector.broadcast %cst_35 : f32 to vector<16x33xf32>
    %c128 = arith.constant 128 : index
    %c991 = arith.constant 991 : index
    %56 = vector.load %arg20[%c128, %c991] : memref<144x1024xf32, #tpu.memory_space<vmem>>, vector<16x33xf32>
    tpu.vector_store %arg20[%c128, %c991], %55 {strides = array<i32>} : memref<144x1024xf32, #tpu.memory_space<vmem>>, vector<16x33xf32>,
    %57 = vector.extract_strided_slice %1 {offsets = [0, 33], sizes = [16, 991], strides = [1, 1]} : vector<16x1024xf32> to vector<16x991xf32>
    %c8 = arith.constant 8 : index
    %c0_36 = arith.constant 0 : index
    %58 = vector.load %arg2[%c8, %c0_36] : memref<9x1024xf32, #tpu.memory_space<vmem>>, vector<1x991xf32>
    %59 = vector.broadcast %58 : vector<1x991xf32> to vector<16x991xf32>
    %60 = arith.mulf %57, %59 : vector<16x991xf32>
    %c128_37 = arith.constant 128 : index
    %c0_38 = arith.constant 0 : index
    %61 = vector.load %arg20[%c128_37, %c0_38] : memref<144x1024xf32, #tpu.memory_space<vmem>>, vector<16x991xf32>
    tpu.vector_store %arg20[%c128_37, %c0_38], %60 {strides = array<i32>} : memref<144x1024xf32, #tpu.memory_space<vmem>>, vector<16x991xf32>,
    %c0_39 = arith.constant 0 : index
    %c0_40 = arith.constant 0 : index
    %62 = vector.load %arg5[%c0_39, %c0_40] : memref<48x144xf32, #tpu.memory_space<vmem>>, vector<48x144xf32>
    %c0_41 = arith.constant 0 : index
    %c0_42 = arith.constant 0 : index
    %63 = vector.load %arg20[%c0_41, %c0_42] : memref<144x1024xf32, #tpu.memory_space<vmem>>, vector<144x1024xf32>
    %cst_43 = arith.constant dense<0.000000e+00> : vector<48x1024xf32>
    %64 = tpu.matmul %62, %63, %cst_43 {dimension_numbers = #tpu.dot_dimension_numbers<[1], [0], [0], [1], [0, 0, 1, 1], [], []>} : vector<48x144xf32>, vector<144x1024xf32>, vector<48x1024xf32> -> vector<48x1024xf32>
    %65 = vector.extract_strided_slice %64 {offsets = [0, 0], sizes = [16, 1024], strides = [1, 1]} : vector<48x1024xf32> to vector<16x1024xf32>
    %66 = vector.extract_strided_slice %64 {offsets = [16, 0], sizes = [16, 1024], strides = [1, 1]} : vector<48x1024xf32> to vector<16x1024xf32>
    %67 = vector.extract_strided_slice %64 {offsets = [32, 0], sizes = [16, 1024], strides = [1, 1]} : vector<48x1024xf32> to vector<16x1024xf32>
    %68 = arith.mulf %65, %65 : vector<16x1024xf32>
    %cst_44 = arith.constant dense<0.000000e+00> : vector<16xf32>
    %69 = vector.multi_reduction <add>, %68, %cst_44 [1] : vector<16x1024xf32> to vector<16xf32>
    %70 = vector.shape_cast %69 : vector<16xf32> to vector<16x1xf32>
    %71 = math.sqrt %70 : vector<16x1xf32>
    %cst_45 = arith.constant 9.99999996E-13 : f32
    %72 = vector.broadcast %cst_45 : f32 to vector<16x1xf32>
    %73 = arith.maximumf %71, %72 : vector<16x1xf32>
    %74 = vector.broadcast %73 : vector<16x1xf32> to vector<16x1024xf32>
    %75 = arith.divf %65, %74 : vector<16x1024xf32>
    %76 = arith.mulf %66, %66 : vector<16x1024xf32>
    %cst_46 = arith.constant dense<0.000000e+00> : vector<16xf32>
    %77 = vector.multi_reduction <add>, %76, %cst_46 [1] : vector<16x1024xf32> to vector<16xf32>
    %78 = vector.shape_cast %77 : vector<16xf32> to vector<16x1xf32>
    %79 = math.sqrt %78 : vector<16x1xf32>
    %cst_47 = arith.constant 9.99999996E-13 : f32
    %80 = vector.broadcast %cst_47 : f32 to vector<16x1xf32>
    %81 = arith.maximumf %79, %80 : vector<16x1xf32>
    %82 = vector.broadcast %81 : vector<16x1xf32> to vector<16x1024xf32>
    %83 = arith.divf %66, %82 : vector<16x1024xf32>
    %cst_48 = arith.constant dense<0.000000e+00> : vector<16x16xf32>
    %84 = tpu.matmul %75, %83, %cst_48 {dimension_numbers = #tpu.dot_dimension_numbers<[1], [1], [0], [0], [0, 0, 1, 0], [], []>} : vector<16x1024xf32>, vector<16x1024xf32>, vector<16x16xf32> -> vector<16x16xf32>
    %c0_49 = arith.constant 0 : index
    %c0_50 = arith.constant 0 : index
    %85 = vector.load %arg6[%c0_49, %c0_50] : memref<16x16xf32, #tpu.memory_space<vmem>>, vector<16x16xf32>
    %86 = arith.mulf %84, %85 : vector<16x16xf32>
    %c0_51 = arith.constant 0 : index
    %c0_52 = arith.constant 0 : index
    %87 = vector.load %arg7[%c0_51, %c0_52] : memref<16x16xf32, #tpu.memory_space<vmem>>, vector<16x16xf32>
    %88 = arith.addf %86, %87 : vector<16x16xf32>
    %cst_53 = arith.constant dense<0xFF800000> : vector<16xf32>
    %89 = vector.multi_reduction <maximumf>, %88, %cst_53 [1] : vector<16x16xf32> to vector<16xf32>
    %90 = vector.shape_cast %89 : vector<16xf32> to vector<16x1xf32>
    %91 = vector.broadcast %90 : vector<16x1xf32> to vector<16x16xf32>
    %92 = arith.subf %88, %91 : vector<16x16xf32>
    %93 = math.exp %92 : vector<16x16xf32>
    %cst_54 = arith.constant dense<0.000000e+00> : vector<16xf32>
    %94 = vector.multi_reduction <add>, %93, %cst_54 [1] : vector<16x16xf32> to vector<16xf32>
    %95 = vector.shape_cast %94 : vector<16xf32> to vector<16x1xf32>
    %96 = vector.broadcast %95 : vector<16x1xf32> to vector<16x16xf32>
    %97 = arith.divf %93, %96 : vector<16x16xf32>
    %cst_55 = arith.constant dense<0.000000e+00> : vector<16x1024xf32>
    %98 = tpu.matmul %97, %67, %cst_55 {dimension_numbers = #tpu.dot_dimension_numbers<[1], [0], [0], [1], [0, 0, 1, 1], [], []>} : vector<16x16xf32>, vector<16x1024xf32>, vector<16x1024xf32> -> vector<16x1024xf32>
    %c0_56 = arith.constant 0 : index
    %c0_57 = arith.constant 0 : index
    %99 = vector.load %arg4[%c0_56, %c0_57] : memref<256x1024xf32, #tpu.memory_space<vmem>>, vector<256x1024xf32>
    %cst_58 = arith.constant dense<0.000000e+00> : vector<16x256xf32>
    %100 = tpu.matmul %1, %99, %cst_58 {dimension_numbers = #tpu.dot_dimension_numbers<[1], [1], [0], [0], [0, 0, 1, 0], [], []>} : vector<16x1024xf32>, vector<256x1024xf32>, vector<16x256xf32> -> vector<16x256xf32>
    %cst_59 = arith.constant 2.500000e-01 : f32
    %101 = vector.broadcast %cst_59 : f32 to vector<16x256xf32>
    %102 = arith.mulf %101, %100 : vector<16x256xf32>
    %cst_60 = arith.constant 0.000000e+00 : f32
    %103 = vector.broadcast %cst_60 : f32 to vector<16x17xf32>
    %c0_61 = arith.constant 0 : index
    %c0_62 = arith.constant 0 : index
    %104 = vector.load %arg21[%c0_61, %c0_62] : memref<144x256xf32, #tpu.memory_space<vmem>>, vector<16x17xf32>
    tpu.vector_store %arg21[%c0_61, %c0_62], %103 {strides = array<i32>} : memref<144x256xf32, #tpu.memory_space<vmem>>, vector<16x17xf32>,
    %105 = vector.extract_strided_slice %102 {offsets = [0, 0], sizes = [16, 239], strides = [1, 1]} : vector<16x256xf32> to vector<16x239xf32>
    %c0_63 = arith.constant 0 : index
    %c17 = arith.constant 17 : index
    %106 = vector.load %arg3[%c0_63, %c17] : memref<9x256xf32, #tpu.memory_space<vmem>>, vector<1x239xf32>
    %107 = vector.broadcast %106 : vector<1x239xf32> to vector<16x239xf32>
    %108 = arith.mulf %105, %107 : vector<16x239xf32>
    %c0_64 = arith.constant 0 : index
    %c17_65 = arith.constant 17 : index
    %109 = vector.load %arg21[%c0_64, %c17_65] : memref<144x256xf32, #tpu.memory_space<vmem>>, vector<16x239xf32>
    tpu.vector_store %arg21[%c0_64, %c17_65], %108 {strides = array<i32>} : memref<144x256xf32, #tpu.memory_space<vmem>>, vector<16x239xf32>,
    %cst_66 = arith.constant 0.000000e+00 : f32
    %110 = vector.broadcast %cst_66 : f32 to vector<16x16xf32>
    %c16_67 = arith.constant 16 : index
    %c0_68 = arith.constant 0 : index
    %111 = vector.load %arg21[%c16_67, %c0_68] : memref<144x256xf32, #tpu.memory_space<vmem>>, vector<16x16xf32>
    tpu.vector_store %arg21[%c16_67, %c0_68], %110 {strides = array<i32>} : memref<144x256xf32, #tpu.memory_space<vmem>>, vector<16x16xf32>,
    %112 = vector.extract_strided_slice %102 {offsets = [0, 0], sizes = [16, 240], strides = [1, 1]} : vector<16x256xf32> to vector<16x240xf32>
    %c1_69 = arith.constant 1 : index
    %c16_70 = arith.constant 16 : index
    %113 = vector.load %arg3[%c1_69, %c16_70] : memref<9x256xf32, #tpu.memory_space<vmem>>, vector<1x240xf32>
    %114 = vector.broadcast %113 : vector<1x240xf32> to vector<16x240xf32>
    %115 = arith.mulf %112, %114 : vector<16x240xf32>
    %c16_71 = arith.constant 16 : index
    %c16_72 = arith.constant 16 : index
    %116 = vector.load %arg21[%c16_71, %c16_72] : memref<144x256xf32, #tpu.memory_space<vmem>>, vector<16x240xf32>
    tpu.vector_store %arg21[%c16_71, %c16_72], %115 {strides = array<i32>} : memref<144x256xf32, #tpu.memory_space<vmem>>, vector<16x240xf32>,
    %cst_73 = arith.constant 0.000000e+00 : f32
    %117 = vector.broadcast %cst_73 : f32 to vector<16x15xf32>
    %c32_74 = arith.constant 32 : index
    %c0_75 = arith.constant 0 : index
    %118 = vector.load %arg21[%c32_74, %c0_75] : memref<144x256xf32, #tpu.memory_space<vmem>>, vector<16x15xf32>
    tpu.vector_store %arg21[%c32_74, %c0_75], %117 {strides = array<i32>} : memref<144x256xf32, #tpu.memory_space<vmem>>, vector<16x15xf32>,
    %119 = vector.extract_strided_slice %102 {offsets = [0, 0], sizes = [16, 241], strides = [1, 1]} : vector<16x256xf32> to vector<16x241xf32>
    %c2_76 = arith.constant 2 : index
    %c15 = arith.constant 15 : index
    %120 = vector.load %arg3[%c2_76, %c15] : memref<9x256xf32, #tpu.memory_space<vmem>>, vector<1x241xf32>
    %121 = vector.broadcast %120 : vector<1x241xf32> to vector<16x241xf32>
    %122 = arith.mulf %119, %121 : vector<16x241xf32>
    %c32_77 = arith.constant 32 : index
    %c15_78 = arith.constant 15 : index
    %123 = vector.load %arg21[%c32_77, %c15_78] : memref<144x256xf32, #tpu.memory_space<vmem>>, vector<16x241xf32>
    tpu.vector_store %arg21[%c32_77, %c15_78], %122 {strides = array<i32>} : memref<144x256xf32, #tpu.memory_space<vmem>>, vector<16x241xf32>,
    %cst_79 = arith.constant 0.000000e+00 : f32
    %124 = vector.broadcast %cst_79 : f32 to vector<16x1xf32>
    %c48_80 = arith.constant 48 : index
    %c0_81 = arith.constant 0 : index
    %125 = vector.load %arg21[%c48_80, %c0_81] : memref<144x256xf32, #tpu.memory_space<vmem>>, vector<16x1xf32>
    tpu.vector_store %arg21[%c48_80, %c0_81], %124 {strides = array<i32>} : memref<144x256xf32, #tpu.memory_space<vmem>>, vector<16x1xf32>,
    %126 = vector.extract_strided_slice %102 {offsets = [0, 0], sizes = [16, 255], strides = [1, 1]} : vector<16x256xf32> to vector<16x255xf32>
    %c3_82 = arith.constant 3 : index
    %c1_83 = arith.constant 1 : index
    %127 = vector.load %arg3[%c3_82, %c1_83] : memref<9x256xf32, #tpu.memory_space<vmem>>, vector<1x255xf32>
    %128 = vector.broadcast %127 : vector<1x255xf32> to vector<16x255xf32>
    %129 = arith.mulf %126, %128 : vector<16x255xf32>
    %c48_84 = arith.constant 48 : index
    %c1_85 = arith.constant 1 : index
    %130 = vector.load %arg21[%c48_84, %c1_85] : memref<144x256xf32, #tpu.memory_space<vmem>>, vector<16x255xf32>
    tpu.vector_store %arg21[%c48_84, %c1_85], %129 {strides = array<i32>} : memref<144x256xf32, #tpu.memory_space<vmem>>, vector<16x255xf32>,
    %c4_86 = arith.constant 4 : index
    %c0_87 = arith.constant 0 : index
    %131 = vector.load %arg3[%c4_86, %c0_87] : memref<9x256xf32, #tpu.memory_space<vmem>>, vector<1x256xf32>
    %132 = vector.broadcast %131 : vector<1x256xf32> to vector<16x256xf32>
    %133 = arith.mulf %102, %132 : vector<16x256xf32>
    %c64_88 = arith.constant 64 : index
    %c0_89 = arith.constant 0 : index
    %134 = vector.load %arg21[%c64_88, %c0_89] : memref<144x256xf32, #tpu.memory_space<vmem>>, vector<16x256xf32>
    tpu.vector_store %arg21[%c64_88, %c0_89], %133 {strides = array<i32>} : memref<144x256xf32, #tpu.memory_space<vmem>>, vector<16x256xf32>,
    %cst_90 = arith.constant 0.000000e+00 : f32
    %135 = vector.broadcast %cst_90 : f32 to vector<16x1xf32>
    %c80_91 = arith.constant 80 : index
    %c255 = arith.constant 255 : index
    %136 = vector.load %arg21[%c80_91, %c255] : memref<144x256xf32, #tpu.memory_space<vmem>>, vector<16x1xf32>
    tpu.vector_store %arg21[%c80_91, %c255], %135 {strides = array<i32>} : memref<144x256xf32, #tpu.memory_space<vmem>>, vector<16x1xf32>,
    %137 = vector.extract_strided_slice %102 {offsets = [0, 1], sizes = [16, 255], strides = [1, 1]} : vector<16x256xf32> to vector<16x255xf32>
    %c5_92 = arith.constant 5 : index
    %c0_93 = arith.constant 0 : index
    %138 = vector.load %arg3[%c5_92, %c0_93] : memref<9x256xf32, #tpu.memory_space<vmem>>, vector<1x255xf32>
    %139 = vector.broadcast %138 : vector<1x255xf32> to vector<16x255xf32>
    %140 = arith.mulf %137, %139 : vector<16x255xf32>
    %c80_94 = arith.constant 80 : index
    %c0_95 = arith.constant 0 : index
    %141 = vector.load %arg21[%c80_94, %c0_95] : memref<144x256xf32, #tpu.memory_space<vmem>>, vector<16x255xf32>
    tpu.vector_store %arg21[%c80_94, %c0_95], %140 {strides = array<i32>} : memref<144x256xf32, #tpu.memory_space<vmem>>, vector<16x255xf32>,
    %cst_96 = arith.constant 0.000000e+00 : f32
    %142 = vector.broadcast %cst_96 : f32 to vector<16x15xf32>
    %c96_97 = arith.constant 96 : index
    %c241 = arith.constant 241 : index
    %143 = vector.load %arg21[%c96_97, %c241] : memref<144x256xf32, #tpu.memory_space<vmem>>, vector<16x15xf32>
    tpu.vector_store %arg21[%c96_97, %c241], %142 {strides = array<i32>} : memref<144x256xf32, #tpu.memory_space<vmem>>, vector<16x15xf32>,
    %144 = vector.extract_strided_slice %102 {offsets = [0, 15], sizes = [16, 241], strides = [1, 1]} : vector<16x256xf32> to vector<16x241xf32>
    %c6_98 = arith.constant 6 : index
    %c0_99 = arith.constant 0 : index
    %145 = vector.load %arg3[%c6_98, %c0_99] : memref<9x256xf32, #tpu.memory_space<vmem>>, vector<1x241xf32>
    %146 = vector.broadcast %145 : vector<1x241xf32> to vector<16x241xf32>
    %147 = arith.mulf %144, %146 : vector<16x241xf32>
    %c96_100 = arith.constant 96 : index
    %c0_101 = arith.constant 0 : index
    %148 = vector.load %arg21[%c96_100, %c0_101] : memref<144x256xf32, #tpu.memory_space<vmem>>, vector<16x241xf32>
    tpu.vector_store %arg21[%c96_100, %c0_101], %147 {strides = array<i32>} : memref<144x256xf32, #tpu.memory_space<vmem>>, vector<16x241xf32>,
    %cst_102 = arith.constant 0.000000e+00 : f32
    %149 = vector.broadcast %cst_102 : f32 to vector<16x16xf32>
    %c112_103 = arith.constant 112 : index
    %c240 = arith.constant 240 : index
    %150 = vector.load %arg21[%c112_103, %c240] : memref<144x256xf32, #tpu.memory_space<vmem>>, vector<16x16xf32>
    tpu.vector_store %arg21[%c112_103, %c240], %149 {strides = array<i32>} : memref<144x256xf32, #tpu.memory_space<vmem>>, vector<16x16xf32>,
    %151 = vector.extract_strided_slice %102 {offsets = [0, 16], sizes = [16, 240], strides = [1, 1]} : vector<16x256xf32> to vector<16x240xf32>
    %c7_104 = arith.constant 7 : index
    %c0_105 = arith.constant 0 : index
    %152 = vector.load %arg3[%c7_104, %c0_105] : memref<9x256xf32, #tpu.memory_space<vmem>>, vector<1x240xf32>
    %153 = vector.broadcast %152 : vector<1x240xf32> to vector<16x240xf32>
    %154 = arith.mulf %151, %153 : vector<16x240xf32>
    %c112_106 = arith.constant 112 : index
    %c0_107 = arith.constant 0 : index
    %155 = vector.load %arg21[%c112_106, %c0_107] : memref<144x256xf32, #tpu.memory_space<vmem>>, vector<16x240xf32>
    tpu.vector_store %arg21[%c112_106, %c0_107], %154 {strides = array<i32>} : memref<144x256xf32, #tpu.memory_space<vmem>>, vector<16x240xf32>,
    %cst_108 = arith.constant 0.000000e+00 : f32
    %156 = vector.broadcast %cst_108 : f32 to vector<16x17xf32>
    %c128_109 = arith.constant 128 : index
    %c239 = arith.constant 239 : index
    %157 = vector.load %arg21[%c128_109, %c239] : memref<144x256xf32, #tpu.memory_space<vmem>>, vector<16x17xf32>
    tpu.vector_store %arg21[%c128_109, %c239], %156 {strides = array<i32>} : memref<144x256xf32, #tpu.memory_space<vmem>>, vector<16x17xf32>,
    %158 = vector.extract_strided_slice %102 {offsets = [0, 17], sizes = [16, 239], strides = [1, 1]} : vector<16x256xf32> to vector<16x239xf32>
    %c8_110 = arith.constant 8 : index
    %c0_111 = arith.constant 0 : index
    %159 = vector.load %arg3[%c8_110, %c0_111] : memref<9x256xf32, #tpu.memory_space<vmem>>, vector<1x239xf32>
    %160 = vector.broadcast %159 : vector<1x239xf32> to vector<16x239xf32>
    %161 = arith.mulf %158, %160 : vector<16x239xf32>
    %c128_112 = arith.constant 128 : index
    %c0_113 = arith.constant 0 : index
    %162 = vector.load %arg21[%c128_112, %c0_113] : memref<144x256xf32, #tpu.memory_space<vmem>>, vector<16x239xf32>
    tpu.vector_store %arg21[%c128_112, %c0_113], %161 {strides = array<i32>} : memref<144x256xf32, #tpu.memory_space<vmem>>, vector<16x239xf32>,
    %c0_114 = arith.constant 0 : index
    %c0_115 = arith.constant 0 : index
    %163 = vector.load %arg8[%c0_114, %c0_115] : memref<16x144xf32, #tpu.memory_space<vmem>>, vector<16x144xf32>
    %c0_116 = arith.constant 0 : index
    %c0_117 = arith.constant 0 : index
    %164 = vector.load %arg21[%c0_116, %c0_117] : memref<144x256xf32, #tpu.memory_space<vmem>>, vector<144x256xf32>
    %cst_118 = arith.constant dense<0.000000e+00> : vector<16x256xf32>
    %165 = tpu.matmul %163, %164, %cst_118 {dimension_numbers = #tpu.dot_dimension_numbers<[1], [0], [0], [1], [0, 0, 1, 1], [], []>} : vector<16x144xf32>, vector<144x256xf32>, vector<16x256xf32> -> vector<16x256xf32>
    %c0_119 = arith.constant 0 : index
    %c0_120 = arith.constant 0 : index
    %166 = vector.load %arg9[%c0_119, %c0_120] : memref<16x1xf32, #tpu.memory_space<vmem>>, vector<16x1xf32>
    %167 = vector.broadcast %166 : vector<16x1xf32> to vector<16x256xf32>
    %168 = arith.addf %165, %167 : vector<16x256xf32>
    %c0_121 = arith.constant 0 : index
    %c0_122 = arith.constant 0 : index
    %169 = vector.load %arg16[%c0_121, %c0_122] : memref<256x16xf32, #tpu.memory_space<vmem>>, vector<256x16xf32>
    %cst_123 = arith.constant dense<0.000000e+00> : vector<16x16xf32>
    %170 = tpu.matmul %168, %169, %cst_123 {dimension_numbers = #tpu.dot_dimension_numbers<[1], [0], [0], [1], [0, 0, 1, 1], [], []>} : vector<16x256xf32>, vector<256x16xf32>, vector<16x16xf32> -> vector<16x16xf32>
    %c0_124 = arith.constant 0 : index
    %c0_125 = arith.constant 0 : index
    %171 = vector.load %arg17[%c0_124, %c0_125] : memref<16x256xf32, #tpu.memory_space<vmem>>, vector<16x256xf32>
    %cst_126 = arith.constant dense<0.000000e+00> : vector<16x256xf32>
    %172 = tpu.matmul %170, %171, %cst_126 {dimension_numbers = #tpu.dot_dimension_numbers<[1], [0], [0], [1], [0, 0, 1, 1], [], []>} : vector<16x16xf32>, vector<16x256xf32>, vector<16x256xf32> -> vector<16x256xf32>
    %173 = arith.subf %168, %172 : vector<16x256xf32>
    %174 = arith.mulf %173, %173 : vector<16x256xf32>
    %c0_127 = arith.constant 0 : index
    %c0_128 = arith.constant 0 : index
    %175 = vector.load %arg16[%c0_127, %c0_128] : memref<256x16xf32, #tpu.memory_space<vmem>>, vector<256x16xf32>
    %cst_129 = arith.constant dense<0.000000e+00> : vector<16x16xf32>
    %176 = tpu.matmul %174, %175, %cst_129 {dimension_numbers = #tpu.dot_dimension_numbers<[1], [0], [0], [1], [0, 0, 1, 1], [], []>} : vector<16x256xf32>, vector<256x16xf32>, vector<16x16xf32> -> vector<16x16xf32>
    %c0_130 = arith.constant 0 : index
    %c0_131 = arith.constant 0 : index
    %177 = vector.load %arg17[%c0_130, %c0_131] : memref<16x256xf32, #tpu.memory_space<vmem>>, vector<16x256xf32>
    %cst_132 = arith.constant dense<0.000000e+00> : vector<16x256xf32>
    %178 = tpu.matmul %176, %177, %cst_132 {dimension_numbers = #tpu.dot_dimension_numbers<[1], [0], [0], [1], [0, 0, 1, 1], [], []>} : vector<16x16xf32>, vector<16x256xf32>, vector<16x256xf32> -> vector<16x256xf32>
    %cst_133 = arith.constant 9.99999974E-6 : f32
    %179 = vector.broadcast %cst_133 : f32 to vector<16x256xf32>
    %180 = arith.addf %178, %179 : vector<16x256xf32>
    %181 = math.rsqrt %180 : vector<16x256xf32>
    %182 = arith.mulf %173, %181 : vector<16x256xf32>
    %c0_134 = arith.constant 0 : index
    %c0_135 = arith.constant 0 : index
    %183 = vector.load %arg10[%c0_134, %c0_135] : memref<1x256xf32, #tpu.memory_space<vmem>>, vector<1x256xf32>
    %184 = vector.broadcast %183 : vector<1x256xf32> to vector<16x256xf32>
    %185 = arith.mulf %182, %184 : vector<16x256xf32>
    %c0_136 = arith.constant 0 : index
    %c0_137 = arith.constant 0 : index
    %186 = vector.load %arg11[%c0_136, %c0_137] : memref<1x256xf32, #tpu.memory_space<vmem>>, vector<1x256xf32>
    %187 = vector.broadcast %186 : vector<1x256xf32> to vector<16x256xf32>
    %188 = arith.addf %185, %187 : vector<16x256xf32>
    %cst_138 = arith.constant 0.000000e+00 : f32
    %189 = vector.broadcast %cst_138 : f32 to vector<16x256xf32>
    %190 = arith.maximumf %188, %189 : vector<16x256xf32>
    %cst_139 = arith.constant 0.000000e+00 : f32
    %191 = vector.broadcast %cst_139 : f32 to vector<16x17xf32>
    %c0_140 = arith.constant 0 : index
    %c0_141 = arith.constant 0 : index
    %192 = vector.load %arg21[%c0_140, %c0_141] : memref<144x256xf32, #tpu.memory_space<vmem>>, vector<16x17xf32>
    tpu.vector_store %arg21[%c0_140, %c0_141], %191 {strides = array<i32>} : memref<144x256xf32, #tpu.memory_space<vmem>>, vector<16x17xf32>,
    %193 = vector.extract_strided_slice %190 {offsets = [0, 0], sizes = [16, 239], strides = [1, 1]} : vector<16x256xf32> to vector<16x239xf32>
    %c0_142 = arith.constant 0 : index
    %c17_143 = arith.constant 17 : index
    %194 = vector.load %arg3[%c0_142, %c17_143] : memref<9x256xf32, #tpu.memory_space<vmem>>, vector<1x239xf32>
    %195 = vector.broadcast %194 : vector<1x239xf32> to vector<16x239xf32>
    %196 = arith.mulf %193, %195 : vector<16x239xf32>
    %c0_144 = arith.constant 0 : index
    %c17_145 = arith.constant 17 : index
    %197 = vector.load %arg21[%c0_144, %c17_145] : memref<144x256xf32, #tpu.memory_space<vmem>>, vector<16x239xf32>
    tpu.vector_store %arg21[%c0_144, %c17_145], %196 {strides = array<i32>} : memref<144x256xf32, #tpu.memory_space<vmem>>, vector<16x239xf32>,
    %cst_146 = arith.constant 0.000000e+00 : f32
    %198 = vector.broadcast %cst_146 : f32 to vector<16x16xf32>
    %c16_147 = arith.constant 16 : index
    %c0_148 = arith.constant 0 : index
    %199 = vector.load %arg21[%c16_147, %c0_148] : memref<144x256xf32, #tpu.memory_space<vmem>>, vector<16x16xf32>
    tpu.vector_store %arg21[%c16_147, %c0_148], %198 {strides = array<i32>} : memref<144x256xf32, #tpu.memory_space<vmem>>, vector<16x16xf32>,
    %200 = vector.extract_strided_slice %190 {offsets = [0, 0], sizes = [16, 240], strides = [1, 1]} : vector<16x256xf32> to vector<16x240xf32>
    %c1_149 = arith.constant 1 : index
    %c16_150 = arith.constant 16 : index
    %201 = vector.load %arg3[%c1_149, %c16_150] : memref<9x256xf32, #tpu.memory_space<vmem>>, vector<1x240xf32>
    %202 = vector.broadcast %201 : vector<1x240xf32> to vector<16x240xf32>
    %203 = arith.mulf %200, %202 : vector<16x240xf32>
    %c16_151 = arith.constant 16 : index
    %c16_152 = arith.constant 16 : index
    %204 = vector.load %arg21[%c16_151, %c16_152] : memref<144x256xf32, #tpu.memory_space<vmem>>, vector<16x240xf32>
    tpu.vector_store %arg21[%c16_151, %c16_152], %203 {strides = array<i32>} : memref<144x256xf32, #tpu.memory_space<vmem>>, vector<16x240xf32>,
    %cst_153 = arith.constant 0.000000e+00 : f32
    %205 = vector.broadcast %cst_153 : f32 to vector<16x15xf32>
    %c32_154 = arith.constant 32 : index
    %c0_155 = arith.constant 0 : index
    %206 = vector.load %arg21[%c32_154, %c0_155] : memref<144x256xf32, #tpu.memory_space<vmem>>, vector<16x15xf32>
    tpu.vector_store %arg21[%c32_154, %c0_155], %205 {strides = array<i32>} : memref<144x256xf32, #tpu.memory_space<vmem>>, vector<16x15xf32>,
    %207 = vector.extract_strided_slice %190 {offsets = [0, 0], sizes = [16, 241], strides = [1, 1]} : vector<16x256xf32> to vector<16x241xf32>
    %c2_156 = arith.constant 2 : index
    %c15_157 = arith.constant 15 : index
    %208 = vector.load %arg3[%c2_156, %c15_157] : memref<9x256xf32, #tpu.memory_space<vmem>>, vector<1x241xf32>
    %209 = vector.broadcast %208 : vector<1x241xf32> to vector<16x241xf32>
    %210 = arith.mulf %207, %209 : vector<16x241xf32>
    %c32_158 = arith.constant 32 : index
    %c15_159 = arith.constant 15 : index
    %211 = vector.load %arg21[%c32_158, %c15_159] : memref<144x256xf32, #tpu.memory_space<vmem>>, vector<16x241xf32>
    tpu.vector_store %arg21[%c32_158, %c15_159], %210 {strides = array<i32>} : memref<144x256xf32, #tpu.memory_space<vmem>>, vector<16x241xf32>,
    %cst_160 = arith.constant 0.000000e+00 : f32
    %212 = vector.broadcast %cst_160 : f32 to vector<16x1xf32>
    %c48_161 = arith.constant 48 : index
    %c0_162 = arith.constant 0 : index
    %213 = vector.load %arg21[%c48_161, %c0_162] : memref<144x256xf32, #tpu.memory_space<vmem>>, vector<16x1xf32>
    tpu.vector_store %arg21[%c48_161, %c0_162], %212 {strides = array<i32>} : memref<144x256xf32, #tpu.memory_space<vmem>>, vector<16x1xf32>,
    %214 = vector.extract_strided_slice %190 {offsets = [0, 0], sizes = [16, 255], strides = [1, 1]} : vector<16x256xf32> to vector<16x255xf32>
    %c3_163 = arith.constant 3 : index
    %c1_164 = arith.constant 1 : index
    %215 = vector.load %arg3[%c3_163, %c1_164] : memref<9x256xf32, #tpu.memory_space<vmem>>, vector<1x255xf32>
    %216 = vector.broadcast %215 : vector<1x255xf32> to vector<16x255xf32>
    %217 = arith.mulf %214, %216 : vector<16x255xf32>
    %c48_165 = arith.constant 48 : index
    %c1_166 = arith.constant 1 : index
    %218 = vector.load %arg21[%c48_165, %c1_166] : memref<144x256xf32, #tpu.memory_space<vmem>>, vector<16x255xf32>
    tpu.vector_store %arg21[%c48_165, %c1_166], %217 {strides = array<i32>} : memref<144x256xf32, #tpu.memory_space<vmem>>, vector<16x255xf32>,
    %c4_167 = arith.constant 4 : index
    %c0_168 = arith.constant 0 : index
    %219 = vector.load %arg3[%c4_167, %c0_168] : memref<9x256xf32, #tpu.memory_space<vmem>>, vector<1x256xf32>
    %220 = vector.broadcast %219 : vector<1x256xf32> to vector<16x256xf32>
    %221 = arith.mulf %190, %220 : vector<16x256xf32>
    %c64_169 = arith.constant 64 : index
    %c0_170 = arith.constant 0 : index
    %222 = vector.load %arg21[%c64_169, %c0_170] : memref<144x256xf32, #tpu.memory_space<vmem>>, vector<16x256xf32>
    tpu.vector_store %arg21[%c64_169, %c0_170], %221 {strides = array<i32>} : memref<144x256xf32, #tpu.memory_space<vmem>>, vector<16x256xf32>,
    %cst_171 = arith.constant 0.000000e+00 : f32
    %223 = vector.broadcast %cst_171 : f32 to vector<16x1xf32>
    %c80_172 = arith.constant 80 : index
    %c255_173 = arith.constant 255 : index
    %224 = vector.load %arg21[%c80_172, %c255_173] : memref<144x256xf32, #tpu.memory_space<vmem>>, vector<16x1xf32>
    tpu.vector_store %arg21[%c80_172, %c255_173], %223 {strides = array<i32>} : memref<144x256xf32, #tpu.memory_space<vmem>>, vector<16x1xf32>,
    %225 = vector.extract_strided_slice %190 {offsets = [0, 1], sizes = [16, 255], strides = [1, 1]} : vector<16x256xf32> to vector<16x255xf32>
    %c5_174 = arith.constant 5 : index
    %c0_175 = arith.constant 0 : index
    %226 = vector.load %arg3[%c5_174, %c0_175] : memref<9x256xf32, #tpu.memory_space<vmem>>, vector<1x255xf32>
    %227 = vector.broadcast %226 : vector<1x255xf32> to vector<16x255xf32>
    %228 = arith.mulf %225, %227 : vector<16x255xf32>
    %c80_176 = arith.constant 80 : index
    %c0_177 = arith.constant 0 : index
    %229 = vector.load %arg21[%c80_176, %c0_177] : memref<144x256xf32, #tpu.memory_space<vmem>>, vector<16x255xf32>
    tpu.vector_store %arg21[%c80_176, %c0_177], %228 {strides = array<i32>} : memref<144x256xf32, #tpu.memory_space<vmem>>, vector<16x255xf32>,
    %cst_178 = arith.constant 0.000000e+00 : f32
    %230 = vector.broadcast %cst_178 : f32 to vector<16x15xf32>
    %c96_179 = arith.constant 96 : index
    %c241_180 = arith.constant 241 : index
    %231 = vector.load %arg21[%c96_179, %c241_180] : memref<144x256xf32, #tpu.memory_space<vmem>>, vector<16x15xf32>
    tpu.vector_store %arg21[%c96_179, %c241_180], %230 {strides = array<i32>} : memref<144x256xf32, #tpu.memory_space<vmem>>, vector<16x15xf32>,
    %232 = vector.extract_strided_slice %190 {offsets = [0, 15], sizes = [16, 241], strides = [1, 1]} : vector<16x256xf32> to vector<16x241xf32>
    %c6_181 = arith.constant 6 : index
    %c0_182 = arith.constant 0 : index
    %233 = vector.load %arg3[%c6_181, %c0_182] : memref<9x256xf32, #tpu.memory_space<vmem>>, vector<1x241xf32>
    %234 = vector.broadcast %233 : vector<1x241xf32> to vector<16x241xf32>
    %235 = arith.mulf %232, %234 : vector<16x241xf32>
    %c96_183 = arith.constant 96 : index
    %c0_184 = arith.constant 0 : index
    %236 = vector.load %arg21[%c96_183, %c0_184] : memref<144x256xf32, #tpu.memory_space<vmem>>, vector<16x241xf32>
    tpu.vector_store %arg21[%c96_183, %c0_184], %235 {strides = array<i32>} : memref<144x256xf32, #tpu.memory_space<vmem>>, vector<16x241xf32>,
    %cst_185 = arith.constant 0.000000e+00 : f32
    %237 = vector.broadcast %cst_185 : f32 to vector<16x16xf32>
    %c112_186 = arith.constant 112 : index
    %c240_187 = arith.constant 240 : index
    %238 = vector.load %arg21[%c112_186, %c240_187] : memref<144x256xf32, #tpu.memory_space<vmem>>, vector<16x16xf32>
    tpu.vector_store %arg21[%c112_186, %c240_187], %237 {strides = array<i32>} : memref<144x256xf32, #tpu.memory_space<vmem>>, vector<16x16xf32>,
    %239 = vector.extract_strided_slice %190 {offsets = [0, 16], sizes = [16, 240], strides = [1, 1]} : vector<16x256xf32> to vector<16x240xf32>
    %c7_188 = arith.constant 7 : index
    %c0_189 = arith.constant 0 : index
    %240 = vector.load %arg3[%c7_188, %c0_189] : memref<9x256xf32, #tpu.memory_space<vmem>>, vector<1x240xf32>
    %241 = vector.broadcast %240 : vector<1x240xf32> to vector<16x240xf32>
    %242 = arith.mulf %239, %241 : vector<16x240xf32>
    %c112_190 = arith.constant 112 : index
    %c0_191 = arith.constant 0 : index
    %243 = vector.load %arg21[%c112_190, %c0_191] : memref<144x256xf32, #tpu.memory_space<vmem>>, vector<16x240xf32>
    tpu.vector_store %arg21[%c112_190, %c0_191], %242 {strides = array<i32>} : memref<144x256xf32, #tpu.memory_space<vmem>>, vector<16x240xf32>,
    %cst_192 = arith.constant 0.000000e+00 : f32
    %244 = vector.broadcast %cst_192 : f32 to vector<16x17xf32>
    %c128_193 = arith.constant 128 : index
    %c239_194 = arith.constant 239 : index
    %245 = vector.load %arg21[%c128_193, %c239_194] : memref<144x256xf32, #tpu.memory_space<vmem>>, vector<16x17xf32>
    tpu.vector_store %arg21[%c128_193, %c239_194], %244 {strides = array<i32>} : memref<144x256xf32, #tpu.memory_space<vmem>>, vector<16x17xf32>,
    %246 = vector.extract_strided_slice %190 {offsets = [0, 17], sizes = [16, 239], strides = [1, 1]} : vector<16x256xf32> to vector<16x239xf32>
    %c8_195 = arith.constant 8 : index
    %c0_196 = arith.constant 0 : index
    %247 = vector.load %arg3[%c8_195, %c0_196] : memref<9x256xf32, #tpu.memory_space<vmem>>, vector<1x239xf32>
    %248 = vector.broadcast %247 : vector<1x239xf32> to vector<16x239xf32>
    %249 = arith.mulf %246, %248 : vector<16x239xf32>
    %c128_197 = arith.constant 128 : index
    %c0_198 = arith.constant 0 : index
    %250 = vector.load %arg21[%c128_197, %c0_198] : memref<144x256xf32, #tpu.memory_space<vmem>>, vector<16x239xf32>
    tpu.vector_store %arg21[%c128_197, %c0_198], %249 {strides = array<i32>} : memref<144x256xf32, #tpu.memory_space<vmem>>, vector<16x239xf32>,
    %c0_199 = arith.constant 0 : index
    %c0_200 = arith.constant 0 : index
    %251 = vector.load %arg12[%c0_199, %c0_200] : memref<16x144xf32, #tpu.memory_space<vmem>>, vector<16x144xf32>
    %c0_201 = arith.constant 0 : index
    %c0_202 = arith.constant 0 : index
    %252 = vector.load %arg21[%c0_201, %c0_202] : memref<144x256xf32, #tpu.memory_space<vmem>>, vector<144x256xf32>
    %cst_203 = arith.constant dense<0.000000e+00> : vector<16x256xf32>
    %253 = tpu.matmul %251, %252, %cst_203 {dimension_numbers = #tpu.dot_dimension_numbers<[1], [0], [0], [1], [0, 0, 1, 1], [], []>} : vector<16x144xf32>, vector<144x256xf32>, vector<16x256xf32> -> vector<16x256xf32>
    %c0_204 = arith.constant 0 : index
    %c0_205 = arith.constant 0 : index
    %254 = vector.load %arg13[%c0_204, %c0_205] : memref<16x1xf32, #tpu.memory_space<vmem>>, vector<16x1xf32>
    %255 = vector.broadcast %254 : vector<16x1xf32> to vector<16x256xf32>
    %256 = arith.addf %253, %255 : vector<16x256xf32>
    %c0_206 = arith.constant 0 : index
    %c0_207 = arith.constant 0 : index
    %257 = vector.load %arg16[%c0_206, %c0_207] : memref<256x16xf32, #tpu.memory_space<vmem>>, vector<256x16xf32>
    %cst_208 = arith.constant dense<0.000000e+00> : vector<16x16xf32>
    %258 = tpu.matmul %256, %257, %cst_208 {dimension_numbers = #tpu.dot_dimension_numbers<[1], [0], [0], [1], [0, 0, 1, 1], [], []>} : vector<16x256xf32>, vector<256x16xf32>, vector<16x16xf32> -> vector<16x16xf32>
    %c0_209 = arith.constant 0 : index
    %c0_210 = arith.constant 0 : index
    %259 = vector.load %arg17[%c0_209, %c0_210] : memref<16x256xf32, #tpu.memory_space<vmem>>, vector<16x256xf32>
    %cst_211 = arith.constant dense<0.000000e+00> : vector<16x256xf32>
    %260 = tpu.matmul %258, %259, %cst_211 {dimension_numbers = #tpu.dot_dimension_numbers<[1], [0], [0], [1], [0, 0, 1, 1], [], []>} : vector<16x16xf32>, vector<16x256xf32>, vector<16x256xf32> -> vector<16x256xf32>
    %261 = arith.subf %256, %260 : vector<16x256xf32>
    %262 = arith.mulf %261, %261 : vector<16x256xf32>
    %c0_212 = arith.constant 0 : index
    %c0_213 = arith.constant 0 : index
    %263 = vector.load %arg16[%c0_212, %c0_213] : memref<256x16xf32, #tpu.memory_space<vmem>>, vector<256x16xf32>
    %cst_214 = arith.constant dense<0.000000e+00> : vector<16x16xf32>
    %264 = tpu.matmul %262, %263, %cst_214 {dimension_numbers = #tpu.dot_dimension_numbers<[1], [0], [0], [1], [0, 0, 1, 1], [], []>} : vector<16x256xf32>, vector<256x16xf32>, vector<16x16xf32> -> vector<16x16xf32>
    %c0_215 = arith.constant 0 : index
    %c0_216 = arith.constant 0 : index
    %265 = vector.load %arg17[%c0_215, %c0_216] : memref<16x256xf32, #tpu.memory_space<vmem>>, vector<16x256xf32>
    %cst_217 = arith.constant dense<0.000000e+00> : vector<16x256xf32>
    %266 = tpu.matmul %264, %265, %cst_217 {dimension_numbers = #tpu.dot_dimension_numbers<[1], [0], [0], [1], [0, 0, 1, 1], [], []>} : vector<16x16xf32>, vector<16x256xf32>, vector<16x256xf32> -> vector<16x256xf32>
    %cst_218 = arith.constant 9.99999974E-6 : f32
    %267 = vector.broadcast %cst_218 : f32 to vector<16x256xf32>
    %268 = arith.addf %266, %267 : vector<16x256xf32>
    %269 = math.rsqrt %268 : vector<16x256xf32>
    %270 = arith.mulf %261, %269 : vector<16x256xf32>
    %c0_219 = arith.constant 0 : index
    %c0_220 = arith.constant 0 : index
    %271 = vector.load %arg14[%c0_219, %c0_220] : memref<1x256xf32, #tpu.memory_space<vmem>>, vector<1x256xf32>
    %272 = vector.broadcast %271 : vector<1x256xf32> to vector<16x256xf32>
    %273 = arith.mulf %270, %272 : vector<16x256xf32>
    %c0_221 = arith.constant 0 : index
    %c0_222 = arith.constant 0 : index
    %274 = vector.load %arg15[%c0_221, %c0_222] : memref<1x256xf32, #tpu.memory_space<vmem>>, vector<1x256xf32>
    %275 = vector.broadcast %274 : vector<1x256xf32> to vector<16x256xf32>
    %276 = arith.addf %273, %275 : vector<16x256xf32>
    %cst_223 = arith.constant 0.000000e+00 : f32
    %277 = vector.broadcast %cst_223 : f32 to vector<16x256xf32>
    %278 = arith.maximumf %276, %277 : vector<16x256xf32>
    %c0_224 = arith.constant 0 : index
    %c0_225 = arith.constant 0 : index
    %279 = vector.load %arg4[%c0_224, %c0_225] : memref<256x1024xf32, #tpu.memory_space<vmem>>, vector<256x1024xf32>
    %cst_226 = arith.constant dense<0.000000e+00> : vector<16x1024xf32>
    %280 = tpu.matmul %278, %279, %cst_226 {dimension_numbers = #tpu.dot_dimension_numbers<[1], [0], [0], [1], [0, 0, 1, 1], [], []>} : vector<16x256xf32>, vector<256x1024xf32>, vector<16x1024xf32> -> vector<16x1024xf32>
    %c0_227 = arith.constant 0 : index
    %c0_228 = arith.constant 0 : index
    %281 = vector.load %arg18[%c0_227, %c0_228] : memref<16x16xf32, #tpu.memory_space<vmem>>, vector<16x16xf32>
    %282 = arith.mulf %98, %280 : vector<16x1024xf32>
    %cst_229 = arith.constant dense<0.000000e+00> : vector<16x1024xf32>
    %283 = tpu.matmul %281, %282, %cst_229 {dimension_numbers = #tpu.dot_dimension_numbers<[1], [0], [0], [1], [0, 0, 1, 1], [], []>} : vector<16x16xf32>, vector<16x1024xf32>, vector<16x1024xf32> -> vector<16x1024xf32>
    %c0_230 = arith.constant 0 : index
    %c0_231 = arith.constant 0 : index
    %c0_232 = arith.constant 0 : index
    %284 = vector.load %arg19[%c0_230, %c0_231, %c0_232] : memref<1x16x1024xf32, #tpu.memory_space<vmem>>, vector<1x16x1024xf32>
    %285 = vector.shape_cast %284 : vector<1x16x1024xf32> to vector<16x1024xf32>
    %286 = vector.shape_cast %283 : vector<16x1024xf32> to vector<1x16x1024xf32>
    tpu.vector_store %arg19[%c0_230, %c0_231, %c0_232], %286 {strides = array<i32>} : memref<1x16x1024xf32, #tpu.memory_space<vmem>>, vector<1x16x1024xf32>,
    return
  }
  func.func @transform_0(%arg0: i32) -> (i32, i32, i32) {
    %c0_i32 = arith.constant 0 : i32
    %c0_i32_0 = arith.constant 0 : i32
    %c0_i32_1 = arith.constant 0 : i32
    return %arg0, %c0_i32, %c0_i32_0 : i32, i32, i32
  }
  func.func @transform_1(%arg0: i32) -> (i32, i32) {
    %c0_i32 = arith.constant 0 : i32
    %c0_i32_0 = arith.constant 0 : i32
    %c0_i32_1 = arith.constant 0 : i32
    return %c0_i32, %c0_i32_0 : i32, i32
  }
  func.func @transform_2(%arg0: i32) -> (i32, i32) {
    %c0_i32 = arith.constant 0 : i32
    %c0_i32_0 = arith.constant 0 : i32
    %c0_i32_1 = arith.constant 0 : i32
    return %c0_i32, %c0_i32_0 : i32, i32
  }
  func.func @transform_3(%arg0: i32) -> (i32, i32) {
    %c0_i32 = arith.constant 0 : i32
    %c0_i32_0 = arith.constant 0 : i32
    %c0_i32_1 = arith.constant 0 : i32
    return %c0_i32, %c0_i32_0 : i32, i32
  }
  func.func @transform_4(%arg0: i32) -> (i32, i32) {
    %c0_i32 = arith.constant 0 : i32
    %c0_i32_0 = arith.constant 0 : i32
    %c0_i32_1 = arith.constant 0 : i32
    return %c0_i32, %c0_i32_0 : i32, i32
  }
  func.func @transform_5(%arg0: i32) -> (i32, i32) {
    %c0_i32 = arith.constant 0 : i32
    %c0_i32_0 = arith.constant 0 : i32
    %c0_i32_1 = arith.constant 0 : i32
    return %c0_i32, %c0_i32_0 : i32, i32
  }
  func.func @transform_6(%arg0: i32) -> (i32, i32) {
    %c0_i32 = arith.constant 0 : i32
    %c0_i32_0 = arith.constant 0 : i32
    %c0_i32_1 = arith.constant 0 : i32
    return %c0_i32, %c0_i32_0 : i32, i32
  }
  func.func @transform_7(%arg0: i32) -> (i32, i32) {
    %c0_i32 = arith.constant 0 : i32
    %c0_i32_0 = arith.constant 0 : i32
    %c0_i32_1 = arith.constant 0 : i32
    return %c0_i32, %c0_i32_0 : i32, i32
  }
  func.func @transform_8(%arg0: i32) -> (i32, i32) {
    %c0_i32 = arith.constant 0 : i32
    %c0_i32_0 = arith.constant 0 : i32
    %c0_i32_1 = arith.constant 0 : i32
    return %c0_i32, %c0_i32_0 : i32, i32
  }
  func.func @transform_9(%arg0: i32) -> (i32, i32) {
    %c0_i32 = arith.constant 0 : i32
    %c0_i32_0 = arith.constant 0 : i32
    %c0_i32_1 = arith.constant 0 : i32
    return %c0_i32, %c0_i32_0 : i32, i32
  }
  func.func @transform_10(%arg0: i32) -> (i32, i32) {
    %c0_i32 = arith.constant 0 : i32
    %c0_i32_0 = arith.constant 0 : i32
    %c0_i32_1 = arith.constant 0 : i32
    return %c0_i32, %c0_i32_0 : i32, i32
  }
  func.func @transform_11(%arg0: i32) -> (i32, i32) {
    %c0_i32 = arith.constant 0 : i32
    %c0_i32_0 = arith.constant 0 : i32
    %c0_i32_1 = arith.constant 0 : i32
    return %c0_i32, %c0_i32_0 : i32, i32
  }
  func.func @transform_12(%arg0: i32) -> (i32, i32) {
    %c0_i32 = arith.constant 0 : i32
    %c0_i32_0 = arith.constant 0 : i32
    %c0_i32_1 = arith.constant 0 : i32
    return %c0_i32, %c0_i32_0 : i32, i32
  }
  func.func @transform_13(%arg0: i32) -> (i32, i32) {
    %c0_i32 = arith.constant 0 : i32
    %c0_i32_0 = arith.constant 0 : i32
    %c0_i32_1 = arith.constant 0 : i32
    return %c0_i32, %c0_i32_0 : i32, i32
  }
  func.func @transform_14(%arg0: i32) -> (i32, i32) {
    %c0_i32 = arith.constant 0 : i32
    %c0_i32_0 = arith.constant 0 : i32
    %c0_i32_1 = arith.constant 0 : i32
    return %c0_i32, %c0_i32_0 : i32, i32
  }
  func.func @transform_15(%arg0: i32) -> (i32, i32) {
    %c0_i32 = arith.constant 0 : i32
    %c0_i32_0 = arith.constant 0 : i32
    %c0_i32_1 = arith.constant 0 : i32
    return %c0_i32, %c0_i32_0 : i32, i32
  }
  func.func @transform_16(%arg0: i32) -> (i32, i32) {
    %c0_i32 = arith.constant 0 : i32
    %c0_i32_0 = arith.constant 0 : i32
    %c0_i32_1 = arith.constant 0 : i32
    return %c0_i32, %c0_i32_0 : i32, i32
  }
  func.func @transform_17(%arg0: i32) -> (i32, i32) {
    %c0_i32 = arith.constant 0 : i32
    %c0_i32_0 = arith.constant 0 : i32
    %c0_i32_1 = arith.constant 0 : i32
    return %c0_i32, %c0_i32_0 : i32, i32
  }
  func.func @transform_18(%arg0: i32) -> (i32, i32, i32) {
    %c0_i32 = arith.constant 0 : i32
    %c0_i32_0 = arith.constant 0 : i32
    %c0_i32_1 = arith.constant 0 : i32
    return %arg0, %c0_i32, %c0_i32_0 : i32, i32, i32
  }
}

</mosaic_0001>

<llo_original>
// kernel: tile.28
$region0: #{tile.28}
  #allocation0 [shape = 's32[1]{0}', space=sflag, size = 0x4, scoped, tag = 'scoped memory for tile.28']
  %s0 = inlined_call_operand.vmem [shape: f32[16], index: 0, kind: input, shape index: {}]
  %s1 = inlined_call_operand.vmem [shape: f32[16,16], index: 1, kind: output, shape index: {}]
  // Predicated region
  $region2: #{tile.28} parent=0 // pred_check
    _
  $region3: #{tile.28} parent=0 // pred_check_branch
    %3 = sbr.rel (0) target = $region5
  $region4: #{tile.28} parent=0 // pred_region
    _
  $region5: #{tile.28} parent=0 // pred_fallthru
    _
  %v4 = vld [vmem:[%s0] ss:$0 sm:$0xff]
  %5 = vst [vmem:[%s1] sm:$0xff] %v4
  %s6 = scalar_lea.vmem %s1, 8
  %7 = vst [vmem:[%s6] sm:$0xff] %v4

// kernel: mul.11
$region0: #{mul.11}
  %s0 = inlined_call_operand.vmem [shape: f32[48,3,3], index: 0, kind: input, shape index: {}]
  %s1 = inlined_call_operand.vmem [shape: f32[48,9], index: 1, kind: output, shape index: {}]
  $region1: #{mul.11} parent=0
    #allocation0 [shape = 'u8[12288]{0}', space=vmem, size = 0x3000, scoped, tag = 'scoped mem for input reshape']
    %s3 = sshllo.u32 0, 4
    %s4 = smul.addr 4, 2
    %s5 = scalar_lea.vmem %s0, %s4
    %v6 = vld [vmem:[%s5] sm:%s3]
    %s7 = scalar_lea.vmem [#allocation0], 16
    %8 = vst [vmem:[%s7] sm:%s3] %v6
    %s9 = scalar_lea.vmem %s0, 4
    %v10 = vld [vmem:[%s9] sm:%s3]
    %s11 = scalar_lea.vmem [#allocation0], 8
    %12 = vst [vmem:[%s11] sm:%s3] %v10
    %v13 = vld [vmem:[%s0] sm:%s3]
    %14 = vst [vmem:[#allocation0] sm:%s3] %v13
    %v15 = vld [vmem:[#allocation0] sm:$0x7]
    %vm16 = vcmask 392192
    %17 = vst.msk [vmem:[%s1] sm:$0x7] %vm16, %v15
    %s18 = scalar_lea.vmem [#allocation0], 8
    %v19 = vld [vmem:[%s18] sm:$0x7]
    %vm20 = vcmask 392192
    %s21 = scalar_lea.vmem %s1, 3
    %22 = vst.msk [vmem:[%s21] sm:$0x7] %vm20, %v19
    %s23 = scalar_lea.vmem [#allocation0], 16
    %v24 = vld [vmem:[%s23] sm:$0x7]
    %vm25 = vcmask 392192
    %s26 = scalar_lea.vmem %s1, 6
    %27 = vst.msk [vmem:[%s26] sm:$0x7] %vm25, %v24

// kernel: tile.29
$region0: #{tile.29}
  %s0 = inlined_call_operand.vmem [shape: f32[16,16], index: 0, kind: input, shape index: {}]
  %s1 = inlined_call_operand.vmem [shape: f32[1,256], index: 1, kind: output, shape index: {}]
  $region1: #{tile.29} parent=0
    #allocation0 [shape = 'u8[8192]{0}', space=vmem, size = 0x2000, scoped, tag = 'scoped mem for output reshape']
    %s2 = smov 3
    %v3 = vld [vmem:[%s0] ss:$8 sm:%s2]
    %vm4 = vcmask 130048
    %5 = vst.msk [vmem:[#allocation0] ss:$8 sm:$0x3] %vm4, %v3
    %s6 = scalar_lea.vmem %s0, 7
    %s7 = smov 3
    %v8 = vld [vmem:[%s6] ss:$8 sm:%s7]
    %9 = vrot.lane.b32.xlu0 %v8, 112
    %v10 = vpop.permute.xlu0 %9
    %vm11 = vcmask 1048448
    %12 = vst.msk [vmem:[#allocation0] ss:$8 sm:$0x3] %vm11, %v10
    %s13 = scalar_lea.vmem %s0, 6
    %s14 = smov 3
    %v15 = vld [vmem:[%s13] ss:$8 sm:%s14]
    %16 = vrot.lane.b32.xlu0 %v15, 96
    %v17 = vpop.permute.xlu0 %16
    %vm18 = vcmask 917248
    %19 = vst.msk [vmem:[#allocation0] ss:$8 sm:$0x3] %vm18, %v17
    %s20 = scalar_lea.vmem %s0, 5
    %s21 = smov 3
    %v22 = vld [vmem:[%s20] ss:$8 sm:%s21]
    %23 = vrot.lane.b32.xlu0 %v22, 80
    %v24 = vpop.permute.xlu0 %23
    %vm25 = vcmask 786048
    %26 = vst.msk [vmem:[#allocation0] ss:$8 sm:$0x3] %vm25, %v24
    %s27 = scalar_lea.vmem %s0, 4
    %s28 = smov 3
    %v29 = vld [vmem:[%s27] ss:$8 sm:%s28]
    %30 = vrot.lane.b32.xlu0 %v29, 64
    %v31 = vpop.permute.xlu0 %30
    %vm32 = vcmask 654848
    %33 = vst.msk [vmem:[#allocation0] ss:$8 sm:$0x3] %vm32, %v31
    %s34 = scalar_lea.vmem %s0, 3
    %s35 = smov 3
    %v36 = vld [vmem:[%s34] ss:$8 sm:%s35]
    %37 = vrot.lane.b32.xlu0 %v36, 48
    %v38 = vpop.permute.xlu0 %37
    %vm39 = vcmask 523648
    %40 = vst.msk [vmem:[#allocation0] ss:$8 sm:$0x3] %vm39, %v38
    %s41 = scalar_lea.vmem %s0, 2
    %s42 = smov 3
    %v43 = vld [vmem:[%s41] ss:$8 sm:%s42]
    %44 = vrot.lane.b32.xlu0 %v43, 32
    %v45 = vpop.permute.xlu0 %44
    %vm46 = vcmask 392448
    %47 = vst.msk [vmem:[#allocation0] ss:$8 sm:$0x3] %vm46, %v45
    %s48 = scalar_lea.vmem %s0, 1
    %s49 = smov 3
    %v50 = vld [vmem:[%s48] ss:$8 sm:%s49]
    %51 = vrot.lane.b32.xlu0 %v50, 16
    %v52 = vpop.permute.xlu0 %51
    %vm53 = vcmask 261248
    %54 = vst.msk [vmem:[#allocation0] ss:$8 sm:$0x3] %vm53, %v52
    %s56 = sshllo.u32 0, 1
    %v58 = vld [vmem:[#allocation0] sm:%s56]
    %s59 = sshllo.u32 0, 1
    %60 = vst [vmem:[%s1] sm:%s59] %v58
    %s61 = scalar_lea.vmem [#allocation0], 8
    %v62 = vld [vmem:[%s61] sm:%s56]
    %s63 = sshllo.u32 0, 1
    %s64 = scalar_lea.vmem %s1, 1
    %65 = vst [vmem:[%s64] sm:%s63] %v62

// kernel: attention_forward.1
$region0: #{attention_forward.1}
  #allocation0 [shape = 'u32[]', space=smem, size = 0x4, offset = 0x4, fixed_abs, tag = 'smem constant byte address 0x4 - core index']
  #allocation1 [shape = 'u32[144,128]{1,0:T(1,128)}', space=vmem, size = 0x12000, scoped, tag = 'internal scratch']
  #allocation2 [shape = 'f32[144,1024]{1,0:T(8,128)}', space=vmem, size = 0x90000, scoped, tag = 'scratch operand']
  #allocation3 [shape = 'f32[144,256]{1,0:T(8,128)}', space=vmem, size = 0x24000, scoped, tag = 'scratch operand']
  %s0 = inlined_call_operand.vmem [shape: f32[2,16,1024], index: 0, kind: input, shape index: {}]
  %s1 = inlined_call_operand.vmem [shape: f32[9,1024], index: 1, kind: input, shape index: {}]
  %s2 = inlined_call_operand.vmem [shape: f32[9,256], index: 2, kind: input, shape index: {}]
  %s3 = inlined_call_operand.vmem [shape: f32[256,1024], index: 3, kind: input, shape index: {}]
  %s4 = inlined_call_operand.vmem [shape: f32[48,144], index: 4, kind: input, shape index: {}]
  %s5 = inlined_call_operand.vmem [shape: f32[16,16], index: 5, kind: input, shape index: {}]
  %s6 = inlined_call_operand.vmem [shape: f32[16,16], index: 6, kind: input, shape index: {}]
  %s7 = inlined_call_operand.vmem [shape: f32[16,144], index: 7, kind: input, shape index: {}]
  %s8 = inlined_call_operand.vmem [shape: f32[16,1], index: 8, kind: input, shape index: {}]
  %s9 = inlined_call_operand.vmem [shape: f32[1,256], index: 9, kind: input, shape index: {}]
  %s10 = inlined_call_operand.vmem [shape: f32[1,256], index: 10, kind: input, shape index: {}]
  %s11 = inlined_call_operand.vmem [shape: f32[16,144], index: 11, kind: input, shape index: {}]
  %s12 = inlined_call_operand.vmem [shape: f32[16,1], index: 12, kind: input, shape index: {}]
  %s13 = inlined_call_operand.vmem [shape: f32[1,256], index: 13, kind: input, shape index: {}]
  %s14 = inlined_call_operand.vmem [shape: f32[1,256], index: 14, kind: input, shape index: {}]
  %s15 = inlined_call_operand.vmem [shape: f32[256,16], index: 15, kind: input, shape index: {}]
  %s16 = inlined_call_operand.vmem [shape: f32[16,256], index: 16, kind: input, shape index: {}]
  %s17 = inlined_call_operand.vmem [shape: f32[16,16], index: 17, kind: input, shape index: {}]
  %s18 = inlined_call_operand.vmem [shape: f32[2,16,1024], index: 18, kind: output, shape index: {}]
  %s19 = sld [smem:[#allocation0]]
  $region105: #{attention_forward.1} parent=0
    _
  %s21 = ssub.s32 1, %s19
  %s22 = scalar_select 0, %s21, %s19
  loop: start=0, step=1, limit=4
  $region2: #{attention_forward.1} parent=0 // loop_pre_header
    _
  $region3: #{attention_forward.1} parent=0 // loop_header
    %s24 = sphi 0, %s28
    %p25 = scmp.ge.s32.totalorder %s24, 4
    %s34 = sphi 0, %s36
    %s37 = sphi 0, %s34
    %s38 = sphi 0, %s37
    %s54 = sphi 0, %s38
    %s58 = sphi 0, %s58
    %s60 = sphi 0, %s58
    %s61 = sphi 0, %s60
    %s75 = sphi 0, %s61
    %s79 = sphi 0, %s79
    %s81 = sphi 0, %s79
    %s82 = sphi 0, %s81
    %s96 = sphi 0, %s82
    %s100 = sphi 0, %s100
    %s102 = sphi 0, %s100
    %s103 = sphi 0, %s102
    %s117 = sphi 0, %s103
    %s121 = sphi 0, %s121
    %s123 = sphi 0, %s121
    %s124 = sphi 0, %s123
    %s138 = sphi 0, %s124
    %s142 = sphi 0, %s142
    %s144 = sphi 0, %s142
    %s145 = sphi 0, %s144
    %s159 = sphi 0, %s145
    %s163 = sphi 0, %s163
    %s165 = sphi 0, %s163
    %s166 = sphi 0, %s165
    %s180 = sphi 0, %s166
    %s184 = sphi 0, %s184
    %s186 = sphi 0, %s184
    %s187 = sphi 0, %s186
    %s201 = sphi 0, %s187
    %s205 = sphi 0, %s205
    %s207 = sphi 0, %s205
    %s208 = sphi 0, %s207
    %s222 = sphi 0, %s208
    %s226 = sphi 0, %s226
    %s228 = sphi 0, %s226
    %s229 = sphi 0, %s228
    %s243 = sphi 0, %s229
    %s247 = sphi 0, %s247
    %s249 = sphi 0, %s247
    %s250 = sphi 0, %s249
    %s264 = sphi 0, %s250
    %s268 = sphi 0, %s268
    %s270 = sphi 0, %s268
    %s271 = sphi 0, %s270
    %s285 = sphi 0, %s271
    %s289 = sphi 0, %s289
    %s291 = sphi 0, %s289
    %s292 = sphi 0, %s291
    %s306 = sphi 0, %s292
    %s310 = sphi 0, %s310
    %s312 = sphi 0, %s310
    %s313 = sphi 0, %s312
    %s327 = sphi 0, %s313
    %s331 = sphi 0, %s331
    %s333 = sphi 0, %s331
    %s334 = sphi 0, %s333
    %s348 = sphi 0, %s334
    %s352 = sphi 0, %s352
    %s354 = sphi 0, %s352
    %s355 = sphi 0, %s354
    %s369 = sphi 0, %s355
    %s373 = sphi 0, %s373
    %s375 = sphi 0, %s373
    %s376 = sphi 0, %s375
    %s390 = sphi 0, %s376
    %s394 = sphi 0, %s394
    %s396 = sphi 0, %s394
    %s397 = sphi 0, %s396
    %s411 = sphi 0, %s397
    %s417 = sphi 0, %s419
    %s420 = sphi 0, %s417
    %s421 = sphi 0, %s420
    %s437 = sphi 0, %s421
  $region4: #{attention_forward.1} parent=0 // loop_header_branch
    %27 = sbr.rel (%p25) target = $region8
  $region5: #{attention_forward.1} parent=0 // loop_body
    %s29 = ssub.s32 %s24, 1
    %s30 = ssub.s32 %s24, 2
    %s31 = sadd.s32 %s24, 1
    %s32 = ssub.s32 %s24, %s31
    %p33 = scmp.eq.s32.totalorder %s32, 0
    %s35 = sadd.s32 %s34, 1
    %s36 = scalar_select %p33, %s34, %s35
    %p39 = pneg %p33
    %p40 = scmp.eq.s32.totalorder %s24, 1
    %p41 = por %p39, %p40
    %p42 = scmp.ne.s32.totalorder %s34, %s37
    %p43 = scmp.eq.s32.totalorder %s24, 0
    %p44 = por %p42, %p43
    %p45 = scmp.ne.s32.totalorder %s34, %s37
    %p46 = scmp.eq.s32.totalorder %s29, 1
    %p47 = por %p45, %p46
    %p48 = scmp.ne.s32.totalorder %s37, %s38
    %p49 = scmp.eq.s32.totalorder %s29, 0
    %p50 = por %p48, %p49
    %p51 = scmp.ne.s32.totalorder %s37, %s38
    %p52 = scmp.eq.s32.totalorder %s30, 1
    %p53 = por %p51, %p52
    %p55 = scmp.ne.s32.totalorder %s38, %s54
    %p56 = scmp.eq.s32.totalorder %s30, 0
    %p57 = por %p55, %p56
    %s59 = sadd.s32 %s58, 1
    %p62 = scmp.eq.s32.totalorder %s24, 1
    %p63 = scmp.ne.s32.totalorder %s58, %s60
    %p64 = scmp.eq.s32.totalorder %s24, 0
    %p65 = por %p63, %p64
    %p66 = scmp.ne.s32.totalorder %s58, %s60
    %p67 = scmp.eq.s32.totalorder %s29, 1
    %p68 = por %p66, %p67
    %p69 = scmp.ne.s32.totalorder %s60, %s61
    %p70 = scmp.eq.s32.totalorder %s29, 0
    %p71 = por %p69, %p70
    %p72 = scmp.ne.s32.totalorder %s60, %s61
    %p73 = scmp.eq.s32.totalorder %s30, 1
    %p74 = por %p72, %p73
    %p76 = scmp.ne.s32.totalorder %s61, %s75
    %p77 = scmp.eq.s32.totalorder %s30, 0
    %p78 = por %p76, %p77
    %s80 = sadd.s32 %s79, 1
    %p83 = scmp.eq.s32.totalorder %s24, 1
    %p84 = scmp.ne.s32.totalorder %s79, %s81
    %p85 = scmp.eq.s32.totalorder %s24, 0
    %p86 = por %p84, %p85
    %p87 = scmp.ne.s32.totalorder %s79, %s81
    %p88 = scmp.eq.s32.totalorder %s29, 1
    %p89 = por %p87, %p88
    %p90 = scmp.ne.s32.totalorder %s81, %s82
    %p91 = scmp.eq.s32.totalorder %s29, 0
    %p92 = por %p90, %p91
    %p93 = scmp.ne.s32.totalorder %s81, %s82
    %p94 = scmp.eq.s32.totalorder %s30, 1
    %p95 = por %p93, %p94
    %p97 = scmp.ne.s32.totalorder %s82, %s96
    %p98 = scmp.eq.s32.totalorder %s30, 0
    %p99 = por %p97, %p98
    %s101 = sadd.s32 %s100, 1
    %p104 = scmp.eq.s32.totalorder %s24, 1
    %p105 = scmp.ne.s32.totalorder %s100, %s102
    %p106 = scmp.eq.s32.totalorder %s24, 0
    %p107 = por %p105, %p106
    %p108 = scmp.ne.s32.totalorder %s100, %s102
    %p109 = scmp.eq.s32.totalorder %s29, 1
    %p110 = por %p108, %p109
    %p111 = scmp.ne.s32.totalorder %s102, %s103
    %p112 = scmp.eq.s32.totalorder %s29, 0
    %p113 = por %p111, %p112
    %p114 = scmp.ne.s32.totalorder %s102, %s103
    %p115 = scmp.eq.s32.totalorder %s30, 1
    %p116 = por %p114, %p115
    %p118 = scmp.ne.s32.totalorder %s103, %s117
    %p119 = scmp.eq.s32.totalorder %s30, 0
    %p120 = por %p118, %p119
    %s122 = sadd.s32 %s121, 1
    %p125 = scmp.eq.s32.totalorder %s24, 1
    %p126 = scmp.ne.s32.totalorder %s121, %s123
    %p127 = scmp.eq.s32.totalorder %s24, 0
    %p128 = por %p126, %p127
    %p129 = scmp.ne.s32.totalorder %s121, %s123
    %p130 = scmp.eq.s32.totalorder %s29, 1
    %p131 = por %p129, %p130
    %p132 = scmp.ne.s32.totalorder %s123, %s124
    %p133 = scmp.eq.s32.totalorder %s29, 0
    %p134 = por %p132, %p133
    %p135 = scmp.ne.s32.totalorder %s123, %s124
    %p136 = scmp.eq.s32.totalorder %s30, 1
    %p137 = por %p135, %p136
    %p139 = scmp.ne.s32.totalorder %s124, %s138
    %p140 = scmp.eq.s32.totalorder %s30, 0
    %p141 = por %p139, %p140
    %s143 = sadd.s32 %s142, 1
    %p146 = scmp.eq.s32.totalorder %s24, 1
    %p147 = scmp.ne.s32.totalorder %s142, %s144
    %p148 = scmp.eq.s32.totalorder %s24, 0
    %p149 = por %p147, %p148
    %p150 = scmp.ne.s32.totalorder %s142, %s144
    %p151 = scmp.eq.s32.totalorder %s29, 1
    %p152 = por %p150, %p151
    %p153 = scmp.ne.s32.totalorder %s144, %s145
    %p154 = scmp.eq.s32.totalorder %s29, 0
    %p155 = por %p153, %p154
    %p156 = scmp.ne.s32.totalorder %s144, %s145
    %p157 = scmp.eq.s32.totalorder %s30, 1
    %p158 = por %p156, %p157
    %p160 = scmp.ne.s32.totalorder %s145, %s159
    %p161 = scmp.eq.s32.totalorder %s30, 0
    %p162 = por %p160, %p161
    %s164 = sadd.s32 %s163, 1
    %p167 = scmp.eq.s32.totalorder %s24, 1
    %p168 = scmp.ne.s32.totalorder %s163, %s165
    %p169 = scmp.eq.s32.totalorder %s24, 0
    %p170 = por %p168, %p169
    %p171 = scmp.ne.s32.totalorder %s163, %s165
    %p172 = scmp.eq.s32.totalorder %s29, 1
    %p173 = por %p171, %p172
    %p174 = scmp.ne.s32.totalorder %s165, %s166
    %p175 = scmp.eq.s32.totalorder %s29, 0
    %p176 = por %p174, %p175
    %p177 = scmp.ne.s32.totalorder %s165, %s166
    %p178 = scmp.eq.s32.totalorder %s30, 1
    %p179 = por %p177, %p178
    %p181 = scmp.ne.s32.totalorder %s166, %s180
    %p182 = scmp.eq.s32.totalorder %s30, 0
    %p183 = por %p181, %p182
    %s185 = sadd.s32 %s184, 1
    %p188 = scmp.eq.s32.totalorder %s24, 1
    %p189 = scmp.ne.s32.totalorder %s184, %s186
    %p190 = scmp.eq.s32.totalorder %s24, 0
    %p191 = por %p189, %p190
    %p192 = scmp.ne.s32.totalorder %s184, %s186
    %p193 = scmp.eq.s32.totalorder %s29, 1
    %p194 = por %p192, %p193
    %p195 = scmp.ne.s32.totalorder %s186, %s187
    %p196 = scmp.eq.s32.totalorder %s29, 0
    %p197 = por %p195, %p196
    %p198 = scmp.ne.s32.totalorder %s186, %s187
    %p199 = scmp.eq.s32.totalorder %s30, 1
    %p200 = por %p198, %p199
    %p202 = scmp.ne.s32.totalorder %s187, %s201
    %p203 = scmp.eq.s32.totalorder %s30, 0
    %p204 = por %p202, %p203
    %s206 = sadd.s32 %s205, 1
    %p209 = scmp.eq.s32.totalorder %s24, 1
    %p210 = scmp.ne.s32.totalorder %s205, %s207
    %p211 = scmp.eq.s32.totalorder %s24, 0
    %p212 = por %p210, %p211
    %p213 = scmp.ne.s32.totalorder %s205, %s207
    %p214 = scmp.eq.s32.totalorder %s29, 1
    %p215 = por %p213, %p214
    %p216 = scmp.ne.s32.totalorder %s207, %s208
    %p217 = scmp.eq.s32.totalorder %s29, 0
    %p218 = por %p216, %p217
    %p219 = scmp.ne.s32.totalorder %s207, %s208
    %p220 = scmp.eq.s32.totalorder %s30, 1
    %p221 = por %p219, %p220
    %p223 = scmp.ne.s32.totalorder %s208, %s222
    %p224 = scmp.eq.s32.totalorder %s30, 0
    %p225 = por %p223, %p224
    %s227 = sadd.s32 %s226, 1
    %p230 = scmp.eq.s32.totalorder %s24, 1
    %p231 = scmp.ne.s32.totalorder %s226, %s228
    %p232 = scmp.eq.s32.totalorder %s24, 0
    %p233 = por %p231, %p232
    %p234 = scmp.ne.s32.totalorder %s226, %s228
    %p235 = scmp.eq.s32.totalorder %s29, 1
    %p236 = por %p234, %p235
    %p237 = scmp.ne.s32.totalorder %s228, %s229
    %p238 = scmp.eq.s32.totalorder %s29, 0
    %p239 = por %p237, %p238
    %p240 = scmp.ne.s32.totalorder %s228, %s229
    %p241 = scmp.eq.s32.totalorder %s30, 1
    %p242 = por %p240, %p241
    %p244 = scmp.ne.s32.totalorder %s229, %s243
    %p245 = scmp.eq.s32.totalorder %s30, 0
    %p246 = por %p244, %p245
    %s248 = sadd.s32 %s247, 1
    %p251 = scmp.eq.s32.totalorder %s24, 1
    %p252 = scmp.ne.s32.totalorder %s247, %s249
    %p253 = scmp.eq.s32.totalorder %s24, 0
    %p254 = por %p252, %p253
    %p255 = scmp.ne.s32.totalorder %s247, %s249
    %p256 = scmp.eq.s32.totalorder %s29, 1
    %p257 = por %p255, %p256
    %p258 = scmp.ne.s32.totalorder %s249, %s250
    %p259 = scmp.eq.s32.totalorder %s29, 0
    %p260 = por %p258, %p259
    %p261 = scmp.ne.s32.totalorder %s249, %s250
    %p262 = scmp.eq.s32.totalorder %s30, 1
    %p263 = por %p261, %p262
    %p265 = scmp.ne.s32.totalorder %s250, %s264
    %p266 = scmp.eq.s32.totalorder %s30, 0
    %p267 = por %p265, %p266
    %s269 = sadd.s32 %s268, 1
    %p272 = scmp.eq.s32.totalorder %s24, 1
    %p273 = scmp.ne.s32.totalorder %s268, %s270
    %p274 = scmp.eq.s32.totalorder %s24, 0
    %p275 = por %p273, %p274
    %p276 = scmp.ne.s32.totalorder %s268, %s270
    %p277 = scmp.eq.s32.totalorder %s29, 1
    %p278 = por %p276, %p277
    %p279 = scmp.ne.s32.totalorder %s270, %s271
    %p280 = scmp.eq.s32.totalorder %s29, 0
    %p281 = por %p279, %p280
    %p282 = scmp.ne.s32.totalorder %s270, %s271
    %p283 = scmp.eq.s32.totalorder %s30, 1
    %p284 = por %p282, %p283
    %p286 = scmp.ne.s32.totalorder %s271, %s285
    %p287 = scmp.eq.s32.totalorder %s30, 0
    %p288 = por %p286, %p287
    %s290 = sadd.s32 %s289, 1
    %p293 = scmp.eq.s32.totalorder %s24, 1
    %p294 = scmp.ne.s32.totalorder %s289, %s291
    %p295 = scmp.eq.s32.totalorder %s24, 0
    %p296 = por %p294, %p295
    %p297 = scmp.ne.s32.totalorder %s289, %s291
    %p298 = scmp.eq.s32.totalorder %s29, 1
    %p299 = por %p297, %p298
    %p300 = scmp.ne.s32.totalorder %s291, %s292
    %p301 = scmp.eq.s32.totalorder %s29, 0
    %p302 = por %p300, %p301
    %p303 = scmp.ne.s32.totalorder %s291, %s292
    %p304 = scmp.eq.s32.totalorder %s30, 1
    %p305 = por %p303, %p304
    %p307 = scmp.ne.s32.totalorder %s292, %s306
    %p308 = scmp.eq.s32.totalorder %s30, 0
    %p309 = por %p307, %p308
    %s311 = sadd.s32 %s310, 1
    %p314 = scmp.eq.s32.totalorder %s24, 1
    %p315 = scmp.ne.s32.totalorder %s310, %s312
    %p316 = scmp.eq.s32.totalorder %s24, 0
    %p317 = por %p315, %p316
    %p318 = scmp.ne.s32.totalorder %s310, %s312
    %p319 = scmp.eq.s32.totalorder %s29, 1
    %p320 = por %p318, %p319
    %p321 = scmp.ne.s32.totalorder %s312, %s313
    %p322 = scmp.eq.s32.totalorder %s29, 0
    %p323 = por %p321, %p322
    %p324 = scmp.ne.s32.totalorder %s312, %s313
    %p325 = scmp.eq.s32.totalorder %s30, 1
    %p326 = por %p324, %p325
    %p328 = scmp.ne.s32.totalorder %s313, %s327
    %p329 = scmp.eq.s32.totalorder %s30, 0
    %p330 = por %p328, %p329
    %s332 = sadd.s32 %s331, 1
    %p335 = scmp.eq.s32.totalorder %s24, 1
    %p336 = scmp.ne.s32.totalorder %s331, %s333
    %p337 = scmp.eq.s32.totalorder %s24, 0
    %p338 = por %p336, %p337
    %p339 = scmp.ne.s32.totalorder %s331, %s333
    %p340 = scmp.eq.s32.totalorder %s29, 1
    %p341 = por %p339, %p340
    %p342 = scmp.ne.s32.totalorder %s333, %s334
    %p343 = scmp.eq.s32.totalorder %s29, 0
    %p344 = por %p342, %p343
    %p345 = scmp.ne.s32.totalorder %s333, %s334
    %p346 = scmp.eq.s32.totalorder %s30, 1
    %p347 = por %p345, %p346
    %p349 = scmp.ne.s32.totalorder %s334, %s348
    %p350 = scmp.eq.s32.totalorder %s30, 0
    %p351 = por %p349, %p350
    %s353 = sadd.s32 %s352, 1
    %p356 = scmp.eq.s32.totalorder %s24, 1
    %p357 = scmp.ne.s32.totalorder %s352, %s354
    %p358 = scmp.eq.s32.totalorder %s24, 0
    %p359 = por %p357, %p358
    %p360 = scmp.ne.s32.totalorder %s352, %s354
    %p361 = scmp.eq.s32.totalorder %s29, 1
    %p362 = por %p360, %p361
    %p363 = scmp.ne.s32.totalorder %s354, %s355
    %p364 = scmp.eq.s32.totalorder %s29, 0
    %p365 = por %p363, %p364
    %p366 = scmp.ne.s32.totalorder %s354, %s355
    %p367 = scmp.eq.s32.totalorder %s30, 1
    %p368 = por %p366, %p367
    %p370 = scmp.ne.s32.totalorder %s355, %s369
    %p371 = scmp.eq.s32.totalorder %s30, 0
    %p372 = por %p370, %p371
    %s374 = sadd.s32 %s373, 1
    %p377 = scmp.eq.s32.totalorder %s24, 1
    %p378 = scmp.ne.s32.totalorder %s373, %s375
    %p379 = scmp.eq.s32.totalorder %s24, 0
    %p380 = por %p378, %p379
    %p381 = scmp.ne.s32.totalorder %s373, %s375
    %p382 = scmp.eq.s32.totalorder %s29, 1
    %p383 = por %p381, %p382
    %p384 = scmp.ne.s32.totalorder %s375, %s376
    %p385 = scmp.eq.s32.totalorder %s29, 0
    %p386 = por %p384, %p385
    %p387 = scmp.ne.s32.totalorder %s375, %s376
    %p388 = scmp.eq.s32.totalorder %s30, 1
    %p389 = por %p387, %p388
    %p391 = scmp.ne.s32.totalorder %s376, %s390
    %p392 = scmp.eq.s32.totalorder %s30, 0
    %p393 = por %p391, %p392
    %s395 = sadd.s32 %s394, 1
    %p398 = scmp.eq.s32.totalorder %s24, 1
    %p399 = scmp.ne.s32.totalorder %s394, %s396
    %p400 = scmp.eq.s32.totalorder %s24, 0
    %p401 = por %p399, %p400
    %p402 = scmp.ne.s32.totalorder %s394, %s396
    %p403 = scmp.eq.s32.totalorder %s29, 1
    %p404 = por %p402, %p403
    %p405 = scmp.ne.s32.totalorder %s396, %s397
    %p406 = scmp.eq.s32.totalorder %s29, 0
    %p407 = por %p405, %p406
    %p408 = scmp.ne.s32.totalorder %s396, %s397
    %p409 = scmp.eq.s32.totalorder %s30, 1
    %p410 = por %p408, %p409
    %p412 = scmp.ne.s32.totalorder %s397, %s411
    %p413 = scmp.eq.s32.totalorder %s30, 0
    %p414 = por %p412, %p413
    %s415 = ssub.s32 %s24, %s31
    %p416 = scmp.eq.s32.totalorder %s415, 0
    %s418 = sadd.s32 %s417, 1
    %s419 = scalar_select %p416, %s417, %s418
    %p422 = pneg %p416
    %p423 = scmp.eq.s32.totalorder %s24, 1
    %p424 = por %p422, %p423
    %p425 = scmp.ne.s32.totalorder %s417, %s420
    %p426 = scmp.eq.s32.totalorder %s24, 0
    %p427 = por %p425, %p426
    %p428 = scmp.ne.s32.totalorder %s417, %s420
    %p429 = scmp.eq.s32.totalorder %s29, 1
    %p430 = por %p428, %p429
    %p431 = scmp.ne.s32.totalorder %s420, %s421
    %p432 = scmp.eq.s32.totalorder %s29, 0
    %p433 = por %p431, %p432
    %p434 = scmp.ne.s32.totalorder %s420, %s421
    %p435 = scmp.eq.s32.totalorder %s30, 1
    %p436 = por %p434, %p435
    %p438 = scmp.ne.s32.totalorder %s421, %s437
    %p439 = scmp.eq.s32.totalorder %s30, 0
    %p440 = por %p438, %p439
    %p441 = scmp.le.s32.totalorder 1, %s24
    %p442 = scmp.lt.s32.totalorder %s24, 3
    %p443 = pnand %p441, %p442
    %p444 = pneg %p443
    // Predicated region
    $region9: #{attention_forward.1} parent=5 // pred_check
      _
    $region10: #{attention_forward.1} parent=5 // pred_check_branch
      %446 = sbr.rel (%p443) target = $region12
    $region11: #{attention_forward.1} parent=5 // pred_region
      %s447 = ssub.s32 %s24, 1
      // Predicated region
      $region13: #{attention_forward.1} parent=11 // pred_check
        %p448 = pneg %p71
      $region14: #{attention_forward.1} parent=11 // pred_check_branch
        %450 = sbr.rel (%p448) target = $region16
      $region15: #{attention_forward.1} parent=11 // pred_region
        _
      $region16: #{attention_forward.1} parent=11 // pred_fallthru
        _
      // Predicated region
      $region17: #{attention_forward.1} parent=11 // pred_check
        %p451 = pneg %p92
      $region18: #{attention_forward.1} parent=11 // pred_check_branch
        %453 = sbr.rel (%p451) target = $region20
      $region19: #{attention_forward.1} parent=11 // pred_region
        _
      $region20: #{attention_forward.1} parent=11 // pred_fallthru
        _
      // Predicated region
      $region21: #{attention_forward.1} parent=11 // pred_check
        %p454 = pneg %p113
      $region22: #{attention_forward.1} parent=11 // pred_check_branch
        %456 = sbr.rel (%p454) target = $region24
      $region23: #{attention_forward.1} parent=11 // pred_region
        _
      $region24: #{attention_forward.1} parent=11 // pred_fallthru
        _
      // Predicated region
      $region25: #{attention_forward.1} parent=11 // pred_check
        %p457 = pneg %p134
      $region26: #{attention_forward.1} parent=11 // pred_check_branch
        %459 = sbr.rel (%p457) target = $region28
      $region27: #{attention_forward.1} parent=11 // pred_region
        _
      $region28: #{attention_forward.1} parent=11 // pred_fallthru
        _
      // Predicated region
      $region29: #{attention_forward.1} parent=11 // pred_check
        %p460 = pneg %p155
      $region30: #{attention_forward.1} parent=11 // pred_check_branch
        %462 = sbr.rel (%p460) target = $region32
      $region31: #{attention_forward.1} parent=11 // pred_region
        _
      $region32: #{attention_forward.1} parent=11 // pred_fallthru
        _
      // Predicated region
      $region33: #{attention_forward.1} parent=11 // pred_check
        %p463 = pneg %p176
      $region34: #{attention_forward.1} parent=11 // pred_check_branch
        %465 = sbr.rel (%p463) target = $region36
      $region35: #{attention_forward.1} parent=11 // pred_region
        _
      $region36: #{attention_forward.1} parent=11 // pred_fallthru
        _
      // Predicated region
      $region37: #{attention_forward.1} parent=11 // pred_check
        %p466 = pneg %p197
      $region38: #{attention_forward.1} parent=11 // pred_check_branch
        %468 = sbr.rel (%p466) target = $region40
      $region39: #{attention_forward.1} parent=11 // pred_region
        _
      $region40: #{attention_forward.1} parent=11 // pred_fallthru
        _
      // Predicated region
      $region41: #{attention_forward.1} parent=11 // pred_check
        %p469 = pneg %p218
      $region42: #{attention_forward.1} parent=11 // pred_check_branch
        %471 = sbr.rel (%p469) target = $region44
      $region43: #{attention_forward.1} parent=11 // pred_region
        _
      $region44: #{attention_forward.1} parent=11 // pred_fallthru
        _
      // Predicated region
      $region45: #{attention_forward.1} parent=11 // pred_check
        %p472 = pneg %p239
      $region46: #{attention_forward.1} parent=11 // pred_check_branch
        %474 = sbr.rel (%p472) target = $region48
      $region47: #{attention_forward.1} parent=11 // pred_region
        _
      $region48: #{attention_forward.1} parent=11 // pred_fallthru
        _
      // Predicated region
      $region49: #{attention_forward.1} parent=11 // pred_check
        %p475 = pneg %p260
      $region50: #{attention_forward.1} parent=11 // pred_check_branch
        %477 = sbr.rel (%p475) target = $region52
      $region51: #{attention_forward.1} parent=11 // pred_region
        _
      $region52: #{attention_forward.1} parent=11 // pred_fallthru
        _
      // Predicated region
      $region53: #{attention_forward.1} parent=11 // pred_check
        %p478 = pneg %p281
      $region54: #{attention_forward.1} parent=11 // pred_check_branch
        %480 = sbr.rel (%p478) target = $region56
      $region55: #{attention_forward.1} parent=11 // pred_region
        _
      $region56: #{attention_forward.1} parent=11 // pred_fallthru
        _
      // Predicated region
      $region57: #{attention_forward.1} parent=11 // pred_check
        %p481 = pneg %p302
      $region58: #{attention_forward.1} parent=11 // pred_check_branch
        %483 = sbr.rel (%p481) target = $region60
      $region59: #{attention_forward.1} parent=11 // pred_region
        _
      $region60: #{attention_forward.1} parent=11 // pred_fallthru
        _
      // Predicated region
      $region61: #{attention_forward.1} parent=11 // pred_check
        %p484 = pneg %p323
      $region62: #{attention_forward.1} parent=11 // pred_check_branch
        %486 = sbr.rel (%p484) target = $region64
      $region63: #{attention_forward.1} parent=11 // pred_region
        _
      $region64: #{attention_forward.1} parent=11 // pred_fallthru
        _
      // Predicated region
      $region65: #{attention_forward.1} parent=11 // pred_check
        %p487 = pneg %p344
      $region66: #{attention_forward.1} parent=11 // pred_check_branch
        %489 = sbr.rel (%p487) target = $region68
      $region67: #{attention_forward.1} parent=11 // pred_region
        _
      $region68: #{attention_forward.1} parent=11 // pred_fallthru
        _
      // Predicated region
      $region69: #{attention_forward.1} parent=11 // pred_check
        %p490 = pneg %p365
      $region70: #{attention_forward.1} parent=11 // pred_check_branch
        %492 = sbr.rel (%p490) target = $region72
      $region71: #{attention_forward.1} parent=11 // pred_region
        _
      $region72: #{attention_forward.1} parent=11 // pred_fallthru
        _
      // Predicated region
      $region73: #{attention_forward.1} parent=11 // pred_check
        %p493 = pneg %p386
      $region74: #{attention_forward.1} parent=11 // pred_check_branch
        %495 = sbr.rel (%p493) target = $region76
      $region75: #{attention_forward.1} parent=11 // pred_region
        _
      $region76: #{attention_forward.1} parent=11 // pred_fallthru
        _
      // Predicated region
      $region77: #{attention_forward.1} parent=11 // pred_check
        %p496 = pneg %p407
      $region78: #{attention_forward.1} parent=11 // pred_check_branch
        %498 = sbr.rel (%p496) target = $region80
      $region79: #{attention_forward.1} parent=11 // pred_region
        _
      $region80: #{attention_forward.1} parent=11 // pred_fallthru
        _
    $region12: #{attention_forward.1} parent=5 // pred_fallthru
      _
    %p499 = scmp.lt.s32.totalorder %s24, 2
    // Predicated region
    $region81: #{attention_forward.1} parent=5 // pred_check
      %p500 = pneg %p499
    $region82: #{attention_forward.1} parent=5 // pred_check_branch
      %502 = sbr.rel (%p500) target = $region84
    $region83: #{attention_forward.1} parent=5 // pred_region
      // Predicated region
      $region85: #{attention_forward.1} parent=83 // pred_check
        %p503 = pneg %p44
      $region86: #{attention_forward.1} parent=83 // pred_check_branch
        %505 = sbr.rel (%p503) target = $region88
      $region87: #{attention_forward.1} parent=83 // pred_region
        %p506 = scmp.lt.s32.totalorder %s24, 1
        %s507 = scalar_select %p506, %s24, 1
        %s508 = smul.addr %s507, 16
        %s509 = smul.addr %s508, 8
        %s510 = scalar_lea.vmem %s0, %s509
      $region88: #{attention_forward.1} parent=83 // pred_fallthru
        _
    $region84: #{attention_forward.1} parent=5 // pred_fallthru
      _
    %p511 = scmp.le.s32.totalorder 1, %s24
    %p512 = scmp.lt.s32.totalorder %s24, 3
    %p513 = pnand %p511, %p512
    %p514 = pneg %p513
    // Predicated region
    $region89: #{attention_forward.1} parent=5 // pred_check
      _
    $region90: #{attention_forward.1} parent=5 // pred_check_branch
      %516 = sbr.rel (%p513) target = $region92
    $region91: #{attention_forward.1} parent=5 // pred_region
      %s517 = ssub.s32 %s24, 1
      %p518 = scmp.lt.s32.totalorder %s29, 1
      %s519 = scalar_select %p518, %s29, 1
      %s520 = smul.addr %s519, 16
      %s521 = smul.addr %s520, 8
      %s522 = scalar_lea.vmem %s0, %s521
      %p523 = pneg %p50
      %p524 = pneg %p47
      %p525 = pneg %p71
      %p526 = pneg %p68
      %p527 = pneg %p92
      %p528 = pneg %p89
      %p529 = pneg %p113
      %p530 = pneg %p110
      %p531 = pneg %p134
      %p532 = pneg %p131
      %p533 = pneg %p155
      %p534 = pneg %p152
      %p535 = pneg %p176
      %p536 = pneg %p173
      %p537 = pneg %p197
      %p538 = pneg %p194
      %p539 = pneg %p218
      %p540 = pneg %p215
      %p541 = pneg %p239
      %p542 = pneg %p236
      %p543 = pneg %p260
      %p544 = pneg %p257
      %p545 = pneg %p281
      %p546 = pneg %p278
      %p547 = pneg %p302
      %p548 = pneg %p299
      %p549 = pneg %p323
      %p550 = pneg %p320
      %p551 = pneg %p344
      %p552 = pneg %p341
      %p553 = pneg %p365
      %p554 = pneg %p362
      %p555 = pneg %p386
      %p556 = pneg %p383
      %p557 = pneg %p407
      %p558 = pneg %p404
      %p559 = pneg %p433
      %p560 = pneg %p430
      %p561 = scmp.lt.s32.totalorder %s29, 1
      %s562 = scalar_select %p561, %s29, 1
      %s563 = smul.addr %s562, 16
      %s564 = smul.addr %s563, 8
      %s565 = scalar_lea.vmem %s18, %s564
      %p566 = scmp.lt.s32.totalorder %s29, 1
      %s567 = scalar_select %p566, %s29, 1
      %s568 = smul.addr %s567, 16
      %s569 = smul.addr %s568, 8
      %s570 = scalar_lea.vmem %s0, %s569
      %p571 = scmp.lt.s32.totalorder %s29, 1
      %s572 = scalar_select %p571, %s29, 1
      %s573 = smul.addr %s572, 16
      %s574 = smul.addr %s573, 8
      %s575 = scalar_lea.vmem %s18, %s574
      %v576 = vld [vmem:[%s570] sm:$0xff]
      %v577 = vld [vmem:[%s570 + $0x8] sm:$0xff]
      %v578 = vld [vmem:[%s570 + $0x10] sm:$0xff]
      %v579 = vld [vmem:[%s570 + $0x18] sm:$0xff]
      %v580 = vld [vmem:[%s570 + $0x20] sm:$0xff]
      %v581 = vld [vmem:[%s570 + $0x28] sm:$0xff]
      %v582 = vld [vmem:[%s570 + $0x30] sm:$0xff]
      %v583 = vld [vmem:[%s570 + $0x38] sm:$0xff]
      %v584 = vld [vmem:[%s570 + $0x40] sm:$0xff]
      %v585 = vld [vmem:[%s570 + $0x48] sm:$0xff]
      %v586 = vld [vmem:[%s570 + $0x50] sm:$0xff]
      %v587 = vld [vmem:[%s570 + $0x58] sm:$0xff]
      %v588 = vld [vmem:[%s570 + $0x60] sm:$0xff]
      %v589 = vld [vmem:[%s570 + $0x68] sm:$0xff]
      %v590 = vld [vmem:[%s570 + $0x70] sm:$0xff]
      %v591 = vld [vmem:[%s570 + $0x78] sm:$0xff]
      %vm592 = vcmask 269312
      %593 = vst.msk [vmem:[#allocation2] sm:$0xff] %vm592, 0.0
      %594 = vst.msk [vmem:[#allocation2 + $0x40] sm:$0xff] %vm592, 0.0
      %v595 = vld [vmem:[%s1] ss:$8 sm:$0xf]
      %v596 = vld [vmem:[%s1] ss:$8 sm:$0xf0]
      %v597 = vor.u32 %v595, %v596
      %v599 = vlaneseq
      %v600 = vshrl.u32 %v599, 7
      %v601 = vsub.s32 0, %v600
      %v602 = vrot.slane %v597, %v601
      %v603 = vlaneseq
      %v604 = vshrl.u32 %v603, 7
      %v605 = vsub.s32 1, %v604
      %v606 = vrot.slane %v597, %v605
      %v607 = vlaneseq
      %v608 = vshrl.u32 %v607, 7
      %v609 = vsub.s32 2, %v608
      %v610 = vrot.slane %v597, %v609
      %v611 = vlaneseq
      %v612 = vshrl.u32 %v611, 7
      %v613 = vsub.s32 3, %v612
      %v614 = vrot.slane %v597, %v613
      %v615 = vlaneseq
      %v616 = vshrl.u32 %v615, 7
      %v617 = vsub.s32 4, %v616
      %v618 = vrot.slane %v597, %v617
      %v619 = vlaneseq
      %v620 = vshrl.u32 %v619, 7
      %v621 = vsub.s32 5, %v620
      %v622 = vrot.slane %v597, %v621
      %v623 = vlaneseq
      %v624 = vshrl.u32 %v623, 7
      %v625 = vsub.s32 6, %v624
      %v626 = vrot.slane %v597, %v625
      %v627 = vlaneseq
      %v628 = vshrl.u32 %v627, 7
      %v629 = vsub.s32 7, %v628
      %v630 = vrot.slane %v597, %v629
      %631 = vrot.lane.b32.xlu0 %v602, 95
      %v632 = vpop.permute.xlu0 %631
      %633 = vrot.lane.b32.xlu0 %v606, 95
      %v634 = vpop.permute.xlu0 %633
      %635 = vrot.lane.b32.xlu0 %v610, 95
      %v636 = vpop.permute.xlu0 %635
      %637 = vrot.lane.b32.xlu0 %v614, 95
      %v638 = vpop.permute.xlu0 %637
      %639 = vrot.lane.b32.xlu0 %v618, 95
      %v640 = vpop.permute.xlu0 %639
      %641 = vrot.lane.b32.xlu0 %v622, 95
      %v642 = vpop.permute.xlu0 %641
      %643 = vrot.lane.b32.xlu0 %v626, 95
      %v644 = vpop.permute.xlu0 %643
      %645 = vrot.lane.b32.xlu0 %v630, 95
      %v646 = vpop.permute.xlu0 %645
      %vm647 = vcmask 777216
      %v648 = vsel %vm647, %v632, %v634
      %v649 = vsel %vm647, %v634, %v636
      %v650 = vsel %vm647, %v636, %v638
      %v651 = vsel %vm647, %v638, %v640
      %v652 = vsel %vm647, %v640, %v642
      %v653 = vsel %vm647, %v642, %v644
      %v654 = vsel %vm647, %v644, %v646
      %v663 = vmul.f32 %v576, %v648
      %v664 = vmul.f32 %v577, %v649
      %v665 = vmul.f32 %v578, %v650
      %v666 = vmul.f32 %v579, %v651
      %v667 = vmul.f32 %v580, %v652
      %v668 = vmul.f32 %v581, %v653
      %v669 = vmul.f32 %v582, %v654
      %v670 = vmul.f32 %v583, %v646
      %v671 = vmul.f32 %v584, %v648
      %v672 = vmul.f32 %v585, %v649
      %v673 = vmul.f32 %v586, %v650
      %v674 = vmul.f32 %v587, %v651
      %v675 = vmul.f32 %v588, %v652
      %v676 = vmul.f32 %v589, %v653
      %v677 = vmul.f32 %v590, %v654
      %v678 = vmul.f32 %v591, %v646
      %695 = vrot.lane.b32.xlu0 %v663, 33
      %v696 = vpop.permute.xlu0 %695
      %697 = vrot.lane.b32.xlu0 %v664, 33
      %v698 = vpop.permute.xlu0 %697
      %699 = vrot.lane.b32.xlu0 %v665, 33
      %v700 = vpop.permute.xlu0 %699
      %701 = vrot.lane.b32.xlu0 %v666, 33
      %v702 = vpop.permute.xlu0 %701
      %703 = vrot.lane.b32.xlu0 %v667, 33
      %v704 = vpop.permute.xlu0 %703
      %705 = vrot.lane.b32.xlu0 %v668, 33
      %v706 = vpop.permute.xlu0 %705
      %707 = vrot.lane.b32.xlu0 %v669, 33
      %v708 = vpop.permute.xlu0 %707
      %709 = vrot.lane.b32.xlu0 %v670, 33
      %v710 = vpop.permute.xlu0 %709
      %711 = vrot.lane.b32.xlu0 %v671, 33
      %v712 = vpop.permute.xlu0 %711
      %713 = vrot.lane.b32.xlu0 %v672, 33
      %v714 = vpop.permute.xlu0 %713
      %715 = vrot.lane.b32.xlu0 %v673, 33
      %v716 = vpop.permute.xlu0 %715
      %717 = vrot.lane.b32.xlu0 %v674, 33
      %v718 = vpop.permute.xlu0 %717
      %719 = vrot.lane.b32.xlu0 %v675, 33
      %v720 = vpop.permute.xlu0 %719
      %721 = vrot.lane.b32.xlu0 %v676, 33
      %v722 = vpop.permute.xlu0 %721
      %723 = vrot.lane.b32.xlu0 %v677, 33
      %v724 = vpop.permute.xlu0 %723
      %725 = vrot.lane.b32.xlu0 %v678, 33
      %v726 = vpop.permute.xlu0 %725
      %v727 = vsel %vm592, %v696, %v698
      %v728 = vsel %vm592, %v698, %v700
      %v729 = vsel %vm592, %v700, %v702
      %v730 = vsel %vm592, %v702, %v704
      %v731 = vsel %vm592, %v704, %v706
      %v732 = vsel %vm592, %v706, %v708
      %v733 = vsel %vm592, %v708, %v710
      %v734 = vsel %vm592, %v712, %v714
      %v735 = vsel %vm592, %v714, %v716
      %v736 = vsel %vm592, %v716, %v718
      %v737 = vsel %vm592, %v718, %v720
      %v738 = vsel %vm592, %v720, %v722
      %v739 = vsel %vm592, %v722, %v724
      %v740 = vsel %vm592, %v724, %v726
      %vm757 = vcmask 1047816
      %758 = vst.msk [vmem:[#allocation2] sm:$0xff] %vm757, %v696
      %759 = vst [vmem:[#allocation2 + $0x8] sm:$0xff] %v727
      %760 = vst [vmem:[#allocation2 + $0x10] sm:$0xff] %v728
      %761 = vst [vmem:[#allocation2 + $0x18] sm:$0xff] %v729
      %762 = vst [vmem:[#allocation2 + $0x20] sm:$0xff] %v730
      %763 = vst [vmem:[#allocation2 + $0x28] sm:$0xff] %v731
      %764 = vst [vmem:[#allocation2 + $0x30] sm:$0xff] %v732
      %765 = vst [vmem:[#allocation2 + $0x38] sm:$0xff] %v733
      %766 = vst.msk [vmem:[#allocation2 + $0x40] sm:$0xff] %vm757, %v712
      %767 = vst [vmem:[#allocation2 + $0x48] sm:$0xff] %v734
      %768 = vst [vmem:[#allocation2 + $0x50] sm:$0xff] %v735
      %769 = vst [vmem:[#allocation2 + $0x58] sm:$0xff] %v736
      %770 = vst [vmem:[#allocation2 + $0x60] sm:$0xff] %v737
      %771 = vst [vmem:[#allocation2 + $0x68] sm:$0xff] %v738
      %772 = vst [vmem:[#allocation2 + $0x70] sm:$0xff] %v739
      %773 = vst [vmem:[#allocation2 + $0x78] sm:$0xff] %v740
      %vm774 = vcmask 261120
      %775 = vst.msk [vmem:[#allocation2 + $0x80] sm:$0xff] %vm774, 0.0
      %776 = vst.msk [vmem:[#allocation2 + $0xc0] sm:$0xff] %vm774, 0.0
      %s777 = scalar_lea.vmem %s1, 1
      %v778 = vld [vmem:[%s777] ss:$8 sm:$0xf]
      %v779 = vld [vmem:[%s777] ss:$8 sm:$0xf0]
      %v780 = vor.u32 %v778, %v779
      %v782 = vlaneseq
      %v783 = vshrl.u32 %v782, 7
      %v784 = vsub.s32 0, %v783
      %v785 = vrot.slane %v780, %v784
      %v786 = vlaneseq
      %v787 = vshrl.u32 %v786, 7
      %v788 = vsub.s32 1, %v787
      %v789 = vrot.slane %v780, %v788
      %v790 = vlaneseq
      %v791 = vshrl.u32 %v790, 7
      %v792 = vsub.s32 2, %v791
      %v793 = vrot.slane %v780, %v792
      %v794 = vlaneseq
      %v795 = vshrl.u32 %v794, 7
      %v796 = vsub.s32 3, %v795
      %v797 = vrot.slane %v780, %v796
      %v798 = vlaneseq
      %v799 = vshrl.u32 %v798, 7
      %v800 = vsub.s32 4, %v799
      %v801 = vrot.slane %v780, %v800
      %v802 = vlaneseq
      %v803 = vshrl.u32 %v802, 7
      %v804 = vsub.s32 5, %v803
      %v805 = vrot.slane %v780, %v804
      %v806 = vlaneseq
      %v807 = vshrl.u32 %v806, 7
      %v808 = vsub.s32 6, %v807
      %v809 = vrot.slane %v780, %v808
      %v810 = vlaneseq
      %v811 = vshrl.u32 %v810, 7
      %v812 = vsub.s32 7, %v811
      %v813 = vrot.slane %v780, %v812
      %814 = vrot.lane.b32.xlu0 %v785, 96
      %v815 = vpop.permute.xlu0 %814
      %816 = vrot.lane.b32.xlu0 %v789, 96
      %v817 = vpop.permute.xlu0 %816
      %818 = vrot.lane.b32.xlu0 %v793, 96
      %v819 = vpop.permute.xlu0 %818
      %820 = vrot.lane.b32.xlu0 %v797, 96
      %v821 = vpop.permute.xlu0 %820
      %822 = vrot.lane.b32.xlu0 %v801, 96
      %v823 = vpop.permute.xlu0 %822
      %824 = vrot.lane.b32.xlu0 %v805, 96
      %v825 = vpop.permute.xlu0 %824
      %826 = vrot.lane.b32.xlu0 %v809, 96
      %v827 = vpop.permute.xlu0 %826
      %828 = vrot.lane.b32.xlu0 %v813, 96
      %v829 = vpop.permute.xlu0 %828
      %vm830 = vcmask 785408
      %v831 = vsel %vm830, %v815, %v817
      %v832 = vsel %vm830, %v817, %v819
      %v833 = vsel %vm830, %v819, %v821
      %v834 = vsel %vm830, %v821, %v823
      %v835 = vsel %vm830, %v823, %v825
      %v836 = vsel %vm830, %v825, %v827
      %v837 = vsel %vm830, %v827, %v829
      %v846 = vmul.f32 %v576, %v831
      %v847 = vmul.f32 %v577, %v832
      %v848 = vmul.f32 %v578, %v833
      %v849 = vmul.f32 %v579, %v834
      %v850 = vmul.f32 %v580, %v835
      %v851 = vmul.f32 %v581, %v836
      %v852 = vmul.f32 %v582, %v837
      %v853 = vmul.f32 %v583, %v829
      %v854 = vmul.f32 %v584, %v831
      %v855 = vmul.f32 %v585, %v832
      %v856 = vmul.f32 %v586, %v833
      %v857 = vmul.f32 %v587, %v834
      %v858 = vmul.f32 %v588, %v835
      %v859 = vmul.f32 %v589, %v836
      %v860 = vmul.f32 %v590, %v837
      %v861 = vmul.f32 %v591, %v829
      %878 = vrot.lane.b32.xlu0 %v846, 32
      %v879 = vpop.permute.xlu0 %878
      %880 = vrot.lane.b32.xlu0 %v847, 32
      %v881 = vpop.permute.xlu0 %880
      %882 = vrot.lane.b32.xlu0 %v848, 32
      %v883 = vpop.permute.xlu0 %882
      %884 = vrot.lane.b32.xlu0 %v849, 32
      %v885 = vpop.permute.xlu0 %884
      %886 = vrot.lane.b32.xlu0 %v850, 32
      %v887 = vpop.permute.xlu0 %886
      %888 = vrot.lane.b32.xlu0 %v851, 32
      %v889 = vpop.permute.xlu0 %888
      %890 = vrot.lane.b32.xlu0 %v852, 32
      %v891 = vpop.permute.xlu0 %890
      %892 = vrot.lane.b32.xlu0 %v853, 32
      %v893 = vpop.permute.xlu0 %892
      %894 = vrot.lane.b32.xlu0 %v854, 32
      %v895 = vpop.permute.xlu0 %894
      %896 = vrot.lane.b32.xlu0 %v855, 32
      %v897 = vpop.permute.xlu0 %896
      %898 = vrot.lane.b32.xlu0 %v856, 32
      %v899 = vpop.permute.xlu0 %898
      %900 = vrot.lane.b32.xlu0 %v857, 32
      %v901 = vpop.permute.xlu0 %900
      %902 = vrot.lane.b32.xlu0 %v858, 32
      %v903 = vpop.permute.xlu0 %902
      %904 = vrot.lane.b32.xlu0 %v859, 32
      %v905 = vpop.permute.xlu0 %904
      %906 = vrot.lane.b32.xlu0 %v860, 32
      %v907 = vpop.permute.xlu0 %906
      %908 = vrot.lane.b32.xlu0 %v861, 32
      %v909 = vpop.permute.xlu0 %908
      %v910 = vsel %vm774, %v879, %v881
      %v911 = vsel %vm774, %v881, %v883
      %v912 = vsel %vm774, %v883, %v885
      %v913 = vsel %vm774, %v885, %v887
      %v914 = vsel %vm774, %v887, %v889
      %v915 = vsel %vm774, %v889, %v891
      %v916 = vsel %vm774, %v891, %v893
      %v917 = vsel %vm774, %v895, %v897
      %v918 = vsel %vm774, %v897, %v899
      %v919 = vsel %vm774, %v899, %v901
      %v920 = vsel %vm774, %v901, %v903
      %v921 = vsel %vm774, %v903, %v905
      %v922 = vsel %vm774, %v905, %v907
      %v923 = vsel %vm774, %v907, %v909
      %vm940 = vcmask 1047808
      %941 = vst.msk [vmem:[#allocation2 + $0x80] sm:$0xff] %vm940, %v879
      %942 = vst [vmem:[#allocation2 + $0x88] sm:$0xff] %v910
      %943 = vst [vmem:[#allocation2 + $0x90] sm:$0xff] %v911
      %944 = vst [vmem:[#allocation2 + $0x98] sm:$0xff] %v912
      %945 = vst [vmem:[#allocation2 + $0xa0] sm:$0xff] %v913
      %946 = vst [vmem:[#allocation2 + $0xa8] sm:$0xff] %v914
      %947 = vst [vmem:[#allocation2 + $0xb0] sm:$0xff] %v915
      %948 = vst [vmem:[#allocation2 + $0xb8] sm:$0xff] %v916
      %949 = vst.msk [vmem:[#allocation2 + $0xc0] sm:$0xff] %vm940, %v895
      %950 = vst [vmem:[#allocation2 + $0xc8] sm:$0xff] %v917
      %951 = vst [vmem:[#allocation2 + $0xd0] sm:$0xff] %v918
      %952 = vst [vmem:[#allocation2 + $0xd8] sm:$0xff] %v919
      %953 = vst [vmem:[#allocation2 + $0xe0] sm:$0xff] %v920
      %954 = vst [vmem:[#allocation2 + $0xe8] sm:$0xff] %v921
      %955 = vst [vmem:[#allocation2 + $0xf0] sm:$0xff] %v922
      %956 = vst [vmem:[#allocation2 + $0xf8] sm:$0xff] %v923
      %vm957 = vcmask 252928
      %958 = vst.msk [vmem:[#allocation2 + $0x100] sm:$0xff] %vm957, 0.0
      %959 = vst.msk [vmem:[#allocation2 + $0x140] sm:$0xff] %vm957, 0.0
      %s960 = scalar_lea.vmem %s1, 2
      %v961 = vld [vmem:[%s960] ss:$8 sm:$0xf]
      %v962 = vld [vmem:[%s960] ss:$8 sm:$0xf0]
      %v963 = vor.u32 %v961, %v962
      %v965 = vlaneseq
      %v966 = vshrl.u32 %v965, 7
      %v967 = vsub.s32 0, %v966
      %v968 = vrot.slane %v963, %v967
      %v969 = vlaneseq
      %v970 = vshrl.u32 %v969, 7
      %v971 = vsub.s32 1, %v970
      %v972 = vrot.slane %v963, %v971
      %v973 = vlaneseq
      %v974 = vshrl.u32 %v973, 7
      %v975 = vsub.s32 2, %v974
      %v976 = vrot.slane %v963, %v975
      %v977 = vlaneseq
      %v978 = vshrl.u32 %v977, 7
      %v979 = vsub.s32 3, %v978
      %v980 = vrot.slane %v963, %v979
      %v981 = vlaneseq
      %v982 = vshrl.u32 %v981, 7
      %v983 = vsub.s32 4, %v982
      %v984 = vrot.slane %v963, %v983
      %v985 = vlaneseq
      %v986 = vshrl.u32 %v985, 7
      %v987 = vsub.s32 5, %v986
      %v988 = vrot.slane %v963, %v987
      %v989 = vlaneseq
      %v990 = vshrl.u32 %v989, 7
      %v991 = vsub.s32 6, %v990
      %v992 = vrot.slane %v963, %v991
      %v993 = vlaneseq
      %v994 = vshrl.u32 %v993, 7
      %v995 = vsub.s32 7, %v994
      %v996 = vrot.slane %v963, %v995
      %997 = vrot.lane.b32.xlu0 %v968, 97
      %v998 = vpop.permute.xlu0 %997
      %999 = vrot.lane.b32.xlu0 %v972, 97
      %v1000 = vpop.permute.xlu0 %999
      %1001 = vrot.lane.b32.xlu0 %v976, 97
      %v1002 = vpop.permute.xlu0 %1001
      %1003 = vrot.lane.b32.xlu0 %v980, 97
      %v1004 = vpop.permute.xlu0 %1003
      %1005 = vrot.lane.b32.xlu0 %v984, 97
      %v1006 = vpop.permute.xlu0 %1005
      %1007 = vrot.lane.b32.xlu0 %v988, 97
      %v1008 = vpop.permute.xlu0 %1007
      %1009 = vrot.lane.b32.xlu0 %v992, 97
      %v1010 = vpop.permute.xlu0 %1009
      %1011 = vrot.lane.b32.xlu0 %v996, 97
      %v1012 = vpop.permute.xlu0 %1011
      %vm1013 = vcmask 793600
      %v1014 = vsel %vm1013, %v998, %v1000
      %v1015 = vsel %vm1013, %v1000, %v1002
      %v1016 = vsel %vm1013, %v1002, %v1004
      %v1017 = vsel %vm1013, %v1004, %v1006
      %v1018 = vsel %vm1013, %v1006, %v1008
      %v1019 = vsel %vm1013, %v1008, %v1010
      %v1020 = vsel %vm1013, %v1010, %v1012
      %v1029 = vmul.f32 %v576, %v1014
      %v1030 = vmul.f32 %v577, %v1015
      %v1031 = vmul.f32 %v578, %v1016
      %v1032 = vmul.f32 %v579, %v1017
      %v1033 = vmul.f32 %v580, %v1018
      %v1034 = vmul.f32 %v581, %v1019
      %v1035 = vmul.f32 %v582, %v1020
      %v1036 = vmul.f32 %v583, %v1012
      %v1037 = vmul.f32 %v584, %v1014
      %v1038 = vmul.f32 %v585, %v1015
      %v1039 = vmul.f32 %v586, %v1016
      %v1040 = vmul.f32 %v587, %v1017
      %v1041 = vmul.f32 %v588, %v1018
      %v1042 = vmul.f32 %v589, %v1019
      %v1043 = vmul.f32 %v590, %v1020
      %v1044 = vmul.f32 %v591, %v1012
      %1061 = vrot.lane.b32.xlu0 %v1029, 31
      %v1062 = vpop.permute.xlu0 %1061
      %1063 = vrot.lane.b32.xlu0 %v1030, 31
      %v1064 = vpop.permute.xlu0 %1063
      %1065 = vrot.lane.b32.xlu0 %v1031, 31
      %v1066 = vpop.permute.xlu0 %1065
      %1067 = vrot.lane.b32.xlu0 %v1032, 31
      %v1068 = vpop.permute.xlu0 %1067
      %1069 = vrot.lane.b32.xlu0 %v1033, 31
      %v1070 = vpop.permute.xlu0 %1069
      %1071 = vrot.lane.b32.xlu0 %v1034, 31
      %v1072 = vpop.permute.xlu0 %1071
      %1073 = vrot.lane.b32.xlu0 %v1035, 31
      %v1074 = vpop.permute.xlu0 %1073
      %1075 = vrot.lane.b32.xlu0 %v1036, 31
      %v1076 = vpop.permute.xlu0 %1075
      %1077 = vrot.lane.b32.xlu0 %v1037, 31
      %v1078 = vpop.permute.xlu0 %1077
      %1079 = vrot.lane.b32.xlu0 %v1038, 31
      %v1080 = vpop.permute.xlu0 %1079
      %1081 = vrot.lane.b32.xlu0 %v1039, 31
      %v1082 = vpop.permute.xlu0 %1081
      %1083 = vrot.lane.b32.xlu0 %v1040, 31
      %v1084 = vpop.permute.xlu0 %1083
      %1085 = vrot.lane.b32.xlu0 %v1041, 31
      %v1086 = vpop.permute.xlu0 %1085
      %1087 = vrot.lane.b32.xlu0 %v1042, 31
      %v1088 = vpop.permute.xlu0 %1087
      %1089 = vrot.lane.b32.xlu0 %v1043, 31
      %v1090 = vpop.permute.xlu0 %1089
      %1091 = vrot.lane.b32.xlu0 %v1044, 31
      %v1092 = vpop.permute.xlu0 %1091
      %v1093 = vsel %vm957, %v1062, %v1064
      %v1094 = vsel %vm957, %v1064, %v1066
      %v1095 = vsel %vm957, %v1066, %v1068
      %v1096 = vsel %vm957, %v1068, %v1070
      %v1097 = vsel %vm957, %v1070, %v1072
      %v1098 = vsel %vm957, %v1072, %v1074
      %v1099 = vsel %vm957, %v1074, %v1076
      %v1100 = vsel %vm957, %v1078, %v1080
      %v1101 = vsel %vm957, %v1080, %v1082
      %v1102 = vsel %vm957, %v1082, %v1084
      %v1103 = vsel %vm957, %v1084, %v1086
      %v1104 = vsel %vm957, %v1086, %v1088
      %v1105 = vsel %vm957, %v1088, %v1090
      %v1106 = vsel %vm957, %v1090, %v1092
      %vm1123 = vcmask 1047800
      %1124 = vst.msk [vmem:[#allocation2 + $0x100] sm:$0xff] %vm1123, %v1062
      %1125 = vst [vmem:[#allocation2 + $0x108] sm:$0xff] %v1093
      %1126 = vst [vmem:[#allocation2 + $0x110] sm:$0xff] %v1094
      %1127 = vst [vmem:[#allocation2 + $0x118] sm:$0xff] %v1095
      %1128 = vst [vmem:[#allocation2 + $0x120] sm:$0xff] %v1096
      %1129 = vst [vmem:[#allocation2 + $0x128] sm:$0xff] %v1097
      %1130 = vst [vmem:[#allocation2 + $0x130] sm:$0xff] %v1098
      %1131 = vst [vmem:[#allocation2 + $0x138] sm:$0xff] %v1099
      %1132 = vst.msk [vmem:[#allocation2 + $0x140] sm:$0xff] %vm1123, %v1078
      %1133 = vst [vmem:[#allocation2 + $0x148] sm:$0xff] %v1100
      %1134 = vst [vmem:[#allocation2 + $0x150] sm:$0xff] %v1101
      %1135 = vst [vmem:[#allocation2 + $0x158] sm:$0xff] %v1102
      %1136 = vst [vmem:[#allocation2 + $0x160] sm:$0xff] %v1103
      %1137 = vst [vmem:[#allocation2 + $0x168] sm:$0xff] %v1104
      %1138 = vst [vmem:[#allocation2 + $0x170] sm:$0xff] %v1105
      %1139 = vst [vmem:[#allocation2 + $0x178] sm:$0xff] %v1106
      %vm1140 = vcmask 7168
      %1141 = vst.msk [vmem:[#allocation2 + $0x180] sm:$0xff] %vm1140, 0.0
      %1142 = vst.msk [vmem:[#allocation2 + $0x1c0] sm:$0xff] %vm1140, 0.0
      %s1143 = scalar_lea.vmem %s1, 3
      %v1144 = vld [vmem:[%s1143] ss:$8 sm:$0xf]
      %v1145 = vld [vmem:[%s1143] ss:$8 sm:$0xf0]
      %v1146 = vor.u32 %v1144, %v1145
      %v1148 = vlaneseq
      %v1149 = vshrl.u32 %v1148, 7
      %v1150 = vsub.s32 0, %v1149
      %v1151 = vrot.slane %v1146, %v1150
      %v1152 = vlaneseq
      %v1153 = vshrl.u32 %v1152, 7
      %v1154 = vsub.s32 1, %v1153
      %v1155 = vrot.slane %v1146, %v1154
      %v1156 = vlaneseq
      %v1157 = vshrl.u32 %v1156, 7
      %v1158 = vsub.s32 2, %v1157
      %v1159 = vrot.slane %v1146, %v1158
      %v1160 = vlaneseq
      %v1161 = vshrl.u32 %v1160, 7
      %v1162 = vsub.s32 3, %v1161
      %v1163 = vrot.slane %v1146, %v1162
      %v1164 = vlaneseq
      %v1165 = vshrl.u32 %v1164, 7
      %v1166 = vsub.s32 4, %v1165
      %v1167 = vrot.slane %v1146, %v1166
      %v1168 = vlaneseq
      %v1169 = vshrl.u32 %v1168, 7
      %v1170 = vsub.s32 5, %v1169
      %v1171 = vrot.slane %v1146, %v1170
      %v1172 = vlaneseq
      %v1173 = vshrl.u32 %v1172, 7
      %v1174 = vsub.s32 6, %v1173
      %v1175 = vrot.slane %v1146, %v1174
      %v1176 = vlaneseq
      %v1177 = vshrl.u32 %v1176, 7
      %v1178 = vsub.s32 7, %v1177
      %v1179 = vrot.slane %v1146, %v1178
      %1180 = vrot.lane.b32.xlu0 %v1151, 127
      %v1181 = vpop.permute.xlu0 %1180
      %1182 = vrot.lane.b32.xlu0 %v1155, 127
      %v1183 = vpop.permute.xlu0 %1182
      %1184 = vrot.lane.b32.xlu0 %v1159, 127
      %v1185 = vpop.permute.xlu0 %1184
      %1186 = vrot.lane.b32.xlu0 %v1163, 127
      %v1187 = vpop.permute.xlu0 %1186
      %1188 = vrot.lane.b32.xlu0 %v1167, 127
      %v1189 = vpop.permute.xlu0 %1188
      %1190 = vrot.lane.b32.xlu0 %v1171, 127
      %v1191 = vpop.permute.xlu0 %1190
      %1192 = vrot.lane.b32.xlu0 %v1175, 127
      %v1193 = vpop.permute.xlu0 %1192
      %1194 = vrot.lane.b32.xlu0 %v1179, 127
      %v1195 = vpop.permute.xlu0 %1194
      %vm1196 = vcmask 1039360
      %v1197 = vsel %vm1196, %v1181, %v1183
      %v1198 = vsel %vm1196, %v1183, %v1185
      %v1199 = vsel %vm1196, %v1185, %v1187
      %v1200 = vsel %vm1196, %v1187, %v1189
      %v1201 = vsel %vm1196, %v1189, %v1191
      %v1202 = vsel %vm1196, %v1191, %v1193
      %v1203 = vsel %vm1196, %v1193, %v1195
      %v1212 = vmul.f32 %v576, %v1197
      %v1213 = vmul.f32 %v577, %v1198
      %v1214 = vmul.f32 %v578, %v1199
      %v1215 = vmul.f32 %v579, %v1200
      %v1216 = vmul.f32 %v580, %v1201
      %v1217 = vmul.f32 %v581, %v1202
      %v1218 = vmul.f32 %v582, %v1203
      %v1219 = vmul.f32 %v583, %v1195
      %v1220 = vmul.f32 %v584, %v1197
      %v1221 = vmul.f32 %v585, %v1198
      %v1222 = vmul.f32 %v586, %v1199
      %v1223 = vmul.f32 %v587, %v1200
      %v1224 = vmul.f32 %v588, %v1201
      %v1225 = vmul.f32 %v589, %v1202
      %v1226 = vmul.f32 %v590, %v1203
      %v1227 = vmul.f32 %v591, %v1195
      %1244 = vrot.lane.b32.xlu0 %v1212, 1
      %v1245 = vpop.permute.xlu0 %1244
      %1246 = vrot.lane.b32.xlu0 %v1213, 1
      %v1247 = vpop.permute.xlu0 %1246
      %1248 = vrot.lane.b32.xlu0 %v1214, 1
      %v1249 = vpop.permute.xlu0 %1248
      %1250 = vrot.lane.b32.xlu0 %v1215, 1
      %v1251 = vpop.permute.xlu0 %1250
      %1252 = vrot.lane.b32.xlu0 %v1216, 1
      %v1253 = vpop.permute.xlu0 %1252
      %1254 = vrot.lane.b32.xlu0 %v1217, 1
      %v1255 = vpop.permute.xlu0 %1254
      %1256 = vrot.lane.b32.xlu0 %v1218, 1
      %v1257 = vpop.permute.xlu0 %1256
      %1258 = vrot.lane.b32.xlu0 %v1219, 1
      %v1259 = vpop.permute.xlu0 %1258
      %1260 = vrot.lane.b32.xlu0 %v1220, 1
      %v1261 = vpop.permute.xlu0 %1260
      %1262 = vrot.lane.b32.xlu0 %v1221, 1
      %v1263 = vpop.permute.xlu0 %1262
      %1264 = vrot.lane.b32.xlu0 %v1222, 1
      %v1265 = vpop.permute.xlu0 %1264
      %1266 = vrot.lane.b32.xlu0 %v1223, 1
      %v1267 = vpop.permute.xlu0 %1266
      %1268 = vrot.lane.b32.xlu0 %v1224, 1
      %v1269 = vpop.permute.xlu0 %1268
      %1270 = vrot.lane.b32.xlu0 %v1225, 1
      %v1271 = vpop.permute.xlu0 %1270
      %1272 = vrot.lane.b32.xlu0 %v1226, 1
      %v1273 = vpop.permute.xlu0 %1272
      %1274 = vrot.lane.b32.xlu0 %v1227, 1
      %v1275 = vpop.permute.xlu0 %1274
      %v1276 = vsel %vm1140, %v1245, %v1247
      %v1277 = vsel %vm1140, %v1247, %v1249
      %v1278 = vsel %vm1140, %v1249, %v1251
      %v1279 = vsel %vm1140, %v1251, %v1253
      %v1280 = vsel %vm1140, %v1253, %v1255
      %v1281 = vsel %vm1140, %v1255, %v1257
      %v1282 = vsel %vm1140, %v1257, %v1259
      %v1283 = vsel %vm1140, %v1261, %v1263
      %v1284 = vsel %vm1140, %v1263, %v1265
      %v1285 = vsel %vm1140, %v1265, %v1267
      %v1286 = vsel %vm1140, %v1267, %v1269
      %v1287 = vsel %vm1140, %v1269, %v1271
      %v1288 = vsel %vm1140, %v1271, %v1273
      %v1289 = vsel %vm1140, %v1273, %v1275
      %vm1306 = vcmask 1047560
      %1307 = vst.msk [vmem:[#allocation2 + $0x180] sm:$0xff] %vm1306, %v1245
      %1308 = vst [vmem:[#allocation2 + $0x188] sm:$0xff] %v1276
      %1309 = vst [vmem:[#allocation2 + $0x190] sm:$0xff] %v1277
      %1310 = vst [vmem:[#allocation2 + $0x198] sm:$0xff] %v1278
      %1311 = vst [vmem:[#allocation2 + $0x1a0] sm:$0xff] %v1279
      %1312 = vst [vmem:[#allocation2 + $0x1a8] sm:$0xff] %v1280
      %1313 = vst [vmem:[#allocation2 + $0x1b0] sm:$0xff] %v1281
      %1314 = vst [vmem:[#allocation2 + $0x1b8] sm:$0xff] %v1282
      %1315 = vst.msk [vmem:[#allocation2 + $0x1c0] sm:$0xff] %vm1306, %v1261
      %1316 = vst [vmem:[#allocation2 + $0x1c8] sm:$0xff] %v1283
      %1317 = vst [vmem:[#allocation2 + $0x1d0] sm:$0xff] %v1284
      %1318 = vst [vmem:[#allocation2 + $0x1d8] sm:$0xff] %v1285
      %1319 = vst [vmem:[#allocation2 + $0x1e0] sm:$0xff] %v1286
      %1320 = vst [vmem:[#allocation2 + $0x1e8] sm:$0xff] %v1287
      %1321 = vst [vmem:[#allocation2 + $0x1f0] sm:$0xff] %v1288
      %1322 = vst [vmem:[#allocation2 + $0x1f8] sm:$0xff] %v1289
      %s1323 = scalar_lea.vmem %s1, 4
      %v1324 = vld [vmem:[%s1323] ss:$8 sm:$0xf]
      %v1325 = vld [vmem:[%s1323] ss:$8 sm:$0xf0]
      %v1326 = vor.u32 %v1324, %v1325
      %v1328 = vlaneseq
      %v1329 = vshrl.u32 %v1328, 7
      %v1330 = vsub.s32 0, %v1329
      %v1331 = vrot.slane %v1326, %v1330
      %v1332 = vlaneseq
      %v1333 = vshrl.u32 %v1332, 7
      %v1334 = vsub.s32 1, %v1333
      %v1335 = vrot.slane %v1326, %v1334
      %v1336 = vlaneseq
      %v1337 = vshrl.u32 %v1336, 7
      %v1338 = vsub.s32 2, %v1337
      %v1339 = vrot.slane %v1326, %v1338
      %v1340 = vlaneseq
      %v1341 = vshrl.u32 %v1340, 7
      %v1342 = vsub.s32 3, %v1341
      %v1343 = vrot.slane %v1326, %v1342
      %v1344 = vlaneseq
      %v1345 = vshrl.u32 %v1344, 7
      %v1346 = vsub.s32 4, %v1345
      %v1347 = vrot.slane %v1326, %v1346
      %v1348 = vlaneseq
      %v1349 = vshrl.u32 %v1348, 7
      %v1350 = vsub.s32 5, %v1349
      %v1351 = vrot.slane %v1326, %v1350
      %v1352 = vlaneseq
      %v1353 = vshrl.u32 %v1352, 7
      %v1354 = vsub.s32 6, %v1353
      %v1355 = vrot.slane %v1326, %v1354
      %v1356 = vlaneseq
      %v1357 = vshrl.u32 %v1356, 7
      %v1358 = vsub.s32 7, %v1357
      %v1359 = vrot.slane %v1326, %v1358
      %v1368 = vmul.f32 %v576, %v1331
      %v1369 = vmul.f32 %v577, %v1335
      %v1370 = vmul.f32 %v578, %v1339
      %v1371 = vmul.f32 %v579, %v1343
      %v1372 = vmul.f32 %v580, %v1347
      %v1373 = vmul.f32 %v581, %v1351
      %v1374 = vmul.f32 %v582, %v1355
      %v1375 = vmul.f32 %v583, %v1359
      %v1376 = vmul.f32 %v584, %v1331
      %v1377 = vmul.f32 %v585, %v1335
      %v1378 = vmul.f32 %v586, %v1339
      %v1379 = vmul.f32 %v587, %v1343
      %v1380 = vmul.f32 %v588, %v1347
      %v1381 = vmul.f32 %v589, %v1351
      %v1382 = vmul.f32 %v590, %v1355
      %v1383 = vmul.f32 %v591, %v1359
      %1384 = vst [vmem:[#allocation2 + $0x200] sm:$0xff] %v1368
      %1385 = vst [vmem:[#allocation2 + $0x208] sm:$0xff] %v1369
      %1386 = vst [vmem:[#allocation2 + $0x210] sm:$0xff] %v1370
      %1387 = vst [vmem:[#allocation2 + $0x218] sm:$0xff] %v1371
      %1388 = vst [vmem:[#allocation2 + $0x220] sm:$0xff] %v1372
      %1389 = vst [vmem:[#allocation2 + $0x228] sm:$0xff] %v1373
      %1390 = vst [vmem:[#allocation2 + $0x230] sm:$0xff] %v1374
      %1391 = vst [vmem:[#allocation2 + $0x238] sm:$0xff] %v1375
      %1392 = vst [vmem:[#allocation2 + $0x240] sm:$0xff] %v1376
      %1393 = vst [vmem:[#allocation2 + $0x248] sm:$0xff] %v1377
      %1394 = vst [vmem:[#allocation2 + $0x250] sm:$0xff] %v1378
      %1395 = vst [vmem:[#allocation2 + $0x258] sm:$0xff] %v1379
      %1396 = vst [vmem:[#allocation2 + $0x260] sm:$0xff] %v1380
      %1397 = vst [vmem:[#allocation2 + $0x268] sm:$0xff] %v1381
      %1398 = vst [vmem:[#allocation2 + $0x270] sm:$0xff] %v1382
      %1399 = vst [vmem:[#allocation2 + $0x278] sm:$0xff] %v1383
      %vm1400 = vcmask 1048568
      %1401 = vst.msk [vmem:[#allocation2 + $0x2b8] sm:$0xff] %vm1400, 0.0
      %1402 = vst.msk [vmem:[#allocation2 + $0x2f8] sm:$0xff] %vm1400, 0.0
      %s1403 = scalar_lea.vmem %s1, 5
      %v1404 = vld [vmem:[%s1403] ss:$8 sm:$0xf]
      %v1405 = vld [vmem:[%s1403] ss:$8 sm:$0xf0]
      %v1406 = vor.u32 %v1404, %v1405
      %v1408 = vlaneseq
      %v1409 = vshrl.u32 %v1408, 7
      %v1410 = vsub.s32 0, %v1409
      %v1411 = vrot.slane %v1406, %v1410
      %v1412 = vlaneseq
      %v1413 = vshrl.u32 %v1412, 7
      %v1414 = vsub.s32 1, %v1413
      %v1415 = vrot.slane %v1406, %v1414
      %v1416 = vlaneseq
      %v1417 = vshrl.u32 %v1416, 7
      %v1418 = vsub.s32 2, %v1417
      %v1419 = vrot.slane %v1406, %v1418
      %v1420 = vlaneseq
      %v1421 = vshrl.u32 %v1420, 7
      %v1422 = vsub.s32 3, %v1421
      %v1423 = vrot.slane %v1406, %v1422
      %v1424 = vlaneseq
      %v1425 = vshrl.u32 %v1424, 7
      %v1426 = vsub.s32 4, %v1425
      %v1427 = vrot.slane %v1406, %v1426
      %v1428 = vlaneseq
      %v1429 = vshrl.u32 %v1428, 7
      %v1430 = vsub.s32 5, %v1429
      %v1431 = vrot.slane %v1406, %v1430
      %v1432 = vlaneseq
      %v1433 = vshrl.u32 %v1432, 7
      %v1434 = vsub.s32 6, %v1433
      %v1435 = vrot.slane %v1406, %v1434
      %v1436 = vlaneseq
      %v1437 = vshrl.u32 %v1436, 7
      %v1438 = vsub.s32 7, %v1437
      %v1439 = vrot.slane %v1406, %v1438
      %1440 = vrot.lane.b32.xlu0 %v1411, 1
      %v1441 = vpop.permute.xlu0 %1440
      %1442 = vrot.lane.b32.xlu0 %v1415, 1
      %v1443 = vpop.permute.xlu0 %1442
      %1444 = vrot.lane.b32.xlu0 %v1419, 1
      %v1445 = vpop.permute.xlu0 %1444
      %1446 = vrot.lane.b32.xlu0 %v1423, 1
      %v1447 = vpop.permute.xlu0 %1446
      %1448 = vrot.lane.b32.xlu0 %v1427, 1
      %v1449 = vpop.permute.xlu0 %1448
      %1450 = vrot.lane.b32.xlu0 %v1431, 1
      %v1451 = vpop.permute.xlu0 %1450
      %1452 = vrot.lane.b32.xlu0 %v1435, 1
      %v1453 = vpop.permute.xlu0 %1452
      %1454 = vrot.lane.b32.xlu0 %v1439, 1
      %v1455 = vpop.permute.xlu0 %1454
      %v1456 = vsel %vm1140, %v1441, %v1443
      %v1457 = vsel %vm1140, %v1443, %v1445
      %v1458 = vsel %vm1140, %v1445, %v1447
      %v1459 = vsel %vm1140, %v1447, %v1449
      %v1460 = vsel %vm1140, %v1449, %v1451
      %v1461 = vsel %vm1140, %v1451, %v1453
      %v1462 = vsel %vm1140, %v1453, %v1455
      %v1471 = vmul.f32 %v576, %v1441
      %v1472 = vmul.f32 %v577, %v1456
      %v1473 = vmul.f32 %v578, %v1457
      %v1474 = vmul.f32 %v579, %v1458
      %v1475 = vmul.f32 %v580, %v1459
      %v1476 = vmul.f32 %v581, %v1460
      %v1477 = vmul.f32 %v582, %v1461
      %v1478 = vmul.f32 %v583, %v1462
      %v1479 = vmul.f32 %v584, %v1441
      %v1480 = vmul.f32 %v585, %v1456
      %v1481 = vmul.f32 %v586, %v1457
      %v1482 = vmul.f32 %v587, %v1458
      %v1483 = vmul.f32 %v588, %v1459
      %v1484 = vmul.f32 %v589, %v1460
      %v1485 = vmul.f32 %v590, %v1461
      %v1486 = vmul.f32 %v591, %v1462
      %1503 = vrot.lane.b32.xlu0 %v1471, 127
      %v1504 = vpop.permute.xlu0 %1503
      %1505 = vrot.lane.b32.xlu0 %v1472, 127
      %v1506 = vpop.permute.xlu0 %1505
      %1507 = vrot.lane.b32.xlu0 %v1473, 127
      %v1508 = vpop.permute.xlu0 %1507
      %1509 = vrot.lane.b32.xlu0 %v1474, 127
      %v1510 = vpop.permute.xlu0 %1509
      %1511 = vrot.lane.b32.xlu0 %v1475, 127
      %v1512 = vpop.permute.xlu0 %1511
      %1513 = vrot.lane.b32.xlu0 %v1476, 127
      %v1514 = vpop.permute.xlu0 %1513
      %1515 = vrot.lane.b32.xlu0 %v1477, 127
      %v1516 = vpop.permute.xlu0 %1515
      %1517 = vrot.lane.b32.xlu0 %v1478, 127
      %v1518 = vpop.permute.xlu0 %1517
      %1519 = vrot.lane.b32.xlu0 %v1479, 127
      %v1520 = vpop.permute.xlu0 %1519
      %1521 = vrot.lane.b32.xlu0 %v1480, 127
      %v1522 = vpop.permute.xlu0 %1521
      %1523 = vrot.lane.b32.xlu0 %v1481, 127
      %v1524 = vpop.permute.xlu0 %1523
      %1525 = vrot.lane.b32.xlu0 %v1482, 127
      %v1526 = vpop.permute.xlu0 %1525
      %1527 = vrot.lane.b32.xlu0 %v1483, 127
      %v1528 = vpop.permute.xlu0 %1527
      %1529 = vrot.lane.b32.xlu0 %v1484, 127
      %v1530 = vpop.permute.xlu0 %1529
      %1531 = vrot.lane.b32.xlu0 %v1485, 127
      %v1532 = vpop.permute.xlu0 %1531
      %1533 = vrot.lane.b32.xlu0 %v1486, 127
      %v1534 = vpop.permute.xlu0 %1533
      %v1535 = vsel %vm1196, %v1504, %v1506
      %v1536 = vsel %vm1196, %v1506, %v1508
      %v1537 = vsel %vm1196, %v1508, %v1510
      %v1538 = vsel %vm1196, %v1510, %v1512
      %v1539 = vsel %vm1196, %v1512, %v1514
      %v1540 = vsel %vm1196, %v1514, %v1516
      %v1541 = vsel %vm1196, %v1516, %v1518
      %v1542 = vsel %vm1196, %v1520, %v1522
      %v1543 = vsel %vm1196, %v1522, %v1524
      %v1544 = vsel %vm1196, %v1524, %v1526
      %v1545 = vsel %vm1196, %v1526, %v1528
      %v1546 = vsel %vm1196, %v1528, %v1530
      %v1547 = vsel %vm1196, %v1530, %v1532
      %v1548 = vsel %vm1196, %v1532, %v1534
      %1565 = vst [vmem:[#allocation2 + $0x280] sm:$0xff] %v1535
      %1566 = vst [vmem:[#allocation2 + $0x288] sm:$0xff] %v1536
      %1567 = vst [vmem:[#allocation2 + $0x290] sm:$0xff] %v1537
      %1568 = vst [vmem:[#allocation2 + $0x298] sm:$0xff] %v1538
      %1569 = vst [vmem:[#allocation2 + $0x2a0] sm:$0xff] %v1539
      %1570 = vst [vmem:[#allocation2 + $0x2a8] sm:$0xff] %v1540
      %1571 = vst [vmem:[#allocation2 + $0x2b0] sm:$0xff] %v1541
      %1572 = vst.msk [vmem:[#allocation2 + $0x2b8] sm:$0xff] %vm1196, %v1518
      %1573 = vst [vmem:[#allocation2 + $0x2c0] sm:$0xff] %v1542
      %1574 = vst [vmem:[#allocation2 + $0x2c8] sm:$0xff] %v1543
      %1575 = vst [vmem:[#allocation2 + $0x2d0] sm:$0xff] %v1544
      %1576 = vst [vmem:[#allocation2 + $0x2d8] sm:$0xff] %v1545
      %1577 = vst [vmem:[#allocation2 + $0x2e0] sm:$0xff] %v1546
      %1578 = vst [vmem:[#allocation2 + $0x2e8] sm:$0xff] %v1547
      %1579 = vst [vmem:[#allocation2 + $0x2f0] sm:$0xff] %v1548
      %1580 = vst.msk [vmem:[#allocation2 + $0x2f8] sm:$0xff] %vm1196, %v1534
      %vm1581 = vcmask 1048328
      %1582 = vst.msk [vmem:[#allocation2 + $0x338] sm:$0xff] %vm1581, 0.0
      %1583 = vst.msk [vmem:[#allocation2 + $0x378] sm:$0xff] %vm1581, 0.0
      %s1584 = scalar_lea.vmem %s1, 6
      %v1585 = vld [vmem:[%s1584] ss:$8 sm:$0xf]
      %v1586 = vld [vmem:[%s1584] ss:$8 sm:$0xf0]
      %v1587 = vor.u32 %v1585, %v1586
      %v1589 = vlaneseq
      %v1590 = vshrl.u32 %v1589, 7
      %v1591 = vsub.s32 0, %v1590
      %v1592 = vrot.slane %v1587, %v1591
      %v1593 = vlaneseq
      %v1594 = vshrl.u32 %v1593, 7
      %v1595 = vsub.s32 1, %v1594
      %v1596 = vrot.slane %v1587, %v1595
      %v1597 = vlaneseq
      %v1598 = vshrl.u32 %v1597, 7
      %v1599 = vsub.s32 2, %v1598
      %v1600 = vrot.slane %v1587, %v1599
      %v1601 = vlaneseq
      %v1602 = vshrl.u32 %v1601, 7
      %v1603 = vsub.s32 3, %v1602
      %v1604 = vrot.slane %v1587, %v1603
      %v1605 = vlaneseq
      %v1606 = vshrl.u32 %v1605, 7
      %v1607 = vsub.s32 4, %v1606
      %v1608 = vrot.slane %v1587, %v1607
      %v1609 = vlaneseq
      %v1610 = vshrl.u32 %v1609, 7
      %v1611 = vsub.s32 5, %v1610
      %v1612 = vrot.slane %v1587, %v1611
      %v1613 = vlaneseq
      %v1614 = vshrl.u32 %v1613, 7
      %v1615 = vsub.s32 6, %v1614
      %v1616 = vrot.slane %v1587, %v1615
      %v1617 = vlaneseq
      %v1618 = vshrl.u32 %v1617, 7
      %v1619 = vsub.s32 7, %v1618
      %v1620 = vrot.slane %v1587, %v1619
      %1621 = vrot.lane.b32.xlu0 %v1592, 31
      %v1622 = vpop.permute.xlu0 %1621
      %1623 = vrot.lane.b32.xlu0 %v1596, 31
      %v1624 = vpop.permute.xlu0 %1623
      %1625 = vrot.lane.b32.xlu0 %v1600, 31
      %v1626 = vpop.permute.xlu0 %1625
      %1627 = vrot.lane.b32.xlu0 %v1604, 31
      %v1628 = vpop.permute.xlu0 %1627
      %1629 = vrot.lane.b32.xlu0 %v1608, 31
      %v1630 = vpop.permute.xlu0 %1629
      %1631 = vrot.lane.b32.xlu0 %v1612, 31
      %v1632 = vpop.permute.xlu0 %1631
      %1633 = vrot.lane.b32.xlu0 %v1616, 31
      %v1634 = vpop.permute.xlu0 %1633
      %1635 = vrot.lane.b32.xlu0 %v1620, 31
      %v1636 = vpop.permute.xlu0 %1635
      %v1637 = vsel %vm957, %v1622, %v1624
      %v1638 = vsel %vm957, %v1624, %v1626
      %v1639 = vsel %vm957, %v1626, %v1628
      %v1640 = vsel %vm957, %v1628, %v1630
      %v1641 = vsel %vm957, %v1630, %v1632
      %v1642 = vsel %vm957, %v1632, %v1634
      %v1643 = vsel %vm957, %v1634, %v1636
      %v1652 = vmul.f32 %v576, %v1622
      %v1653 = vmul.f32 %v577, %v1637
      %v1654 = vmul.f32 %v578, %v1638
      %v1655 = vmul.f32 %v579, %v1639
      %v1656 = vmul.f32 %v580, %v1640
      %v1657 = vmul.f32 %v581, %v1641
      %v1658 = vmul.f32 %v582, %v1642
      %v1659 = vmul.f32 %v583, %v1643
      %v1660 = vmul.f32 %v584, %v1622
      %v1661 = vmul.f32 %v585, %v1637
      %v1662 = vmul.f32 %v586, %v1638
      %v1663 = vmul.f32 %v587, %v1639
      %v1664 = vmul.f32 %v588, %v1640
      %v1665 = vmul.f32 %v589, %v1641
      %v1666 = vmul.f32 %v590, %v1642
      %v1667 = vmul.f32 %v591, %v1643
      %1684 = vrot.lane.b32.xlu0 %v1652, 97
      %v1685 = vpop.permute.xlu0 %1684
      %1686 = vrot.lane.b32.xlu0 %v1653, 97
      %v1687 = vpop.permute.xlu0 %1686
      %1688 = vrot.lane.b32.xlu0 %v1654, 97
      %v1689 = vpop.permute.xlu0 %1688
      %1690 = vrot.lane.b32.xlu0 %v1655, 97
      %v1691 = vpop.permute.xlu0 %1690
      %1692 = vrot.lane.b32.xlu0 %v1656, 97
      %v1693 = vpop.permute.xlu0 %1692
      %1694 = vrot.lane.b32.xlu0 %v1657, 97
      %v1695 = vpop.permute.xlu0 %1694
      %1696 = vrot.lane.b32.xlu0 %v1658, 97
      %v1697 = vpop.permute.xlu0 %1696
      %1698 = vrot.lane.b32.xlu0 %v1659, 97
      %v1699 = vpop.permute.xlu0 %1698
      %1700 = vrot.lane.b32.xlu0 %v1660, 97
      %v1701 = vpop.permute.xlu0 %1700
      %1702 = vrot.lane.b32.xlu0 %v1661, 97
      %v1703 = vpop.permute.xlu0 %1702
      %1704 = vrot.lane.b32.xlu0 %v1662, 97
      %v1705 = vpop.permute.xlu0 %1704
      %1706 = vrot.lane.b32.xlu0 %v1663, 97
      %v1707 = vpop.permute.xlu0 %1706
      %1708 = vrot.lane.b32.xlu0 %v1664, 97
      %v1709 = vpop.permute.xlu0 %1708
      %1710 = vrot.lane.b32.xlu0 %v1665, 97
      %v1711 = vpop.permute.xlu0 %1710
      %1712 = vrot.lane.b32.xlu0 %v1666, 97
      %v1713 = vpop.permute.xlu0 %1712
      %1714 = vrot.lane.b32.xlu0 %v1667, 97
      %v1715 = vpop.permute.xlu0 %1714
      %v1716 = vsel %vm1013, %v1685, %v1687
      %v1717 = vsel %vm1013, %v1687, %v1689
      %v1718 = vsel %vm1013, %v1689, %v1691
      %v1719 = vsel %vm1013, %v1691, %v1693
      %v1720 = vsel %vm1013, %v1693, %v1695
      %v1721 = vsel %vm1013, %v1695, %v1697
      %v1722 = vsel %vm1013, %v1697, %v1699
      %v1723 = vsel %vm1013, %v1701, %v1703
      %v1724 = vsel %vm1013, %v1703, %v1705
      %v1725 = vsel %vm1013, %v1705, %v1707
      %v1726 = vsel %vm1013, %v1707, %v1709
      %v1727 = vsel %vm1013, %v1709, %v1711
      %v1728 = vsel %vm1013, %v1711, %v1713
      %v1729 = vsel %vm1013, %v1713, %v1715
      %1746 = vst [vmem:[#allocation2 + $0x300] sm:$0xff] %v1716
      %1747 = vst [vmem:[#allocation2 + $0x308] sm:$0xff] %v1717
      %1748 = vst [vmem:[#allocation2 + $0x310] sm:$0xff] %v1718
      %1749 = vst [vmem:[#allocation2 + $0x318] sm:$0xff] %v1719
      %1750 = vst [vmem:[#allocation2 + $0x320] sm:$0xff] %v1720
      %1751 = vst [vmem:[#allocation2 + $0x328] sm:$0xff] %v1721
      %1752 = vst [vmem:[#allocation2 + $0x330] sm:$0xff] %v1722
      %1753 = vst.msk [vmem:[#allocation2 + $0x338] sm:$0xff] %vm1013, %v1699
      %1754 = vst [vmem:[#allocation2 + $0x340] sm:$0xff] %v1723
      %1755 = vst [vmem:[#allocation2 + $0x348] sm:$0xff] %v1724
      %1756 = vst [vmem:[#allocation2 + $0x350] sm:$0xff] %v1725
      %1757 = vst [vmem:[#allocation2 + $0x358] sm:$0xff] %v1726
      %1758 = vst [vmem:[#allocation2 + $0x360] sm:$0xff] %v1727
      %1759 = vst [vmem:[#allocation2 + $0x368] sm:$0xff] %v1728
      %1760 = vst [vmem:[#allocation2 + $0x370] sm:$0xff] %v1729
      %1761 = vst.msk [vmem:[#allocation2 + $0x378] sm:$0xff] %vm1013, %v1715
      %vm1762 = vcmask 1048320
      %1763 = vst.msk [vmem:[#allocation2 + $0x3b8] sm:$0xff] %vm1762, 0.0
      %1764 = vst.msk [vmem:[#allocation2 + $0x3f8] sm:$0xff] %vm1762, 0.0
      %s1765 = scalar_lea.vmem %s1, 7
      %v1766 = vld [vmem:[%s1765] ss:$8 sm:$0xf]
      %v1767 = vld [vmem:[%s1765] ss:$8 sm:$0xf0]
      %v1768 = vor.u32 %v1766, %v1767
      %v1770 = vlaneseq
      %v1771 = vshrl.u32 %v1770, 7
      %v1772 = vsub.s32 0, %v1771
      %v1773 = vrot.slane %v1768, %v1772
      %v1774 = vlaneseq
      %v1775 = vshrl.u32 %v1774, 7
      %v1776 = vsub.s32 1, %v1775
      %v1777 = vrot.slane %v1768, %v1776
      %v1778 = vlaneseq
      %v1779 = vshrl.u32 %v1778, 7
      %v1780 = vsub.s32 2, %v1779
      %v1781 = vrot.slane %v1768, %v1780
      %v1782 = vlaneseq
      %v1783 = vshrl.u32 %v1782, 7
      %v1784 = vsub.s32 3, %v1783
      %v1785 = vrot.slane %v1768, %v1784
      %v1786 = vlaneseq
      %v1787 = vshrl.u32 %v1786, 7
      %v1788 = vsub.s32 4, %v1787
      %v1789 = vrot.slane %v1768, %v1788
      %v1790 = vlaneseq
      %v1791 = vshrl.u32 %v1790, 7
      %v1792 = vsub.s32 5, %v1791
      %v1793 = vrot.slane %v1768, %v1792
      %v1794 = vlaneseq
      %v1795 = vshrl.u32 %v1794, 7
      %v1796 = vsub.s32 6, %v1795
      %v1797 = vrot.slane %v1768, %v1796
      %v1798 = vlaneseq
      %v1799 = vshrl.u32 %v1798, 7
      %v1800 = vsub.s32 7, %v1799
      %v1801 = vrot.slane %v1768, %v1800
      %1802 = vrot.lane.b32.xlu0 %v1773, 32
      %v1803 = vpop.permute.xlu0 %1802
      %1804 = vrot.lane.b32.xlu0 %v1777, 32
      %v1805 = vpop.permute.xlu0 %1804
      %1806 = vrot.lane.b32.xlu0 %v1781, 32
      %v1807 = vpop.permute.xlu0 %1806
      %1808 = vrot.lane.b32.xlu0 %v1785, 32
      %v1809 = vpop.permute.xlu0 %1808
      %1810 = vrot.lane.b32.xlu0 %v1789, 32
      %v1811 = vpop.permute.xlu0 %1810
      %1812 = vrot.lane.b32.xlu0 %v1793, 32
      %v1813 = vpop.permute.xlu0 %1812
      %1814 = vrot.lane.b32.xlu0 %v1797, 32
      %v1815 = vpop.permute.xlu0 %1814
      %1816 = vrot.lane.b32.xlu0 %v1801, 32
      %v1817 = vpop.permute.xlu0 %1816
      %v1818 = vsel %vm774, %v1803, %v1805
      %v1819 = vsel %vm774, %v1805, %v1807
      %v1820 = vsel %vm774, %v1807, %v1809
      %v1821 = vsel %vm774, %v1809, %v1811
      %v1822 = vsel %vm774, %v1811, %v1813
      %v1823 = vsel %vm774, %v1813, %v1815
      %v1824 = vsel %vm774, %v1815, %v1817
      %v1833 = vmul.f32 %v576, %v1803
      %v1834 = vmul.f32 %v577, %v1818
      %v1835 = vmul.f32 %v578, %v1819
      %v1836 = vmul.f32 %v579, %v1820
      %v1837 = vmul.f32 %v580, %v1821
      %v1838 = vmul.f32 %v581, %v1822
      %v1839 = vmul.f32 %v582, %v1823
      %v1840 = vmul.f32 %v583, %v1824
      %v1841 = vmul.f32 %v584, %v1803
      %v1842 = vmul.f32 %v585, %v1818
      %v1843 = vmul.f32 %v586, %v1819
      %v1844 = vmul.f32 %v587, %v1820
      %v1845 = vmul.f32 %v588, %v1821
      %v1846 = vmul.f32 %v589, %v1822
      %v1847 = vmul.f32 %v590, %v1823
      %v1848 = vmul.f32 %v591, %v1824
      %1865 = vrot.lane.b32.xlu0 %v1833, 96
      %v1866 = vpop.permute.xlu0 %1865
      %1867 = vrot.lane.b32.xlu0 %v1834, 96
      %v1868 = vpop.permute.xlu0 %1867
      %1869 = vrot.lane.b32.xlu0 %v1835, 96
      %v1870 = vpop.permute.xlu0 %1869
      %1871 = vrot.lane.b32.xlu0 %v1836, 96
      %v1872 = vpop.permute.xlu0 %1871
      %1873 = vrot.lane.b32.xlu0 %v1837, 96
      %v1874 = vpop.permute.xlu0 %1873
      %1875 = vrot.lane.b32.xlu0 %v1838, 96
      %v1876 = vpop.permute.xlu0 %1875
      %1877 = vrot.lane.b32.xlu0 %v1839, 96
      %v1878 = vpop.permute.xlu0 %1877
      %1879 = vrot.lane.b32.xlu0 %v1840, 96
      %v1880 = vpop.permute.xlu0 %1879
      %1881 = vrot.lane.b32.xlu0 %v1841, 96
      %v1882 = vpop.permute.xlu0 %1881
      %1883 = vrot.lane.b32.xlu0 %v1842, 96
      %v1884 = vpop.permute.xlu0 %1883
      %1885 = vrot.lane.b32.xlu0 %v1843, 96
      %v1886 = vpop.permute.xlu0 %1885
      %1887 = vrot.lane.b32.xlu0 %v1844, 96
      %v1888 = vpop.permute.xlu0 %1887
      %1889 = vrot.lane.b32.xlu0 %v1845, 96
      %v1890 = vpop.permute.xlu0 %1889
      %1891 = vrot.lane.b32.xlu0 %v1846, 96
      %v1892 = vpop.permute.xlu0 %1891
      %1893 = vrot.lane.b32.xlu0 %v1847, 96
      %v1894 = vpop.permute.xlu0 %1893
      %1895 = vrot.lane.b32.xlu0 %v1848, 96
      %v1896 = vpop.permute.xlu0 %1895
      %v1897 = vsel %vm830, %v1866, %v1868
      %v1898 = vsel %vm830, %v1868, %v1870
      %v1899 = vsel %vm830, %v1870, %v1872
      %v1900 = vsel %vm830, %v1872, %v1874
      %v1901 = vsel %vm830, %v1874, %v1876
      %v1902 = vsel %vm830, %v1876, %v1878
      %v1903 = vsel %vm830, %v1878, %v1880
      %v1904 = vsel %vm830, %v1882, %v1884
      %v1905 = vsel %vm830, %v1884, %v1886
      %v1906 = vsel %vm830, %v1886, %v1888
      %v1907 = vsel %vm830, %v1888, %v1890
      %v1908 = vsel %vm830, %v1890, %v1892
      %v1909 = vsel %vm830, %v1892, %v1894
      %v1910 = vsel %vm830, %v1894, %v1896
      %1927 = vst [vmem:[#allocation2 + $0x380] sm:$0xff] %v1897
      %1928 = vst [vmem:[#allocation2 + $0x388] sm:$0xff] %v1898
      %1929 = vst [vmem:[#allocation2 + $0x390] sm:$0xff] %v1899
      %1930 = vst [vmem:[#allocation2 + $0x398] sm:$0xff] %v1900
      %1931 = vst [vmem:[#allocation2 + $0x3a0] sm:$0xff] %v1901
      %1932 = vst [vmem:[#allocation2 + $0x3a8] sm:$0xff] %v1902
      %1933 = vst [vmem:[#allocation2 + $0x3b0] sm:$0xff] %v1903
      %1934 = vst.msk [vmem:[#allocation2 + $0x3b8] sm:$0xff] %vm830, %v1880
      %1935 = vst [vmem:[#allocation2 + $0x3c0] sm:$0xff] %v1904
      %1936 = vst [vmem:[#allocation2 + $0x3c8] sm:$0xff] %v1905
      %1937 = vst [vmem:[#allocation2 + $0x3d0] sm:$0xff] %v1906
      %1938 = vst [vmem:[#allocation2 + $0x3d8] sm:$0xff] %v1907
      %1939 = vst [vmem:[#allocation2 + $0x3e0] sm:$0xff] %v1908
      %1940 = vst [vmem:[#allocation2 + $0x3e8] sm:$0xff] %v1909
      %1941 = vst [vmem:[#allocation2 + $0x3f0] sm:$0xff] %v1910
      %1942 = vst.msk [vmem:[#allocation2 + $0x3f8] sm:$0xff] %vm830, %v1896
      %vm1943 = vcmask 1048312
      %1944 = vst.msk [vmem:[#allocation2 + $0x438] sm:$0xff] %vm1943, 0.0
      %1945 = vst.msk [vmem:[#allocation2 + $0x478] sm:$0xff] %vm1943, 0.0
      %s1946 = scalar_lea.vmem %s1, 64
      %v1947 = vld [vmem:[%s1946] ss:$8 sm:$0xf]
      %v1948 = vld [vmem:[%s1946] ss:$8 sm:$0xf0]
      %v1949 = vor.u32 %v1947, %v1948
      %v1951 = vlaneseq
      %v1952 = vshrl.u32 %v1951, 7
      %v1953 = vsub.s32 0, %v1952
      %v1954 = vrot.slane %v1949, %v1953
      %v1955 = vlaneseq
      %v1956 = vshrl.u32 %v1955, 7
      %v1957 = vsub.s32 1, %v1956
      %v1958 = vrot.slane %v1949, %v1957
      %v1959 = vlaneseq
      %v1960 = vshrl.u32 %v1959, 7
      %v1961 = vsub.s32 2, %v1960
      %v1962 = vrot.slane %v1949, %v1961
      %v1963 = vlaneseq
      %v1964 = vshrl.u32 %v1963, 7
      %v1965 = vsub.s32 3, %v1964
      %v1966 = vrot.slane %v1949, %v1965
      %v1967 = vlaneseq
      %v1968 = vshrl.u32 %v1967, 7
      %v1969 = vsub.s32 4, %v1968
      %v1970 = vrot.slane %v1949, %v1969
      %v1971 = vlaneseq
      %v1972 = vshrl.u32 %v1971, 7
      %v1973 = vsub.s32 5, %v1972
      %v1974 = vrot.slane %v1949, %v1973
      %v1975 = vlaneseq
      %v1976 = vshrl.u32 %v1975, 7
      %v1977 = vsub.s32 6, %v1976
      %v1978 = vrot.slane %v1949, %v1977
      %v1979 = vlaneseq
      %v1980 = vshrl.u32 %v1979, 7
      %v1981 = vsub.s32 7, %v1980
      %v1982 = vrot.slane %v1949, %v1981
      %1983 = vrot.lane.b32.xlu0 %v1954, 33
      %v1984 = vpop.permute.xlu0 %1983
      %1985 = vrot.lane.b32.xlu0 %v1958, 33
      %v1986 = vpop.permute.xlu0 %1985
      %1987 = vrot.lane.b32.xlu0 %v1962, 33
      %v1988 = vpop.permute.xlu0 %1987
      %1989 = vrot.lane.b32.xlu0 %v1966, 33
      %v1990 = vpop.permute.xlu0 %1989
      %1991 = vrot.lane.b32.xlu0 %v1970, 33
      %v1992 = vpop.permute.xlu0 %1991
      %1993 = vrot.lane.b32.xlu0 %v1974, 33
      %v1994 = vpop.permute.xlu0 %1993
      %1995 = vrot.lane.b32.xlu0 %v1978, 33
      %v1996 = vpop.permute.xlu0 %1995
      %1997 = vrot.lane.b32.xlu0 %v1982, 33
      %v1998 = vpop.permute.xlu0 %1997
      %v1999 = vsel %vm592, %v1984, %v1986
      %v2000 = vsel %vm592, %v1986, %v1988
      %v2001 = vsel %vm592, %v1988, %v1990
      %v2002 = vsel %vm592, %v1990, %v1992
      %v2003 = vsel %vm592, %v1992, %v1994
      %v2004 = vsel %vm592, %v1994, %v1996
      %v2005 = vsel %vm592, %v1996, %v1998
      %v2014 = vmul.f32 %v576, %v1984
      %v2015 = vmul.f32 %v577, %v1999
      %v2016 = vmul.f32 %v578, %v2000
      %v2017 = vmul.f32 %v579, %v2001
      %v2018 = vmul.f32 %v580, %v2002
      %v2019 = vmul.f32 %v581, %v2003
      %v2020 = vmul.f32 %v582, %v2004
      %v2021 = vmul.f32 %v583, %v2005
      %v2022 = vmul.f32 %v584, %v1984
      %v2023 = vmul.f32 %v585, %v1999
      %v2024 = vmul.f32 %v586, %v2000
      %v2025 = vmul.f32 %v587, %v2001
      %v2026 = vmul.f32 %v588, %v2002
      %v2027 = vmul.f32 %v589, %v2003
      %v2028 = vmul.f32 %v590, %v2004
      %v2029 = vmul.f32 %v591, %v2005
      %2046 = vrot.lane.b32.xlu0 %v2014, 95
      %v2047 = vpop.permute.xlu0 %2046
      %2048 = vrot.lane.b32.xlu0 %v2015, 95
      %v2049 = vpop.permute.xlu0 %2048
      %2050 = vrot.lane.b32.xlu0 %v2016, 95
      %v2051 = vpop.permute.xlu0 %2050
      %2052 = vrot.lane.b32.xlu0 %v2017, 95
      %v2053 = vpop.permute.xlu0 %2052
      %2054 = vrot.lane.b32.xlu0 %v2018, 95
      %v2055 = vpop.permute.xlu0 %2054
      %2056 = vrot.lane.b32.xlu0 %v2019, 95
      %v2057 = vpop.permute.xlu0 %2056
      %2058 = vrot.lane.b32.xlu0 %v2020, 95
      %v2059 = vpop.permute.xlu0 %2058
      %2060 = vrot.lane.b32.xlu0 %v2021, 95
      %v2061 = vpop.permute.xlu0 %2060
      %2062 = vrot.lane.b32.xlu0 %v2022, 95
      %v2063 = vpop.permute.xlu0 %2062
      %2064 = vrot.lane.b32.xlu0 %v2023, 95
      %v2065 = vpop.permute.xlu0 %2064
      %2066 = vrot.lane.b32.xlu0 %v2024, 95
      %v2067 = vpop.permute.xlu0 %2066
      %2068 = vrot.lane.b32.xlu0 %v2025, 95
      %v2069 = vpop.permute.xlu0 %2068
      %2070 = vrot.lane.b32.xlu0 %v2026, 95
      %v2071 = vpop.permute.xlu0 %2070
      %2072 = vrot.lane.b32.xlu0 %v2027, 95
      %v2073 = vpop.permute.xlu0 %2072
      %2074 = vrot.lane.b32.xlu0 %v2028, 95
      %v2075 = vpop.permute.xlu0 %2074
      %2076 = vrot.lane.b32.xlu0 %v2029, 95
      %v2077 = vpop.permute.xlu0 %2076
      %v2078 = vsel %vm647, %v2047, %v2049
      %v2079 = vsel %vm647, %v2049, %v2051
      %v2080 = vsel %vm647, %v2051, %v2053
      %v2081 = vsel %vm647, %v2053, %v2055
      %v2082 = vsel %vm647, %v2055, %v2057
      %v2083 = vsel %vm647, %v2057, %v2059
      %v2084 = vsel %vm647, %v2059, %v2061
      %v2085 = vsel %vm647, %v2063, %v2065
      %v2086 = vsel %vm647, %v2065, %v2067
      %v2087 = vsel %vm647, %v2067, %v2069
      %v2088 = vsel %vm647, %v2069, %v2071
      %v2089 = vsel %vm647, %v2071, %v2073
      %v2090 = vsel %vm647, %v2073, %v2075
      %v2091 = vsel %vm647, %v2075, %v2077
      %2108 = vst [vmem:[#allocation2 + $0x400] sm:$0xff] %v2078
      %2109 = vst [vmem:[#allocation2 + $0x408] sm:$0xff] %v2079
      %2110 = vst [vmem:[#allocation2 + $0x410] sm:$0xff] %v2080
      %2111 = vst [vmem:[#allocation2 + $0x418] sm:$0xff] %v2081
      %2112 = vst [vmem:[#allocation2 + $0x420] sm:$0xff] %v2082
      %2113 = vst [vmem:[#allocation2 + $0x428] sm:$0xff] %v2083
      %2114 = vst [vmem:[#allocation2 + $0x430] sm:$0xff] %v2084
      %2115 = vst.msk [vmem:[#allocation2 + $0x438] sm:$0xff] %vm647, %v2061
      %2116 = vst [vmem:[#allocation2 + $0x440] sm:$0xff] %v2085
      %2117 = vst [vmem:[#allocation2 + $0x448] sm:$0xff] %v2086
      %2118 = vst [vmem:[#allocation2 + $0x450] sm:$0xff] %v2087
      %2119 = vst [vmem:[#allocation2 + $0x458] sm:$0xff] %v2088
      %2120 = vst [vmem:[#allocation2 + $0x460] sm:$0xff] %v2089
      %2121 = vst [vmem:[#allocation2 + $0x468] sm:$0xff] %v2090
      %2122 = vst [vmem:[#allocation2 + $0x470] sm:$0xff] %v2091
      %2123 = vst.msk [vmem:[#allocation2 + $0x478] sm:$0xff] %vm647, %v2077
      %v2124 = vld [vmem:[%s4] sm:$0xff]
      %v2125 = vld [vmem:[%s4 + $0x8] sm:$0xff]
      %v2126 = vld [vmem:[%s4 + $0x10] sm:$0xff]
      %v2127 = vld [vmem:[%s4 + $0x18] sm:$0xff]
      %v2128 = vld [vmem:[%s4 + $0x20] sm:$0xff]
      %v2129 = vld [vmem:[%s4 + $0x28] sm:$0xff]
      %v2130 = vld [vmem:[%s4 + $0x30] sm:$0xff]
      %v2131 = vld [vmem:[%s4 + $0x38] sm:$0xff]
      %v2132 = vld [vmem:[%s4 + $0x40] sm:$0xff]
      %v2133 = vld [vmem:[%s4 + $0x48] sm:$0xff]
      %v2134 = vld [vmem:[%s4 + $0x50] sm:$0xff]
      %v2135 = vld [vmem:[%s4 + $0x58] sm:$0xff]
      %v2136 = vld [vmem:[#allocation2] sm:$0xff]
      %v2137 = vld [vmem:[#allocation2 + $0x8] sm:$0xff]
      %v2138 = vld [vmem:[#allocation2 + $0x10] sm:$0xff]
      %v2139 = vld [vmem:[#allocation2 + $0x18] sm:$0xff]
      %v2140 = vld [vmem:[#allocation2 + $0x20] sm:$0xff]
      %v2141 = vld [vmem:[#allocation2 + $0x28] sm:$0xff]
      %v2142 = vld [vmem:[#allocation2 + $0x30] sm:$0xff]
      %v2143 = vld [vmem:[#allocation2 + $0x38] sm:$0xff]
      %v2144 = vld [vmem:[#allocation2 + $0x40] sm:$0xff]
      %v2145 = vld [vmem:[#allocation2 + $0x48] sm:$0xff]
      %v2146 = vld [vmem:[#allocation2 + $0x50] sm:$0xff]
      %v2147 = vld [vmem:[#allocation2 + $0x58] sm:$0xff]
      %v2148 = vld [vmem:[#allocation2 + $0x60] sm:$0xff]
      %v2149 = vld [vmem:[#allocation2 + $0x68] sm:$0xff]
      %v2150 = vld [vmem:[#allocation2 + $0x70] sm:$0xff]
      %v2151 = vld [vmem:[#allocation2 + $0x78] sm:$0xff]
      %v2152 = vld [vmem:[#allocation2 + $0x80] sm:$0xff]
      %v2153 = vld [vmem:[#allocation2 + $0x88] sm:$0xff]
      %v2154 = vld [vmem:[#allocation2 + $0x90] sm:$0xff]
      %v2155 = vld [vmem:[#allocation2 + $0x98] sm:$0xff]
      %v2156 = vld [vmem:[#allocation2 + $0xa0] sm:$0xff]
      %v2157 = vld [vmem:[#allocation2 + $0xa8] sm:$0xff]
      %v2158 = vld [vmem:[#allocation2 + $0xb0] sm:$0xff]
      %v2159 = vld [vmem:[#allocation2 + $0xb8] sm:$0xff]
      %v2160 = vld [vmem:[#allocation2 + $0xc0] sm:$0xff]
      %v2161 = vld [vmem:[#allocation2 + $0xc8] sm:$0xff]
      %v2162 = vld [vmem:[#allocation2 + $0xd0] sm:$0xff]
      %v2163 = vld [vmem:[#allocation2 + $0xd8] sm:$0xff]
      %v2164 = vld [vmem:[#allocation2 + $0xe0] sm:$0xff]
      %v2165 = vld [vmem:[#allocation2 + $0xe8] sm:$0xff]
      %v2166 = vld [vmem:[#allocation2 + $0xf0] sm:$0xff]
      %v2167 = vld [vmem:[#allocation2 + $0xf8] sm:$0xff]
      %v2168 = vld [vmem:[#allocation2 + $0x100] sm:$0xff]
      %v2169 = vld [vmem:[#allocation2 + $0x108] sm:$0xff]
      %v2170 = vld [vmem:[#allocation2 + $0x110] sm:$0xff]
      %v2171 = vld [vmem:[#allocation2 + $0x118] sm:$0xff]
      %v2172 = vld [vmem:[#allocation2 + $0x120] sm:$0xff]
      %v2173 = vld [vmem:[#allocation2 + $0x128] sm:$0xff]
      %v2174 = vld [vmem:[#allocation2 + $0x130] sm:$0xff]
      %v2175 = vld [vmem:[#allocation2 + $0x138] sm:$0xff]
      %v2176 = vld [vmem:[#allocation2 + $0x140] sm:$0xff]
      %v2177 = vld [vmem:[#allocation2 + $0x148] sm:$0xff]
      %v2178 = vld [vmem:[#allocation2 + $0x150] sm:$0xff]
      %v2179 = vld [vmem:[#allocation2 + $0x158] sm:$0xff]
      %v2180 = vld [vmem:[#allocation2 + $0x160] sm:$0xff]
      %v2181 = vld [vmem:[#allocation2 + $0x168] sm:$0xff]
      %v2182 = vld [vmem:[#allocation2 + $0x170] sm:$0xff]
      %v2183 = vld [vmem:[#allocation2 + $0x178] sm:$0xff]
      %v2184 = vld [vmem:[#allocation2 + $0x180] sm:$0xff]
      %v2185 = vld [vmem:[#allocation2 + $0x188] sm:$0xff]
      %v2186 = vld [vmem:[#allocation2 + $0x190] sm:$0xff]
      %v2187 = vld [vmem:[#allocation2 + $0x198] sm:$0xff]
      %v2188 = vld [vmem:[#allocation2 + $0x1a0] sm:$0xff]
      %v2189 = vld [vmem:[#allocation2 + $0x1a8] sm:$0xff]
      %v2190 = vld [vmem:[#allocation2 + $0x1b0] sm:$0xff]
      %v2191 = vld [vmem:[#allocation2 + $0x1b8] sm:$0xff]
      %v2192 = vld [vmem:[#allocation2 + $0x1c0] sm:$0xff]
      %v2193 = vld [vmem:[#allocation2 + $0x1c8] sm:$0xff]
      %v2194 = vld [vmem:[#allocation2 + $0x1d0] sm:$0xff]
      %v2195 = vld [vmem:[#allocation2 + $0x1d8] sm:$0xff]
      %v2196 = vld [vmem:[#allocation2 + $0x1e0] sm:$0xff]
      %v2197 = vld [vmem:[#allocation2 + $0x1e8] sm:$0xff]
      %v2198 = vld [vmem:[#allocation2 + $0x1f0] sm:$0xff]
      %v2199 = vld [vmem:[#allocation2 + $0x1f8] sm:$0xff]
      %v2200 = vld [vmem:[#allocation2 + $0x200] sm:$0xff]
      %v2201 = vld [vmem:[#allocation2 + $0x208] sm:$0xff]
      %v2202 = vld [vmem:[#allocation2 + $0x210] sm:$0xff]
      %v2203 = vld [vmem:[#allocation2 + $0x218] sm:$0xff]
      %v2204 = vld [vmem:[#allocation2 + $0x220] sm:$0xff]
      %v2205 = vld [vmem:[#allocation2 + $0x228] sm:$0xff]
      %v2206 = vld [vmem:[#allocation2 + $0x230] sm:$0xff]
      %v2207 = vld [vmem:[#allocation2 + $0x238] sm:$0xff]
      %v2208 = vld [vmem:[#allocation2 + $0x240] sm:$0xff]
      %v2209 = vld [vmem:[#allocation2 + $0x248] sm:$0xff]
      %v2210 = vld [vmem:[#allocation2 + $0x250] sm:$0xff]
      %v2211 = vld [vmem:[#allocation2 + $0x258] sm:$0xff]
      %v2212 = vld [vmem:[#allocation2 + $0x260] sm:$0xff]
      %v2213 = vld [vmem:[#allocation2 + $0x268] sm:$0xff]
      %v2214 = vld [vmem:[#allocation2 + $0x270] sm:$0xff]
      %v2215 = vld [vmem:[#allocation2 + $0x278] sm:$0xff]
      %v2216 = vld [vmem:[#allocation2 + $0x280] sm:$0xff]
      %v2217 = vld [vmem:[#allocation2 + $0x288] sm:$0xff]
      %v2218 = vld [vmem:[#allocation2 + $0x290] sm:$0xff]
      %v2219 = vld [vmem:[#allocation2 + $0x298] sm:$0xff]
      %v2220 = vld [vmem:[#allocation2 + $0x2a0] sm:$0xff]
      %v2221 = vld [vmem:[#allocation2 + $0x2a8] sm:$0xff]
      %v2222 = vld [vmem:[#allocation2 + $0x2b0] sm:$0xff]
      %v2223 = vld [vmem:[#allocation2 + $0x2b8] sm:$0xff]
      %v2224 = vld [vmem:[#allocation2 + $0x2c0] sm:$0xff]
      %v2225 = vld [vmem:[#allocation2 + $0x2c8] sm:$0xff]
      %v2226 = vld [vmem:[#allocation2 + $0x2d0] sm:$0xff]
      %v2227 = vld [vmem:[#allocation2 + $0x2d8] sm:$0xff]
      %v2228 = vld [vmem:[#allocation2 + $0x2e0] sm:$0xff]
      %v2229 = vld [vmem:[#allocation2 + $0x2e8] sm:$0xff]
      %v2230 = vld [vmem:[#allocation2 + $0x2f0] sm:$0xff]
      %v2231 = vld [vmem:[#allocation2 + $0x2f8] sm:$0xff]
      %v2232 = vld [vmem:[#allocation2 + $0x300] sm:$0xff]
      %v2233 = vld [vmem:[#allocation2 + $0x308] sm:$0xff]
      %v2234 = vld [vmem:[#allocation2 + $0x310] sm:$0xff]
      %v2235 = vld [vmem:[#allocation2 + $0x318] sm:$0xff]
      %v2236 = vld [vmem:[#allocation2 + $0x320] sm:$0xff]
      %v2237 = vld [vmem:[#allocation2 + $0x328] sm:$0xff]
      %v2238 = vld [vmem:[#allocation2 + $0x330] sm:$0xff]
      %v2239 = vld [vmem:[#allocation2 + $0x338] sm:$0xff]
      %v2240 = vld [vmem:[#allocation2 + $0x340] sm:$0xff]
      %v2241 = vld [vmem:[#allocation2 + $0x348] sm:$0xff]
      %v2242 = vld [vmem:[#allocation2 + $0x350] sm:$0xff]
      %v2243 = vld [vmem:[#allocation2 + $0x358] sm:$0xff]
      %v2244 = vld [vmem:[#allocation2 + $0x360] sm:$0xff]
      %v2245 = vld [vmem:[#allocation2 + $0x368] sm:$0xff]
      %v2246 = vld [vmem:[#allocation2 + $0x370] sm:$0xff]
      %v2247 = vld [vmem:[#allocation2 + $0x378] sm:$0xff]
      %v2248 = vld [vmem:[#allocation2 + $0x380] sm:$0xff]
      %v2249 = vld [vmem:[#allocation2 + $0x388] sm:$0xff]
      %v2250 = vld [vmem:[#allocation2 + $0x390] sm:$0xff]
      %v2251 = vld [vmem:[#allocation2 + $0x398] sm:$0xff]
      %v2252 = vld [vmem:[#allocation2 + $0x3a0] sm:$0xff]
      %v2253 = vld [vmem:[#allocation2 + $0x3a8] sm:$0xff]
      %v2254 = vld [vmem:[#allocation2 + $0x3b0] sm:$0xff]
      %v2255 = vld [vmem:[#allocation2 + $0x3b8] sm:$0xff]
      %v2256 = vld [vmem:[#allocation2 + $0x3c0] sm:$0xff]
      %v2257 = vld [vmem:[#allocation2 + $0x3c8] sm:$0xff]
      %v2258 = vld [vmem:[#allocation2 + $0x3d0] sm:$0xff]
      %v2259 = vld [vmem:[#allocation2 + $0x3d8] sm:$0xff]
      %v2260 = vld [vmem:[#allocation2 + $0x3e0] sm:$0xff]
      %v2261 = vld [vmem:[#allocation2 + $0x3e8] sm:$0xff]
      %v2262 = vld [vmem:[#allocation2 + $0x3f0] sm:$0xff]
      %v2263 = vld [vmem:[#allocation2 + $0x3f8] sm:$0xff]
      %v2264 = vld [vmem:[#allocation2 + $0x400] sm:$0xff]
      %v2265 = vld [vmem:[#allocation2 + $0x408] sm:$0xff]
      %v2266 = vld [vmem:[#allocation2 + $0x410] sm:$0xff]
      %v2267 = vld [vmem:[#allocation2 + $0x418] sm:$0xff]
      %v2268 = vld [vmem:[#allocation2 + $0x420] sm:$0xff]
      %v2269 = vld [vmem:[#allocation2 + $0x428] sm:$0xff]
      %v2270 = vld [vmem:[#allocation2 + $0x430] sm:$0xff]
      %v2271 = vld [vmem:[#allocation2 + $0x438] sm:$0xff]
      %v2272 = vld [vmem:[#allocation2 + $0x440] sm:$0xff]
      %v2273 = vld [vmem:[#allocation2 + $0x448] sm:$0xff]
      %v2274 = vld [vmem:[#allocation2 + $0x450] sm:$0xff]
      %v2275 = vld [vmem:[#allocation2 + $0x458] sm:$0xff]
      %v2276 = vld [vmem:[#allocation2 + $0x460] sm:$0xff]
      %v2277 = vld [vmem:[#allocation2 + $0x468] sm:$0xff]
      %v2278 = vld [vmem:[#allocation2 + $0x470] sm:$0xff]
      %v2279 = vld [vmem:[#allocation2 + $0x478] sm:$0xff]
      %vm2280 = vcmask 130048
      %v2282 = vsel %vm2280, %v2125, 0
      %v2285 = vsel %vm2280, %v2127, 0
      %v2288 = vsel %vm2280, %v2129, 0
      %v2291 = vsel %vm2280, %v2131, 0
      %v2294 = vsel %vm2280, %v2133, 0
      %v2297 = vsel %vm2280, %v2135, 0
      %2299 = vmatprep.subr.mxu0 %v2137
      %2300 = vmatpush1.msra.mxu0 %v2136
      %2301 = vmatprep.subr.mxu0 %v2145
      %2302 = vmatpush1.msra.mxu0 %v2144
      %2303 = vmatprep.subr.mxu0 %v2153
      %2304 = vmatpush1.msra.mxu0 %v2152
      %2305 = vmatprep.subr.mxu0 %v2161
      %2306 = vmatpush1.msra.mxu0 %v2160
      %2307 = vmatprep.subr.mxu0 %v2169
      %2308 = vmatpush1.msra.mxu0 %v2168
      %2309 = vmatprep.subr.mxu0 %v2177
      %2310 = vmatpush1.msra.mxu0 %v2176
      %2311 = vmatprep.subr.mxu0 %v2185
      %2312 = vmatpush1.msra.mxu0 %v2184
      %2313 = vmatprep.subr.mxu0 %v2193
      %2314 = vmatpush1.msra.mxu0 %v2192
      %2315 = vmatprep.subr.mxu0 %v2201
      %2316 = vmatpush1.msra.mxu0 %v2200
      %2317 = vmatprep.subr.mxu0 %v2209
      %2318 = vmatpush1.msra.mxu0 %v2208
      %2319 = vmatprep.subr.mxu0 %v2217
      %2320 = vmatpush1.msra.mxu0 %v2216
      %2321 = vmatprep.subr.mxu0 %v2225
      %2322 = vmatpush1.msra.mxu0 %v2224
      %2323 = vmatprep.subr.mxu0 %v2233
      %2324 = vmatpush1.msra.mxu0 %v2232
      %2325 = vmatprep.subr.mxu0 %v2241
      %2326 = vmatpush1.msra.mxu0 %v2240
      %2327 = vmatprep.subr.mxu0 %v2249
      %2328 = vmatpush1.msra.mxu0 %v2248
      %2329 = vmatprep.subr.mxu0 %v2257
      %2330 = vmatpush1.msra.mxu0 %v2256
      %2331 = vmatprep.subr.mxu0 %v2265
      %2332 = vmatpush1.msra.mxu0 %v2264
      %2333 = vmatprep.subr.mxu0 %v2273
      %2334 = vmatpush1.msra.mxu0 %v2272
      %2335 = vmatprep.subr.mxu0 0.0
      %2336 = vmatpush1.msra.mxu0 0.0
      %2337 = vmatprep.subr.mxu0 0.0
      %2338 = vmatpush1.msra.mxu0 0.0
      %2339 = vmatprep.subr.mxu0 0.0
      %2340 = vmatpush1.msra.mxu0 0.0
      %2341 = vmatprep.subr.mxu0 0.0
      %2342 = vmatpush1.msra.mxu0 0.0
      %2343 = vmatprep.subr.mxu0 0.0
      %2344 = vmatpush1.msra.mxu0 0.0
      %2345 = vmatprep.subr.mxu0 0.0
      %2346 = vmatpush1.msra.mxu0 0.0
      %2347 = vmatprep.subr.mxu0 0.0
      %2348 = vmatpush1.msra.mxu0 0.0
      %2349 = vmatprep.subr.mxu0 0.0
      %2350 = vmatpush1.msra.mxu0 0.0
      %2351 = vmatprep.subr.mxu0 0.0
      %2352 = vmatpush1.msra.mxu0 0.0
      %2353 = vmatprep.subr.mxu0 0.0
      %2354 = vmatpush1.msra.mxu0 0.0
      %2355 = vmatprep.subr.mxu0 0.0
      %2356 = vmatpush1.msra.mxu0 0.0
      %2357 = vmatprep.subr.mxu0 0.0
      %2358 = vmatpush1.msra.mxu0 0.0
      %2359 = vmatprep.subr.mxu0 0.0
      %2360 = vmatpush1.msra.mxu0 0.0
      %2361 = vmatprep.subr.mxu0 0.0
      %2362 = vmatpush1.msra.mxu0 0.0
      %2363 = vmatprep.mubr.f32.mxu0 %v2282
      %2364 = vmatmul.mubr.f32.gmra.mrb[0].mxu0 %v2124
      %v2365 = vpop.f32.mrb[0].mxu0
      %v2366 = vadd.f32 0.0, %v2365
      %v2367 = vpop.f32.mrb[0].mxu0
      %v2368 = vadd.f32 0.0, %v2367
      %2369 = vmatprep.mubr.f32.mxu0 %v2285
      %2370 = vmatmul.mubr.f32.gmra.mrb[0].mxu0 %v2126
      %v2371 = vpop.f32.mrb[0].mxu0
      %v2372 = vadd.f32 0.0, %v2371
      %v2373 = vpop.f32.mrb[0].mxu0
      %v2374 = vadd.f32 0.0, %v2373
      %2375 = vmatprep.mubr.f32.mxu0 %v2288
      %2376 = vmatmul.mubr.f32.gmra.mrb[0].mxu0 %v2128
      %v2377 = vpop.f32.mrb[0].mxu0
      %v2378 = vadd.f32 0.0, %v2377
      %v2379 = vpop.f32.mrb[0].mxu0
      %v2380 = vadd.f32 0.0, %v2379
      %2381 = vmatprep.mubr.f32.mxu0 %v2291
      %2382 = vmatmul.mubr.f32.gmra.mrb[0].mxu0 %v2130
      %v2383 = vpop.f32.mrb[0].mxu0
      %v2384 = vadd.f32 0.0, %v2383
      %v2385 = vpop.f32.mrb[0].mxu0
      %v2386 = vadd.f32 0.0, %v2385
      %2387 = vmatprep.mubr.f32.mxu0 %v2294
      %2388 = vmatmul.mubr.f32.gmra.mrb[0].mxu0 %v2132
      %v2389 = vpop.f32.mrb[0].mxu0
      %v2390 = vadd.f32 0.0, %v2389
      %v2391 = vpop.f32.mrb[0].mxu0
      %v2392 = vadd.f32 0.0, %v2391
      %2393 = vmatprep.mubr.f32.mxu0 %v2297
      %2394 = vmatmul.mubr.f32.gmra.mrb[0].mxu0 %v2134
      %v2395 = vpop.f32.mrb[0].mxu0
      %v2396 = vadd.f32 0.0, %v2395
      %v2397 = vpop.f32.mrb[0].mxu0
      %v2398 = vadd.f32 0.0, %v2397
      %2399 = vdwg.mxu0
      %2400 = vmatprep.subr.mxu0 %v2139
      %2401 = vmatpush1.msra.mxu0 %v2138
      %2402 = vmatprep.subr.mxu0 %v2147
      %2403 = vmatpush1.msra.mxu0 %v2146
      %2404 = vmatprep.subr.mxu0 %v2155
      %2405 = vmatpush1.msra.mxu0 %v2154
      %2406 = vmatprep.subr.mxu0 %v2163
      %2407 = vmatpush1.msra.mxu0 %v2162
      %2408 = vmatprep.subr.mxu0 %v2171
      %2409 = vmatpush1.msra.mxu0 %v2170
      %2410 = vmatprep.subr.mxu0 %v2179
      %2411 = vmatpush1.msra.mxu0 %v2178
      %2412 = vmatprep.subr.mxu0 %v2187
      %2413 = vmatpush1.msra.mxu0 %v2186
      %2414 = vmatprep.subr.mxu0 %v2195
      %2415 = vmatpush1.msra.mxu0 %v2194
      %2416 = vmatprep.subr.mxu0 %v2203
      %2417 = vmatpush1.msra.mxu0 %v2202
      %2418 = vmatprep.subr.mxu0 %v2211
      %2419 = vmatpush1.msra.mxu0 %v2210
      %2420 = vmatprep.subr.mxu0 %v2219
      %2421 = vmatpush1.msra.mxu0 %v2218
      %2422 = vmatprep.subr.mxu0 %v2227
      %2423 = vmatpush1.msra.mxu0 %v2226
      %2424 = vmatprep.subr.mxu0 %v2235
      %2425 = vmatpush1.msra.mxu0 %v2234
      %2426 = vmatprep.subr.mxu0 %v2243
      %2427 = vmatpush1.msra.mxu0 %v2242
      %2428 = vmatprep.subr.mxu0 %v2251
      %2429 = vmatpush1.msra.mxu0 %v2250
      %2430 = vmatprep.subr.mxu0 %v2259
      %2431 = vmatpush1.msra.mxu0 %v2258
      %2432 = vmatprep.subr.mxu0 %v2267
      %2433 = vmatpush1.msra.mxu0 %v2266
      %2434 = vmatprep.subr.mxu0 %v2275
      %2435 = vmatpush1.msra.mxu0 %v2274
      %2436 = vmatprep.subr.mxu0 0.0
      %2437 = vmatpush1.msra.mxu0 0.0
      %2438 = vmatprep.subr.mxu0 0.0
      %2439 = vmatpush1.msra.mxu0 0.0
      %2440 = vmatprep.subr.mxu0 0.0
      %2441 = vmatpush1.msra.mxu0 0.0
      %2442 = vmatprep.subr.mxu0 0.0
      %2443 = vmatpush1.msra.mxu0 0.0
      %2444 = vmatprep.subr.mxu0 0.0
      %2445 = vmatpush1.msra.mxu0 0.0
      %2446 = vmatprep.subr.mxu0 0.0
      %2447 = vmatpush1.msra.mxu0 0.0
      %2448 = vmatprep.subr.mxu0 0.0
      %2449 = vmatpush1.msra.mxu0 0.0
      %2450 = vmatprep.subr.mxu0 0.0
      %2451 = vmatpush1.msra.mxu0 0.0
      %2452 = vmatprep.subr.mxu0 0.0
      %2453 = vmatpush1.msra.mxu0 0.0
      %2454 = vmatprep.subr.mxu0 0.0
      %2455 = vmatpush1.msra.mxu0 0.0
      %2456 = vmatprep.subr.mxu0 0.0
      %2457 = vmatpush1.msra.mxu0 0.0
      %2458 = vmatprep.subr.mxu0 0.0
      %2459 = vmatpush1.msra.mxu0 0.0
      %2460 = vmatprep.subr.mxu0 0.0
      %2461 = vmatpush1.msra.mxu0 0.0
      %2462 = vmatprep.subr.mxu0 0.0
      %2463 = vmatpush1.msra.mxu0 0.0
      %2464 = vmatprep.mubr.f32.mxu0 %v2282
      %2465 = vmatmul.mubr.f32.gmra.mrb[0].mxu0 %v2124
      %v2466 = vpop.f32.mrb[0].mxu0
      %v2467 = vadd.f32 0.0, %v2466
      %v2468 = vpop.f32.mrb[0].mxu0
      %v2469 = vadd.f32 0.0, %v2468
      %2470 = vmatprep.mubr.f32.mxu0 %v2285
      %2471 = vmatmul.mubr.f32.gmra.mrb[0].mxu0 %v2126
      %v2472 = vpop.f32.mrb[0].mxu0
      %v2473 = vadd.f32 0.0, %v2472
      %v2474 = vpop.f32.mrb[0].mxu0
      %v2475 = vadd.f32 0.0, %v2474
      %2476 = vmatprep.mubr.f32.mxu0 %v2288
      %2477 = vmatmul.mubr.f32.gmra.mrb[0].mxu0 %v2128
      %v2478 = vpop.f32.mrb[0].mxu0
      %v2479 = vadd.f32 0.0, %v2478
      %v2480 = vpop.f32.mrb[0].mxu0
      %v2481 = vadd.f32 0.0, %v2480
      %2482 = vmatprep.mubr.f32.mxu0 %v2291
      %2483 = vmatmul.mubr.f32.gmra.mrb[0].mxu0 %v2130
      %v2484 = vpop.f32.mrb[0].mxu0
      %v2485 = vadd.f32 0.0, %v2484
      %v2486 = vpop.f32.mrb[0].mxu0
      %v2487 = vadd.f32 0.0, %v2486
      %2488 = vmatprep.mubr.f32.mxu0 %v2294
      %2489 = vmatmul.mubr.f32.gmra.mrb[0].mxu0 %v2132
      %v2490 = vpop.f32.mrb[0].mxu0
      %v2491 = vadd.f32 0.0, %v2490
      %v2492 = vpop.f32.mrb[0].mxu0
      %v2493 = vadd.f32 0.0, %v2492
      %2494 = vmatprep.mubr.f32.mxu0 %v2297
      %2495 = vmatmul.mubr.f32.gmra.mrb[0].mxu0 %v2134
      %v2496 = vpop.f32.mrb[0].mxu0
      %v2497 = vadd.f32 0.0, %v2496
      %v2498 = vpop.f32.mrb[0].mxu0
      %v2499 = vadd.f32 0.0, %v2498
      %2500 = vdwg.mxu0
      %2501 = vmatprep.subr.mxu0 %v2141
      %2502 = vmatpush1.msra.mxu0 %v2140
      %2503 = vmatprep.subr.mxu0 %v2149
      %2504 = vmatpush1.msra.mxu0 %v2148
      %2505 = vmatprep.subr.mxu0 %v2157
      %2506 = vmatpush1.msra.mxu0 %v2156
      %2507 = vmatprep.subr.mxu0 %v2165
      %2508 = vmatpush1.msra.mxu0 %v2164
      %2509 = vmatprep.subr.mxu0 %v2173
      %2510 = vmatpush1.msra.mxu0 %v2172
      %2511 = vmatprep.subr.mxu0 %v2181
      %2512 = vmatpush1.msra.mxu0 %v2180
      %2513 = vmatprep.subr.mxu0 %v2189
      %2514 = vmatpush1.msra.mxu0 %v2188
      %2515 = vmatprep.subr.mxu0 %v2197
      %2516 = vmatpush1.msra.mxu0 %v2196
      %2517 = vmatprep.subr.mxu0 %v2205
      %2518 = vmatpush1.msra.mxu0 %v2204
      %2519 = vmatprep.subr.mxu0 %v2213
      %2520 = vmatpush1.msra.mxu0 %v2212
      %2521 = vmatprep.subr.mxu0 %v2221
      %2522 = vmatpush1.msra.mxu0 %v2220
      %2523 = vmatprep.subr.mxu0 %v2229
      %2524 = vmatpush1.msra.mxu0 %v2228
      %2525 = vmatprep.subr.mxu0 %v2237
      %2526 = vmatpush1.msra.mxu0 %v2236
      %2527 = vmatprep.subr.mxu0 %v2245
      %2528 = vmatpush1.msra.mxu0 %v2244
      %2529 = vmatprep.subr.mxu0 %v2253
      %2530 = vmatpush1.msra.mxu0 %v2252
      %2531 = vmatprep.subr.mxu0 %v2261
      %2532 = vmatpush1.msra.mxu0 %v2260
      %2533 = vmatprep.subr.mxu0 %v2269
      %2534 = vmatpush1.msra.mxu0 %v2268
      %2535 = vmatprep.subr.mxu0 %v2277
      %2536 = vmatpush1.msra.mxu0 %v2276
      %2537 = vmatprep.subr.mxu0 0.0
      %2538 = vmatpush1.msra.mxu0 0.0
      %2539 = vmatprep.subr.mxu0 0.0
      %2540 = vmatpush1.msra.mxu0 0.0
      %2541 = vmatprep.subr.mxu0 0.0
      %2542 = vmatpush1.msra.mxu0 0.0
      %2543 = vmatprep.subr.mxu0 0.0
      %2544 = vmatpush1.msra.mxu0 0.0
      %2545 = vmatprep.subr.mxu0 0.0
      %2546 = vmatpush1.msra.mxu0 0.0
      %2547 = vmatprep.subr.mxu0 0.0
      %2548 = vmatpush1.msra.mxu0 0.0
      %2549 = vmatprep.subr.mxu0 0.0
      %2550 = vmatpush1.msra.mxu0 0.0
      %2551 = vmatprep.subr.mxu0 0.0
      %2552 = vmatpush1.msra.mxu0 0.0
      %2553 = vmatprep.subr.mxu0 0.0
      %2554 = vmatpush1.msra.mxu0 0.0
      %2555 = vmatprep.subr.mxu0 0.0
      %2556 = vmatpush1.msra.mxu0 0.0
      %2557 = vmatprep.subr.mxu0 0.0
      %2558 = vmatpush1.msra.mxu0 0.0
      %2559 = vmatprep.subr.mxu0 0.0
      %2560 = vmatpush1.msra.mxu0 0.0
      %2561 = vmatprep.subr.mxu0 0.0
      %2562 = vmatpush1.msra.mxu0 0.0
      %2563 = vmatprep.subr.mxu0 0.0
      %2564 = vmatpush1.msra.mxu0 0.0
      %2565 = vmatprep.mubr.f32.mxu0 %v2282
      %2566 = vmatmul.mubr.f32.gmra.mrb[0].mxu0 %v2124
      %v2567 = vpop.f32.mrb[0].mxu0
      %v2568 = vadd.f32 0.0, %v2567
      %v2569 = vpop.f32.mrb[0].mxu0
      %v2570 = vadd.f32 0.0, %v2569
      %2571 = vmatprep.mubr.f32.mxu0 %v2285
      %2572 = vmatmul.mubr.f32.gmra.mrb[0].mxu0 %v2126
      %v2573 = vpop.f32.mrb[0].mxu0
      %v2574 = vadd.f32 0.0, %v2573
      %v2575 = vpop.f32.mrb[0].mxu0
      %v2576 = vadd.f32 0.0, %v2575
      %2577 = vmatprep.mubr.f32.mxu0 %v2288
      %2578 = vmatmul.mubr.f32.gmra.mrb[0].mxu0 %v2128
      %v2579 = vpop.f32.mrb[0].mxu0
      %v2580 = vadd.f32 0.0, %v2579
      %v2581 = vpop.f32.mrb[0].mxu0
      %v2582 = vadd.f32 0.0, %v2581
      %2583 = vmatprep.mubr.f32.mxu0 %v2291
      %2584 = vmatmul.mubr.f32.gmra.mrb[0].mxu0 %v2130
      %v2585 = vpop.f32.mrb[0].mxu0
      %v2586 = vadd.f32 0.0, %v2585
      %v2587 = vpop.f32.mrb[0].mxu0
      %v2588 = vadd.f32 0.0, %v2587
      %2589 = vmatprep.mubr.f32.mxu0 %v2294
      %2590 = vmatmul.mubr.f32.gmra.mrb[0].mxu0 %v2132
      %v2591 = vpop.f32.mrb[0].mxu0
      %v2592 = vadd.f32 0.0, %v2591
      %v2593 = vpop.f32.mrb[0].mxu0
      %v2594 = vadd.f32 0.0, %v2593
      %2595 = vmatprep.mubr.f32.mxu0 %v2297
      %2596 = vmatmul.mubr.f32.gmra.mrb[0].mxu0 %v2134
      %v2597 = vpop.f32.mrb[0].mxu0
      %v2598 = vadd.f32 0.0, %v2597
      %v2599 = vpop.f32.mrb[0].mxu0
      %v2600 = vadd.f32 0.0, %v2599
      %2601 = vdwg.mxu0
      %2602 = vmatprep.subr.mxu0 %v2143
      %2603 = vmatpush1.msra.mxu0 %v2142
      %2604 = vmatprep.subr.mxu0 %v2151
      %2605 = vmatpush1.msra.mxu0 %v2150
      %2606 = vmatprep.subr.mxu0 %v2159
      %2607 = vmatpush1.msra.mxu0 %v2158
      %2608 = vmatprep.subr.mxu0 %v2167
      %2609 = vmatpush1.msra.mxu0 %v2166
      %2610 = vmatprep.subr.mxu0 %v2175
      %2611 = vmatpush1.msra.mxu0 %v2174
      %2612 = vmatprep.subr.mxu0 %v2183
      %2613 = vmatpush1.msra.mxu0 %v2182
      %2614 = vmatprep.subr.mxu0 %v2191
      %2615 = vmatpush1.msra.mxu0 %v2190
      %2616 = vmatprep.subr.mxu0 %v2199
      %2617 = vmatpush1.msra.mxu0 %v2198
      %2618 = vmatprep.subr.mxu0 %v2207
      %2619 = vmatpush1.msra.mxu0 %v2206
      %2620 = vmatprep.subr.mxu0 %v2215
      %2621 = vmatpush1.msra.mxu0 %v2214
      %2622 = vmatprep.subr.mxu0 %v2223
      %2623 = vmatpush1.msra.mxu0 %v2222
      %2624 = vmatprep.subr.mxu0 %v2231
      %2625 = vmatpush1.msra.mxu0 %v2230
      %2626 = vmatprep.subr.mxu0 %v2239
      %2627 = vmatpush1.msra.mxu0 %v2238
      %2628 = vmatprep.subr.mxu0 %v2247
      %2629 = vmatpush1.msra.mxu0 %v2246
      %2630 = vmatprep.subr.mxu0 %v2255
      %2631 = vmatpush1.msra.mxu0 %v2254
      %2632 = vmatprep.subr.mxu0 %v2263
      %2633 = vmatpush1.msra.mxu0 %v2262
      %2634 = vmatprep.subr.mxu0 %v2271
      %2635 = vmatpush1.msra.mxu0 %v2270
      %2636 = vmatprep.subr.mxu0 %v2279
      %2637 = vmatpush1.msra.mxu0 %v2278
      %2638 = vmatprep.subr.mxu0 0.0
      %2639 = vmatpush1.msra.mxu0 0.0
      %2640 = vmatprep.subr.mxu0 0.0
      %2641 = vmatpush1.msra.mxu0 0.0
      %2642 = vmatprep.subr.mxu0 0.0
      %2643 = vmatpush1.msra.mxu0 0.0
      %2644 = vmatprep.subr.mxu0 0.0
      %2645 = vmatpush1.msra.mxu0 0.0
      %2646 = vmatprep.subr.mxu0 0.0
      %2647 = vmatpush1.msra.mxu0 0.0
      %2648 = vmatprep.subr.mxu0 0.0
      %2649 = vmatpush1.msra.mxu0 0.0
      %2650 = vmatprep.subr.mxu0 0.0
      %2651 = vmatpush1.msra.mxu0 0.0
      %2652 = vmatprep.subr.mxu0 0.0
      %2653 = vmatpush1.msra.mxu0 0.0
      %2654 = vmatprep.subr.mxu0 0.0
      %2655 = vmatpush1.msra.mxu0 0.0
      %2656 = vmatprep.subr.mxu0 0.0
      %2657 = vmatpush1.msra.mxu0 0.0
      %2658 = vmatprep.subr.mxu0 0.0
      %2659 = vmatpush1.msra.mxu0 0.0
      %2660 = vmatprep.subr.mxu0 0.0
      %2661 = vmatpush1.msra.mxu0 0.0
      %2662 = vmatprep.subr.mxu0 0.0
      %2663 = vmatpush1.msra.mxu0 0.0
      %2664 = vmatprep.subr.mxu0 0.0
      %2665 = vmatpush1.msra.mxu0 0.0
      %2666 = vmatprep.mubr.f32.mxu0 %v2282
      %2667 = vmatmul.mubr.f32.gmra.mrb[0].mxu0 %v2124
      %v2668 = vpop.f32.mrb[0].mxu0
      %v2669 = vadd.f32 0.0, %v2668
      %v2670 = vpop.f32.mrb[0].mxu0
      %v2671 = vadd.f32 0.0, %v2670
      %2672 = vmatprep.mubr.f32.mxu0 %v2285
      %2673 = vmatmul.mubr.f32.gmra.mrb[0].mxu0 %v2126
      %v2674 = vpop.f32.mrb[0].mxu0
      %v2675 = vadd.f32 0.0, %v2674
      %v2676 = vpop.f32.mrb[0].mxu0
      %v2677 = vadd.f32 0.0, %v2676
      %2678 = vmatprep.mubr.f32.mxu0 %v2288
      %2679 = vmatmul.mubr.f32.gmra.mrb[0].mxu0 %v2128
      %v2680 = vpop.f32.mrb[0].mxu0
      %v2681 = vadd.f32 0.0, %v2680
      %v2682 = vpop.f32.mrb[0].mxu0
      %v2683 = vadd.f32 0.0, %v2682
      %2684 = vmatprep.mubr.f32.mxu0 %v2291
      %2685 = vmatmul.mubr.f32.gmra.mrb[0].mxu0 %v2130
      %v2686 = vpop.f32.mrb[0].mxu0
      %v2687 = vadd.f32 0.0, %v2686
      %v2688 = vpop.f32.mrb[0].mxu0
      %v2689 = vadd.f32 0.0, %v2688
      %2690 = vmatprep.mubr.f32.mxu0 %v2294
      %2691 = vmatmul.mubr.f32.gmra.mrb[0].mxu0 %v2132
      %v2692 = vpop.f32.mrb[0].mxu0
      %v2693 = vadd.f32 0.0, %v2692
      %v2694 = vpop.f32.mrb[0].mxu0
      %v2695 = vadd.f32 0.0, %v2694
      %2696 = vmatprep.mubr.f32.mxu0 %v2297
      %2697 = vmatmul.mubr.f32.gmra.mrb[0].mxu0 %v2134
      %v2698 = vpop.f32.mrb[0].mxu0
      %v2699 = vadd.f32 0.0, %v2698
      %v2700 = vpop.f32.mrb[0].mxu0
      %v2701 = vadd.f32 0.0, %v2700
      %2702 = vdwg.mxu0
      %v2703 = vmul.f32 %v2366, %v2366
      %v2704 = vmul.f32 %v2368, %v2368
      %v2705 = vmul.f32 %v2467, %v2467
      %v2706 = vmul.f32 %v2469, %v2469
      %v2707 = vmul.f32 %v2568, %v2568
      %v2708 = vmul.f32 %v2570, %v2570
      %v2709 = vmul.f32 %v2669, %v2669
      %v2710 = vmul.f32 %v2671, %v2671
      %v2711 = vmul.f32 %v2372, %v2372
      %v2712 = vmul.f32 %v2374, %v2374
      %v2713 = vmul.f32 %v2473, %v2473
      %v2714 = vmul.f32 %v2475, %v2475
      %v2715 = vmul.f32 %v2574, %v2574
      %v2716 = vmul.f32 %v2576, %v2576
      %v2717 = vmul.f32 %v2675, %v2675
      %v2718 = vmul.f32 %v2677, %v2677
      %v2719 = vadd.f32 %v2703, %v2704
      %v2720 = vadd.f32 %v2719, %v2705
      %v2721 = vadd.f32 %v2720, %v2706
      %v2722 = vadd.f32 %v2721, %v2707
      %v2723 = vadd.f32 %v2722, %v2708
      %v2724 = vadd.f32 %v2723, %v2709
      %v2725 = vadd.f32 %v2724, %v2710
      %2726 = vadd.xlane.f32.xlu0 %v2725
      %v2727 = vpop.xlane.xlu0 %2726
      %v2728 = vadd.f32 %v2711, %v2712
      %v2729 = vadd.f32 %v2728, %v2713
      %v2730 = vadd.f32 %v2729, %v2714
      %v2731 = vadd.f32 %v2730, %v2715
      %v2732 = vadd.f32 %v2731, %v2716
      %v2733 = vadd.f32 %v2732, %v2717
      %v2734 = vadd.f32 %v2733, %v2718
      %2735 = vadd.xlane.f32.xlu0 %v2734
      %v2736 = vpop.xlane.xlu0 %2735
      %v2737 = vrsqrt.pop %v2727
      %v2738 = vmul.f32 %v2727, %v2737
      %vm2739 = vcmp.eq.f32.partialorder %v2727, inf
      %v2740 = vsel %vm2739, %v2727, %v2738
      %vm2741 = vcmp.eq.f32.partialorder %v2727, 0.0
      %v2742 = vand.u32 %v2727, 2147483648
      %v2743 = vsel %vm2741, %v2742, %v2740
      %v2744 = vrsqrt.pop %v2736
      %v2745 = vmul.f32 %v2736, %v2744
      %vm2746 = vcmp.eq.f32.partialorder %v2736, inf
      %v2747 = vsel %vm2746, %v2736, %v2745
      %vm2748 = vcmp.eq.f32.partialorder %v2736, 0.0
      %v2749 = vand.u32 %v2736, 2147483648
      %v2750 = vsel %vm2748, %v2749, %v2747
      %v2751 = vmax.f32 %v2743, 1e-12
      %v2752 = vmax.f32 %v2750, 1e-12
      %v2753 = vrcp.pop %v2751
      %v2754 = vmul.f32 %v2366, %v2753
      %v2755 = vmul.f32 %v2368, %v2753
      %v2756 = vmul.f32 %v2467, %v2753
      %v2757 = vmul.f32 %v2469, %v2753
      %v2758 = vmul.f32 %v2568, %v2753
      %v2759 = vmul.f32 %v2570, %v2753
      %v2760 = vmul.f32 %v2669, %v2753
      %v2761 = vmul.f32 %v2671, %v2753
      %v2762 = vrcp.pop %v2752
      %v2763 = vmul.f32 %v2372, %v2762
      %v2764 = vmul.f32 %v2374, %v2762
      %v2765 = vmul.f32 %v2473, %v2762
      %v2766 = vmul.f32 %v2475, %v2762
      %v2767 = vmul.f32 %v2574, %v2762
      %v2768 = vmul.f32 %v2576, %v2762
      %v2769 = vmul.f32 %v2675, %v2762
      %v2770 = vmul.f32 %v2677, %v2762
      %v2771 = vmul.f32 %v2378, %v2378
      %v2772 = vmul.f32 %v2380, %v2380
      %v2773 = vmul.f32 %v2479, %v2479
      %v2774 = vmul.f32 %v2481, %v2481
      %v2775 = vmul.f32 %v2580, %v2580
      %v2776 = vmul.f32 %v2582, %v2582
      %v2777 = vmul.f32 %v2681, %v2681
      %v2778 = vmul.f32 %v2683, %v2683
      %v2779 = vmul.f32 %v2384, %v2384
      %v2780 = vmul.f32 %v2386, %v2386
      %v2781 = vmul.f32 %v2485, %v2485
      %v2782 = vmul.f32 %v2487, %v2487
      %v2783 = vmul.f32 %v2586, %v2586
      %v2784 = vmul.f32 %v2588, %v2588
      %v2785 = vmul.f32 %v2687, %v2687
      %v2786 = vmul.f32 %v2689, %v2689
      %v2787 = vadd.f32 %v2771, %v2772
      %v2788 = vadd.f32 %v2787, %v2773
      %v2789 = vadd.f32 %v2788, %v2774
      %v2790 = vadd.f32 %v2789, %v2775
      %v2791 = vadd.f32 %v2790, %v2776
      %v2792 = vadd.f32 %v2791, %v2777
      %v2793 = vadd.f32 %v2792, %v2778
      %2794 = vadd.xlane.f32.xlu0 %v2793
      %v2795 = vpop.xlane.xlu0 %2794
      %v2796 = vadd.f32 %v2779, %v2780
      %v2797 = vadd.f32 %v2796, %v2781
      %v2798 = vadd.f32 %v2797, %v2782
      %v2799 = vadd.f32 %v2798, %v2783
      %v2800 = vadd.f32 %v2799, %v2784
      %v2801 = vadd.f32 %v2800, %v2785
      %v2802 = vadd.f32 %v2801, %v2786
      %2803 = vadd.xlane.f32.xlu0 %v2802
      %v2804 = vpop.xlane.xlu0 %2803
      %v2805 = vrsqrt.pop %v2795
      %v2806 = vmul.f32 %v2795, %v2805
      %vm2807 = vcmp.eq.f32.partialorder %v2795, inf
      %v2808 = vsel %vm2807, %v2795, %v2806
      %vm2809 = vcmp.eq.f32.partialorder %v2795, 0.0
      %v2810 = vand.u32 %v2795, 2147483648
      %v2811 = vsel %vm2809, %v2810, %v2808
      %v2812 = vrsqrt.pop %v2804
      %v2813 = vmul.f32 %v2804, %v2812
      %vm2814 = vcmp.eq.f32.partialorder %v2804, inf
      %v2815 = vsel %vm2814, %v2804, %v2813
      %vm2816 = vcmp.eq.f32.partialorder %v2804, 0.0
      %v2817 = vand.u32 %v2804, 2147483648
      %v2818 = vsel %vm2816, %v2817, %v2815
      %v2819 = vmax.f32 %v2811, 1e-12
      %v2820 = vmax.f32 %v2818, 1e-12
      %v2821 = vrcp.pop %v2819
      %v2822 = vmul.f32 %v2378, %v2821
      %v2823 = vmul.f32 %v2380, %v2821
      %v2824 = vmul.f32 %v2479, %v2821
      %v2825 = vmul.f32 %v2481, %v2821
      %v2826 = vmul.f32 %v2580, %v2821
      %v2827 = vmul.f32 %v2582, %v2821
      %v2828 = vmul.f32 %v2681, %v2821
      %v2829 = vmul.f32 %v2683, %v2821
      %v2830 = vrcp.pop %v2820
      %v2831 = vmul.f32 %v2384, %v2830
      %v2832 = vmul.f32 %v2386, %v2830
      %v2833 = vmul.f32 %v2485, %v2830
      %v2834 = vmul.f32 %v2487, %v2830
      %v2835 = vmul.f32 %v2586, %v2830
      %v2836 = vmul.f32 %v2588, %v2830
      %v2837 = vmul.f32 %v2687, %v2830
      %v2838 = vmul.f32 %v2689, %v2830
      %2839 = vmatprep.subr.mxu0 %v2823
      %2840 = vmatpush1.xpose.msra.mxu0 %v2822
      %2841 = vmatprep.subr.mxu0 %v2832
      %2842 = vmatpush1.xpose.msra.mxu0 %v2831
      %2843 = vmatprep.subr.mxu0 0.0
      %2844 = vmatpush1.xpose.msra.mxu0 0.0
      %2845 = vmatprep.subr.mxu0 0.0
      %2846 = vmatpush1.xpose.msra.mxu0 0.0
      %2847 = vmatprep.subr.mxu0 0.0
      %2848 = vmatpush1.xpose.msra.mxu0 0.0
      %2849 = vmatprep.subr.mxu0 0.0
      %2850 = vmatpush1.xpose.msra.mxu0 0.0
      %2851 = vmatprep.subr.mxu0 0.0
      %2852 = vmatpush1.xpose.msra.mxu0 0.0
      %2853 = vmatprep.subr.mxu0 0.0
      %2854 = vmatpush1.xpose.msra.mxu0 0.0
      %2855 = vmatprep.subr.mxu0 0.0
      %2856 = vmatpush1.xpose.msra.mxu0 0.0
      %2857 = vmatprep.subr.mxu0 0.0
      %2858 = vmatpush1.xpose.msra.mxu0 0.0
      %2859 = vmatprep.subr.mxu0 0.0
      %2860 = vmatpush1.xpose.msra.mxu0 0.0
      %2861 = vmatprep.subr.mxu0 0.0
      %2862 = vmatpush1.xpose.msra.mxu0 0.0
      %2863 = vmatprep.subr.mxu0 0.0
      %2864 = vmatpush1.xpose.msra.mxu0 0.0
      %2865 = vmatprep.subr.mxu0 0.0
      %2866 = vmatpush1.xpose.msra.mxu0 0.0
      %2867 = vmatprep.subr.mxu0 0.0
      %2868 = vmatpush1.xpose.msra.mxu0 0.0
      %2869 = vmatprep.subr.mxu0 0.0
      %2870 = vmatpush1.xpose.msra.mxu0 0.0
      %2871 = vmatprep.subr.mxu0 0.0
      %2872 = vmatpush1.xpose.msra.mxu0 0.0
      %2873 = vmatprep.subr.mxu0 0.0
      %2874 = vmatpush1.xpose.msra.mxu0 0.0
      %2875 = vmatprep.subr.mxu0 0.0
      %2876 = vmatpush1.xpose.msra.mxu0 0.0
      %2877 = vmatprep.subr.mxu0 0.0
      %2878 = vmatpush1.xpose.msra.mxu0 0.0
      %2879 = vmatprep.subr.mxu0 0.0
      %2880 = vmatpush1.xpose.msra.mxu0 0.0
      %2881 = vmatprep.subr.mxu0 0.0
      %2882 = vmatpush1.xpose.msra.mxu0 0.0
      %2883 = vmatprep.subr.mxu0 0.0
      %2884 = vmatpush1.xpose.msra.mxu0 0.0
      %2885 = vmatprep.subr.mxu0 0.0
      %2886 = vmatpush1.xpose.msra.mxu0 0.0
      %2887 = vmatprep.subr.mxu0 0.0
      %2888 = vmatpush1.xpose.msra.mxu0 0.0
      %2889 = vmatprep.subr.mxu0 0.0
      %2890 = vmatpush1.xpose.msra.mxu0 0.0
      %2891 = vmatprep.subr.mxu0 0.0
      %2892 = vmatpush1.xpose.msra.mxu0 0.0
      %2893 = vmatprep.subr.mxu0 0.0
      %2894 = vmatpush1.xpose.msra.mxu0 0.0
      %2895 = vmatprep.subr.mxu0 0.0
      %2896 = vmatpush1.xpose.msra.mxu0 0.0
      %2897 = vmatprep.subr.mxu0 0.0
      %2898 = vmatpush1.xpose.msra.mxu0 0.0
      %2899 = vmatprep.subr.mxu0 0.0
      %2900 = vmatpush1.xpose.msra.mxu0 0.0
      %2901 = vmatprep.subr.mxu0 0.0
      %2902 = vmatpush1.xpose.msra.mxu0 0.0
      %2903 = vmatprep.mubr.f32.mxu0 %v2755
      %2904 = vmatmul.mubr.f32.gmra.mrb[0].mxu0 %v2754
      %v2905 = vpop.f32.mrb[0].mxu0
      %v2906 = vadd.f32 0.0, %v2905
      %v2907 = vpop.f32.mrb[0].mxu0
      %2908 = vmatprep.mubr.f32.mxu0 %v2764
      %2909 = vmatmul.mubr.f32.gmra.mrb[0].mxu0 %v2763
      %v2910 = vpop.f32.mrb[0].mxu0
      %v2911 = vadd.f32 0.0, %v2910
      %v2912 = vpop.f32.mrb[0].mxu0
      %2913 = vdwg.mxu0
      %2914 = vmatprep.subr.mxu0 %v2825
      %2915 = vmatpush1.xpose.msra.mxu0 %v2824
      %2916 = vmatprep.subr.mxu0 %v2834
      %2917 = vmatpush1.xpose.msra.mxu0 %v2833
      %2918 = vmatprep.subr.mxu0 0.0
      %2919 = vmatpush1.xpose.msra.mxu0 0.0
      %2920 = vmatprep.subr.mxu0 0.0
      %2921 = vmatpush1.xpose.msra.mxu0 0.0
      %2922 = vmatprep.subr.mxu0 0.0
      %2923 = vmatpush1.xpose.msra.mxu0 0.0
      %2924 = vmatprep.subr.mxu0 0.0
      %2925 = vmatpush1.xpose.msra.mxu0 0.0
      %2926 = vmatprep.subr.mxu0 0.0
      %2927 = vmatpush1.xpose.msra.mxu0 0.0
      %2928 = vmatprep.subr.mxu0 0.0
      %2929 = vmatpush1.xpose.msra.mxu0 0.0
      %2930 = vmatprep.subr.mxu0 0.0
      %2931 = vmatpush1.xpose.msra.mxu0 0.0
      %2932 = vmatprep.subr.mxu0 0.0
      %2933 = vmatpush1.xpose.msra.mxu0 0.0
      %2934 = vmatprep.subr.mxu0 0.0
      %2935 = vmatpush1.xpose.msra.mxu0 0.0
      %2936 = vmatprep.subr.mxu0 0.0
      %2937 = vmatpush1.xpose.msra.mxu0 0.0
      %2938 = vmatprep.subr.mxu0 0.0
      %2939 = vmatpush1.xpose.msra.mxu0 0.0
      %2940 = vmatprep.subr.mxu0 0.0
      %2941 = vmatpush1.xpose.msra.mxu0 0.0
      %2942 = vmatprep.subr.mxu0 0.0
      %2943 = vmatpush1.xpose.msra.mxu0 0.0
      %2944 = vmatprep.subr.mxu0 0.0
      %2945 = vmatpush1.xpose.msra.mxu0 0.0
      %2946 = vmatprep.subr.mxu0 0.0
      %2947 = vmatpush1.xpose.msra.mxu0 0.0
      %2948 = vmatprep.subr.mxu0 0.0
      %2949 = vmatpush1.xpose.msra.mxu0 0.0
      %2950 = vmatprep.subr.mxu0 0.0
      %2951 = vmatpush1.xpose.msra.mxu0 0.0
      %2952 = vmatprep.subr.mxu0 0.0
      %2953 = vmatpush1.xpose.msra.mxu0 0.0
      %2954 = vmatprep.subr.mxu0 0.0
      %2955 = vmatpush1.xpose.msra.mxu0 0.0
      %2956 = vmatprep.subr.mxu0 0.0
      %2957 = vmatpush1.xpose.msra.mxu0 0.0
      %2958 = vmatprep.subr.mxu0 0.0
      %2959 = vmatpush1.xpose.msra.mxu0 0.0
      %2960 = vmatprep.subr.mxu0 0.0
      %2961 = vmatpush1.xpose.msra.mxu0 0.0
      %2962 = vmatprep.subr.mxu0 0.0
      %2963 = vmatpush1.xpose.msra.mxu0 0.0
      %2964 = vmatprep.subr.mxu0 0.0
      %2965 = vmatpush1.xpose.msra.mxu0 0.0
      %2966 = vmatprep.subr.mxu0 0.0
      %2967 = vmatpush1.xpose.msra.mxu0 0.0
      %2968 = vmatprep.subr.mxu0 0.0
      %2969 = vmatpush1.xpose.msra.mxu0 0.0
      %2970 = vmatprep.subr.mxu0 0.0
      %2971 = vmatpush1.xpose.msra.mxu0 0.0
      %2972 = vmatprep.subr.mxu0 0.0
      %2973 = vmatpush1.xpose.msra.mxu0 0.0
      %2974 = vmatprep.subr.mxu0 0.0
      %2975 = vmatpush1.xpose.msra.mxu0 0.0
      %2976 = vmatprep.subr.mxu0 0.0
      %2977 = vmatpush1.xpose.msra.mxu0 0.0
      %2978 = vmatprep.mubr.f32.mxu0 %v2757
      %2979 = vmatmul.mubr.f32.gmra.mrb[0].mxu0 %v2756
      %v2980 = vpop.f32.mrb[0].mxu0
      %v2981 = vadd.f32 %v2906, %v2980
      %v2982 = vpop.f32.mrb[0].mxu0
      %2983 = vmatprep.mubr.f32.mxu0 %v2766
      %2984 = vmatmul.mubr.f32.gmra.mrb[0].mxu0 %v2765
      %v2985 = vpop.f32.mrb[0].mxu0
      %v2986 = vadd.f32 %v2911, %v2985
      %v2987 = vpop.f32.mrb[0].mxu0
      %2988 = vdwg.mxu0
      %2989 = vmatprep.subr.mxu0 %v2827
      %2990 = vmatpush1.xpose.msra.mxu0 %v2826
      %2991 = vmatprep.subr.mxu0 %v2836
      %2992 = vmatpush1.xpose.msra.mxu0 %v2835
      %2993 = vmatprep.subr.mxu0 0.0
      %2994 = vmatpush1.xpose.msra.mxu0 0.0
      %2995 = vmatprep.subr.mxu0 0.0
      %2996 = vmatpush1.xpose.msra.mxu0 0.0
      %2997 = vmatprep.subr.mxu0 0.0
      %2998 = vmatpush1.xpose.msra.mxu0 0.0
      %2999 = vmatprep.subr.mxu0 0.0
      %3000 = vmatpush1.xpose.msra.mxu0 0.0
      %3001 = vmatprep.subr.mxu0 0.0
      %3002 = vmatpush1.xpose.msra.mxu0 0.0
      %3003 = vmatprep.subr.mxu0 0.0
      %3004 = vmatpush1.xpose.msra.mxu0 0.0
      %3005 = vmatprep.subr.mxu0 0.0
      %3006 = vmatpush1.xpose.msra.mxu0 0.0
      %3007 = vmatprep.subr.mxu0 0.0
      %3008 = vmatpush1.xpose.msra.mxu0 0.0
      %3009 = vmatprep.subr.mxu0 0.0
      %3010 = vmatpush1.xpose.msra.mxu0 0.0
      %3011 = vmatprep.subr.mxu0 0.0
      %3012 = vmatpush1.xpose.msra.mxu0 0.0
      %3013 = vmatprep.subr.mxu0 0.0
      %3014 = vmatpush1.xpose.msra.mxu0 0.0
      %3015 = vmatprep.subr.mxu0 0.0
      %3016 = vmatpush1.xpose.msra.mxu0 0.0
      %3017 = vmatprep.subr.mxu0 0.0
      %3018 = vmatpush1.xpose.msra.mxu0 0.0
      %3019 = vmatprep.subr.mxu0 0.0
      %3020 = vmatpush1.xpose.msra.mxu0 0.0
      %3021 = vmatprep.subr.mxu0 0.0
      %3022 = vmatpush1.xpose.msra.mxu0 0.0
      %3023 = vmatprep.subr.mxu0 0.0
      %3024 = vmatpush1.xpose.msra.mxu0 0.0
      %3025 = vmatprep.subr.mxu0 0.0
      %3026 = vmatpush1.xpose.msra.mxu0 0.0
      %3027 = vmatprep.subr.mxu0 0.0
      %3028 = vmatpush1.xpose.msra.mxu0 0.0
      %3029 = vmatprep.subr.mxu0 0.0
      %3030 = vmatpush1.xpose.msra.mxu0 0.0
      %3031 = vmatprep.subr.mxu0 0.0
      %3032 = vmatpush1.xpose.msra.mxu0 0.0
      %3033 = vmatprep.subr.mxu0 0.0
      %3034 = vmatpush1.xpose.msra.mxu0 0.0
      %3035 = vmatprep.subr.mxu0 0.0
      %3036 = vmatpush1.xpose.msra.mxu0 0.0
      %3037 = vmatprep.subr.mxu0 0.0
      %3038 = vmatpush1.xpose.msra.mxu0 0.0
      %3039 = vmatprep.subr.mxu0 0.0
      %3040 = vmatpush1.xpose.msra.mxu0 0.0
      %3041 = vmatprep.subr.mxu0 0.0
      %3042 = vmatpush1.xpose.msra.mxu0 0.0
      %3043 = vmatprep.subr.mxu0 0.0
      %3044 = vmatpush1.xpose.msra.mxu0 0.0
      %3045 = vmatprep.subr.mxu0 0.0
      %3046 = vmatpush1.xpose.msra.mxu0 0.0
      %3047 = vmatprep.subr.mxu0 0.0
      %3048 = vmatpush1.xpose.msra.mxu0 0.0
      %3049 = vmatprep.subr.mxu0 0.0
      %3050 = vmatpush1.xpose.msra.mxu0 0.0
      %3051 = vmatprep.subr.mxu0 0.0
      %3052 = vmatpush1.xpose.msra.mxu0 0.0
      %3053 = vmatprep.mubr.f32.mxu0 %v2759
      %3054 = vmatmul.mubr.f32.gmra.mrb[0].mxu0 %v2758
      %v3055 = vpop.f32.mrb[0].mxu0
      %v3056 = vadd.f32 %v2981, %v3055
      %v3057 = vpop.f32.mrb[0].mxu0
      %3058 = vmatprep.mubr.f32.mxu0 %v2768
      %3059 = vmatmul.mubr.f32.gmra.mrb[0].mxu0 %v2767
      %v3060 = vpop.f32.mrb[0].mxu0
      %v3061 = vadd.f32 %v2986, %v3060
      %v3062 = vpop.f32.mrb[0].mxu0
      %3063 = vdwg.mxu0
      %3064 = vmatprep.subr.mxu0 %v2829
      %3065 = vmatpush1.xpose.msra.mxu0 %v2828
      %3066 = vmatprep.subr.mxu0 %v2838
      %3067 = vmatpush1.xpose.msra.mxu0 %v2837
      %3068 = vmatprep.subr.mxu0 0.0
      %3069 = vmatpush1.xpose.msra.mxu0 0.0
      %3070 = vmatprep.subr.mxu0 0.0
      %3071 = vmatpush1.xpose.msra.mxu0 0.0
      %3072 = vmatprep.subr.mxu0 0.0
      %3073 = vmatpush1.xpose.msra.mxu0 0.0
      %3074 = vmatprep.subr.mxu0 0.0
      %3075 = vmatpush1.xpose.msra.mxu0 0.0
      %3076 = vmatprep.subr.mxu0 0.0
      %3077 = vmatpush1.xpose.msra.mxu0 0.0
      %3078 = vmatprep.subr.mxu0 0.0
      %3079 = vmatpush1.xpose.msra.mxu0 0.0
      %3080 = vmatprep.subr.mxu0 0.0
      %3081 = vmatpush1.xpose.msra.mxu0 0.0
      %3082 = vmatprep.subr.mxu0 0.0
      %3083 = vmatpush1.xpose.msra.mxu0 0.0
      %3084 = vmatprep.subr.mxu0 0.0
      %3085 = vmatpush1.xpose.msra.mxu0 0.0
      %3086 = vmatprep.subr.mxu0 0.0
      %3087 = vmatpush1.xpose.msra.mxu0 0.0
      %3088 = vmatprep.subr.mxu0 0.0
      %3089 = vmatpush1.xpose.msra.mxu0 0.0
      %3090 = vmatprep.subr.mxu0 0.0
      %3091 = vmatpush1.xpose.msra.mxu0 0.0
      %3092 = vmatprep.subr.mxu0 0.0
      %3093 = vmatpush1.xpose.msra.mxu0 0.0
      %3094 = vmatprep.subr.mxu0 0.0
      %3095 = vmatpush1.xpose.msra.mxu0 0.0
      %3096 = vmatprep.subr.mxu0 0.0
      %3097 = vmatpush1.xpose.msra.mxu0 0.0
      %3098 = vmatprep.subr.mxu0 0.0
      %3099 = vmatpush1.xpose.msra.mxu0 0.0
      %3100 = vmatprep.subr.mxu0 0.0
      %3101 = vmatpush1.xpose.msra.mxu0 0.0
      %3102 = vmatprep.subr.mxu0 0.0
      %3103 = vmatpush1.xpose.msra.mxu0 0.0
      %3104 = vmatprep.subr.mxu0 0.0
      %3105 = vmatpush1.xpose.msra.mxu0 0.0
      %3106 = vmatprep.subr.mxu0 0.0
      %3107 = vmatpush1.xpose.msra.mxu0 0.0
      %3108 = vmatprep.subr.mxu0 0.0
      %3109 = vmatpush1.xpose.msra.mxu0 0.0
      %3110 = vmatprep.subr.mxu0 0.0
      %3111 = vmatpush1.xpose.msra.mxu0 0.0
      %3112 = vmatprep.subr.mxu0 0.0
      %3113 = vmatpush1.xpose.msra.mxu0 0.0
      %3114 = vmatprep.subr.mxu0 0.0
      %3115 = vmatpush1.xpose.msra.mxu0 0.0
      %3116 = vmatprep.subr.mxu0 0.0
      %3117 = vmatpush1.xpose.msra.mxu0 0.0
      %3118 = vmatprep.subr.mxu0 0.0
      %3119 = vmatpush1.xpose.msra.mxu0 0.0
      %3120 = vmatprep.subr.mxu0 0.0
      %3121 = vmatpush1.xpose.msra.mxu0 0.0
      %3122 = vmatprep.subr.mxu0 0.0
      %3123 = vmatpush1.xpose.msra.mxu0 0.0
      %3124 = vmatprep.subr.mxu0 0.0
      %3125 = vmatpush1.xpose.msra.mxu0 0.0
      %3126 = vmatprep.subr.mxu0 0.0
      %3127 = vmatpush1.xpose.msra.mxu0 0.0
      %3128 = vmatprep.mubr.f32.mxu0 %v2761
      %3129 = vmatmul.mubr.f32.gmra.mrb[0].mxu0 %v2760
      %v3130 = vpop.f32.mrb[0].mxu0
      %v3131 = vadd.f32 %v3056, %v3130
      %v3132 = vpop.f32.mrb[0].mxu0
      %3133 = vmatprep.mubr.f32.mxu0 %v2770
      %3134 = vmatmul.mubr.f32.gmra.mrb[0].mxu0 %v2769
      %v3135 = vpop.f32.mrb[0].mxu0
      %v3136 = vadd.f32 %v3061, %v3135
      %v3137 = vpop.f32.mrb[0].mxu0
      %3138 = vdwg.mxu0
      %v3139 = vld [vmem:[%s5] sm:$0xff]
      %v3140 = vld [vmem:[%s5 + $0x8] sm:$0xff]
      %v3141 = vmul.f32 %v3131, %v3139
      %v3142 = vmul.f32 %v3136, %v3140
      %v3143 = vld [vmem:[%s6] sm:$0xff]
      %v3144 = vld [vmem:[%s6 + $0x8] sm:$0xff]
      %v3145 = vadd.f32 %v3141, %v3143
      %v3146 = vadd.f32 %v3142, %v3144
      %v3147 = vsel %vm2280, %v3145, -inf
      %3148 = vmax.xlane.f32.xlu0 %v3147
      %v3149 = vpop.xlane.xlu0 %3148
      %v3150 = vsel %vm2280, %v3146, -inf
      %3151 = vmax.xlane.f32.xlu0 %v3150
      %v3152 = vpop.xlane.xlu0 %3151
      %v3153 = vsub.f32 %v3145, %v3149
      %v3154 = vsub.f32 %v3146, %v3152
      %v3155 = vmul.f32 %v3153, 1.442695
      %v3156 = vpow.pop %v3155
      %v3157 = vmul.f32 %v3154, 1.442695
      %v3158 = vpow.pop %v3157
      %v3159 = vsel %vm2280, %v3156, 0.0
      %3160 = vadd.xlane.f32.xlu0 %v3159
      %v3161 = vpop.xlane.xlu0 %3160
      %v3162 = vsel %vm2280, %v3158, 0.0
      %3163 = vadd.xlane.f32.xlu0 %v3162
      %v3164 = vpop.xlane.xlu0 %3163
      %v3165 = vrcp.pop %v3161
      %v3166 = vmul.f32 %v3156, %v3165
      %v3167 = vrcp.pop %v3164
      %v3168 = vmul.f32 %v3158, %v3167
      %v3170 = vsel %vm2280, %v3166, 0
      %v3173 = vsel %vm2280, %v3168, 0
      %3175 = vmatprep.subr.mxu0 %v2392
      %3176 = vmatpush1.msra.mxu0 %v2390
      %3177 = vmatprep.subr.mxu0 %v2398
      %3178 = vmatpush1.msra.mxu0 %v2396
      %3179 = vmatprep.subr.mxu0 0.0
      %3180 = vmatpush1.msra.mxu0 0.0
      %3181 = vmatprep.subr.mxu0 0.0
      %3182 = vmatpush1.msra.mxu0 0.0
      %3183 = vmatprep.subr.mxu0 0.0
      %3184 = vmatpush1.msra.mxu0 0.0
      %3185 = vmatprep.subr.mxu0 0.0
      %3186 = vmatpush1.msra.mxu0 0.0
      %3187 = vmatprep.subr.mxu0 0.0
      %3188 = vmatpush1.msra.mxu0 0.0
      %3189 = vmatprep.subr.mxu0 0.0
      %3190 = vmatpush1.msra.mxu0 0.0
      %3191 = vmatprep.subr.mxu0 0.0
      %3192 = vmatpush1.msra.mxu0 0.0
      %3193 = vmatprep.subr.mxu0 0.0
      %3194 = vmatpush1.msra.mxu0 0.0
      %3195 = vmatprep.subr.mxu0 0.0
      %3196 = vmatpush1.msra.mxu0 0.0
      %3197 = vmatprep.subr.mxu0 0.0
      %3198 = vmatpush1.msra.mxu0 0.0
      %3199 = vmatprep.subr.mxu0 0.0
      %3200 = vmatpush1.msra.mxu0 0.0
      %3201 = vmatprep.subr.mxu0 0.0
      %3202 = vmatpush1.msra.mxu0 0.0
      %3203 = vmatprep.subr.mxu0 0.0
      %3204 = vmatpush1.msra.mxu0 0.0
      %3205 = vmatprep.subr.mxu0 0.0
      %3206 = vmatpush1.msra.mxu0 0.0
      %3207 = vmatprep.subr.mxu0 0.0
      %3208 = vmatpush1.msra.mxu0 0.0
      %3209 = vmatprep.subr.mxu0 0.0
      %3210 = vmatpush1.msra.mxu0 0.0
      %3211 = vmatprep.subr.mxu0 0.0
      %3212 = vmatpush1.msra.mxu0 0.0
      %3213 = vmatprep.subr.mxu0 0.0
      %3214 = vmatpush1.msra.mxu0 0.0
      %3215 = vmatprep.subr.mxu0 0.0
      %3216 = vmatpush1.msra.mxu0 0.0
      %3217 = vmatprep.subr.mxu0 0.0
      %3218 = vmatpush1.msra.mxu0 0.0
      %3219 = vmatprep.subr.mxu0 0.0
      %3220 = vmatpush1.msra.mxu0 0.0
      %3221 = vmatprep.subr.mxu0 0.0
      %3222 = vmatpush1.msra.mxu0 0.0
      %3223 = vmatprep.subr.mxu0 0.0
      %3224 = vmatpush1.msra.mxu0 0.0
      %3225 = vmatprep.subr.mxu0 0.0
      %3226 = vmatpush1.msra.mxu0 0.0
      %3227 = vmatprep.subr.mxu0 0.0
      %3228 = vmatpush1.msra.mxu0 0.0
      %3229 = vmatprep.subr.mxu0 0.0
      %3230 = vmatpush1.msra.mxu0 0.0
      %3231 = vmatprep.subr.mxu0 0.0
      %3232 = vmatpush1.msra.mxu0 0.0
      %3233 = vmatprep.subr.mxu0 0.0
      %3234 = vmatpush1.msra.mxu0 0.0
      %3235 = vmatprep.subr.mxu0 0.0
      %3236 = vmatpush1.msra.mxu0 0.0
      %3237 = vmatprep.subr.mxu0 0.0
      %3238 = vmatpush1.msra.mxu0 0.0
      %3239 = vmatprep.mubr.f32.mxu0 0.0
      %3240 = vmatmul.mubr.f32.gmra.mrb[0].mxu0 %v3170
      %v3241 = vpop.f32.mrb[0].mxu0
      %v3242 = vadd.f32 0.0, %v3241
      %v3243 = vpop.f32.mrb[0].mxu0
      %v3244 = vadd.f32 0.0, %v3243
      %3245 = vmatprep.mubr.f32.mxu0 0.0
      %3246 = vmatmul.mubr.f32.gmra.mrb[0].mxu0 %v3173
      %v3247 = vpop.f32.mrb[0].mxu0
      %v3248 = vadd.f32 0.0, %v3247
      %v3249 = vpop.f32.mrb[0].mxu0
      %v3250 = vadd.f32 0.0, %v3249
      %3251 = vdwg.mxu0
      %3252 = vmatprep.subr.mxu0 %v2493
      %3253 = vmatpush1.msra.mxu0 %v2491
      %3254 = vmatprep.subr.mxu0 %v2499
      %3255 = vmatpush1.msra.mxu0 %v2497
      %3256 = vmatprep.subr.mxu0 0.0
      %3257 = vmatpush1.msra.mxu0 0.0
      %3258 = vmatprep.subr.mxu0 0.0
      %3259 = vmatpush1.msra.mxu0 0.0
      %3260 = vmatprep.subr.mxu0 0.0
      %3261 = vmatpush1.msra.mxu0 0.0
      %3262 = vmatprep.subr.mxu0 0.0
      %3263 = vmatpush1.msra.mxu0 0.0
      %3264 = vmatprep.subr.mxu0 0.0
      %3265 = vmatpush1.msra.mxu0 0.0
      %3266 = vmatprep.subr.mxu0 0.0
      %3267 = vmatpush1.msra.mxu0 0.0
      %3268 = vmatprep.subr.mxu0 0.0
      %3269 = vmatpush1.msra.mxu0 0.0
      %3270 = vmatprep.subr.mxu0 0.0
      %3271 = vmatpush1.msra.mxu0 0.0
      %3272 = vmatprep.subr.mxu0 0.0
      %3273 = vmatpush1.msra.mxu0 0.0
      %3274 = vmatprep.subr.mxu0 0.0
      %3275 = vmatpush1.msra.mxu0 0.0
      %3276 = vmatprep.subr.mxu0 0.0
      %3277 = vmatpush1.msra.mxu0 0.0
      %3278 = vmatprep.subr.mxu0 0.0
      %3279 = vmatpush1.msra.mxu0 0.0
      %3280 = vmatprep.subr.mxu0 0.0
      %3281 = vmatpush1.msra.mxu0 0.0
      %3282 = vmatprep.subr.mxu0 0.0
      %3283 = vmatpush1.msra.mxu0 0.0
      %3284 = vmatprep.subr.mxu0 0.0
      %3285 = vmatpush1.msra.mxu0 0.0
      %3286 = vmatprep.subr.mxu0 0.0
      %3287 = vmatpush1.msra.mxu0 0.0
      %3288 = vmatprep.subr.mxu0 0.0
      %3289 = vmatpush1.msra.mxu0 0.0
      %3290 = vmatprep.subr.mxu0 0.0
      %3291 = vmatpush1.msra.mxu0 0.0
      %3292 = vmatprep.subr.mxu0 0.0
      %3293 = vmatpush1.msra.mxu0 0.0
      %3294 = vmatprep.subr.mxu0 0.0
      %3295 = vmatpush1.msra.mxu0 0.0
      %3296 = vmatprep.subr.mxu0 0.0
      %3297 = vmatpush1.msra.mxu0 0.0
      %3298 = vmatprep.subr.mxu0 0.0
      %3299 = vmatpush1.msra.mxu0 0.0
      %3300 = vmatprep.subr.mxu0 0.0
      %3301 = vmatpush1.msra.mxu0 0.0
      %3302 = vmatprep.subr.mxu0 0.0
      %3303 = vmatpush1.msra.mxu0 0.0
      %3304 = vmatprep.subr.mxu0 0.0
      %3305 = vmatpush1.msra.mxu0 0.0
      %3306 = vmatprep.subr.mxu0 0.0
      %3307 = vmatpush1.msra.mxu0 0.0
      %3308 = vmatprep.subr.mxu0 0.0
      %3309 = vmatpush1.msra.mxu0 0.0
      %3310 = vmatprep.subr.mxu0 0.0
      %3311 = vmatpush1.msra.mxu0 0.0
      %3312 = vmatprep.subr.mxu0 0.0
      %3313 = vmatpush1.msra.mxu0 0.0
      %3314 = vmatprep.subr.mxu0 0.0
      %3315 = vmatpush1.msra.mxu0 0.0
      %3316 = vmatprep.mubr.f32.mxu0 0.0
      %3317 = vmatmul.mubr.f32.gmra.mrb[0].mxu0 %v3170
      %v3318 = vpop.f32.mrb[0].mxu0
      %v3319 = vadd.f32 0.0, %v3318
      %v3320 = vpop.f32.mrb[0].mxu0
      %v3321 = vadd.f32 0.0, %v3320
      %3322 = vmatprep.mubr.f32.mxu0 0.0
      %3323 = vmatmul.mubr.f32.gmra.mrb[0].mxu0 %v3173
      %v3324 = vpop.f32.mrb[0].mxu0
      %v3325 = vadd.f32 0.0, %v3324
      %v3326 = vpop.f32.mrb[0].mxu0
      %v3327 = vadd.f32 0.0, %v3326
      %3328 = vdwg.mxu0
      %3329 = vmatprep.subr.mxu0 %v2594
      %3330 = vmatpush1.msra.mxu0 %v2592
      %3331 = vmatprep.subr.mxu0 %v2600
      %3332 = vmatpush1.msra.mxu0 %v2598
      %3333 = vmatprep.subr.mxu0 0.0
      %3334 = vmatpush1.msra.mxu0 0.0
      %3335 = vmatprep.subr.mxu0 0.0
      %3336 = vmatpush1.msra.mxu0 0.0
      %3337 = vmatprep.subr.mxu0 0.0
      %3338 = vmatpush1.msra.mxu0 0.0
      %3339 = vmatprep.subr.mxu0 0.0
      %3340 = vmatpush1.msra.mxu0 0.0
      %3341 = vmatprep.subr.mxu0 0.0
      %3342 = vmatpush1.msra.mxu0 0.0
      %3343 = vmatprep.subr.mxu0 0.0
      %3344 = vmatpush1.msra.mxu0 0.0
      %3345 = vmatprep.subr.mxu0 0.0
      %3346 = vmatpush1.msra.mxu0 0.0
      %3347 = vmatprep.subr.mxu0 0.0
      %3348 = vmatpush1.msra.mxu0 0.0
      %3349 = vmatprep.subr.mxu0 0.0
      %3350 = vmatpush1.msra.mxu0 0.0
      %3351 = vmatprep.subr.mxu0 0.0
      %3352 = vmatpush1.msra.mxu0 0.0
      %3353 = vmatprep.subr.mxu0 0.0
      %3354 = vmatpush1.msra.mxu0 0.0
      %3355 = vmatprep.subr.mxu0 0.0
      %3356 = vmatpush1.msra.mxu0 0.0
      %3357 = vmatprep.subr.mxu0 0.0
      %3358 = vmatpush1.msra.mxu0 0.0
      %3359 = vmatprep.subr.mxu0 0.0
      %3360 = vmatpush1.msra.mxu0 0.0
      %3361 = vmatprep.subr.mxu0 0.0
      %3362 = vmatpush1.msra.mxu0 0.0
      %3363 = vmatprep.subr.mxu0 0.0
      %3364 = vmatpush1.msra.mxu0 0.0
      %3365 = vmatprep.subr.mxu0 0.0
      %3366 = vmatpush1.msra.mxu0 0.0
      %3367 = vmatprep.subr.mxu0 0.0
      %3368 = vmatpush1.msra.mxu0 0.0
      %3369 = vmatprep.subr.mxu0 0.0
      %3370 = vmatpush1.msra.mxu0 0.0
      %3371 = vmatprep.subr.mxu0 0.0
      %3372 = vmatpush1.msra.mxu0 0.0
      %3373 = vmatprep.subr.mxu0 0.0
      %3374 = vmatpush1.msra.mxu0 0.0
      %3375 = vmatprep.subr.mxu0 0.0
      %3376 = vmatpush1.msra.mxu0 0.0
      %3377 = vmatprep.subr.mxu0 0.0
      %3378 = vmatpush1.msra.mxu0 0.0
      %3379 = vmatprep.subr.mxu0 0.0
      %3380 = vmatpush1.msra.mxu0 0.0
      %3381 = vmatprep.subr.mxu0 0.0
      %3382 = vmatpush1.msra.mxu0 0.0
      %3383 = vmatprep.subr.mxu0 0.0
      %3384 = vmatpush1.msra.mxu0 0.0
      %3385 = vmatprep.subr.mxu0 0.0
      %3386 = vmatpush1.msra.mxu0 0.0
      %3387 = vmatprep.subr.mxu0 0.0
      %3388 = vmatpush1.msra.mxu0 0.0
      %3389 = vmatprep.subr.mxu0 0.0
      %3390 = vmatpush1.msra.mxu0 0.0
      %3391 = vmatprep.subr.mxu0 0.0
      %3392 = vmatpush1.msra.mxu0 0.0
      %3393 = vmatprep.mubr.f32.mxu0 0.0
      %3394 = vmatmul.mubr.f32.gmra.mrb[0].mxu0 %v3170
      %v3395 = vpop.f32.mrb[0].mxu0
      %v3396 = vadd.f32 0.0, %v3395
      %v3397 = vpop.f32.mrb[0].mxu0
      %v3398 = vadd.f32 0.0, %v3397
      %3399 = vmatprep.mubr.f32.mxu0 0.0
      %3400 = vmatmul.mubr.f32.gmra.mrb[0].mxu0 %v3173
      %v3401 = vpop.f32.mrb[0].mxu0
      %v3402 = vadd.f32 0.0, %v3401
      %v3403 = vpop.f32.mrb[0].mxu0
      %v3404 = vadd.f32 0.0, %v3403
      %3405 = vdwg.mxu0
      %3406 = vmatprep.subr.mxu0 %v2695
      %3407 = vmatpush1.msra.mxu0 %v2693
      %3408 = vmatprep.subr.mxu0 %v2701
      %3409 = vmatpush1.msra.mxu0 %v2699
      %3410 = vmatprep.subr.mxu0 0.0
      %3411 = vmatpush1.msra.mxu0 0.0
      %3412 = vmatprep.subr.mxu0 0.0
      %3413 = vmatpush1.msra.mxu0 0.0
      %3414 = vmatprep.subr.mxu0 0.0
      %3415 = vmatpush1.msra.mxu0 0.0
      %3416 = vmatprep.subr.mxu0 0.0
      %3417 = vmatpush1.msra.mxu0 0.0
      %3418 = vmatprep.subr.mxu0 0.0
      %3419 = vmatpush1.msra.mxu0 0.0
      %3420 = vmatprep.subr.mxu0 0.0
      %3421 = vmatpush1.msra.mxu0 0.0
      %3422 = vmatprep.subr.mxu0 0.0
      %3423 = vmatpush1.msra.mxu0 0.0
      %3424 = vmatprep.subr.mxu0 0.0
      %3425 = vmatpush1.msra.mxu0 0.0
      %3426 = vmatprep.subr.mxu0 0.0
      %3427 = vmatpush1.msra.mxu0 0.0
      %3428 = vmatprep.subr.mxu0 0.0
      %3429 = vmatpush1.msra.mxu0 0.0
      %3430 = vmatprep.subr.mxu0 0.0
      %3431 = vmatpush1.msra.mxu0 0.0
      %3432 = vmatprep.subr.mxu0 0.0
      %3433 = vmatpush1.msra.mxu0 0.0
      %3434 = vmatprep.subr.mxu0 0.0
      %3435 = vmatpush1.msra.mxu0 0.0
      %3436 = vmatprep.subr.mxu0 0.0
      %3437 = vmatpush1.msra.mxu0 0.0
      %3438 = vmatprep.subr.mxu0 0.0
      %3439 = vmatpush1.msra.mxu0 0.0
      %3440 = vmatprep.subr.mxu0 0.0
      %3441 = vmatpush1.msra.mxu0 0.0
      %3442 = vmatprep.subr.mxu0 0.0
      %3443 = vmatpush1.msra.mxu0 0.0
      %3444 = vmatprep.subr.mxu0 0.0
      %3445 = vmatpush1.msra.mxu0 0.0
      %3446 = vmatprep.subr.mxu0 0.0
      %3447 = vmatpush1.msra.mxu0 0.0
      %3448 = vmatprep.subr.mxu0 0.0
      %3449 = vmatpush1.msra.mxu0 0.0
      %3450 = vmatprep.subr.mxu0 0.0
      %3451 = vmatpush1.msra.mxu0 0.0
      %3452 = vmatprep.subr.mxu0 0.0
      %3453 = vmatpush1.msra.mxu0 0.0
      %3454 = vmatprep.subr.mxu0 0.0
      %3455 = vmatpush1.msra.mxu0 0.0
      %3456 = vmatprep.subr.mxu0 0.0
      %3457 = vmatpush1.msra.mxu0 0.0
      %3458 = vmatprep.subr.mxu0 0.0
      %3459 = vmatpush1.msra.mxu0 0.0
      %3460 = vmatprep.subr.mxu0 0.0
      %3461 = vmatpush1.msra.mxu0 0.0
      %3462 = vmatprep.subr.mxu0 0.0
      %3463 = vmatpush1.msra.mxu0 0.0
      %3464 = vmatprep.subr.mxu0 0.0
      %3465 = vmatpush1.msra.mxu0 0.0
      %3466 = vmatprep.subr.mxu0 0.0
      %3467 = vmatpush1.msra.mxu0 0.0
      %3468 = vmatprep.subr.mxu0 0.0
      %3469 = vmatpush1.msra.mxu0 0.0
      %3470 = vmatprep.mubr.f32.mxu0 0.0
      %3471 = vmatmul.mubr.f32.gmra.mrb[0].mxu0 %v3170
      %v3472 = vpop.f32.mrb[0].mxu0
      %v3473 = vadd.f32 0.0, %v3472
      %v3474 = vpop.f32.mrb[0].mxu0
      %v3475 = vadd.f32 0.0, %v3474
      %3476 = vmatprep.mubr.f32.mxu0 0.0
      %3477 = vmatmul.mubr.f32.gmra.mrb[0].mxu0 %v3173
      %v3478 = vpop.f32.mrb[0].mxu0
      %v3479 = vadd.f32 0.0, %v3478
      %v3480 = vpop.f32.mrb[0].mxu0
      %v3481 = vadd.f32 0.0, %v3480
      %3482 = vdwg.mxu0
      %v3483 = vld [vmem:[%s3] sm:$0xff]
      %v3484 = vld [vmem:[%s3 + $0x8] sm:$0xff]
      %v3485 = vld [vmem:[%s3 + $0x10] sm:$0xff]
      %v3486 = vld [vmem:[%s3 + $0x18] sm:$0xff]
      %v3487 = vld [vmem:[%s3 + $0x20] sm:$0xff]
      %v3488 = vld [vmem:[%s3 + $0x28] sm:$0xff]
      %v3489 = vld [vmem:[%s3 + $0x30] sm:$0xff]
      %v3490 = vld [vmem:[%s3 + $0x38] sm:$0xff]
      %v3491 = vld [vmem:[%s3 + $0x40] sm:$0xff]
      %v3492 = vld [vmem:[%s3 + $0x48] sm:$0xff]
      %v3493 = vld [vmem:[%s3 + $0x50] sm:$0xff]
      %v3494 = vld [vmem:[%s3 + $0x58] sm:$0xff]
      %v3495 = vld [vmem:[%s3 + $0x60] sm:$0xff]
      %v3496 = vld [vmem:[%s3 + $0x68] sm:$0xff]
      %v3497 = vld [vmem:[%s3 + $0x70] sm:$0xff]
      %v3498 = vld [vmem:[%s3 + $0x78] sm:$0xff]
      %v3499 = vld [vmem:[%s3 + $0x80] sm:$0xff]
      %v3500 = vld [vmem:[%s3 + $0x88] sm:$0xff]
      %v3501 = vld [vmem:[%s3 + $0x90] sm:$0xff]
      %v3502 = vld [vmem:[%s3 + $0x98] sm:$0xff]
      %v3503 = vld [vmem:[%s3 + $0xa0] sm:$0xff]
      %v3504 = vld [vmem:[%s3 + $0xa8] sm:$0xff]
      %v3505 = vld [vmem:[%s3 + $0xb0] sm:$0xff]
      %v3506 = vld [vmem:[%s3 + $0xb8] sm:$0xff]
      %v3507 = vld [vmem:[%s3 + $0xc0] sm:$0xff]
      %v3508 = vld [vmem:[%s3 + $0xc8] sm:$0xff]
      %v3509 = vld [vmem:[%s3 + $0xd0] sm:$0xff]
      %v3510 = vld [vmem:[%s3 + $0xd8] sm:$0xff]
      %v3511 = vld [vmem:[%s3 + $0xe0] sm:$0xff]
      %v3512 = vld [vmem:[%s3 + $0xe8] sm:$0xff]
      %v3513 = vld [vmem:[%s3 + $0xf0] sm:$0xff]
      %v3514 = vld [vmem:[%s3 + $0xf8] sm:$0xff]
      %v3515 = vld [vmem:[%s3 + $0x100] sm:$0xff]
      %v3516 = vld [vmem:[%s3 + $0x108] sm:$0xff]
      %v3517 = vld [vmem:[%s3 + $0x110] sm:$0xff]
      %v3518 = vld [vmem:[%s3 + $0x118] sm:$0xff]
      %v3519 = vld [vmem:[%s3 + $0x120] sm:$0xff]
      %v3520 = vld [vmem:[%s3 + $0x128] sm:$0xff]
      %v3521 = vld [vmem:[%s3 + $0x130] sm:$0xff]
      %v3522 = vld [vmem:[%s3 + $0x138] sm:$0xff]
      %v3523 = vld [vmem:[%s3 + $0x140] sm:$0xff]
      %v3524 = vld [vmem:[%s3 + $0x148] sm:$0xff]
      %v3525 = vld [vmem:[%s3 + $0x150] sm:$0xff]
      %v3526 = vld [vmem:[%s3 + $0x158] sm:$0xff]
      %v3527 = vld [vmem:[%s3 + $0x160] sm:$0xff]
      %v3528 = vld [vmem:[%s3 + $0x168] sm:$0xff]
      %v3529 = vld [vmem:[%s3 + $0x170] sm:$0xff]
      %v3530 = vld [vmem:[%s3 + $0x178] sm:$0xff]
      %v3531 = vld [vmem:[%s3 + $0x180] sm:$0xff]
      %v3532 = vld [vmem:[%s3 + $0x188] sm:$0xff]
      %v3533 = vld [vmem:[%s3 + $0x190] sm:$0xff]
      %v3534 = vld [vmem:[%s3 + $0x198] sm:$0xff]
      %v3535 = vld [vmem:[%s3 + $0x1a0] sm:$0xff]
      %v3536 = vld [vmem:[%s3 + $0x1a8] sm:$0xff]
      %v3537 = vld [vmem:[%s3 + $0x1b0] sm:$0xff]
      %v3538 = vld [vmem:[%s3 + $0x1b8] sm:$0xff]
      %v3539 = vld [vmem:[%s3 + $0x1c0] sm:$0xff]
      %v3540 = vld [vmem:[%s3 + $0x1c8] sm:$0xff]
      %v3541 = vld [vmem:[%s3 + $0x1d0] sm:$0xff]
      %v3542 = vld [vmem:[%s3 + $0x1d8] sm:$0xff]
      %v3543 = vld [vmem:[%s3 + $0x1e0] sm:$0xff]
      %v3544 = vld [vmem:[%s3 + $0x1e8] sm:$0xff]
      %v3545 = vld [vmem:[%s3 + $0x1f0] sm:$0xff]
      %v3546 = vld [vmem:[%s3 + $0x1f8] sm:$0xff]
      %v3547 = vld [vmem:[%s3 + $0x200] sm:$0xff]
      %v3548 = vld [vmem:[%s3 + $0x208] sm:$0xff]
      %v3549 = vld [vmem:[%s3 + $0x210] sm:$0xff]
      %v3550 = vld [vmem:[%s3 + $0x218] sm:$0xff]
      %v3551 = vld [vmem:[%s3 + $0x220] sm:$0xff]
      %v3552 = vld [vmem:[%s3 + $0x228] sm:$0xff]
      %v3553 = vld [vmem:[%s3 + $0x230] sm:$0xff]
      %v3554 = vld [vmem:[%s3 + $0x238] sm:$0xff]
      %v3555 = vld [vmem:[%s3 + $0x240] sm:$0xff]
      %v3556 = vld [vmem:[%s3 + $0x248] sm:$0xff]
      %v3557 = vld [vmem:[%s3 + $0x250] sm:$0xff]
      %v3558 = vld [vmem:[%s3 + $0x258] sm:$0xff]
      %v3559 = vld [vmem:[%s3 + $0x260] sm:$0xff]
      %v3560 = vld [vmem:[%s3 + $0x268] sm:$0xff]
      %v3561 = vld [vmem:[%s3 + $0x270] sm:$0xff]
      %v3562 = vld [vmem:[%s3 + $0x278] sm:$0xff]
      %v3563 = vld [vmem:[%s3 + $0x280] sm:$0xff]
      %v3564 = vld [vmem:[%s3 + $0x288] sm:$0xff]
      %v3565 = vld [vmem:[%s3 + $0x290] sm:$0xff]
      %v3566 = vld [vmem:[%s3 + $0x298] sm:$0xff]
      %v3567 = vld [vmem:[%s3 + $0x2a0] sm:$0xff]
      %v3568 = vld [vmem:[%s3 + $0x2a8] sm:$0xff]
      %v3569 = vld [vmem:[%s3 + $0x2b0] sm:$0xff]
      %v3570 = vld [vmem:[%s3 + $0x2b8] sm:$0xff]
      %v3571 = vld [vmem:[%s3 + $0x2c0] sm:$0xff]
      %v3572 = vld [vmem:[%s3 + $0x2c8] sm:$0xff]
      %v3573 = vld [vmem:[%s3 + $0x2d0] sm:$0xff]
      %v3574 = vld [vmem:[%s3 + $0x2d8] sm:$0xff]
      %v3575 = vld [vmem:[%s3 + $0x2e0] sm:$0xff]
      %v3576 = vld [vmem:[%s3 + $0x2e8] sm:$0xff]
      %v3577 = vld [vmem:[%s3 + $0x2f0] sm:$0xff]
      %v3578 = vld [vmem:[%s3 + $0x2f8] sm:$0xff]
      %v3579 = vld [vmem:[%s3 + $0x300] sm:$0xff]
      %v3580 = vld [vmem:[%s3 + $0x308] sm:$0xff]
      %v3581 = vld [vmem:[%s3 + $0x310] sm:$0xff]
      %v3582 = vld [vmem:[%s3 + $0x318] sm:$0xff]
      %v3583 = vld [vmem:[%s3 + $0x320] sm:$0xff]
      %v3584 = vld [vmem:[%s3 + $0x328] sm:$0xff]
      %v3585 = vld [vmem:[%s3 + $0x330] sm:$0xff]
      %v3586 = vld [vmem:[%s3 + $0x338] sm:$0xff]
      %v3587 = vld [vmem:[%s3 + $0x340] sm:$0xff]
      %v3588 = vld [vmem:[%s3 + $0x348] sm:$0xff]
      %v3589 = vld [vmem:[%s3 + $0x350] sm:$0xff]
      %v3590 = vld [vmem:[%s3 + $0x358] sm:$0xff]
      %v3591 = vld [vmem:[%s3 + $0x360] sm:$0xff]
      %v3592 = vld [vmem:[%s3 + $0x368] sm:$0xff]
      %v3593 = vld [vmem:[%s3 + $0x370] sm:$0xff]
      %v3594 = vld [vmem:[%s3 + $0x378] sm:$0xff]
      %v3595 = vld [vmem:[%s3 + $0x380] sm:$0xff]
      %v3596 = vld [vmem:[%s3 + $0x388] sm:$0xff]
      %v3597 = vld [vmem:[%s3 + $0x390] sm:$0xff]
      %v3598 = vld [vmem:[%s3 + $0x398] sm:$0xff]
      %v3599 = vld [vmem:[%s3 + $0x3a0] sm:$0xff]
      %v3600 = vld [vmem:[%s3 + $0x3a8] sm:$0xff]
      %v3601 = vld [vmem:[%s3 + $0x3b0] sm:$0xff]
      %v3602 = vld [vmem:[%s3 + $0x3b8] sm:$0xff]
      %v3603 = vld [vmem:[%s3 + $0x3c0] sm:$0xff]
      %v3604 = vld [vmem:[%s3 + $0x3c8] sm:$0xff]
      %v3605 = vld [vmem:[%s3 + $0x3d0] sm:$0xff]
      %v3606 = vld [vmem:[%s3 + $0x3d8] sm:$0xff]
      %v3607 = vld [vmem:[%s3 + $0x3e0] sm:$0xff]
      %v3608 = vld [vmem:[%s3 + $0x3e8] sm:$0xff]
      %v3609 = vld [vmem:[%s3 + $0x3f0] sm:$0xff]
      %v3610 = vld [vmem:[%s3 + $0x3f8] sm:$0xff]
      %v3611 = vld [vmem:[%s3 + $0x400] sm:$0xff]
      %v3612 = vld [vmem:[%s3 + $0x408] sm:$0xff]
      %v3613 = vld [vmem:[%s3 + $0x410] sm:$0xff]
      %v3614 = vld [vmem:[%s3 + $0x418] sm:$0xff]
      %v3615 = vld [vmem:[%s3 + $0x420] sm:$0xff]
      %v3616 = vld [vmem:[%s3 + $0x428] sm:$0xff]
      %v3617 = vld [vmem:[%s3 + $0x430] sm:$0xff]
      %v3618 = vld [vmem:[%s3 + $0x438] sm:$0xff]
      %v3619 = vld [vmem:[%s3 + $0x440] sm:$0xff]
      %v3620 = vld [vmem:[%s3 + $0x448] sm:$0xff]
      %v3621 = vld [vmem:[%s3 + $0x450] sm:$0xff]
      %v3622 = vld [vmem:[%s3 + $0x458] sm:$0xff]
      %v3623 = vld [vmem:[%s3 + $0x460] sm:$0xff]
      %v3624 = vld [vmem:[%s3 + $0x468] sm:$0xff]
      %v3625 = vld [vmem:[%s3 + $0x470] sm:$0xff]
      %v3626 = vld [vmem:[%s3 + $0x478] sm:$0xff]
      %v3627 = vld [vmem:[%s3 + $0x480] sm:$0xff]
      %v3628 = vld [vmem:[%s3 + $0x488] sm:$0xff]
      %v3629 = vld [vmem:[%s3 + $0x490] sm:$0xff]
      %v3630 = vld [vmem:[%s3 + $0x498] sm:$0xff]
      %v3631 = vld [vmem:[%s3 + $0x4a0] sm:$0xff]
      %v3632 = vld [vmem:[%s3 + $0x4a8] sm:$0xff]
      %v3633 = vld [vmem:[%s3 + $0x4b0] sm:$0xff]
      %v3634 = vld [vmem:[%s3 + $0x4b8] sm:$0xff]
      %v3635 = vld [vmem:[%s3 + $0x4c0] sm:$0xff]
      %v3636 = vld [vmem:[%s3 + $0x4c8] sm:$0xff]
      %v3637 = vld [vmem:[%s3 + $0x4d0] sm:$0xff]
      %v3638 = vld [vmem:[%s3 + $0x4d8] sm:$0xff]
      %v3639 = vld [vmem:[%s3 + $0x4e0] sm:$0xff]
      %v3640 = vld [vmem:[%s3 + $0x4e8] sm:$0xff]
      %v3641 = vld [vmem:[%s3 + $0x4f0] sm:$0xff]
      %v3642 = vld [vmem:[%s3 + $0x4f8] sm:$0xff]
      %v3643 = vld [vmem:[%s3 + $0x500] sm:$0xff]
      %v3644 = vld [vmem:[%s3 + $0x508] sm:$0xff]
      %v3645 = vld [vmem:[%s3 + $0x510] sm:$0xff]
      %v3646 = vld [vmem:[%s3 + $0x518] sm:$0xff]
      %v3647 = vld [vmem:[%s3 + $0x520] sm:$0xff]
      %v3648 = vld [vmem:[%s3 + $0x528] sm:$0xff]
      %v3649 = vld [vmem:[%s3 + $0x530] sm:$0xff]
      %v3650 = vld [vmem:[%s3 + $0x538] sm:$0xff]
      %v3651 = vld [vmem:[%s3 + $0x540] sm:$0xff]
      %v3652 = vld [vmem:[%s3 + $0x548] sm:$0xff]
      %v3653 = vld [vmem:[%s3 + $0x550] sm:$0xff]
      %v3654 = vld [vmem:[%s3 + $0x558] sm:$0xff]
      %v3655 = vld [vmem:[%s3 + $0x560] sm:$0xff]
      %v3656 = vld [vmem:[%s3 + $0x568] sm:$0xff]
      %v3657 = vld [vmem:[%s3 + $0x570] sm:$0xff]
      %v3658 = vld [vmem:[%s3 + $0x578] sm:$0xff]
      %v3659 = vld [vmem:[%s3 + $0x580] sm:$0xff]
      %v3660 = vld [vmem:[%s3 + $0x588] sm:$0xff]
      %v3661 = vld [vmem:[%s3 + $0x590] sm:$0xff]
      %v3662 = vld [vmem:[%s3 + $0x598] sm:$0xff]
      %v3663 = vld [vmem:[%s3 + $0x5a0] sm:$0xff]
      %v3664 = vld [vmem:[%s3 + $0x5a8] sm:$0xff]
      %v3665 = vld [vmem:[%s3 + $0x5b0] sm:$0xff]
      %v3666 = vld [vmem:[%s3 + $0x5b8] sm:$0xff]
      %v3667 = vld [vmem:[%s3 + $0x5c0] sm:$0xff]
      %v3668 = vld [vmem:[%s3 + $0x5c8] sm:$0xff]
      %v3669 = vld [vmem:[%s3 + $0x5d0] sm:$0xff]
      %v3670 = vld [vmem:[%s3 + $0x5d8] sm:$0xff]
      %v3671 = vld [vmem:[%s3 + $0x5e0] sm:$0xff]
      %v3672 = vld [vmem:[%s3 + $0x5e8] sm:$0xff]
      %v3673 = vld [vmem:[%s3 + $0x5f0] sm:$0xff]
      %v3674 = vld [vmem:[%s3 + $0x5f8] sm:$0xff]
      %v3675 = vld [vmem:[%s3 + $0x600] sm:$0xff]
      %v3676 = vld [vmem:[%s3 + $0x608] sm:$0xff]
      %v3677 = vld [vmem:[%s3 + $0x610] sm:$0xff]
      %v3678 = vld [vmem:[%s3 + $0x618] sm:$0xff]
      %v3679 = vld [vmem:[%s3 + $0x620] sm:$0xff]
      %v3680 = vld [vmem:[%s3 + $0x628] sm:$0xff]
      %v3681 = vld [vmem:[%s3 + $0x630] sm:$0xff]
      %v3682 = vld [vmem:[%s3 + $0x638] sm:$0xff]
      %v3683 = vld [vmem:[%s3 + $0x640] sm:$0xff]
      %v3684 = vld [vmem:[%s3 + $0x648] sm:$0xff]
      %v3685 = vld [vmem:[%s3 + $0x650] sm:$0xff]
      %v3686 = vld [vmem:[%s3 + $0x658] sm:$0xff]
      %v3687 = vld [vmem:[%s3 + $0x660] sm:$0xff]
      %v3688 = vld [vmem:[%s3 + $0x668] sm:$0xff]
      %v3689 = vld [vmem:[%s3 + $0x670] sm:$0xff]
      %v3690 = vld [vmem:[%s3 + $0x678] sm:$0xff]
      %v3691 = vld [vmem:[%s3 + $0x680] sm:$0xff]
      %v3692 = vld [vmem:[%s3 + $0x688] sm:$0xff]
      %v3693 = vld [vmem:[%s3 + $0x690] sm:$0xff]
      %v3694 = vld [vmem:[%s3 + $0x698] sm:$0xff]
      %v3695 = vld [vmem:[%s3 + $0x6a0] sm:$0xff]
      %v3696 = vld [vmem:[%s3 + $0x6a8] sm:$0xff]
      %v3697 = vld [vmem:[%s3 + $0x6b0] sm:$0xff]
      %v3698 = vld [vmem:[%s3 + $0x6b8] sm:$0xff]
      %v3699 = vld [vmem:[%s3 + $0x6c0] sm:$0xff]
      %v3700 = vld [vmem:[%s3 + $0x6c8] sm:$0xff]
      %v3701 = vld [vmem:[%s3 + $0x6d0] sm:$0xff]
      %v3702 = vld [vmem:[%s3 + $0x6d8] sm:$0xff]
      %v3703 = vld [vmem:[%s3 + $0x6e0] sm:$0xff]
      %v3704 = vld [vmem:[%s3 + $0x6e8] sm:$0xff]
      %v3705 = vld [vmem:[%s3 + $0x6f0] sm:$0xff]
      %v3706 = vld [vmem:[%s3 + $0x6f8] sm:$0xff]
      %v3707 = vld [vmem:[%s3 + $0x700] sm:$0xff]
      %v3708 = vld [vmem:[%s3 + $0x708] sm:$0xff]
      %v3709 = vld [vmem:[%s3 + $0x710] sm:$0xff]
      %v3710 = vld [vmem:[%s3 + $0x718] sm:$0xff]
      %v3711 = vld [vmem:[%s3 + $0x720] sm:$0xff]
      %v3712 = vld [vmem:[%s3 + $0x728] sm:$0xff]
      %v3713 = vld [vmem:[%s3 + $0x730] sm:$0xff]
      %v3714 = vld [vmem:[%s3 + $0x738] sm:$0xff]
      %v3715 = vld [vmem:[%s3 + $0x740] sm:$0xff]
      %v3716 = vld [vmem:[%s3 + $0x748] sm:$0xff]
      %v3717 = vld [vmem:[%s3 + $0x750] sm:$0xff]
      %v3718 = vld [vmem:[%s3 + $0x758] sm:$0xff]
      %v3719 = vld [vmem:[%s3 + $0x760] sm:$0xff]
      %v3720 = vld [vmem:[%s3 + $0x768] sm:$0xff]
      %v3721 = vld [vmem:[%s3 + $0x770] sm:$0xff]
      %v3722 = vld [vmem:[%s3 + $0x778] sm:$0xff]
      %v3723 = vld [vmem:[%s3 + $0x780] sm:$0xff]
      %v3724 = vld [vmem:[%s3 + $0x788] sm:$0xff]
      %v3725 = vld [vmem:[%s3 + $0x790] sm:$0xff]
      %v3726 = vld [vmem:[%s3 + $0x798] sm:$0xff]
      %v3727 = vld [vmem:[%s3 + $0x7a0] sm:$0xff]
      %v3728 = vld [vmem:[%s3 + $0x7a8] sm:$0xff]
      %v3729 = vld [vmem:[%s3 + $0x7b0] sm:$0xff]
      %v3730 = vld [vmem:[%s3 + $0x7b8] sm:$0xff]
      %v3731 = vld [vmem:[%s3 + $0x7c0] sm:$0xff]
      %v3732 = vld [vmem:[%s3 + $0x7c8] sm:$0xff]
      %v3733 = vld [vmem:[%s3 + $0x7d0] sm:$0xff]
      %v3734 = vld [vmem:[%s3 + $0x7d8] sm:$0xff]
      %v3735 = vld [vmem:[%s3 + $0x7e0] sm:$0xff]
      %v3736 = vld [vmem:[%s3 + $0x7e8] sm:$0xff]
      %v3737 = vld [vmem:[%s3 + $0x7f0] sm:$0xff]
      %v3738 = vld [vmem:[%s3 + $0x7f8] sm:$0xff]
      %3739 = vmatprep.subr.mxu0 %v3484
      %3740 = vmatpush1.xpose.msra.mxu0 %v3483
      %3741 = vmatprep.subr.mxu0 %v3492
      %3742 = vmatpush1.xpose.msra.mxu0 %v3491
      %3743 = vmatprep.subr.mxu0 %v3500
      %3744 = vmatpush1.xpose.msra.mxu0 %v3499
      %3745 = vmatprep.subr.mxu0 %v3508
      %3746 = vmatpush1.xpose.msra.mxu0 %v3507
      %3747 = vmatprep.subr.mxu0 %v3516
      %3748 = vmatpush1.xpose.msra.mxu0 %v3515
      %3749 = vmatprep.subr.mxu0 %v3524
      %3750 = vmatpush1.xpose.msra.mxu0 %v3523
      %3751 = vmatprep.subr.mxu0 %v3532
      %3752 = vmatpush1.xpose.msra.mxu0 %v3531
      %3753 = vmatprep.subr.mxu0 %v3540
      %3754 = vmatpush1.xpose.msra.mxu0 %v3539
      %3755 = vmatprep.subr.mxu0 %v3548
      %3756 = vmatpush1.xpose.msra.mxu0 %v3547
      %3757 = vmatprep.subr.mxu0 %v3556
      %3758 = vmatpush1.xpose.msra.mxu0 %v3555
      %3759 = vmatprep.subr.mxu0 %v3564
      %3760 = vmatpush1.xpose.msra.mxu0 %v3563
      %3761 = vmatprep.subr.mxu0 %v3572
      %3762 = vmatpush1.xpose.msra.mxu0 %v3571
      %3763 = vmatprep.subr.mxu0 %v3580
      %3764 = vmatpush1.xpose.msra.mxu0 %v3579
      %3765 = vmatprep.subr.mxu0 %v3588
      %3766 = vmatpush1.xpose.msra.mxu0 %v3587
      %3767 = vmatprep.subr.mxu0 %v3596
      %3768 = vmatpush1.xpose.msra.mxu0 %v3595
      %3769 = vmatprep.subr.mxu0 %v3604
      %3770 = vmatpush1.xpose.msra.mxu0 %v3603
      %3771 = vmatprep.subr.mxu0 %v3612
      %3772 = vmatpush1.xpose.msra.mxu0 %v3611
      %3773 = vmatprep.subr.mxu0 %v3620
      %3774 = vmatpush1.xpose.msra.mxu0 %v3619
      %3775 = vmatprep.subr.mxu0 %v3628
      %3776 = vmatpush1.xpose.msra.mxu0 %v3627
      %3777 = vmatprep.subr.mxu0 %v3636
      %3778 = vmatpush1.xpose.msra.mxu0 %v3635
      %3779 = vmatprep.subr.mxu0 %v3644
      %3780 = vmatpush1.xpose.msra.mxu0 %v3643
      %3781 = vmatprep.subr.mxu0 %v3652
      %3782 = vmatpush1.xpose.msra.mxu0 %v3651
      %3783 = vmatprep.subr.mxu0 %v3660
      %3784 = vmatpush1.xpose.msra.mxu0 %v3659
      %3785 = vmatprep.subr.mxu0 %v3668
      %3786 = vmatpush1.xpose.msra.mxu0 %v3667
      %3787 = vmatprep.subr.mxu0 %v3676
      %3788 = vmatpush1.xpose.msra.mxu0 %v3675
      %3789 = vmatprep.subr.mxu0 %v3684
      %3790 = vmatpush1.xpose.msra.mxu0 %v3683
      %3791 = vmatprep.subr.mxu0 %v3692
      %3792 = vmatpush1.xpose.msra.mxu0 %v3691
      %3793 = vmatprep.subr.mxu0 %v3700
      %3794 = vmatpush1.xpose.msra.mxu0 %v3699
      %3795 = vmatprep.subr.mxu0 %v3708
      %3796 = vmatpush1.xpose.msra.mxu0 %v3707
      %3797 = vmatprep.subr.mxu0 %v3716
      %3798 = vmatpush1.xpose.msra.mxu0 %v3715
      %3799 = vmatprep.subr.mxu0 %v3724
      %3800 = vmatpush1.xpose.msra.mxu0 %v3723
      %3801 = vmatprep.subr.mxu0 %v3732
      %3802 = vmatpush1.xpose.msra.mxu0 %v3731
      %3803 = vmatprep.mubr.f32.mxu0 %v577
      %3804 = vmatmul.mubr.f32.gmra.mrb[0].mxu0 %v576
      %v3805 = vpop.f32.mrb[0].mxu0
      %v3806 = vadd.f32 0.0, %v3805
      %v3807 = vpop.f32.mrb[0].mxu0
      %v3808 = vadd.f32 0.0, %v3807
      %3809 = vmatprep.mubr.f32.mxu0 %v585
      %3810 = vmatmul.mubr.f32.gmra.mrb[0].mxu0 %v584
      %v3811 = vpop.f32.mrb[0].mxu0
      %v3812 = vadd.f32 0.0, %v3811
      %v3813 = vpop.f32.mrb[0].mxu0
      %v3814 = vadd.f32 0.0, %v3813
      %3815 = vdwg.mxu0
      %3816 = vmatprep.subr.mxu0 %v3486
      %3817 = vmatpush1.xpose.msra.mxu0 %v3485
      %3818 = vmatprep.subr.mxu0 %v3494
      %3819 = vmatpush1.xpose.msra.mxu0 %v3493
      %3820 = vmatprep.subr.mxu0 %v3502
      %3821 = vmatpush1.xpose.msra.mxu0 %v3501
      %3822 = vmatprep.subr.mxu0 %v3510
      %3823 = vmatpush1.xpose.msra.mxu0 %v3509
      %3824 = vmatprep.subr.mxu0 %v3518
      %3825 = vmatpush1.xpose.msra.mxu0 %v3517
      %3826 = vmatprep.subr.mxu0 %v3526
      %3827 = vmatpush1.xpose.msra.mxu0 %v3525
      %3828 = vmatprep.subr.mxu0 %v3534
      %3829 = vmatpush1.xpose.msra.mxu0 %v3533
      %3830 = vmatprep.subr.mxu0 %v3542
      %3831 = vmatpush1.xpose.msra.mxu0 %v3541
      %3832 = vmatprep.subr.mxu0 %v3550
      %3833 = vmatpush1.xpose.msra.mxu0 %v3549
      %3834 = vmatprep.subr.mxu0 %v3558
      %3835 = vmatpush1.xpose.msra.mxu0 %v3557
      %3836 = vmatprep.subr.mxu0 %v3566
      %3837 = vmatpush1.xpose.msra.mxu0 %v3565
      %3838 = vmatprep.subr.mxu0 %v3574
      %3839 = vmatpush1.xpose.msra.mxu0 %v3573
      %3840 = vmatprep.subr.mxu0 %v3582
      %3841 = vmatpush1.xpose.msra.mxu0 %v3581
      %3842 = vmatprep.subr.mxu0 %v3590
      %3843 = vmatpush1.xpose.msra.mxu0 %v3589
      %3844 = vmatprep.subr.mxu0 %v3598
      %3845 = vmatpush1.xpose.msra.mxu0 %v3597
      %3846 = vmatprep.subr.mxu0 %v3606
      %3847 = vmatpush1.xpose.msra.mxu0 %v3605
      %3848 = vmatprep.subr.mxu0 %v3614
      %3849 = vmatpush1.xpose.msra.mxu0 %v3613
      %3850 = vmatprep.subr.mxu0 %v3622
      %3851 = vmatpush1.xpose.msra.mxu0 %v3621
      %3852 = vmatprep.subr.mxu0 %v3630
      %3853 = vmatpush1.xpose.msra.mxu0 %v3629
      %3854 = vmatprep.subr.mxu0 %v3638
      %3855 = vmatpush1.xpose.msra.mxu0 %v3637
      %3856 = vmatprep.subr.mxu0 %v3646
      %3857 = vmatpush1.xpose.msra.mxu0 %v3645
      %3858 = vmatprep.subr.mxu0 %v3654
      %3859 = vmatpush1.xpose.msra.mxu0 %v3653
      %3860 = vmatprep.subr.mxu0 %v3662
      %3861 = vmatpush1.xpose.msra.mxu0 %v3661
      %3862 = vmatprep.subr.mxu0 %v3670
      %3863 = vmatpush1.xpose.msra.mxu0 %v3669
      %3864 = vmatprep.subr.mxu0 %v3678
      %3865 = vmatpush1.xpose.msra.mxu0 %v3677
      %3866 = vmatprep.subr.mxu0 %v3686
      %3867 = vmatpush1.xpose.msra.mxu0 %v3685
      %3868 = vmatprep.subr.mxu0 %v3694
      %3869 = vmatpush1.xpose.msra.mxu0 %v3693
      %3870 = vmatprep.subr.mxu0 %v3702
      %3871 = vmatpush1.xpose.msra.mxu0 %v3701
      %3872 = vmatprep.subr.mxu0 %v3710
      %3873 = vmatpush1.xpose.msra.mxu0 %v3709
      %3874 = vmatprep.subr.mxu0 %v3718
      %3875 = vmatpush1.xpose.msra.mxu0 %v3717
      %3876 = vmatprep.subr.mxu0 %v3726
      %3877 = vmatpush1.xpose.msra.mxu0 %v3725
      %3878 = vmatprep.subr.mxu0 %v3734
      %3879 = vmatpush1.xpose.msra.mxu0 %v3733
      %3880 = vmatprep.mubr.f32.mxu0 %v579
      %3881 = vmatmul.mubr.f32.gmra.mrb[0].mxu0 %v578
      %v3882 = vpop.f32.mrb[0].mxu0
      %v3883 = vadd.f32 %v3806, %v3882
      %v3884 = vpop.f32.mrb[0].mxu0
      %v3885 = vadd.f32 %v3808, %v3884
      %3886 = vmatprep.mubr.f32.mxu0 %v587
      %3887 = vmatmul.mubr.f32.gmra.mrb[0].mxu0 %v586
      %v3888 = vpop.f32.mrb[0].mxu0
      %v3889 = vadd.f32 %v3812, %v3888
      %v3890 = vpop.f32.mrb[0].mxu0
      %v3891 = vadd.f32 %v3814, %v3890
      %3892 = vdwg.mxu0
      %3893 = vmatprep.subr.mxu0 %v3488
      %3894 = vmatpush1.xpose.msra.mxu0 %v3487
      %3895 = vmatprep.subr.mxu0 %v3496
      %3896 = vmatpush1.xpose.msra.mxu0 %v3495
      %3897 = vmatprep.subr.mxu0 %v3504
      %3898 = vmatpush1.xpose.msra.mxu0 %v3503
      %3899 = vmatprep.subr.mxu0 %v3512
      %3900 = vmatpush1.xpose.msra.mxu0 %v3511
      %3901 = vmatprep.subr.mxu0 %v3520
      %3902 = vmatpush1.xpose.msra.mxu0 %v3519
      %3903 = vmatprep.subr.mxu0 %v3528
      %3904 = vmatpush1.xpose.msra.mxu0 %v3527
      %3905 = vmatprep.subr.mxu0 %v3536
      %3906 = vmatpush1.xpose.msra.mxu0 %v3535
      %3907 = vmatprep.subr.mxu0 %v3544
      %3908 = vmatpush1.xpose.msra.mxu0 %v3543
      %3909 = vmatprep.subr.mxu0 %v3552
      %3910 = vmatpush1.xpose.msra.mxu0 %v3551
      %3911 = vmatprep.subr.mxu0 %v3560
      %3912 = vmatpush1.xpose.msra.mxu0 %v3559
      %3913 = vmatprep.subr.mxu0 %v3568
      %3914 = vmatpush1.xpose.msra.mxu0 %v3567
      %3915 = vmatprep.subr.mxu0 %v3576
      %3916 = vmatpush1.xpose.msra.mxu0 %v3575
      %3917 = vmatprep.subr.mxu0 %v3584
      %3918 = vmatpush1.xpose.msra.mxu0 %v3583
      %3919 = vmatprep.subr.mxu0 %v3592
      %3920 = vmatpush1.xpose.msra.mxu0 %v3591
      %3921 = vmatprep.subr.mxu0 %v3600
      %3922 = vmatpush1.xpose.msra.mxu0 %v3599
      %3923 = vmatprep.subr.mxu0 %v3608
      %3924 = vmatpush1.xpose.msra.mxu0 %v3607
      %3925 = vmatprep.subr.mxu0 %v3616
      %3926 = vmatpush1.xpose.msra.mxu0 %v3615
      %3927 = vmatprep.subr.mxu0 %v3624
      %3928 = vmatpush1.xpose.msra.mxu0 %v3623
      %3929 = vmatprep.subr.mxu0 %v3632
      %3930 = vmatpush1.xpose.msra.mxu0 %v3631
      %3931 = vmatprep.subr.mxu0 %v3640
      %3932 = vmatpush1.xpose.msra.mxu0 %v3639
      %3933 = vmatprep.subr.mxu0 %v3648
      %3934 = vmatpush1.xpose.msra.mxu0 %v3647
      %3935 = vmatprep.subr.mxu0 %v3656
      %3936 = vmatpush1.xpose.msra.mxu0 %v3655
      %3937 = vmatprep.subr.mxu0 %v3664
      %3938 = vmatpush1.xpose.msra.mxu0 %v3663
      %3939 = vmatprep.subr.mxu0 %v3672
      %3940 = vmatpush1.xpose.msra.mxu0 %v3671
      %3941 = vmatprep.subr.mxu0 %v3680
      %3942 = vmatpush1.xpose.msra.mxu0 %v3679
      %3943 = vmatprep.subr.mxu0 %v3688
      %3944 = vmatpush1.xpose.msra.mxu0 %v3687
      %3945 = vmatprep.subr.mxu0 %v3696
      %3946 = vmatpush1.xpose.msra.mxu0 %v3695
      %3947 = vmatprep.subr.mxu0 %v3704
      %3948 = vmatpush1.xpose.msra.mxu0 %v3703
      %3949 = vmatprep.subr.mxu0 %v3712
      %3950 = vmatpush1.xpose.msra.mxu0 %v3711
      %3951 = vmatprep.subr.mxu0 %v3720
      %3952 = vmatpush1.xpose.msra.mxu0 %v3719
      %3953 = vmatprep.subr.mxu0 %v3728
      %3954 = vmatpush1.xpose.msra.mxu0 %v3727
      %3955 = vmatprep.subr.mxu0 %v3736
      %3956 = vmatpush1.xpose.msra.mxu0 %v3735
      %3957 = vmatprep.mubr.f32.mxu0 %v581
      %3958 = vmatmul.mubr.f32.gmra.mrb[0].mxu0 %v580
      %v3959 = vpop.f32.mrb[0].mxu0
      %v3960 = vadd.f32 %v3883, %v3959
      %v3961 = vpop.f32.mrb[0].mxu0
      %v3962 = vadd.f32 %v3885, %v3961
      %3963 = vmatprep.mubr.f32.mxu0 %v589
      %3964 = vmatmul.mubr.f32.gmra.mrb[0].mxu0 %v588
      %v3965 = vpop.f32.mrb[0].mxu0
      %v3966 = vadd.f32 %v3889, %v3965
      %v3967 = vpop.f32.mrb[0].mxu0
      %v3968 = vadd.f32 %v3891, %v3967
      %3969 = vdwg.mxu0
      %3970 = vmatprep.subr.mxu0 %v3490
      %3971 = vmatpush1.xpose.msra.mxu0 %v3489
      %3972 = vmatprep.subr.mxu0 %v3498
      %3973 = vmatpush1.xpose.msra.mxu0 %v3497
      %3974 = vmatprep.subr.mxu0 %v3506
      %3975 = vmatpush1.xpose.msra.mxu0 %v3505
      %3976 = vmatprep.subr.mxu0 %v3514
      %3977 = vmatpush1.xpose.msra.mxu0 %v3513
      %3978 = vmatprep.subr.mxu0 %v3522
      %3979 = vmatpush1.xpose.msra.mxu0 %v3521
      %3980 = vmatprep.subr.mxu0 %v3530
      %3981 = vmatpush1.xpose.msra.mxu0 %v3529
      %3982 = vmatprep.subr.mxu0 %v3538
      %3983 = vmatpush1.xpose.msra.mxu0 %v3537
      %3984 = vmatprep.subr.mxu0 %v3546
      %3985 = vmatpush1.xpose.msra.mxu0 %v3545
      %3986 = vmatprep.subr.mxu0 %v3554
      %3987 = vmatpush1.xpose.msra.mxu0 %v3553
      %3988 = vmatprep.subr.mxu0 %v3562
      %3989 = vmatpush1.xpose.msra.mxu0 %v3561
      %3990 = vmatprep.subr.mxu0 %v3570
      %3991 = vmatpush1.xpose.msra.mxu0 %v3569
      %3992 = vmatprep.subr.mxu0 %v3578
      %3993 = vmatpush1.xpose.msra.mxu0 %v3577
      %3994 = vmatprep.subr.mxu0 %v3586
      %3995 = vmatpush1.xpose.msra.mxu0 %v3585
      %3996 = vmatprep.subr.mxu0 %v3594
      %3997 = vmatpush1.xpose.msra.mxu0 %v3593
      %3998 = vmatprep.subr.mxu0 %v3602
      %3999 = vmatpush1.xpose.msra.mxu0 %v3601
      %4000 = vmatprep.subr.mxu0 %v3610
      %4001 = vmatpush1.xpose.msra.mxu0 %v3609
      %4002 = vmatprep.subr.mxu0 %v3618
      %4003 = vmatpush1.xpose.msra.mxu0 %v3617
      %4004 = vmatprep.subr.mxu0 %v3626
      %4005 = vmatpush1.xpose.msra.mxu0 %v3625
      %4006 = vmatprep.subr.mxu0 %v3634
      %4007 = vmatpush1.xpose.msra.mxu0 %v3633
      %4008 = vmatprep.subr.mxu0 %v3642
      %4009 = vmatpush1.xpose.msra.mxu0 %v3641
      %4010 = vmatprep.subr.mxu0 %v3650
      %4011 = vmatpush1.xpose.msra.mxu0 %v3649
      %4012 = vmatprep.subr.mxu0 %v3658
      %4013 = vmatpush1.xpose.msra.mxu0 %v3657
      %4014 = vmatprep.subr.mxu0 %v3666
      %4015 = vmatpush1.xpose.msra.mxu0 %v3665
      %4016 = vmatprep.subr.mxu0 %v3674
      %4017 = vmatpush1.xpose.msra.mxu0 %v3673
      %4018 = vmatprep.subr.mxu0 %v3682
      %4019 = vmatpush1.xpose.msra.mxu0 %v3681
      %4020 = vmatprep.subr.mxu0 %v3690
      %4021 = vmatpush1.xpose.msra.mxu0 %v3689
      %4022 = vmatprep.subr.mxu0 %v3698
      %4023 = vmatpush1.xpose.msra.mxu0 %v3697
      %4024 = vmatprep.subr.mxu0 %v3706
      %4025 = vmatpush1.xpose.msra.mxu0 %v3705
      %4026 = vmatprep.subr.mxu0 %v3714
      %4027 = vmatpush1.xpose.msra.mxu0 %v3713
      %4028 = vmatprep.subr.mxu0 %v3722
      %4029 = vmatpush1.xpose.msra.mxu0 %v3721
      %4030 = vmatprep.subr.mxu0 %v3730
      %4031 = vmatpush1.xpose.msra.mxu0 %v3729
      %4032 = vmatprep.subr.mxu0 %v3738
      %4033 = vmatpush1.xpose.msra.mxu0 %v3737
      %4034 = vmatprep.mubr.f32.mxu0 %v583
      %4035 = vmatmul.mubr.f32.gmra.mrb[0].mxu0 %v582
      %v4036 = vpop.f32.mrb[0].mxu0
      %v4037 = vadd.f32 %v3960, %v4036
      %v4038 = vpop.f32.mrb[0].mxu0
      %v4039 = vadd.f32 %v3962, %v4038
      %4040 = vmatprep.mubr.f32.mxu0 %v591
      %4041 = vmatmul.mubr.f32.gmra.mrb[0].mxu0 %v590
      %v4042 = vpop.f32.mrb[0].mxu0
      %v4043 = vadd.f32 %v3966, %v4042
      %v4044 = vpop.f32.mrb[0].mxu0
      %v4045 = vadd.f32 %v3968, %v4044
      %4046 = vdwg.mxu0
      %v4047 = vmul.f32 %v4037, 0.25
      %v4048 = vmul.f32 %v4039, 0.25
      %v4049 = vmul.f32 %v4043, 0.25
      %v4050 = vmul.f32 %v4045, 0.25
      %vm4051 = vcmask 138240
      %4052 = vst.msk [vmem:[#allocation3] sm:$0xff] %vm4051, 0.0
      %4053 = vst.msk [vmem:[#allocation3 + $0x10] sm:$0xff] %vm4051, 0.0
      %v4054 = vld [vmem:[%s2] ss:$8 sm:$0x3]
      %v4056 = vlaneseq
      %v4057 = vshrl.u32 %v4056, 7
      %v4058 = vsub.s32 0, %v4057
      %v4059 = vrot.slane %v4054, %v4058
      %v4060 = vlaneseq
      %v4061 = vshrl.u32 %v4060, 7
      %v4062 = vsub.s32 1, %v4061
      %v4063 = vrot.slane %v4054, %v4062
      %4064 = vrot.lane.b32.xlu0 %v4059, 111
      %v4065 = vpop.permute.xlu0 %4064
      %4066 = vrot.lane.b32.xlu0 %v4063, 111
      %v4067 = vpop.permute.xlu0 %4066
      %vm4068 = vcmask 908288
      %v4069 = vsel %vm4068, %v4065, %v4067
      %v4072 = vmul.f32 %v4047, %v4069
      %v4073 = vmul.f32 %v4048, %v4067
      %v4074 = vmul.f32 %v4049, %v4069
      %v4075 = vmul.f32 %v4050, %v4067
      %4080 = vrot.lane.b32.xlu0 %v4072, 17
      %v4081 = vpop.permute.xlu0 %4080
      %4082 = vrot.lane.b32.xlu0 %v4073, 17
      %v4083 = vpop.permute.xlu0 %4082
      %4084 = vrot.lane.b32.xlu0 %v4074, 17
      %v4085 = vpop.permute.xlu0 %4084
      %4086 = vrot.lane.b32.xlu0 %v4075, 17
      %v4087 = vpop.permute.xlu0 %4086
      %v4088 = vsel %vm4051, %v4081, %v4083
      %v4089 = vsel %vm4051, %v4085, %v4087
      %vm4094 = vcmask 1047688
      %4095 = vst.msk [vmem:[#allocation3] sm:$0xff] %vm4094, %v4081
      %4096 = vst [vmem:[#allocation3 + $0x8] sm:$0xff] %v4088
      %4097 = vst.msk [vmem:[#allocation3 + $0x10] sm:$0xff] %vm4094, %v4085
      %4098 = vst [vmem:[#allocation3 + $0x18] sm:$0xff] %v4089
      %4099 = vst.msk [vmem:[#allocation3 + $0x20] sm:$0xff] %vm2280, 0.0
      %4100 = vst.msk [vmem:[#allocation3 + $0x30] sm:$0xff] %vm2280, 0.0
      %s4101 = scalar_lea.vmem %s2, 1
      %v4102 = vld [vmem:[%s4101] ss:$8 sm:$0x3]
      %v4104 = vlaneseq
      %v4105 = vshrl.u32 %v4104, 7
      %v4106 = vsub.s32 0, %v4105
      %v4107 = vrot.slane %v4102, %v4106
      %v4108 = vlaneseq
      %v4109 = vshrl.u32 %v4108, 7
      %v4110 = vsub.s32 1, %v4109
      %v4111 = vrot.slane %v4102, %v4110
      %4112 = vrot.lane.b32.xlu0 %v4107, 112
      %v4113 = vpop.permute.xlu0 %4112
      %4114 = vrot.lane.b32.xlu0 %v4111, 112
      %v4115 = vpop.permute.xlu0 %4114
      %vm4116 = vcmask 916480
      %v4117 = vsel %vm4116, %v4113, %v4115
      %v4120 = vmul.f32 %v4047, %v4117
      %v4121 = vmul.f32 %v4048, %v4115
      %v4122 = vmul.f32 %v4049, %v4117
      %v4123 = vmul.f32 %v4050, %v4115
      %4128 = vrot.lane.b32.xlu0 %v4120, 16
      %v4129 = vpop.permute.xlu0 %4128
      %4130 = vrot.lane.b32.xlu0 %v4121, 16
      %v4131 = vpop.permute.xlu0 %4130
      %4132 = vrot.lane.b32.xlu0 %v4122, 16
      %v4133 = vpop.permute.xlu0 %4132
      %4134 = vrot.lane.b32.xlu0 %v4123, 16
      %v4135 = vpop.permute.xlu0 %4134
      %v4136 = vsel %vm2280, %v4129, %v4131
      %v4137 = vsel %vm2280, %v4133, %v4135
      %vm4142 = vcmask 1047680
      %4143 = vst.msk [vmem:[#allocation3 + $0x20] sm:$0xff] %vm4142, %v4129
      %4144 = vst [vmem:[#allocation3 + $0x28] sm:$0xff] %v4136
      %4145 = vst.msk [vmem:[#allocation3 + $0x30] sm:$0xff] %vm4142, %v4133
      %4146 = vst [vmem:[#allocation3 + $0x38] sm:$0xff] %v4137
      %vm4147 = vcmask 121856
      %4148 = vst.msk [vmem:[#allocation3 + $0x40] sm:$0xff] %vm4147, 0.0
      %4149 = vst.msk [vmem:[#allocation3 + $0x50] sm:$0xff] %vm4147, 0.0
      %s4150 = scalar_lea.vmem %s2, 2
      %v4151 = vld [vmem:[%s4150] ss:$8 sm:$0x3]
      %v4153 = vlaneseq
      %v4154 = vshrl.u32 %v4153, 7
      %v4155 = vsub.s32 0, %v4154
      %v4156 = vrot.slane %v4151, %v4155
      %v4157 = vlaneseq
      %v4158 = vshrl.u32 %v4157, 7
      %v4159 = vsub.s32 1, %v4158
      %v4160 = vrot.slane %v4151, %v4159
      %4161 = vrot.lane.b32.xlu0 %v4156, 113
      %v4162 = vpop.permute.xlu0 %4161
      %4163 = vrot.lane.b32.xlu0 %v4160, 113
      %v4164 = vpop.permute.xlu0 %4163
      %vm4165 = vcmask 924672
      %v4166 = vsel %vm4165, %v4162, %v4164
      %v4169 = vmul.f32 %v4047, %v4166
      %v4170 = vmul.f32 %v4048, %v4164
      %v4171 = vmul.f32 %v4049, %v4166
      %v4172 = vmul.f32 %v4050, %v4164
      %4177 = vrot.lane.b32.xlu0 %v4169, 15
      %v4178 = vpop.permute.xlu0 %4177
      %4179 = vrot.lane.b32.xlu0 %v4170, 15
      %v4180 = vpop.permute.xlu0 %4179
      %4181 = vrot.lane.b32.xlu0 %v4171, 15
      %v4182 = vpop.permute.xlu0 %4181
      %4183 = vrot.lane.b32.xlu0 %v4172, 15
      %v4184 = vpop.permute.xlu0 %4183
      %v4185 = vsel %vm4147, %v4178, %v4180
      %v4186 = vsel %vm4147, %v4182, %v4184
      %vm4191 = vcmask 1047672
      %4192 = vst.msk [vmem:[#allocation3 + $0x40] sm:$0xff] %vm4191, %v4178
      %4193 = vst [vmem:[#allocation3 + $0x48] sm:$0xff] %v4185
      %4194 = vst.msk [vmem:[#allocation3 + $0x50] sm:$0xff] %vm4191, %v4182
      %4195 = vst [vmem:[#allocation3 + $0x58] sm:$0xff] %v4186
      %4196 = vst.msk [vmem:[#allocation3 + $0x60] sm:$0xff] %vm1140, 0.0
      %4197 = vst.msk [vmem:[#allocation3 + $0x70] sm:$0xff] %vm1140, 0.0
      %s4198 = scalar_lea.vmem %s2, 3
      %v4199 = vld [vmem:[%s4198] ss:$8 sm:$0x3]
      %v4201 = vlaneseq
      %v4202 = vshrl.u32 %v4201, 7
      %v4203 = vsub.s32 0, %v4202
      %v4204 = vrot.slane %v4199, %v4203
      %v4205 = vlaneseq
      %v4206 = vshrl.u32 %v4205, 7
      %v4207 = vsub.s32 1, %v4206
      %v4208 = vrot.slane %v4199, %v4207
      %4209 = vrot.lane.b32.xlu0 %v4204, 127
      %v4210 = vpop.permute.xlu0 %4209
      %4211 = vrot.lane.b32.xlu0 %v4208, 127
      %v4212 = vpop.permute.xlu0 %4211
      %v4213 = vsel %vm1196, %v4210, %v4212
      %v4216 = vmul.f32 %v4047, %v4213
      %v4217 = vmul.f32 %v4048, %v4212
      %v4218 = vmul.f32 %v4049, %v4213
      %v4219 = vmul.f32 %v4050, %v4212
      %4224 = vrot.lane.b32.xlu0 %v4216, 1
      %v4225 = vpop.permute.xlu0 %4224
      %4226 = vrot.lane.b32.xlu0 %v4217, 1
      %v4227 = vpop.permute.xlu0 %4226
      %4228 = vrot.lane.b32.xlu0 %v4218, 1
      %v4229 = vpop.permute.xlu0 %4228
      %4230 = vrot.lane.b32.xlu0 %v4219, 1
      %v4231 = vpop.permute.xlu0 %4230
      %v4232 = vsel %vm1140, %v4225, %v4227
      %v4233 = vsel %vm1140, %v4229, %v4231
      %4238 = vst.msk [vmem:[#allocation3 + $0x60] sm:$0xff] %vm1306, %v4225
      %4239 = vst [vmem:[#allocation3 + $0x68] sm:$0xff] %v4232
      %4240 = vst.msk [vmem:[#allocation3 + $0x70] sm:$0xff] %vm1306, %v4229
      %4241 = vst [vmem:[#allocation3 + $0x78] sm:$0xff] %v4233
      %s4242 = scalar_lea.vmem %s2, 4
      %v4243 = vld [vmem:[%s4242] ss:$8 sm:$0x3]
      %v4245 = vlaneseq
      %v4246 = vshrl.u32 %v4245, 7
      %v4247 = vsub.s32 0, %v4246
      %v4248 = vrot.slane %v4243, %v4247
      %v4249 = vlaneseq
      %v4250 = vshrl.u32 %v4249, 7
      %v4251 = vsub.s32 1, %v4250
      %v4252 = vrot.slane %v4243, %v4251
      %v4255 = vmul.f32 %v4047, %v4248
      %v4256 = vmul.f32 %v4048, %v4252
      %v4257 = vmul.f32 %v4049, %v4248
      %v4258 = vmul.f32 %v4050, %v4252
      %4259 = vst [vmem:[#allocation3 + $0x80] sm:$0xff] %v4255
      %4260 = vst [vmem:[#allocation3 + $0x88] sm:$0xff] %v4256
      %4261 = vst [vmem:[#allocation3 + $0x90] sm:$0xff] %v4257
      %4262 = vst [vmem:[#allocation3 + $0x98] sm:$0xff] %v4258
      %4263 = vst.msk [vmem:[#allocation3 + $0xa8] sm:$0xff] %vm1400, 0.0
      %4264 = vst.msk [vmem:[#allocation3 + $0xb8] sm:$0xff] %vm1400, 0.0
      %s4265 = scalar_lea.vmem %s2, 5
      %v4266 = vld [vmem:[%s4265] ss:$8 sm:$0x3]
      %v4268 = vlaneseq
      %v4269 = vshrl.u32 %v4268, 7
      %v4270 = vsub.s32 0, %v4269
      %v4271 = vrot.slane %v4266, %v4270
      %v4272 = vlaneseq
      %v4273 = vshrl.u32 %v4272, 7
      %v4274 = vsub.s32 1, %v4273
      %v4275 = vrot.slane %v4266, %v4274
      %4276 = vrot.lane.b32.xlu0 %v4271, 1
      %v4277 = vpop.permute.xlu0 %4276
      %4278 = vrot.lane.b32.xlu0 %v4275, 1
      %v4279 = vpop.permute.xlu0 %4278
      %v4280 = vsel %vm1140, %v4277, %v4279
      %v4283 = vmul.f32 %v4047, %v4277
      %v4284 = vmul.f32 %v4048, %v4280
      %v4285 = vmul.f32 %v4049, %v4277
      %v4286 = vmul.f32 %v4050, %v4280
      %4291 = vrot.lane.b32.xlu0 %v4283, 127
      %v4292 = vpop.permute.xlu0 %4291
      %4293 = vrot.lane.b32.xlu0 %v4284, 127
      %v4294 = vpop.permute.xlu0 %4293
      %4295 = vrot.lane.b32.xlu0 %v4285, 127
      %v4296 = vpop.permute.xlu0 %4295
      %4297 = vrot.lane.b32.xlu0 %v4286, 127
      %v4298 = vpop.permute.xlu0 %4297
      %v4299 = vsel %vm1196, %v4292, %v4294
      %v4300 = vsel %vm1196, %v4296, %v4298
      %4305 = vst [vmem:[#allocation3 + $0xa0] sm:$0xff] %v4299
      %4306 = vst.msk [vmem:[#allocation3 + $0xa8] sm:$0xff] %vm1196, %v4294
      %4307 = vst [vmem:[#allocation3 + $0xb0] sm:$0xff] %v4300
      %4308 = vst.msk [vmem:[#allocation3 + $0xb8] sm:$0xff] %vm1196, %v4298
      %vm4309 = vcmask 1048456
      %4310 = vst.msk [vmem:[#allocation3 + $0xc8] sm:$0xff] %vm4309, 0.0
      %4311 = vst.msk [vmem:[#allocation3 + $0xd8] sm:$0xff] %vm4309, 0.0
      %s4312 = scalar_lea.vmem %s2, 6
      %v4313 = vld [vmem:[%s4312] ss:$8 sm:$0x3]
      %v4315 = vlaneseq
      %v4316 = vshrl.u32 %v4315, 7
      %v4317 = vsub.s32 0, %v4316
      %v4318 = vrot.slane %v4313, %v4317
      %v4319 = vlaneseq
      %v4320 = vshrl.u32 %v4319, 7
      %v4321 = vsub.s32 1, %v4320
      %v4322 = vrot.slane %v4313, %v4321
      %4323 = vrot.lane.b32.xlu0 %v4318, 15
      %v4324 = vpop.permute.xlu0 %4323
      %4325 = vrot.lane.b32.xlu0 %v4322, 15
      %v4326 = vpop.permute.xlu0 %4325
      %v4327 = vsel %vm4147, %v4324, %v4326
      %v4330 = vmul.f32 %v4047, %v4324
      %v4331 = vmul.f32 %v4048, %v4327
      %v4332 = vmul.f32 %v4049, %v4324
      %v4333 = vmul.f32 %v4050, %v4327
      %4338 = vrot.lane.b32.xlu0 %v4330, 113
      %v4339 = vpop.permute.xlu0 %4338
      %4340 = vrot.lane.b32.xlu0 %v4331, 113
      %v4341 = vpop.permute.xlu0 %4340
      %4342 = vrot.lane.b32.xlu0 %v4332, 113
      %v4343 = vpop.permute.xlu0 %4342
      %4344 = vrot.lane.b32.xlu0 %v4333, 113
      %v4345 = vpop.permute.xlu0 %4344
      %v4346 = vsel %vm4165, %v4339, %v4341
      %v4347 = vsel %vm4165, %v4343, %v4345
      %4352 = vst [vmem:[#allocation3 + $0xc0] sm:$0xff] %v4346
      %4353 = vst.msk [vmem:[#allocation3 + $0xc8] sm:$0xff] %vm4165, %v4341
      %4354 = vst [vmem:[#allocation3 + $0xd0] sm:$0xff] %v4347
      %4355 = vst.msk [vmem:[#allocation3 + $0xd8] sm:$0xff] %vm4165, %v4345
      %vm4356 = vcmask 1048448
      %4357 = vst.msk [vmem:[#allocation3 + $0xe8] sm:$0xff] %vm4356, 0.0
      %4358 = vst.msk [vmem:[#allocation3 + $0xf8] sm:$0xff] %vm4356, 0.0
      %s4359 = scalar_lea.vmem %s2, 7
      %v4360 = vld [vmem:[%s4359] ss:$8 sm:$0x3]
      %v4362 = vlaneseq
      %v4363 = vshrl.u32 %v4362, 7
      %v4364 = vsub.s32 0, %v4363
      %v4365 = vrot.slane %v4360, %v4364
      %v4366 = vlaneseq
      %v4367 = vshrl.u32 %v4366, 7
      %v4368 = vsub.s32 1, %v4367
      %v4369 = vrot.slane %v4360, %v4368
      %4370 = vrot.lane.b32.xlu0 %v4365, 16
      %v4371 = vpop.permute.xlu0 %4370
      %4372 = vrot.lane.b32.xlu0 %v4369, 16
      %v4373 = vpop.permute.xlu0 %4372
      %v4374 = vsel %vm2280, %v4371, %v4373
      %v4377 = vmul.f32 %v4047, %v4371
      %v4378 = vmul.f32 %v4048, %v4374
      %v4379 = vmul.f32 %v4049, %v4371
      %v4380 = vmul.f32 %v4050, %v4374
      %4385 = vrot.lane.b32.xlu0 %v4377, 112
      %v4386 = vpop.permute.xlu0 %4385
      %4387 = vrot.lane.b32.xlu0 %v4378, 112
      %v4388 = vpop.permute.xlu0 %4387
      %4389 = vrot.lane.b32.xlu0 %v4379, 112
      %v4390 = vpop.permute.xlu0 %4389
      %4391 = vrot.lane.b32.xlu0 %v4380, 112
      %v4392 = vpop.permute.xlu0 %4391
      %v4393 = vsel %vm4116, %v4386, %v4388
      %v4394 = vsel %vm4116, %v4390, %v4392
      %4399 = vst [vmem:[#allocation3 + $0xe0] sm:$0xff] %v4393
      %4400 = vst.msk [vmem:[#allocation3 + $0xe8] sm:$0xff] %vm4116, %v4388
      %4401 = vst [vmem:[#allocation3 + $0xf0] sm:$0xff] %v4394
      %4402 = vst.msk [vmem:[#allocation3 + $0xf8] sm:$0xff] %vm4116, %v4392
      %vm4403 = vcmask 1048440
      %4404 = vst.msk [vmem:[#allocation3 + $0x108] sm:$0xff] %vm4403, 0.0
      %4405 = vst.msk [vmem:[#allocation3 + $0x118] sm:$0xff] %vm4403, 0.0
      %s4406 = scalar_lea.vmem %s2, 16
      %v4407 = vld [vmem:[%s4406] ss:$8 sm:$0x3]
      %v4409 = vlaneseq
      %v4410 = vshrl.u32 %v4409, 7
      %v4411 = vsub.s32 0, %v4410
      %v4412 = vrot.slane %v4407, %v4411
      %v4413 = vlaneseq
      %v4414 = vshrl.u32 %v4413, 7
      %v4415 = vsub.s32 1, %v4414
      %v4416 = vrot.slane %v4407, %v4415
      %4417 = vrot.lane.b32.xlu0 %v4412, 17
      %v4418 = vpop.permute.xlu0 %4417
      %4419 = vrot.lane.b32.xlu0 %v4416, 17
      %v4420 = vpop.permute.xlu0 %4419
      %v4421 = vsel %vm4051, %v4418, %v4420
      %v4424 = vmul.f32 %v4047, %v4418
      %v4425 = vmul.f32 %v4048, %v4421
      %v4426 = vmul.f32 %v4049, %v4418
      %v4427 = vmul.f32 %v4050, %v4421
      %4432 = vrot.lane.b32.xlu0 %v4424, 111
      %v4433 = vpop.permute.xlu0 %4432
      %4434 = vrot.lane.b32.xlu0 %v4425, 111
      %v4435 = vpop.permute.xlu0 %4434
      %4436 = vrot.lane.b32.xlu0 %v4426, 111
      %v4437 = vpop.permute.xlu0 %4436
      %4438 = vrot.lane.b32.xlu0 %v4427, 111
      %v4439 = vpop.permute.xlu0 %4438
      %v4440 = vsel %vm4068, %v4433, %v4435
      %v4441 = vsel %vm4068, %v4437, %v4439
      %4446 = vst [vmem:[#allocation3 + $0x100] sm:$0xff] %v4440
      %4447 = vst.msk [vmem:[#allocation3 + $0x108] sm:$0xff] %vm4068, %v4435
      %4448 = vst [vmem:[#allocation3 + $0x110] sm:$0xff] %v4441
      %4449 = vst.msk [vmem:[#allocation3 + $0x118] sm:$0xff] %vm4068, %v4439
      %v4450 = vld [vmem:[%s7] sm:$0xff]
      %v4451 = vld [vmem:[%s7 + $0x8] sm:$0xff]
      %v4452 = vld [vmem:[%s7 + $0x10] sm:$0xff]
      %v4453 = vld [vmem:[%s7 + $0x18] sm:$0xff]
      %v4454 = vld [vmem:[#allocation3] sm:$0xff]
      %v4455 = vld [vmem:[#allocation3 + $0x8] sm:$0xff]
      %v4456 = vld [vmem:[#allocation3 + $0x10] sm:$0xff]
      %v4457 = vld [vmem:[#allocation3 + $0x18] sm:$0xff]
      %v4458 = vld [vmem:[#allocation3 + $0x20] sm:$0xff]
      %v4459 = vld [vmem:[#allocation3 + $0x28] sm:$0xff]
      %v4460 = vld [vmem:[#allocation3 + $0x30] sm:$0xff]
      %v4461 = vld [vmem:[#allocation3 + $0x38] sm:$0xff]
      %v4462 = vld [vmem:[#allocation3 + $0x40] sm:$0xff]
      %v4463 = vld [vmem:[#allocation3 + $0x48] sm:$0xff]
      %v4464 = vld [vmem:[#allocation3 + $0x50] sm:$0xff]
      %v4465 = vld [vmem:[#allocation3 + $0x58] sm:$0xff]
      %v4466 = vld [vmem:[#allocation3 + $0x60] sm:$0xff]
      %v4467 = vld [vmem:[#allocation3 + $0x68] sm:$0xff]
      %v4468 = vld [vmem:[#allocation3 + $0x70] sm:$0xff]
      %v4469 = vld [vmem:[#allocation3 + $0x78] sm:$0xff]
      %v4470 = vld [vmem:[#allocation3 + $0x80] sm:$0xff]
      %v4471 = vld [vmem:[#allocation3 + $0x88] sm:$0xff]
      %v4472 = vld [vmem:[#allocation3 + $0x90] sm:$0xff]
      %v4473 = vld [vmem:[#allocation3 + $0x98] sm:$0xff]
      %v4474 = vld [vmem:[#allocation3 + $0xa0] sm:$0xff]
      %v4475 = vld [vmem:[#allocation3 + $0xa8] sm:$0xff]
      %v4476 = vld [vmem:[#allocation3 + $0xb0] sm:$0xff]
      %v4477 = vld [vmem:[#allocation3 + $0xb8] sm:$0xff]
      %v4478 = vld [vmem:[#allocation3 + $0xc0] sm:$0xff]
      %v4479 = vld [vmem:[#allocation3 + $0xc8] sm:$0xff]
      %v4480 = vld [vmem:[#allocation3 + $0xd0] sm:$0xff]
      %v4481 = vld [vmem:[#allocation3 + $0xd8] sm:$0xff]
      %v4482 = vld [vmem:[#allocation3 + $0xe0] sm:$0xff]
      %v4483 = vld [vmem:[#allocation3 + $0xe8] sm:$0xff]
      %v4484 = vld [vmem:[#allocation3 + $0xf0] sm:$0xff]
      %v4485 = vld [vmem:[#allocation3 + $0xf8] sm:$0xff]
      %v4486 = vld [vmem:[#allocation3 + $0x100] sm:$0xff]
      %v4487 = vld [vmem:[#allocation3 + $0x108] sm:$0xff]
      %v4488 = vld [vmem:[#allocation3 + $0x110] sm:$0xff]
      %v4489 = vld [vmem:[#allocation3 + $0x118] sm:$0xff]
      %v4490 = vld [vmem:[%s8] sm:$0xff]
      %v4491 = vld [vmem:[%s8 + $0x8] sm:$0xff]
      %4493 = vset.pattern.permute.xlu0 0
      %4494 = vperm.xlu0 %4493, %v4490
      %v4495 = vpop.permute.xlu0 %4494
      %4498 = vset.pattern.permute.xlu0 0
      %4499 = vperm.xlu0 %4498, %v4491
      %v4500 = vpop.permute.xlu0 %4499
      %v4503 = vsel %vm2280, %v4451, 0
      %v4506 = vsel %vm2280, %v4453, 0
      %4508 = vmatprep.subr.mxu0 %v4455
      %4509 = vmatpush1.msra.mxu0 %v4454
      %4510 = vmatprep.subr.mxu0 %v4457
      %4511 = vmatpush1.msra.mxu0 %v4456
      %4512 = vmatprep.subr.mxu0 %v4459
      %4513 = vmatpush1.msra.mxu0 %v4458
      %4514 = vmatprep.subr.mxu0 %v4461
      %4515 = vmatpush1.msra.mxu0 %v4460
      %4516 = vmatprep.subr.mxu0 %v4463
      %4517 = vmatpush1.msra.mxu0 %v4462
      %4518 = vmatprep.subr.mxu0 %v4465
      %4519 = vmatpush1.msra.mxu0 %v4464
      %4520 = vmatprep.subr.mxu0 %v4467
      %4521 = vmatpush1.msra.mxu0 %v4466
      %4522 = vmatprep.subr.mxu0 %v4469
      %4523 = vmatpush1.msra.mxu0 %v4468
      %4524 = vmatprep.subr.mxu0 %v4471
      %4525 = vmatpush1.msra.mxu0 %v4470
      %4526 = vmatprep.subr.mxu0 %v4473
      %4527 = vmatpush1.msra.mxu0 %v4472
      %4528 = vmatprep.subr.mxu0 %v4475
      %4529 = vmatpush1.msra.mxu0 %v4474
      %4530 = vmatprep.subr.mxu0 %v4477
      %4531 = vmatpush1.msra.mxu0 %v4476
      %4532 = vmatprep.subr.mxu0 %v4479
      %4533 = vmatpush1.msra.mxu0 %v4478
      %4534 = vmatprep.subr.mxu0 %v4481
      %4535 = vmatpush1.msra.mxu0 %v4480
      %4536 = vmatprep.subr.mxu0 %v4483
      %4537 = vmatpush1.msra.mxu0 %v4482
      %4538 = vmatprep.subr.mxu0 %v4485
      %4539 = vmatpush1.msra.mxu0 %v4484
      %4540 = vmatprep.subr.mxu0 %v4487
      %4541 = vmatpush1.msra.mxu0 %v4486
      %4542 = vmatprep.subr.mxu0 %v4489
      %4543 = vmatpush1.msra.mxu0 %v4488
      %4544 = vmatprep.subr.mxu0 0.0
      %4545 = vmatpush1.msra.mxu0 0.0
      %4546 = vmatprep.subr.mxu0 0.0
      %4547 = vmatpush1.msra.mxu0 0.0
      %4548 = vmatprep.subr.mxu0 0.0
      %4549 = vmatpush1.msra.mxu0 0.0
      %4550 = vmatprep.subr.mxu0 0.0
      %4551 = vmatpush1.msra.mxu0 0.0
      %4552 = vmatprep.subr.mxu0 0.0
      %4553 = vmatpush1.msra.mxu0 0.0
      %4554 = vmatprep.subr.mxu0 0.0
      %4555 = vmatpush1.msra.mxu0 0.0
      %4556 = vmatprep.subr.mxu0 0.0
      %4557 = vmatpush1.msra.mxu0 0.0
      %4558 = vmatprep.subr.mxu0 0.0
      %4559 = vmatpush1.msra.mxu0 0.0
      %4560 = vmatprep.subr.mxu0 0.0
      %4561 = vmatpush1.msra.mxu0 0.0
      %4562 = vmatprep.subr.mxu0 0.0
      %4563 = vmatpush1.msra.mxu0 0.0
      %4564 = vmatprep.subr.mxu0 0.0
      %4565 = vmatpush1.msra.mxu0 0.0
      %4566 = vmatprep.subr.mxu0 0.0
      %4567 = vmatpush1.msra.mxu0 0.0
      %4568 = vmatprep.subr.mxu0 0.0
      %4569 = vmatpush1.msra.mxu0 0.0
      %4570 = vmatprep.subr.mxu0 0.0
      %4571 = vmatpush1.msra.mxu0 0.0
      %4572 = vmatprep.mubr.f32.mxu0 %v4503
      %4573 = vmatmul.mubr.f32.gmra.mrb[0].mxu0 %v4450
      %v4574 = vpop.f32.mrb[0].mxu0
      %v4575 = vadd.f32 %v4495, %v4574
      %v4576 = vpop.f32.mrb[0].mxu0
      %v4577 = vadd.f32 %v4495, %v4576
      %4578 = vmatprep.mubr.f32.mxu0 %v4506
      %4579 = vmatmul.mubr.f32.gmra.mrb[0].mxu0 %v4452
      %v4580 = vpop.f32.mrb[0].mxu0
      %v4581 = vadd.f32 %v4500, %v4580
      %v4582 = vpop.f32.mrb[0].mxu0
      %v4583 = vadd.f32 %v4500, %v4582
      %4584 = vdwg.mxu0
      %v4585 = vld [vmem:[%s15] sm:$0xff]
      %v4586 = vld [vmem:[%s15 + $0x8] sm:$0xff]
      %v4587 = vld [vmem:[%s15 + $0x10] sm:$0xff]
      %v4588 = vld [vmem:[%s15 + $0x18] sm:$0xff]
      %v4589 = vld [vmem:[%s15 + $0x20] sm:$0xff]
      %v4590 = vld [vmem:[%s15 + $0x28] sm:$0xff]
      %v4591 = vld [vmem:[%s15 + $0x30] sm:$0xff]
      %v4592 = vld [vmem:[%s15 + $0x38] sm:$0xff]
      %v4593 = vld [vmem:[%s15 + $0x40] sm:$0xff]
      %v4594 = vld [vmem:[%s15 + $0x48] sm:$0xff]
      %v4595 = vld [vmem:[%s15 + $0x50] sm:$0xff]
      %v4596 = vld [vmem:[%s15 + $0x58] sm:$0xff]
      %v4597 = vld [vmem:[%s15 + $0x60] sm:$0xff]
      %v4598 = vld [vmem:[%s15 + $0x68] sm:$0xff]
      %v4599 = vld [vmem:[%s15 + $0x70] sm:$0xff]
      %v4600 = vld [vmem:[%s15 + $0x78] sm:$0xff]
      %v4601 = vld [vmem:[%s15 + $0x80] sm:$0xff]
      %v4602 = vld [vmem:[%s15 + $0x88] sm:$0xff]
      %v4603 = vld [vmem:[%s15 + $0x90] sm:$0xff]
      %v4604 = vld [vmem:[%s15 + $0x98] sm:$0xff]
      %v4605 = vld [vmem:[%s15 + $0xa0] sm:$0xff]
      %v4606 = vld [vmem:[%s15 + $0xa8] sm:$0xff]
      %v4607 = vld [vmem:[%s15 + $0xb0] sm:$0xff]
      %v4608 = vld [vmem:[%s15 + $0xb8] sm:$0xff]
      %v4609 = vld [vmem:[%s15 + $0xc0] sm:$0xff]
      %v4610 = vld [vmem:[%s15 + $0xc8] sm:$0xff]
      %v4611 = vld [vmem:[%s15 + $0xd0] sm:$0xff]
      %v4612 = vld [vmem:[%s15 + $0xd8] sm:$0xff]
      %v4613 = vld [vmem:[%s15 + $0xe0] sm:$0xff]
      %v4614 = vld [vmem:[%s15 + $0xe8] sm:$0xff]
      %v4615 = vld [vmem:[%s15 + $0xf0] sm:$0xff]
      %v4616 = vld [vmem:[%s15 + $0xf8] sm:$0xff]
      %4617 = vmatprep.subr.mxu0 0.0
      %4618 = vmatpush1.msra.mxu0 %v4585
      %4619 = vmatprep.subr.mxu0 0.0
      %4620 = vmatpush1.msra.mxu0 %v4586
      %4621 = vmatprep.subr.mxu0 0.0
      %4622 = vmatpush1.msra.mxu0 %v4587
      %4623 = vmatprep.subr.mxu0 0.0
      %4624 = vmatpush1.msra.mxu0 %v4588
      %4625 = vmatprep.subr.mxu0 0.0
      %4626 = vmatpush1.msra.mxu0 %v4589
      %4627 = vmatprep.subr.mxu0 0.0
      %4628 = vmatpush1.msra.mxu0 %v4590
      %4629 = vmatprep.subr.mxu0 0.0
      %4630 = vmatpush1.msra.mxu0 %v4591
      %4631 = vmatprep.subr.mxu0 0.0
      %4632 = vmatpush1.msra.mxu0 %v4592
      %4633 = vmatprep.subr.mxu0 0.0
      %4634 = vmatpush1.msra.mxu0 %v4593
      %4635 = vmatprep.subr.mxu0 0.0
      %4636 = vmatpush1.msra.mxu0 %v4594
      %4637 = vmatprep.subr.mxu0 0.0
      %4638 = vmatpush1.msra.mxu0 %v4595
      %4639 = vmatprep.subr.mxu0 0.0
      %4640 = vmatpush1.msra.mxu0 %v4596
      %4641 = vmatprep.subr.mxu0 0.0
      %4642 = vmatpush1.msra.mxu0 %v4597
      %4643 = vmatprep.subr.mxu0 0.0
      %4644 = vmatpush1.msra.mxu0 %v4598
      %4645 = vmatprep.subr.mxu0 0.0
      %4646 = vmatpush1.msra.mxu0 %v4599
      %4647 = vmatprep.subr.mxu0 0.0
      %4648 = vmatpush1.msra.mxu0 %v4600
      %4649 = vmatprep.subr.mxu0 0.0
      %4650 = vmatpush1.msra.mxu0 %v4601
      %4651 = vmatprep.subr.mxu0 0.0
      %4652 = vmatpush1.msra.mxu0 %v4602
      %4653 = vmatprep.subr.mxu0 0.0
      %4654 = vmatpush1.msra.mxu0 %v4603
      %4655 = vmatprep.subr.mxu0 0.0
      %4656 = vmatpush1.msra.mxu0 %v4604
      %4657 = vmatprep.subr.mxu0 0.0
      %4658 = vmatpush1.msra.mxu0 %v4605
      %4659 = vmatprep.subr.mxu0 0.0
      %4660 = vmatpush1.msra.mxu0 %v4606
      %4661 = vmatprep.subr.mxu0 0.0
      %4662 = vmatpush1.msra.mxu0 %v4607
      %4663 = vmatprep.subr.mxu0 0.0
      %4664 = vmatpush1.msra.mxu0 %v4608
      %4665 = vmatprep.subr.mxu0 0.0
      %4666 = vmatpush1.msra.mxu0 %v4609
      %4667 = vmatprep.subr.mxu0 0.0
      %4668 = vmatpush1.msra.mxu0 %v4610
      %4669 = vmatprep.subr.mxu0 0.0
      %4670 = vmatpush1.msra.mxu0 %v4611
      %4671 = vmatprep.subr.mxu0 0.0
      %4672 = vmatpush1.msra.mxu0 %v4612
      %4673 = vmatprep.subr.mxu0 0.0
      %4674 = vmatpush1.msra.mxu0 %v4613
      %4675 = vmatprep.subr.mxu0 0.0
      %4676 = vmatpush1.msra.mxu0 %v4614
      %4677 = vmatprep.subr.mxu0 0.0
      %4678 = vmatpush1.msra.mxu0 %v4615
      %4679 = vmatprep.subr.mxu0 0.0
      %4680 = vmatpush1.msra.mxu0 %v4616
      %4681 = vmatprep.mubr.f32.mxu0 %v4577
      %4682 = vmatmul.mubr.f32.gmra.mrb[0].mxu0 %v4575
      %v4683 = vpop.f32.mrb[0].mxu0
      %v4684 = vadd.f32 0.0, %v4683
      %v4685 = vpop.f32.mrb[0].mxu0
      %4686 = vmatprep.mubr.f32.mxu0 %v4583
      %4687 = vmatmul.mubr.f32.gmra.mrb[0].mxu0 %v4581
      %v4688 = vpop.f32.mrb[0].mxu0
      %v4689 = vadd.f32 0.0, %v4688
      %v4690 = vpop.f32.mrb[0].mxu0
      %4691 = vdwg.mxu0
      %v4692 = vld [vmem:[%s16] sm:$0xff]
      %v4693 = vld [vmem:[%s16 + $0x8] sm:$0xff]
      %v4694 = vld [vmem:[%s16 + $0x10] sm:$0xff]
      %v4695 = vld [vmem:[%s16 + $0x18] sm:$0xff]
      %v4697 = vsel %vm2280, %v4684, 0
      %v4700 = vsel %vm2280, %v4689, 0
      %4702 = vmatprep.subr.mxu0 %v4693
      %4703 = vmatpush1.msra.mxu0 %v4692
      %4704 = vmatprep.subr.mxu0 %v4695
      %4705 = vmatpush1.msra.mxu0 %v4694
      %4706 = vmatprep.subr.mxu0 0.0
      %4707 = vmatpush1.msra.mxu0 0.0
      %4708 = vmatprep.subr.mxu0 0.0
      %4709 = vmatpush1.msra.mxu0 0.0
      %4710 = vmatprep.subr.mxu0 0.0
      %4711 = vmatpush1.msra.mxu0 0.0
      %4712 = vmatprep.subr.mxu0 0.0
      %4713 = vmatpush1.msra.mxu0 0.0
      %4714 = vmatprep.subr.mxu0 0.0
      %4715 = vmatpush1.msra.mxu0 0.0
      %4716 = vmatprep.subr.mxu0 0.0
      %4717 = vmatpush1.msra.mxu0 0.0
      %4718 = vmatprep.subr.mxu0 0.0
      %4719 = vmatpush1.msra.mxu0 0.0
      %4720 = vmatprep.subr.mxu0 0.0
      %4721 = vmatpush1.msra.mxu0 0.0
      %4722 = vmatprep.subr.mxu0 0.0
      %4723 = vmatpush1.msra.mxu0 0.0
      %4724 = vmatprep.subr.mxu0 0.0
      %4725 = vmatpush1.msra.mxu0 0.0
      %4726 = vmatprep.subr.mxu0 0.0
      %4727 = vmatpush1.msra.mxu0 0.0
      %4728 = vmatprep.subr.mxu0 0.0
      %4729 = vmatpush1.msra.mxu0 0.0
      %4730 = vmatprep.subr.mxu0 0.0
      %4731 = vmatpush1.msra.mxu0 0.0
      %4732 = vmatprep.subr.mxu0 0.0
      %4733 = vmatpush1.msra.mxu0 0.0
      %4734 = vmatprep.subr.mxu0 0.0
      %4735 = vmatpush1.msra.mxu0 0.0
      %4736 = vmatprep.subr.mxu0 0.0
      %4737 = vmatpush1.msra.mxu0 0.0
      %4738 = vmatprep.subr.mxu0 0.0
      %4739 = vmatpush1.msra.mxu0 0.0
      %4740 = vmatprep.subr.mxu0 0.0
      %4741 = vmatpush1.msra.mxu0 0.0
      %4742 = vmatprep.subr.mxu0 0.0
      %4743 = vmatpush1.msra.mxu0 0.0
      %4744 = vmatprep.subr.mxu0 0.0
      %4745 = vmatpush1.msra.mxu0 0.0
      %4746 = vmatprep.subr.mxu0 0.0
      %4747 = vmatpush1.msra.mxu0 0.0
      %4748 = vmatprep.subr.mxu0 0.0
      %4749 = vmatpush1.msra.mxu0 0.0
      %4750 = vmatprep.subr.mxu0 0.0
      %4751 = vmatpush1.msra.mxu0 0.0
      %4752 = vmatprep.subr.mxu0 0.0
      %4753 = vmatpush1.msra.mxu0 0.0
      %4754 = vmatprep.subr.mxu0 0.0
      %4755 = vmatpush1.msra.mxu0 0.0
      %4756 = vmatprep.subr.mxu0 0.0
      %4757 = vmatpush1.msra.mxu0 0.0
      %4758 = vmatprep.subr.mxu0 0.0
      %4759 = vmatpush1.msra.mxu0 0.0
      %4760 = vmatprep.subr.mxu0 0.0
      %4761 = vmatpush1.msra.mxu0 0.0
      %4762 = vmatprep.subr.mxu0 0.0
      %4763 = vmatpush1.msra.mxu0 0.0
      %4764 = vmatprep.subr.mxu0 0.0
      %4765 = vmatpush1.msra.mxu0 0.0
      %4766 = vmatprep.mubr.f32.mxu0 0.0
      %4767 = vmatmul.mubr.f32.gmra.mrb[0].mxu0 %v4697
      %v4768 = vpop.f32.mrb[0].mxu0
      %v4769 = vadd.f32 0.0, %v4768
      %v4770 = vpop.f32.mrb[0].mxu0
      %v4771 = vadd.f32 0.0, %v4770
      %4772 = vmatprep.mubr.f32.mxu0 0.0
      %4773 = vmatmul.mubr.f32.gmra.mrb[0].mxu0 %v4700
      %v4774 = vpop.f32.mrb[0].mxu0
      %v4775 = vadd.f32 0.0, %v4774
      %v4776 = vpop.f32.mrb[0].mxu0
      %v4777 = vadd.f32 0.0, %v4776
      %4778 = vdwg.mxu0
      %v4779 = vsub.f32 %v4575, %v4769
      %v4780 = vsub.f32 %v4577, %v4771
      %v4781 = vsub.f32 %v4581, %v4775
      %v4782 = vsub.f32 %v4583, %v4777
      %v4783 = vmul.f32 %v4779, %v4779
      %v4784 = vmul.f32 %v4780, %v4780
      %v4785 = vmul.f32 %v4781, %v4781
      %v4786 = vmul.f32 %v4782, %v4782
      %4787 = vmatprep.subr.mxu0 0.0
      %4788 = vmatpush1.msra.mxu0 %v4585
      %4789 = vmatprep.subr.mxu0 0.0
      %4790 = vmatpush1.msra.mxu0 %v4586
      %4791 = vmatprep.subr.mxu0 0.0
      %4792 = vmatpush1.msra.mxu0 %v4587
      %4793 = vmatprep.subr.mxu0 0.0
      %4794 = vmatpush1.msra.mxu0 %v4588
      %4795 = vmatprep.subr.mxu0 0.0
      %4796 = vmatpush1.msra.mxu0 %v4589
      %4797 = vmatprep.subr.mxu0 0.0
      %4798 = vmatpush1.msra.mxu0 %v4590
      %4799 = vmatprep.subr.mxu0 0.0
      %4800 = vmatpush1.msra.mxu0 %v4591
      %4801 = vmatprep.subr.mxu0 0.0
      %4802 = vmatpush1.msra.mxu0 %v4592
      %4803 = vmatprep.subr.mxu0 0.0
      %4804 = vmatpush1.msra.mxu0 %v4593
      %4805 = vmatprep.subr.mxu0 0.0
      %4806 = vmatpush1.msra.mxu0 %v4594
      %4807 = vmatprep.subr.mxu0 0.0
      %4808 = vmatpush1.msra.mxu0 %v4595
      %4809 = vmatprep.subr.mxu0 0.0
      %4810 = vmatpush1.msra.mxu0 %v4596
      %4811 = vmatprep.subr.mxu0 0.0
      %4812 = vmatpush1.msra.mxu0 %v4597
      %4813 = vmatprep.subr.mxu0 0.0
      %4814 = vmatpush1.msra.mxu0 %v4598
      %4815 = vmatprep.subr.mxu0 0.0
      %4816 = vmatpush1.msra.mxu0 %v4599
      %4817 = vmatprep.subr.mxu0 0.0
      %4818 = vmatpush1.msra.mxu0 %v4600
      %4819 = vmatprep.subr.mxu0 0.0
      %4820 = vmatpush1.msra.mxu0 %v4601
      %4821 = vmatprep.subr.mxu0 0.0
      %4822 = vmatpush1.msra.mxu0 %v4602
      %4823 = vmatprep.subr.mxu0 0.0
      %4824 = vmatpush1.msra.mxu0 %v4603
      %4825 = vmatprep.subr.mxu0 0.0
      %4826 = vmatpush1.msra.mxu0 %v4604
      %4827 = vmatprep.subr.mxu0 0.0
      %4828 = vmatpush1.msra.mxu0 %v4605
      %4829 = vmatprep.subr.mxu0 0.0
      %4830 = vmatpush1.msra.mxu0 %v4606
      %4831 = vmatprep.subr.mxu0 0.0
      %4832 = vmatpush1.msra.mxu0 %v4607
      %4833 = vmatprep.subr.mxu0 0.0
      %4834 = vmatpush1.msra.mxu0 %v4608
      %4835 = vmatprep.subr.mxu0 0.0
      %4836 = vmatpush1.msra.mxu0 %v4609
      %4837 = vmatprep.subr.mxu0 0.0
      %4838 = vmatpush1.msra.mxu0 %v4610
      %4839 = vmatprep.subr.mxu0 0.0
      %4840 = vmatpush1.msra.mxu0 %v4611
      %4841 = vmatprep.subr.mxu0 0.0
      %4842 = vmatpush1.msra.mxu0 %v4612
      %4843 = vmatprep.subr.mxu0 0.0
      %4844 = vmatpush1.msra.mxu0 %v4613
      %4845 = vmatprep.subr.mxu0 0.0
      %4846 = vmatpush1.msra.mxu0 %v4614
      %4847 = vmatprep.subr.mxu0 0.0
      %4848 = vmatpush1.msra.mxu0 %v4615
      %4849 = vmatprep.subr.mxu0 0.0
      %4850 = vmatpush1.msra.mxu0 %v4616
      %4851 = vmatprep.mubr.f32.mxu0 %v4784
      %4852 = vmatmul.mubr.f32.gmra.mrb[0].mxu0 %v4783
      %v4853 = vpop.f32.mrb[0].mxu0
      %v4854 = vadd.f32 0.0, %v4853
      %v4855 = vpop.f32.mrb[0].mxu0
      %4856 = vmatprep.mubr.f32.mxu0 %v4786
      %4857 = vmatmul.mubr.f32.gmra.mrb[0].mxu0 %v4785
      %v4858 = vpop.f32.mrb[0].mxu0
      %v4859 = vadd.f32 0.0, %v4858
      %v4860 = vpop.f32.mrb[0].mxu0
      %4861 = vdwg.mxu0
      %v4863 = vsel %vm2280, %v4854, 0
      %v4866 = vsel %vm2280, %v4859, 0
      %4868 = vmatprep.subr.mxu0 %v4693
      %4869 = vmatpush1.msra.mxu0 %v4692
      %4870 = vmatprep.subr.mxu0 %v4695
      %4871 = vmatpush1.msra.mxu0 %v4694
      %4872 = vmatprep.subr.mxu0 0.0
      %4873 = vmatpush1.msra.mxu0 0.0
      %4874 = vmatprep.subr.mxu0 0.0
      %4875 = vmatpush1.msra.mxu0 0.0
      %4876 = vmatprep.subr.mxu0 0.0
      %4877 = vmatpush1.msra.mxu0 0.0
      %4878 = vmatprep.subr.mxu0 0.0
      %4879 = vmatpush1.msra.mxu0 0.0
      %4880 = vmatprep.subr.mxu0 0.0
      %4881 = vmatpush1.msra.mxu0 0.0
      %4882 = vmatprep.subr.mxu0 0.0
      %4883 = vmatpush1.msra.mxu0 0.0
      %4884 = vmatprep.subr.mxu0 0.0
      %4885 = vmatpush1.msra.mxu0 0.0
      %4886 = vmatprep.subr.mxu0 0.0
      %4887 = vmatpush1.msra.mxu0 0.0
      %4888 = vmatprep.subr.mxu0 0.0
      %4889 = vmatpush1.msra.mxu0 0.0
      %4890 = vmatprep.subr.mxu0 0.0
      %4891 = vmatpush1.msra.mxu0 0.0
      %4892 = vmatprep.subr.mxu0 0.0
      %4893 = vmatpush1.msra.mxu0 0.0
      %4894 = vmatprep.subr.mxu0 0.0
      %4895 = vmatpush1.msra.mxu0 0.0
      %4896 = vmatprep.subr.mxu0 0.0
      %4897 = vmatpush1.msra.mxu0 0.0
      %4898 = vmatprep.subr.mxu0 0.0
      %4899 = vmatpush1.msra.mxu0 0.0
      %4900 = vmatprep.subr.mxu0 0.0
      %4901 = vmatpush1.msra.mxu0 0.0
      %4902 = vmatprep.subr.mxu0 0.0
      %4903 = vmatpush1.msra.mxu0 0.0
      %4904 = vmatprep.subr.mxu0 0.0
      %4905 = vmatpush1.msra.mxu0 0.0
      %4906 = vmatprep.subr.mxu0 0.0
      %4907 = vmatpush1.msra.mxu0 0.0
      %4908 = vmatprep.subr.mxu0 0.0
      %4909 = vmatpush1.msra.mxu0 0.0
      %4910 = vmatprep.subr.mxu0 0.0
      %4911 = vmatpush1.msra.mxu0 0.0
      %4912 = vmatprep.subr.mxu0 0.0
      %4913 = vmatpush1.msra.mxu0 0.0
      %4914 = vmatprep.subr.mxu0 0.0
      %4915 = vmatpush1.msra.mxu0 0.0
      %4916 = vmatprep.subr.mxu0 0.0
      %4917 = vmatpush1.msra.mxu0 0.0
      %4918 = vmatprep.subr.mxu0 0.0
      %4919 = vmatpush1.msra.mxu0 0.0
      %4920 = vmatprep.subr.mxu0 0.0
      %4921 = vmatpush1.msra.mxu0 0.0
      %4922 = vmatprep.subr.mxu0 0.0
      %4923 = vmatpush1.msra.mxu0 0.0
      %4924 = vmatprep.subr.mxu0 0.0
      %4925 = vmatpush1.msra.mxu0 0.0
      %4926 = vmatprep.subr.mxu0 0.0
      %4927 = vmatpush1.msra.mxu0 0.0
      %4928 = vmatprep.subr.mxu0 0.0
      %4929 = vmatpush1.msra.mxu0 0.0
      %4930 = vmatprep.subr.mxu0 0.0
      %4931 = vmatpush1.msra.mxu0 0.0
      %4932 = vmatprep.mubr.f32.mxu0 0.0
      %4933 = vmatmul.mubr.f32.gmra.mrb[0].mxu0 %v4863
      %v4934 = vpop.f32.mrb[0].mxu0
      %v4935 = vadd.f32 1e-05, %v4934
      %v4936 = vpop.f32.mrb[0].mxu0
      %v4937 = vadd.f32 1e-05, %v4936
      %4938 = vmatprep.mubr.f32.mxu0 0.0
      %4939 = vmatmul.mubr.f32.gmra.mrb[0].mxu0 %v4866
      %v4940 = vpop.f32.mrb[0].mxu0
      %v4941 = vadd.f32 1e-05, %v4940
      %v4942 = vpop.f32.mrb[0].mxu0
      %v4943 = vadd.f32 1e-05, %v4942
      %4944 = vdwg.mxu0
      %v4945 = vrsqrt.pop %v4935
      %v4946 = vrsqrt.pop %v4937
      %v4947 = vrsqrt.pop %v4941
      %v4948 = vrsqrt.pop %v4943
      %v4949 = vmul.f32 %v4779, %v4945
      %v4950 = vmul.f32 %v4780, %v4946
      %v4951 = vmul.f32 %v4781, %v4947
      %v4952 = vmul.f32 %v4782, %v4948
      %v4953 = vld [vmem:[%s9] sm:$0x3]
      %v4955 = vlaneseq
      %v4956 = vshrl.u32 %v4955, 7
      %v4957 = vsub.s32 0, %v4956
      %v4958 = vrot.slane %v4953, %v4957
      %v4959 = vlaneseq
      %v4960 = vshrl.u32 %v4959, 7
      %v4961 = vsub.s32 1, %v4960
      %v4962 = vrot.slane %v4953, %v4961
      %v4965 = vmul.f32 %v4949, %v4958
      %v4966 = vmul.f32 %v4950, %v4962
      %v4967 = vmul.f32 %v4951, %v4958
      %v4968 = vmul.f32 %v4952, %v4962
      %v4969 = vld [vmem:[%s10] sm:$0x3]
      %v4971 = vlaneseq
      %v4972 = vshrl.u32 %v4971, 7
      %v4973 = vsub.s32 0, %v4972
      %v4974 = vrot.slane %v4969, %v4973
      %v4975 = vlaneseq
      %v4976 = vshrl.u32 %v4975, 7
      %v4977 = vsub.s32 1, %v4976
      %v4978 = vrot.slane %v4969, %v4977
      %v4981 = vadd.f32 %v4965, %v4974
      %v4982 = vadd.f32 %v4966, %v4978
      %v4983 = vadd.f32 %v4967, %v4974
      %v4984 = vadd.f32 %v4968, %v4978
      %v4985 = vmax.f32 %v4981, 0.0
      %v4986 = vmax.f32 %v4982, 0.0
      %v4987 = vmax.f32 %v4983, 0.0
      %v4988 = vmax.f32 %v4984, 0.0
      %4989 = vst.msk [vmem:[#allocation3] sm:$0xff] %vm4051, 0.0
      %4990 = vst.msk [vmem:[#allocation3 + $0x10] sm:$0xff] %vm4051, 0.0
      %v4991 = vld [vmem:[%s2] ss:$8 sm:$0x3]
      %v4993 = vlaneseq
      %v4994 = vshrl.u32 %v4993, 7
      %v4995 = vsub.s32 0, %v4994
      %v4996 = vrot.slane %v4991, %v4995
      %v4997 = vlaneseq
      %v4998 = vshrl.u32 %v4997, 7
      %v4999 = vsub.s32 1, %v4998
      %v5000 = vrot.slane %v4991, %v4999
      %5001 = vrot.lane.b32.xlu0 %v4996, 111
      %v5002 = vpop.permute.xlu0 %5001
      %5003 = vrot.lane.b32.xlu0 %v5000, 111
      %v5004 = vpop.permute.xlu0 %5003
      %v5005 = vsel %vm4068, %v5002, %v5004
      %v5008 = vmul.f32 %v4985, %v5005
      %v5009 = vmul.f32 %v4986, %v5004
      %v5010 = vmul.f32 %v4987, %v5005
      %v5011 = vmul.f32 %v4988, %v5004
      %5016 = vrot.lane.b32.xlu0 %v5008, 17
      %v5017 = vpop.permute.xlu0 %5016
      %5018 = vrot.lane.b32.xlu0 %v5009, 17
      %v5019 = vpop.permute.xlu0 %5018
      %5020 = vrot.lane.b32.xlu0 %v5010, 17
      %v5021 = vpop.permute.xlu0 %5020
      %5022 = vrot.lane.b32.xlu0 %v5011, 17
      %v5023 = vpop.permute.xlu0 %5022
      %v5024 = vsel %vm4051, %v5017, %v5019
      %v5025 = vsel %vm4051, %v5021, %v5023
      %5030 = vst.msk [vmem:[#allocation3] sm:$0xff] %vm4094, %v5017
      %5031 = vst [vmem:[#allocation3 + $0x8] sm:$0xff] %v5024
      %5032 = vst.msk [vmem:[#allocation3 + $0x10] sm:$0xff] %vm4094, %v5021
      %5033 = vst [vmem:[#allocation3 + $0x18] sm:$0xff] %v5025
      %5034 = vst.msk [vmem:[#allocation3 + $0x20] sm:$0xff] %vm2280, 0.0
      %5035 = vst.msk [vmem:[#allocation3 + $0x30] sm:$0xff] %vm2280, 0.0
      %v5036 = vld [vmem:[%s4101] ss:$8 sm:$0x3]
      %v5038 = vlaneseq
      %v5039 = vshrl.u32 %v5038, 7
      %v5040 = vsub.s32 0, %v5039
      %v5041 = vrot.slane %v5036, %v5040
      %v5042 = vlaneseq
      %v5043 = vshrl.u32 %v5042, 7
      %v5044 = vsub.s32 1, %v5043
      %v5045 = vrot.slane %v5036, %v5044
      %5046 = vrot.lane.b32.xlu0 %v5041, 112
      %v5047 = vpop.permute.xlu0 %5046
      %5048 = vrot.lane.b32.xlu0 %v5045, 112
      %v5049 = vpop.permute.xlu0 %5048
      %v5050 = vsel %vm4116, %v5047, %v5049
      %v5053 = vmul.f32 %v4985, %v5050
      %v5054 = vmul.f32 %v4986, %v5049
      %v5055 = vmul.f32 %v4987, %v5050
      %v5056 = vmul.f32 %v4988, %v5049
      %5061 = vrot.lane.b32.xlu0 %v5053, 16
      %v5062 = vpop.permute.xlu0 %5061
      %5063 = vrot.lane.b32.xlu0 %v5054, 16
      %v5064 = vpop.permute.xlu0 %5063
      %5065 = vrot.lane.b32.xlu0 %v5055, 16
      %v5066 = vpop.permute.xlu0 %5065
      %5067 = vrot.lane.b32.xlu0 %v5056, 16
      %v5068 = vpop.permute.xlu0 %5067
      %v5069 = vsel %vm2280, %v5062, %v5064
      %v5070 = vsel %vm2280, %v5066, %v5068
      %5075 = vst.msk [vmem:[#allocation3 + $0x20] sm:$0xff] %vm4142, %v5062
      %5076 = vst [vmem:[#allocation3 + $0x28] sm:$0xff] %v5069
      %5077 = vst.msk [vmem:[#allocation3 + $0x30] sm:$0xff] %vm4142, %v5066
      %5078 = vst [vmem:[#allocation3 + $0x38] sm:$0xff] %v5070
      %5079 = vst.msk [vmem:[#allocation3 + $0x40] sm:$0xff] %vm4147, 0.0
      %5080 = vst.msk [vmem:[#allocation3 + $0x50] sm:$0xff] %vm4147, 0.0
      %v5081 = vld [vmem:[%s4150] ss:$8 sm:$0x3]
      %v5083 = vlaneseq
      %v5084 = vshrl.u32 %v5083, 7
      %v5085 = vsub.s32 0, %v5084
      %v5086 = vrot.slane %v5081, %v5085
      %v5087 = vlaneseq
      %v5088 = vshrl.u32 %v5087, 7
      %v5089 = vsub.s32 1, %v5088
      %v5090 = vrot.slane %v5081, %v5089
      %5091 = vrot.lane.b32.xlu0 %v5086, 113
      %v5092 = vpop.permute.xlu0 %5091
      %5093 = vrot.lane.b32.xlu0 %v5090, 113
      %v5094 = vpop.permute.xlu0 %5093
      %v5095 = vsel %vm4165, %v5092, %v5094
      %v5098 = vmul.f32 %v4985, %v5095
      %v5099 = vmul.f32 %v4986, %v5094
      %v5100 = vmul.f32 %v4987, %v5095
      %v5101 = vmul.f32 %v4988, %v5094
      %5106 = vrot.lane.b32.xlu0 %v5098, 15
      %v5107 = vpop.permute.xlu0 %5106
      %5108 = vrot.lane.b32.xlu0 %v5099, 15
      %v5109 = vpop.permute.xlu0 %5108
      %5110 = vrot.lane.b32.xlu0 %v5100, 15
      %v5111 = vpop.permute.xlu0 %5110
      %5112 = vrot.lane.b32.xlu0 %v5101, 15
      %v5113 = vpop.permute.xlu0 %5112
      %v5114 = vsel %vm4147, %v5107, %v5109
      %v5115 = vsel %vm4147, %v5111, %v5113
      %5120 = vst.msk [vmem:[#allocation3 + $0x40] sm:$0xff] %vm4191, %v5107
      %5121 = vst [vmem:[#allocation3 + $0x48] sm:$0xff] %v5114
      %5122 = vst.msk [vmem:[#allocation3 + $0x50] sm:$0xff] %vm4191, %v5111
      %5123 = vst [vmem:[#allocation3 + $0x58] sm:$0xff] %v5115
      %5124 = vst.msk [vmem:[#allocation3 + $0x60] sm:$0xff] %vm1140, 0.0
      %5125 = vst.msk [vmem:[#allocation3 + $0x70] sm:$0xff] %vm1140, 0.0
      %v5126 = vld [vmem:[%s4198] ss:$8 sm:$0x3]
      %v5128 = vlaneseq
      %v5129 = vshrl.u32 %v5128, 7
      %v5130 = vsub.s32 0, %v5129
      %v5131 = vrot.slane %v5126, %v5130
      %v5132 = vlaneseq
      %v5133 = vshrl.u32 %v5132, 7
      %v5134 = vsub.s32 1, %v5133
      %v5135 = vrot.slane %v5126, %v5134
      %5136 = vrot.lane.b32.xlu0 %v5131, 127
      %v5137 = vpop.permute.xlu0 %5136
      %5138 = vrot.lane.b32.xlu0 %v5135, 127
      %v5139 = vpop.permute.xlu0 %5138
      %v5140 = vsel %vm1196, %v5137, %v5139
      %v5143 = vmul.f32 %v4985, %v5140
      %v5144 = vmul.f32 %v4986, %v5139
      %v5145 = vmul.f32 %v4987, %v5140
      %v5146 = vmul.f32 %v4988, %v5139
      %5151 = vrot.lane.b32.xlu0 %v5143, 1
      %v5152 = vpop.permute.xlu0 %5151
      %5153 = vrot.lane.b32.xlu0 %v5144, 1
      %v5154 = vpop.permute.xlu0 %5153
      %5155 = vrot.lane.b32.xlu0 %v5145, 1
      %v5156 = vpop.permute.xlu0 %5155
      %5157 = vrot.lane.b32.xlu0 %v5146, 1
      %v5158 = vpop.permute.xlu0 %5157
      %v5159 = vsel %vm1140, %v5152, %v5154
      %v5160 = vsel %vm1140, %v5156, %v5158
      %5165 = vst.msk [vmem:[#allocation3 + $0x60] sm:$0xff] %vm1306, %v5152
      %5166 = vst [vmem:[#allocation3 + $0x68] sm:$0xff] %v5159
      %5167 = vst.msk [vmem:[#allocation3 + $0x70] sm:$0xff] %vm1306, %v5156
      %5168 = vst [vmem:[#allocation3 + $0x78] sm:$0xff] %v5160
      %v5169 = vld [vmem:[%s4242] ss:$8 sm:$0x3]
      %v5171 = vlaneseq
      %v5172 = vshrl.u32 %v5171, 7
      %v5173 = vsub.s32 0, %v5172
      %v5174 = vrot.slane %v5169, %v5173
      %v5175 = vlaneseq
      %v5176 = vshrl.u32 %v5175, 7
      %v5177 = vsub.s32 1, %v5176
      %v5178 = vrot.slane %v5169, %v5177
      %v5181 = vmul.f32 %v4985, %v5174
      %v5182 = vmul.f32 %v4986, %v5178
      %v5183 = vmul.f32 %v4987, %v5174
      %v5184 = vmul.f32 %v4988, %v5178
      %5185 = vst [vmem:[#allocation3 + $0x80] sm:$0xff] %v5181
      %5186 = vst [vmem:[#allocation3 + $0x88] sm:$0xff] %v5182
      %5187 = vst [vmem:[#allocation3 + $0x90] sm:$0xff] %v5183
      %5188 = vst [vmem:[#allocation3 + $0x98] sm:$0xff] %v5184
      %5189 = vst.msk [vmem:[#allocation3 + $0xa8] sm:$0xff] %vm1400, 0.0
      %5190 = vst.msk [vmem:[#allocation3 + $0xb8] sm:$0xff] %vm1400, 0.0
      %v5191 = vld [vmem:[%s4265] ss:$8 sm:$0x3]
      %v5193 = vlaneseq
      %v5194 = vshrl.u32 %v5193, 7
      %v5195 = vsub.s32 0, %v5194
      %v5196 = vrot.slane %v5191, %v5195
      %v5197 = vlaneseq
      %v5198 = vshrl.u32 %v5197, 7
      %v5199 = vsub.s32 1, %v5198
      %v5200 = vrot.slane %v5191, %v5199
      %5201 = vrot.lane.b32.xlu0 %v5196, 1
      %v5202 = vpop.permute.xlu0 %5201
      %5203 = vrot.lane.b32.xlu0 %v5200, 1
      %v5204 = vpop.permute.xlu0 %5203
      %v5205 = vsel %vm1140, %v5202, %v5204
      %v5208 = vmul.f32 %v4985, %v5202
      %v5209 = vmul.f32 %v4986, %v5205
      %v5210 = vmul.f32 %v4987, %v5202
      %v5211 = vmul.f32 %v4988, %v5205
      %5216 = vrot.lane.b32.xlu0 %v5208, 127
      %v5217 = vpop.permute.xlu0 %5216
      %5218 = vrot.lane.b32.xlu0 %v5209, 127
      %v5219 = vpop.permute.xlu0 %5218
      %5220 = vrot.lane.b32.xlu0 %v5210, 127
      %v5221 = vpop.permute.xlu0 %5220
      %5222 = vrot.lane.b32.xlu0 %v5211, 127
      %v5223 = vpop.permute.xlu0 %5222
      %v5224 = vsel %vm1196, %v5217, %v5219
      %v5225 = vsel %vm1196, %v5221, %v5223
      %5230 = vst [vmem:[#allocation3 + $0xa0] sm:$0xff] %v5224
      %5231 = vst.msk [vmem:[#allocation3 + $0xa8] sm:$0xff] %vm1196, %v5219
      %5232 = vst [vmem:[#allocation3 + $0xb0] sm:$0xff] %v5225
      %5233 = vst.msk [vmem:[#allocation3 + $0xb8] sm:$0xff] %vm1196, %v5223
      %5234 = vst.msk [vmem:[#allocation3 + $0xc8] sm:$0xff] %vm4309, 0.0
      %5235 = vst.msk [vmem:[#allocation3 + $0xd8] sm:$0xff] %vm4309, 0.0
      %v5236 = vld [vmem:[%s4312] ss:$8 sm:$0x3]
      %v5238 = vlaneseq
      %v5239 = vshrl.u32 %v5238, 7
      %v5240 = vsub.s32 0, %v5239
      %v5241 = vrot.slane %v5236, %v5240
      %v5242 = vlaneseq
      %v5243 = vshrl.u32 %v5242, 7
      %v5244 = vsub.s32 1, %v5243
      %v5245 = vrot.slane %v5236, %v5244
      %5246 = vrot.lane.b32.xlu0 %v5241, 15
      %v5247 = vpop.permute.xlu0 %5246
      %5248 = vrot.lane.b32.xlu0 %v5245, 15
      %v5249 = vpop.permute.xlu0 %5248
      %v5250 = vsel %vm4147, %v5247, %v5249
      %v5253 = vmul.f32 %v4985, %v5247
      %v5254 = vmul.f32 %v4986, %v5250
      %v5255 = vmul.f32 %v4987, %v5247
      %v5256 = vmul.f32 %v4988, %v5250
      %5261 = vrot.lane.b32.xlu0 %v5253, 113
      %v5262 = vpop.permute.xlu0 %5261
      %5263 = vrot.lane.b32.xlu0 %v5254, 113
      %v5264 = vpop.permute.xlu0 %5263
      %5265 = vrot.lane.b32.xlu0 %v5255, 113
      %v5266 = vpop.permute.xlu0 %5265
      %5267 = vrot.lane.b32.xlu0 %v5256, 113
      %v5268 = vpop.permute.xlu0 %5267
      %v5269 = vsel %vm4165, %v5262, %v5264
      %v5270 = vsel %vm4165, %v5266, %v5268
      %5275 = vst [vmem:[#allocation3 + $0xc0] sm:$0xff] %v5269
      %5276 = vst.msk [vmem:[#allocation3 + $0xc8] sm:$0xff] %vm4165, %v5264
      %5277 = vst [vmem:[#allocation3 + $0xd0] sm:$0xff] %v5270
      %5278 = vst.msk [vmem:[#allocation3 + $0xd8] sm:$0xff] %vm4165, %v5268
      %5279 = vst.msk [vmem:[#allocation3 + $0xe8] sm:$0xff] %vm4356, 0.0
      %5280 = vst.msk [vmem:[#allocation3 + $0xf8] sm:$0xff] %vm4356, 0.0
      %v5281 = vld [vmem:[%s4359] ss:$8 sm:$0x3]
      %v5283 = vlaneseq
      %v5284 = vshrl.u32 %v5283, 7
      %v5285 = vsub.s32 0, %v5284
      %v5286 = vrot.slane %v5281, %v5285
      %v5287 = vlaneseq
      %v5288 = vshrl.u32 %v5287, 7
      %v5289 = vsub.s32 1, %v5288
      %v5290 = vrot.slane %v5281, %v5289
      %5291 = vrot.lane.b32.xlu0 %v5286, 16
      %v5292 = vpop.permute.xlu0 %5291
      %5293 = vrot.lane.b32.xlu0 %v5290, 16
      %v5294 = vpop.permute.xlu0 %5293
      %v5295 = vsel %vm2280, %v5292, %v5294
      %v5298 = vmul.f32 %v4985, %v5292
      %v5299 = vmul.f32 %v4986, %v5295
      %v5300 = vmul.f32 %v4987, %v5292
      %v5301 = vmul.f32 %v4988, %v5295
      %5306 = vrot.lane.b32.xlu0 %v5298, 112
      %v5307 = vpop.permute.xlu0 %5306
      %5308 = vrot.lane.b32.xlu0 %v5299, 112
      %v5309 = vpop.permute.xlu0 %5308
      %5310 = vrot.lane.b32.xlu0 %v5300, 112
      %v5311 = vpop.permute.xlu0 %5310
      %5312 = vrot.lane.b32.xlu0 %v5301, 112
      %v5313 = vpop.permute.xlu0 %5312
      %v5314 = vsel %vm4116, %v5307, %v5309
      %v5315 = vsel %vm4116, %v5311, %v5313
      %5320 = vst [vmem:[#allocation3 + $0xe0] sm:$0xff] %v5314
      %5321 = vst.msk [vmem:[#allocation3 + $0xe8] sm:$0xff] %vm4116, %v5309
      %5322 = vst [vmem:[#allocation3 + $0xf0] sm:$0xff] %v5315
      %5323 = vst.msk [vmem:[#allocation3 + $0xf8] sm:$0xff] %vm4116, %v5313
      %5324 = vst.msk [vmem:[#allocation3 + $0x108] sm:$0xff] %vm4403, 0.0
      %5325 = vst.msk [vmem:[#allocation3 + $0x118] sm:$0xff] %vm4403, 0.0
      %v5326 = vld [vmem:[%s4406] ss:$8 sm:$0x3]
      %v5328 = vlaneseq
      %v5329 = vshrl.u32 %v5328, 7
      %v5330 = vsub.s32 0, %v5329
      %v5331 = vrot.slane %v5326, %v5330
      %v5332 = vlaneseq
      %v5333 = vshrl.u32 %v5332, 7
      %v5334 = vsub.s32 1, %v5333
      %v5335 = vrot.slane %v5326, %v5334
      %5336 = vrot.lane.b32.xlu0 %v5331, 17
      %v5337 = vpop.permute.xlu0 %5336
      %5338 = vrot.lane.b32.xlu0 %v5335, 17
      %v5339 = vpop.permute.xlu0 %5338
      %v5340 = vsel %vm4051, %v5337, %v5339
      %v5343 = vmul.f32 %v4985, %v5337
      %v5344 = vmul.f32 %v4986, %v5340
      %v5345 = vmul.f32 %v4987, %v5337
      %v5346 = vmul.f32 %v4988, %v5340
      %5351 = vrot.lane.b32.xlu0 %v5343, 111
      %v5352 = vpop.permute.xlu0 %5351
      %5353 = vrot.lane.b32.xlu0 %v5344, 111
      %v5354 = vpop.permute.xlu0 %5353
      %5355 = vrot.lane.b32.xlu0 %v5345, 111
      %v5356 = vpop.permute.xlu0 %5355
      %5357 = vrot.lane.b32.xlu0 %v5346, 111
      %v5358 = vpop.permute.xlu0 %5357
      %v5359 = vsel %vm4068, %v5352, %v5354
      %v5360 = vsel %vm4068, %v5356, %v5358
      %5365 = vst [vmem:[#allocation3 + $0x100] sm:$0xff] %v5359
      %5366 = vst.msk [vmem:[#allocation3 + $0x108] sm:$0xff] %vm4068, %v5354
      %5367 = vst [vmem:[#allocation3 + $0x110] sm:$0xff] %v5360
      %5368 = vst.msk [vmem:[#allocation3 + $0x118] sm:$0xff] %vm4068, %v5358
      %v5369 = vld [vmem:[%s11] sm:$0xff]
      %v5370 = vld [vmem:[%s11 + $0x8] sm:$0xff]
      %v5371 = vld [vmem:[%s11 + $0x10] sm:$0xff]
      %v5372 = vld [vmem:[%s11 + $0x18] sm:$0xff]
      %v5373 = vld [vmem:[#allocation3] sm:$0xff]
      %v5374 = vld [vmem:[#allocation3 + $0x8] sm:$0xff]
      %v5375 = vld [vmem:[#allocation3 + $0x10] sm:$0xff]
      %v5376 = vld [vmem:[#allocation3 + $0x18] sm:$0xff]
      %v5377 = vld [vmem:[#allocation3 + $0x20] sm:$0xff]
      %v5378 = vld [vmem:[#allocation3 + $0x28] sm:$0xff]
      %v5379 = vld [vmem:[#allocation3 + $0x30] sm:$0xff]
      %v5380 = vld [vmem:[#allocation3 + $0x38] sm:$0xff]
      %v5381 = vld [vmem:[#allocation3 + $0x40] sm:$0xff]
      %v5382 = vld [vmem:[#allocation3 + $0x48] sm:$0xff]
      %v5383 = vld [vmem:[#allocation3 + $0x50] sm:$0xff]
      %v5384 = vld [vmem:[#allocation3 + $0x58] sm:$0xff]
      %v5385 = vld [vmem:[#allocation3 + $0x60] sm:$0xff]
      %v5386 = vld [vmem:[#allocation3 + $0x68] sm:$0xff]
      %v5387 = vld [vmem:[#allocation3 + $0x70] sm:$0xff]
      %v5388 = vld [vmem:[#allocation3 + $0x78] sm:$0xff]
      %v5389 = vld [vmem:[#allocation3 + $0x80] sm:$0xff]
      %v5390 = vld [vmem:[#allocation3 + $0x88] sm:$0xff]
      %v5391 = vld [vmem:[#allocation3 + $0x90] sm:$0xff]
      %v5392 = vld [vmem:[#allocation3 + $0x98] sm:$0xff]
      %v5393 = vld [vmem:[#allocation3 + $0xa0] sm:$0xff]
      %v5394 = vld [vmem:[#allocation3 + $0xa8] sm:$0xff]
      %v5395 = vld [vmem:[#allocation3 + $0xb0] sm:$0xff]
      %v5396 = vld [vmem:[#allocation3 + $0xb8] sm:$0xff]
      %v5397 = vld [vmem:[#allocation3 + $0xc0] sm:$0xff]
      %v5398 = vld [vmem:[#allocation3 + $0xc8] sm:$0xff]
      %v5399 = vld [vmem:[#allocation3 + $0xd0] sm:$0xff]
      %v5400 = vld [vmem:[#allocation3 + $0xd8] sm:$0xff]
      %v5401 = vld [vmem:[#allocation3 + $0xe0] sm:$0xff]
      %v5402 = vld [vmem:[#allocation3 + $0xe8] sm:$0xff]
      %v5403 = vld [vmem:[#allocation3 + $0xf0] sm:$0xff]
      %v5404 = vld [vmem:[#allocation3 + $0xf8] sm:$0xff]
      %v5405 = vld [vmem:[#allocation3 + $0x100] sm:$0xff]
      %v5406 = vld [vmem:[#allocation3 + $0x108] sm:$0xff]
      %v5407 = vld [vmem:[#allocation3 + $0x110] sm:$0xff]
      %v5408 = vld [vmem:[#allocation3 + $0x118] sm:$0xff]
      %v5409 = vld [vmem:[%s12] sm:$0xff]
      %v5410 = vld [vmem:[%s12 + $0x8] sm:$0xff]
      %5412 = vset.pattern.permute.xlu0 0
      %5413 = vperm.xlu0 %5412, %v5409
      %v5414 = vpop.permute.xlu0 %5413
      %5417 = vset.pattern.permute.xlu0 0
      %5418 = vperm.xlu0 %5417, %v5410
      %v5419 = vpop.permute.xlu0 %5418
      %v5422 = vsel %vm2280, %v5370, 0
      %v5425 = vsel %vm2280, %v5372, 0
      %5427 = vmatprep.subr.mxu0 %v5374
      %5428 = vmatpush1.msra.mxu0 %v5373
      %5429 = vmatprep.subr.mxu0 %v5376
      %5430 = vmatpush1.msra.mxu0 %v5375
      %5431 = vmatprep.subr.mxu0 %v5378
      %5432 = vmatpush1.msra.mxu0 %v5377
      %5433 = vmatprep.subr.mxu0 %v5380
      %5434 = vmatpush1.msra.mxu0 %v5379
      %5435 = vmatprep.subr.mxu0 %v5382
      %5436 = vmatpush1.msra.mxu0 %v5381
      %5437 = vmatprep.subr.mxu0 %v5384
      %5438 = vmatpush1.msra.mxu0 %v5383
      %5439 = vmatprep.subr.mxu0 %v5386
      %5440 = vmatpush1.msra.mxu0 %v5385
      %5441 = vmatprep.subr.mxu0 %v5388
      %5442 = vmatpush1.msra.mxu0 %v5387
      %5443 = vmatprep.subr.mxu0 %v5390
      %5444 = vmatpush1.msra.mxu0 %v5389
      %5445 = vmatprep.subr.mxu0 %v5392
      %5446 = vmatpush1.msra.mxu0 %v5391
      %5447 = vmatprep.subr.mxu0 %v5394
      %5448 = vmatpush1.msra.mxu0 %v5393
      %5449 = vmatprep.subr.mxu0 %v5396
      %5450 = vmatpush1.msra.mxu0 %v5395
      %5451 = vmatprep.subr.mxu0 %v5398
      %5452 = vmatpush1.msra.mxu0 %v5397
      %5453 = vmatprep.subr.mxu0 %v5400
      %5454 = vmatpush1.msra.mxu0 %v5399
      %5455 = vmatprep.subr.mxu0 %v5402
      %5456 = vmatpush1.msra.mxu0 %v5401
      %5457 = vmatprep.subr.mxu0 %v5404
      %5458 = vmatpush1.msra.mxu0 %v5403
      %5459 = vmatprep.subr.mxu0 %v5406
      %5460 = vmatpush1.msra.mxu0 %v5405
      %5461 = vmatprep.subr.mxu0 %v5408
      %5462 = vmatpush1.msra.mxu0 %v5407
      %5463 = vmatprep.subr.mxu0 0.0
      %5464 = vmatpush1.msra.mxu0 0.0
      %5465 = vmatprep.subr.mxu0 0.0
      %5466 = vmatpush1.msra.mxu0 0.0
      %5467 = vmatprep.subr.mxu0 0.0
      %5468 = vmatpush1.msra.mxu0 0.0
      %5469 = vmatprep.subr.mxu0 0.0
      %5470 = vmatpush1.msra.mxu0 0.0
      %5471 = vmatprep.subr.mxu0 0.0
      %5472 = vmatpush1.msra.mxu0 0.0
      %5473 = vmatprep.subr.mxu0 0.0
      %5474 = vmatpush1.msra.mxu0 0.0
      %5475 = vmatprep.subr.mxu0 0.0
      %5476 = vmatpush1.msra.mxu0 0.0
      %5477 = vmatprep.subr.mxu0 0.0
      %5478 = vmatpush1.msra.mxu0 0.0
      %5479 = vmatprep.subr.mxu0 0.0
      %5480 = vmatpush1.msra.mxu0 0.0
      %5481 = vmatprep.subr.mxu0 0.0
      %5482 = vmatpush1.msra.mxu0 0.0
      %5483 = vmatprep.subr.mxu0 0.0
      %5484 = vmatpush1.msra.mxu0 0.0
      %5485 = vmatprep.subr.mxu0 0.0
      %5486 = vmatpush1.msra.mxu0 0.0
      %5487 = vmatprep.subr.mxu0 0.0
      %5488 = vmatpush1.msra.mxu0 0.0
      %5489 = vmatprep.subr.mxu0 0.0
      %5490 = vmatpush1.msra.mxu0 0.0
      %5491 = vmatprep.mubr.f32.mxu0 %v5422
      %5492 = vmatmul.mubr.f32.gmra.mrb[0].mxu0 %v5369
      %v5493 = vpop.f32.mrb[0].mxu0
      %v5494 = vadd.f32 %v5414, %v5493
      %v5495 = vpop.f32.mrb[0].mxu0
      %v5496 = vadd.f32 %v5414, %v5495
      %5497 = vmatprep.mubr.f32.mxu0 %v5425
      %5498 = vmatmul.mubr.f32.gmra.mrb[0].mxu0 %v5371
      %v5499 = vpop.f32.mrb[0].mxu0
      %v5500 = vadd.f32 %v5419, %v5499
      %v5501 = vpop.f32.mrb[0].mxu0
      %v5502 = vadd.f32 %v5419, %v5501
      %5503 = vdwg.mxu0
      %v5504 = vld [vmem:[%s15] sm:$0xff]
      %v5505 = vld [vmem:[%s15 + $0x8] sm:$0xff]
      %v5506 = vld [vmem:[%s15 + $0x10] sm:$0xff]
      %v5507 = vld [vmem:[%s15 + $0x18] sm:$0xff]
      %v5508 = vld [vmem:[%s15 + $0x20] sm:$0xff]
      %v5509 = vld [vmem:[%s15 + $0x28] sm:$0xff]
      %v5510 = vld [vmem:[%s15 + $0x30] sm:$0xff]
      %v5511 = vld [vmem:[%s15 + $0x38] sm:$0xff]
      %v5512 = vld [vmem:[%s15 + $0x40] sm:$0xff]
      %v5513 = vld [vmem:[%s15 + $0x48] sm:$0xff]
      %v5514 = vld [vmem:[%s15 + $0x50] sm:$0xff]
      %v5515 = vld [vmem:[%s15 + $0x58] sm:$0xff]
      %v5516 = vld [vmem:[%s15 + $0x60] sm:$0xff]
      %v5517 = vld [vmem:[%s15 + $0x68] sm:$0xff]
      %v5518 = vld [vmem:[%s15 + $0x70] sm:$0xff]
      %v5519 = vld [vmem:[%s15 + $0x78] sm:$0xff]
      %v5520 = vld [vmem:[%s15 + $0x80] sm:$0xff]
      %v5521 = vld [vmem:[%s15 + $0x88] sm:$0xff]
      %v5522 = vld [vmem:[%s15 + $0x90] sm:$0xff]
      %v5523 = vld [vmem:[%s15 + $0x98] sm:$0xff]
      %v5524 = vld [vmem:[%s15 + $0xa0] sm:$0xff]
      %v5525 = vld [vmem:[%s15 + $0xa8] sm:$0xff]
      %v5526 = vld [vmem:[%s15 + $0xb0] sm:$0xff]
      %v5527 = vld [vmem:[%s15 + $0xb8] sm:$0xff]
      %v5528 = vld [vmem:[%s15 + $0xc0] sm:$0xff]
      %v5529 = vld [vmem:[%s15 + $0xc8] sm:$0xff]
      %v5530 = vld [vmem:[%s15 + $0xd0] sm:$0xff]
      %v5531 = vld [vmem:[%s15 + $0xd8] sm:$0xff]
      %v5532 = vld [vmem:[%s15 + $0xe0] sm:$0xff]
      %v5533 = vld [vmem:[%s15 + $0xe8] sm:$0xff]
      %v5534 = vld [vmem:[%s15 + $0xf0] sm:$0xff]
      %v5535 = vld [vmem:[%s15 + $0xf8] sm:$0xff]
      %5536 = vmatprep.subr.mxu0 0.0
      %5537 = vmatpush1.msra.mxu0 %v5504
      %5538 = vmatprep.subr.mxu0 0.0
      %5539 = vmatpush1.msra.mxu0 %v5505
      %5540 = vmatprep.subr.mxu0 0.0
      %5541 = vmatpush1.msra.mxu0 %v5506
      %5542 = vmatprep.subr.mxu0 0.0
      %5543 = vmatpush1.msra.mxu0 %v5507
      %5544 = vmatprep.subr.mxu0 0.0
      %5545 = vmatpush1.msra.mxu0 %v5508
      %5546 = vmatprep.subr.mxu0 0.0
      %5547 = vmatpush1.msra.mxu0 %v5509
      %5548 = vmatprep.subr.mxu0 0.0
      %5549 = vmatpush1.msra.mxu0 %v5510
      %5550 = vmatprep.subr.mxu0 0.0
      %5551 = vmatpush1.msra.mxu0 %v5511
      %5552 = vmatprep.subr.mxu0 0.0
      %5553 = vmatpush1.msra.mxu0 %v5512
      %5554 = vmatprep.subr.mxu0 0.0
      %5555 = vmatpush1.msra.mxu0 %v5513
      %5556 = vmatprep.subr.mxu0 0.0
      %5557 = vmatpush1.msra.mxu0 %v5514
      %5558 = vmatprep.subr.mxu0 0.0
      %5559 = vmatpush1.msra.mxu0 %v5515
      %5560 = vmatprep.subr.mxu0 0.0
      %5561 = vmatpush1.msra.mxu0 %v5516
      %5562 = vmatprep.subr.mxu0 0.0
      %5563 = vmatpush1.msra.mxu0 %v5517
      %5564 = vmatprep.subr.mxu0 0.0
      %5565 = vmatpush1.msra.mxu0 %v5518
      %5566 = vmatprep.subr.mxu0 0.0
      %5567 = vmatpush1.msra.mxu0 %v5519
      %5568 = vmatprep.subr.mxu0 0.0
      %5569 = vmatpush1.msra.mxu0 %v5520
      %5570 = vmatprep.subr.mxu0 0.0
      %5571 = vmatpush1.msra.mxu0 %v5521
      %5572 = vmatprep.subr.mxu0 0.0
      %5573 = vmatpush1.msra.mxu0 %v5522
      %5574 = vmatprep.subr.mxu0 0.0
      %5575 = vmatpush1.msra.mxu0 %v5523
      %5576 = vmatprep.subr.mxu0 0.0
      %5577 = vmatpush1.msra.mxu0 %v5524
      %5578 = vmatprep.subr.mxu0 0.0
      %5579 = vmatpush1.msra.mxu0 %v5525
      %5580 = vmatprep.subr.mxu0 0.0
      %5581 = vmatpush1.msra.mxu0 %v5526
      %5582 = vmatprep.subr.mxu0 0.0
      %5583 = vmatpush1.msra.mxu0 %v5527
      %5584 = vmatprep.subr.mxu0 0.0
      %5585 = vmatpush1.msra.mxu0 %v5528
      %5586 = vmatprep.subr.mxu0 0.0
      %5587 = vmatpush1.msra.mxu0 %v5529
      %5588 = vmatprep.subr.mxu0 0.0
      %5589 = vmatpush1.msra.mxu0 %v5530
      %5590 = vmatprep.subr.mxu0 0.0
      %5591 = vmatpush1.msra.mxu0 %v5531
      %5592 = vmatprep.subr.mxu0 0.0
      %5593 = vmatpush1.msra.mxu0 %v5532
      %5594 = vmatprep.subr.mxu0 0.0
      %5595 = vmatpush1.msra.mxu0 %v5533
      %5596 = vmatprep.subr.mxu0 0.0
      %5597 = vmatpush1.msra.mxu0 %v5534
      %5598 = vmatprep.subr.mxu0 0.0
      %5599 = vmatpush1.msra.mxu0 %v5535
      %5600 = vmatprep.mubr.f32.mxu0 %v5496
      %5601 = vmatmul.mubr.f32.gmra.mrb[0].mxu0 %v5494
      %v5602 = vpop.f32.mrb[0].mxu0
      %v5603 = vadd.f32 0.0, %v5602
      %v5604 = vpop.f32.mrb[0].mxu0
      %5605 = vmatprep.mubr.f32.mxu0 %v5502
      %5606 = vmatmul.mubr.f32.gmra.mrb[0].mxu0 %v5500
      %v5607 = vpop.f32.mrb[0].mxu0
      %v5608 = vadd.f32 0.0, %v5607
      %v5609 = vpop.f32.mrb[0].mxu0
      %5610 = vdwg.mxu0
      %v5611 = vld [vmem:[%s16] sm:$0xff]
      %v5612 = vld [vmem:[%s16 + $0x8] sm:$0xff]
      %v5613 = vld [vmem:[%s16 + $0x10] sm:$0xff]
      %v5614 = vld [vmem:[%s16 + $0x18] sm:$0xff]
      %v5616 = vsel %vm2280, %v5603, 0
      %v5619 = vsel %vm2280, %v5608, 0
      %5621 = vmatprep.subr.mxu0 %v5612
      %5622 = vmatpush1.msra.mxu0 %v5611
      %5623 = vmatprep.subr.mxu0 %v5614
      %5624 = vmatpush1.msra.mxu0 %v5613
      %5625 = vmatprep.subr.mxu0 0.0
      %5626 = vmatpush1.msra.mxu0 0.0
      %5627 = vmatprep.subr.mxu0 0.0
      %5628 = vmatpush1.msra.mxu0 0.0
      %5629 = vmatprep.subr.mxu0 0.0
      %5630 = vmatpush1.msra.mxu0 0.0
      %5631 = vmatprep.subr.mxu0 0.0
      %5632 = vmatpush1.msra.mxu0 0.0
      %5633 = vmatprep.subr.mxu0 0.0
      %5634 = vmatpush1.msra.mxu0 0.0
      %5635 = vmatprep.subr.mxu0 0.0
      %5636 = vmatpush1.msra.mxu0 0.0
      %5637 = vmatprep.subr.mxu0 0.0
      %5638 = vmatpush1.msra.mxu0 0.0
      %5639 = vmatprep.subr.mxu0 0.0
      %5640 = vmatpush1.msra.mxu0 0.0
      %5641 = vmatprep.subr.mxu0 0.0
      %5642 = vmatpush1.msra.mxu0 0.0
      %5643 = vmatprep.subr.mxu0 0.0
      %5644 = vmatpush1.msra.mxu0 0.0
      %5645 = vmatprep.subr.mxu0 0.0
      %5646 = vmatpush1.msra.mxu0 0.0
      %5647 = vmatprep.subr.mxu0 0.0
      %5648 = vmatpush1.msra.mxu0 0.0
      %5649 = vmatprep.subr.mxu0 0.0
      %5650 = vmatpush1.msra.mxu0 0.0
      %5651 = vmatprep.subr.mxu0 0.0
      %5652 = vmatpush1.msra.mxu0 0.0
      %5653 = vmatprep.subr.mxu0 0.0
      %5654 = vmatpush1.msra.mxu0 0.0
      %5655 = vmatprep.subr.mxu0 0.0
      %5656 = vmatpush1.msra.mxu0 0.0
      %5657 = vmatprep.subr.mxu0 0.0
      %5658 = vmatpush1.msra.mxu0 0.0
      %5659 = vmatprep.subr.mxu0 0.0
      %5660 = vmatpush1.msra.mxu0 0.0
      %5661 = vmatprep.subr.mxu0 0.0
      %5662 = vmatpush1.msra.mxu0 0.0
      %5663 = vmatprep.subr.mxu0 0.0
      %5664 = vmatpush1.msra.mxu0 0.0
      %5665 = vmatprep.subr.mxu0 0.0
      %5666 = vmatpush1.msra.mxu0 0.0
      %5667 = vmatprep.subr.mxu0 0.0
      %5668 = vmatpush1.msra.mxu0 0.0
      %5669 = vmatprep.subr.mxu0 0.0
      %5670 = vmatpush1.msra.mxu0 0.0
      %5671 = vmatprep.subr.mxu0 0.0
      %5672 = vmatpush1.msra.mxu0 0.0
      %5673 = vmatprep.subr.mxu0 0.0
      %5674 = vmatpush1.msra.mxu0 0.0
      %5675 = vmatprep.subr.mxu0 0.0
      %5676 = vmatpush1.msra.mxu0 0.0
      %5677 = vmatprep.subr.mxu0 0.0
      %5678 = vmatpush1.msra.mxu0 0.0
      %5679 = vmatprep.subr.mxu0 0.0
      %5680 = vmatpush1.msra.mxu0 0.0
      %5681 = vmatprep.subr.mxu0 0.0
      %5682 = vmatpush1.msra.mxu0 0.0
      %5683 = vmatprep.subr.mxu0 0.0
      %5684 = vmatpush1.msra.mxu0 0.0
      %5685 = vmatprep.mubr.f32.mxu0 0.0
      %5686 = vmatmul.mubr.f32.gmra.mrb[0].mxu0 %v5616
      %v5687 = vpop.f32.mrb[0].mxu0
      %v5688 = vadd.f32 0.0, %v5687
      %v5689 = vpop.f32.mrb[0].mxu0
      %v5690 = vadd.f32 0.0, %v5689
      %5691 = vmatprep.mubr.f32.mxu0 0.0
      %5692 = vmatmul.mubr.f32.gmra.mrb[0].mxu0 %v5619
      %v5693 = vpop.f32.mrb[0].mxu0
      %v5694 = vadd.f32 0.0, %v5693
      %v5695 = vpop.f32.mrb[0].mxu0
      %v5696 = vadd.f32 0.0, %v5695
      %5697 = vdwg.mxu0
      %v5698 = vsub.f32 %v5494, %v5688
      %v5699 = vsub.f32 %v5496, %v5690
      %v5700 = vsub.f32 %v5500, %v5694
      %v5701 = vsub.f32 %v5502, %v5696
      %v5702 = vmul.f32 %v5698, %v5698
      %v5703 = vmul.f32 %v5699, %v5699
      %v5704 = vmul.f32 %v5700, %v5700
      %v5705 = vmul.f32 %v5701, %v5701
      %5706 = vmatprep.subr.mxu0 0.0
      %5707 = vmatpush1.msra.mxu0 %v5504
      %5708 = vmatprep.subr.mxu0 0.0
      %5709 = vmatpush1.msra.mxu0 %v5505
      %5710 = vmatprep.subr.mxu0 0.0
      %5711 = vmatpush1.msra.mxu0 %v5506
      %5712 = vmatprep.subr.mxu0 0.0
      %5713 = vmatpush1.msra.mxu0 %v5507
      %5714 = vmatprep.subr.mxu0 0.0
      %5715 = vmatpush1.msra.mxu0 %v5508
      %5716 = vmatprep.subr.mxu0 0.0
      %5717 = vmatpush1.msra.mxu0 %v5509
      %5718 = vmatprep.subr.mxu0 0.0
      %5719 = vmatpush1.msra.mxu0 %v5510
      %5720 = vmatprep.subr.mxu0 0.0
      %5721 = vmatpush1.msra.mxu0 %v5511
      %5722 = vmatprep.subr.mxu0 0.0
      %5723 = vmatpush1.msra.mxu0 %v5512
      %5724 = vmatprep.subr.mxu0 0.0
      %5725 = vmatpush1.msra.mxu0 %v5513
      %5726 = vmatprep.subr.mxu0 0.0
      %5727 = vmatpush1.msra.mxu0 %v5514
      %5728 = vmatprep.subr.mxu0 0.0
      %5729 = vmatpush1.msra.mxu0 %v5515
      %5730 = vmatprep.subr.mxu0 0.0
      %5731 = vmatpush1.msra.mxu0 %v5516
      %5732 = vmatprep.subr.mxu0 0.0
      %5733 = vmatpush1.msra.mxu0 %v5517
      %5734 = vmatprep.subr.mxu0 0.0
      %5735 = vmatpush1.msra.mxu0 %v5518
      %5736 = vmatprep.subr.mxu0 0.0
      %5737 = vmatpush1.msra.mxu0 %v5519
      %5738 = vmatprep.subr.mxu0 0.0
      %5739 = vmatpush1.msra.mxu0 %v5520
      %5740 = vmatprep.subr.mxu0 0.0
      %5741 = vmatpush1.msra.mxu0 %v5521
      %5742 = vmatprep.subr.mxu0 0.0
      %5743 = vmatpush1.msra.mxu0 %v5522
      %5744 = vmatprep.subr.mxu0 0.0
      %5745 = vmatpush1.msra.mxu0 %v5523
      %5746 = vmatprep.subr.mxu0 0.0
      %5747 = vmatpush1.msra.mxu0 %v5524
      %5748 = vmatprep.subr.mxu0 0.0
      %5749 = vmatpush1.msra.mxu0 %v5525
      %5750 = vmatprep.subr.mxu0 0.0
      %5751 = vmatpush1.msra.mxu0 %v5526
      %5752 = vmatprep.subr.mxu0 0.0
      %5753 = vmatpush1.msra.mxu0 %v5527
      %5754 = vmatprep.subr.mxu0 0.0
      %5755 = vmatpush1.msra.mxu0 %v5528
      %5756 = vmatprep.subr.mxu0 0.0
      %5757 = vmatpush1.msra.mxu0 %v5529
      %5758 = vmatprep.subr.mxu0 0.0
      %5759 = vmatpush1.msra.mxu0 %v5530
      %5760 = vmatprep.subr.mxu0 0.0
      %5761 = vmatpush1.msra.mxu0 %v5531
      %5762 = vmatprep.subr.mxu0 0.0
      %5763 = vmatpush1.msra.mxu0 %v5532
      %5764 = vmatprep.subr.mxu0 0.0
      %5765 = vmatpush1.msra.mxu0 %v5533
      %5766 = vmatprep.subr.mxu0 0.0
      %5767 = vmatpush1.msra.mxu0 %v5534
      %5768 = vmatprep.subr.mxu0 0.0
      %5769 = vmatpush1.msra.mxu0 %v5535
      %5770 = vmatprep.mubr.f32.mxu0 %v5703
      %5771 = vmatmul.mubr.f32.gmra.mrb[0].mxu0 %v5702
      %v5772 = vpop.f32.mrb[0].mxu0
      %v5773 = vadd.f32 0.0, %v5772
      %v5774 = vpop.f32.mrb[0].mxu0
      %5775 = vmatprep.mubr.f32.mxu0 %v5705
      %5776 = vmatmul.mubr.f32.gmra.mrb[0].mxu0 %v5704
      %v5777 = vpop.f32.mrb[0].mxu0
      %v5778 = vadd.f32 0.0, %v5777
      %v5779 = vpop.f32.mrb[0].mxu0
      %5780 = vdwg.mxu0
      %v5782 = vsel %vm2280, %v5773, 0
      %v5785 = vsel %vm2280, %v5778, 0
      %5787 = vmatprep.subr.mxu0 %v5612
      %5788 = vmatpush1.msra.mxu0 %v5611
      %5789 = vmatprep.subr.mxu0 %v5614
      %5790 = vmatpush1.msra.mxu0 %v5613
      %5791 = vmatprep.subr.mxu0 0.0
      %5792 = vmatpush1.msra.mxu0 0.0
      %5793 = vmatprep.subr.mxu0 0.0
      %5794 = vmatpush1.msra.mxu0 0.0
      %5795 = vmatprep.subr.mxu0 0.0
      %5796 = vmatpush1.msra.mxu0 0.0
      %5797 = vmatprep.subr.mxu0 0.0
      %5798 = vmatpush1.msra.mxu0 0.0
      %5799 = vmatprep.subr.mxu0 0.0
      %5800 = vmatpush1.msra.mxu0 0.0
      %5801 = vmatprep.subr.mxu0 0.0
      %5802 = vmatpush1.msra.mxu0 0.0
      %5803 = vmatprep.subr.mxu0 0.0
      %5804 = vmatpush1.msra.mxu0 0.0
      %5805 = vmatprep.subr.mxu0 0.0
      %5806 = vmatpush1.msra.mxu0 0.0
      %5807 = vmatprep.subr.mxu0 0.0
      %5808 = vmatpush1.msra.mxu0 0.0
      %5809 = vmatprep.subr.mxu0 0.0
      %5810 = vmatpush1.msra.mxu0 0.0
      %5811 = vmatprep.subr.mxu0 0.0
      %5812 = vmatpush1.msra.mxu0 0.0
      %5813 = vmatprep.subr.mxu0 0.0
      %5814 = vmatpush1.msra.mxu0 0.0
      %5815 = vmatprep.subr.mxu0 0.0
      %5816 = vmatpush1.msra.mxu0 0.0
      %5817 = vmatprep.subr.mxu0 0.0
      %5818 = vmatpush1.msra.mxu0 0.0
      %5819 = vmatprep.subr.mxu0 0.0
      %5820 = vmatpush1.msra.mxu0 0.0
      %5821 = vmatprep.subr.mxu0 0.0
      %5822 = vmatpush1.msra.mxu0 0.0
      %5823 = vmatprep.subr.mxu0 0.0
      %5824 = vmatpush1.msra.mxu0 0.0
      %5825 = vmatprep.subr.mxu0 0.0
      %5826 = vmatpush1.msra.mxu0 0.0
      %5827 = vmatprep.subr.mxu0 0.0
      %5828 = vmatpush1.msra.mxu0 0.0
      %5829 = vmatprep.subr.mxu0 0.0
      %5830 = vmatpush1.msra.mxu0 0.0
      %5831 = vmatprep.subr.mxu0 0.0
      %5832 = vmatpush1.msra.mxu0 0.0
      %5833 = vmatprep.subr.mxu0 0.0
      %5834 = vmatpush1.msra.mxu0 0.0
      %5835 = vmatprep.subr.mxu0 0.0
      %5836 = vmatpush1.msra.mxu0 0.0
      %5837 = vmatprep.subr.mxu0 0.0
      %5838 = vmatpush1.msra.mxu0 0.0
      %5839 = vmatprep.subr.mxu0 0.0
      %5840 = vmatpush1.msra.mxu0 0.0
      %5841 = vmatprep.subr.mxu0 0.0
      %5842 = vmatpush1.msra.mxu0 0.0
      %5843 = vmatprep.subr.mxu0 0.0
      %5844 = vmatpush1.msra.mxu0 0.0
      %5845 = vmatprep.subr.mxu0 0.0
      %5846 = vmatpush1.msra.mxu0 0.0
      %5847 = vmatprep.subr.mxu0 0.0
      %5848 = vmatpush1.msra.mxu0 0.0
      %5849 = vmatprep.subr.mxu0 0.0
      %5850 = vmatpush1.msra.mxu0 0.0
      %5851 = vmatprep.mubr.f32.mxu0 0.0
      %5852 = vmatmul.mubr.f32.gmra.mrb[0].mxu0 %v5782
      %v5853 = vpop.f32.mrb[0].mxu0
      %v5854 = vadd.f32 1e-05, %v5853
      %v5855 = vpop.f32.mrb[0].mxu0
      %v5856 = vadd.f32 1e-05, %v5855
      %5857 = vmatprep.mubr.f32.mxu0 0.0
      %5858 = vmatmul.mubr.f32.gmra.mrb[0].mxu0 %v5785
      %v5859 = vpop.f32.mrb[0].mxu0
      %v5860 = vadd.f32 1e-05, %v5859
      %v5861 = vpop.f32.mrb[0].mxu0
      %v5862 = vadd.f32 1e-05, %v5861
      %5863 = vdwg.mxu0
      %v5864 = vrsqrt.pop %v5854
      %v5865 = vrsqrt.pop %v5856
      %v5866 = vrsqrt.pop %v5860
      %v5867 = vrsqrt.pop %v5862
      %v5868 = vmul.f32 %v5698, %v5864
      %v5869 = vmul.f32 %v5699, %v5865
      %v5870 = vmul.f32 %v5700, %v5866
      %v5871 = vmul.f32 %v5701, %v5867
      %v5872 = vld [vmem:[%s13] sm:$0x3]
      %v5874 = vlaneseq
      %v5875 = vshrl.u32 %v5874, 7
      %v5876 = vsub.s32 0, %v5875
      %v5877 = vrot.slane %v5872, %v5876
      %v5878 = vlaneseq
      %v5879 = vshrl.u32 %v5878, 7
      %v5880 = vsub.s32 1, %v5879
      %v5881 = vrot.slane %v5872, %v5880
      %v5884 = vmul.f32 %v5868, %v5877
      %v5885 = vmul.f32 %v5869, %v5881
      %v5886 = vmul.f32 %v5870, %v5877
      %v5887 = vmul.f32 %v5871, %v5881
      %v5888 = vld [vmem:[%s14] sm:$0x3]
      %v5890 = vlaneseq
      %v5891 = vshrl.u32 %v5890, 7
      %v5892 = vsub.s32 0, %v5891
      %v5893 = vrot.slane %v5888, %v5892
      %v5894 = vlaneseq
      %v5895 = vshrl.u32 %v5894, 7
      %v5896 = vsub.s32 1, %v5895
      %v5897 = vrot.slane %v5888, %v5896
      %v5900 = vadd.f32 %v5884, %v5893
      %v5901 = vadd.f32 %v5885, %v5897
      %v5902 = vadd.f32 %v5886, %v5893
      %v5903 = vadd.f32 %v5887, %v5897
      %v5904 = vmax.f32 %v5900, 0.0
      %v5905 = vmax.f32 %v5901, 0.0
      %v5906 = vmax.f32 %v5902, 0.0
      %v5907 = vmax.f32 %v5903, 0.0
      %v5908 = vld [vmem:[%s3] sm:$0xff]
      %v5909 = vld [vmem:[%s3 + $0x8] sm:$0xff]
      %v5910 = vld [vmem:[%s3 + $0x10] sm:$0xff]
      %v5911 = vld [vmem:[%s3 + $0x18] sm:$0xff]
      %v5912 = vld [vmem:[%s3 + $0x20] sm:$0xff]
      %v5913 = vld [vmem:[%s3 + $0x28] sm:$0xff]
      %v5914 = vld [vmem:[%s3 + $0x30] sm:$0xff]
      %v5915 = vld [vmem:[%s3 + $0x38] sm:$0xff]
      %v5916 = vld [vmem:[%s3 + $0x40] sm:$0xff]
      %v5917 = vld [vmem:[%s3 + $0x48] sm:$0xff]
      %v5918 = vld [vmem:[%s3 + $0x50] sm:$0xff]
      %v5919 = vld [vmem:[%s3 + $0x58] sm:$0xff]
      %v5920 = vld [vmem:[%s3 + $0x60] sm:$0xff]
      %v5921 = vld [vmem:[%s3 + $0x68] sm:$0xff]
      %v5922 = vld [vmem:[%s3 + $0x70] sm:$0xff]
      %v5923 = vld [vmem:[%s3 + $0x78] sm:$0xff]
      %v5924 = vld [vmem:[%s3 + $0x80] sm:$0xff]
      %v5925 = vld [vmem:[%s3 + $0x88] sm:$0xff]
      %v5926 = vld [vmem:[%s3 + $0x90] sm:$0xff]
      %v5927 = vld [vmem:[%s3 + $0x98] sm:$0xff]
      %v5928 = vld [vmem:[%s3 + $0xa0] sm:$0xff]
      %v5929 = vld [vmem:[%s3 + $0xa8] sm:$0xff]
      %v5930 = vld [vmem:[%s3 + $0xb0] sm:$0xff]
      %v5931 = vld [vmem:[%s3 + $0xb8] sm:$0xff]
      %v5932 = vld [vmem:[%s3 + $0xc0] sm:$0xff]
      %v5933 = vld [vmem:[%s3 + $0xc8] sm:$0xff]
      %v5934 = vld [vmem:[%s3 + $0xd0] sm:$0xff]
      %v5935 = vld [vmem:[%s3 + $0xd8] sm:$0xff]
      %v5936 = vld [vmem:[%s3 + $0xe0] sm:$0xff]
      %v5937 = vld [vmem:[%s3 + $0xe8] sm:$0xff]
      %v5938 = vld [vmem:[%s3 + $0xf0] sm:$0xff]
      %v5939 = vld [vmem:[%s3 + $0xf8] sm:$0xff]
      %v5940 = vld [vmem:[%s3 + $0x100] sm:$0xff]
      %v5941 = vld [vmem:[%s3 + $0x108] sm:$0xff]
      %v5942 = vld [vmem:[%s3 + $0x110] sm:$0xff]
      %v5943 = vld [vmem:[%s3 + $0x118] sm:$0xff]
      %v5944 = vld [vmem:[%s3 + $0x120] sm:$0xff]
      %v5945 = vld [vmem:[%s3 + $0x128] sm:$0xff]
      %v5946 = vld [vmem:[%s3 + $0x130] sm:$0xff]
      %v5947 = vld [vmem:[%s3 + $0x138] sm:$0xff]
      %v5948 = vld [vmem:[%s3 + $0x140] sm:$0xff]
      %v5949 = vld [vmem:[%s3 + $0x148] sm:$0xff]
      %v5950 = vld [vmem:[%s3 + $0x150] sm:$0xff]
      %v5951 = vld [vmem:[%s3 + $0x158] sm:$0xff]
      %v5952 = vld [vmem:[%s3 + $0x160] sm:$0xff]
      %v5953 = vld [vmem:[%s3 + $0x168] sm:$0xff]
      %v5954 = vld [vmem:[%s3 + $0x170] sm:$0xff]
      %v5955 = vld [vmem:[%s3 + $0x178] sm:$0xff]
      %v5956 = vld [vmem:[%s3 + $0x180] sm:$0xff]
      %v5957 = vld [vmem:[%s3 + $0x188] sm:$0xff]
      %v5958 = vld [vmem:[%s3 + $0x190] sm:$0xff]
      %v5959 = vld [vmem:[%s3 + $0x198] sm:$0xff]
      %v5960 = vld [vmem:[%s3 + $0x1a0] sm:$0xff]
      %v5961 = vld [vmem:[%s3 + $0x1a8] sm:$0xff]
      %v5962 = vld [vmem:[%s3 + $0x1b0] sm:$0xff]
      %v5963 = vld [vmem:[%s3 + $0x1b8] sm:$0xff]
      %v5964 = vld [vmem:[%s3 + $0x1c0] sm:$0xff]
      %v5965 = vld [vmem:[%s3 + $0x1c8] sm:$0xff]
      %v5966 = vld [vmem:[%s3 + $0x1d0] sm:$0xff]
      %v5967 = vld [vmem:[%s3 + $0x1d8] sm:$0xff]
      %v5968 = vld [vmem:[%s3 + $0x1e0] sm:$0xff]
      %v5969 = vld [vmem:[%s3 + $0x1e8] sm:$0xff]
      %v5970 = vld [vmem:[%s3 + $0x1f0] sm:$0xff]
      %v5971 = vld [vmem:[%s3 + $0x1f8] sm:$0xff]
      %v5972 = vld [vmem:[%s3 + $0x200] sm:$0xff]
      %v5973 = vld [vmem:[%s3 + $0x208] sm:$0xff]
      %v5974 = vld [vmem:[%s3 + $0x210] sm:$0xff]
      %v5975 = vld [vmem:[%s3 + $0x218] sm:$0xff]
      %v5976 = vld [vmem:[%s3 + $0x220] sm:$0xff]
      %v5977 = vld [vmem:[%s3 + $0x228] sm:$0xff]
      %v5978 = vld [vmem:[%s3 + $0x230] sm:$0xff]
      %v5979 = vld [vmem:[%s3 + $0x238] sm:$0xff]
      %v5980 = vld [vmem:[%s3 + $0x240] sm:$0xff]
      %v5981 = vld [vmem:[%s3 + $0x248] sm:$0xff]
      %v5982 = vld [vmem:[%s3 + $0x250] sm:$0xff]
      %v5983 = vld [vmem:[%s3 + $0x258] sm:$0xff]
      %v5984 = vld [vmem:[%s3 + $0x260] sm:$0xff]
      %v5985 = vld [vmem:[%s3 + $0x268] sm:$0xff]
      %v5986 = vld [vmem:[%s3 + $0x270] sm:$0xff]
      %v5987 = vld [vmem:[%s3 + $0x278] sm:$0xff]
      %v5988 = vld [vmem:[%s3 + $0x280] sm:$0xff]
      %v5989 = vld [vmem:[%s3 + $0x288] sm:$0xff]
      %v5990 = vld [vmem:[%s3 + $0x290] sm:$0xff]
      %v5991 = vld [vmem:[%s3 + $0x298] sm:$0xff]
      %v5992 = vld [vmem:[%s3 + $0x2a0] sm:$0xff]
      %v5993 = vld [vmem:[%s3 + $0x2a8] sm:$0xff]
      %v5994 = vld [vmem:[%s3 + $0x2b0] sm:$0xff]
      %v5995 = vld [vmem:[%s3 + $0x2b8] sm:$0xff]
      %v5996 = vld [vmem:[%s3 + $0x2c0] sm:$0xff]
      %v5997 = vld [vmem:[%s3 + $0x2c8] sm:$0xff]
      %v5998 = vld [vmem:[%s3 + $0x2d0] sm:$0xff]
      %v5999 = vld [vmem:[%s3 + $0x2d8] sm:$0xff]
      %v6000 = vld [vmem:[%s3 + $0x2e0] sm:$0xff]
      %v6001 = vld [vmem:[%s3 + $0x2e8] sm:$0xff]
      %v6002 = vld [vmem:[%s3 + $0x2f0] sm:$0xff]
      %v6003 = vld [vmem:[%s3 + $0x2f8] sm:$0xff]
      %v6004 = vld [vmem:[%s3 + $0x300] sm:$0xff]
      %v6005 = vld [vmem:[%s3 + $0x308] sm:$0xff]
      %v6006 = vld [vmem:[%s3 + $0x310] sm:$0xff]
      %v6007 = vld [vmem:[%s3 + $0x318] sm:$0xff]
      %v6008 = vld [vmem:[%s3 + $0x320] sm:$0xff]
      %v6009 = vld [vmem:[%s3 + $0x328] sm:$0xff]
      %v6010 = vld [vmem:[%s3 + $0x330] sm:$0xff]
      %v6011 = vld [vmem:[%s3 + $0x338] sm:$0xff]
      %v6012 = vld [vmem:[%s3 + $0x340] sm:$0xff]
      %v6013 = vld [vmem:[%s3 + $0x348] sm:$0xff]
      %v6014 = vld [vmem:[%s3 + $0x350] sm:$0xff]
      %v6015 = vld [vmem:[%s3 + $0x358] sm:$0xff]
      %v6016 = vld [vmem:[%s3 + $0x360] sm:$0xff]
      %v6017 = vld [vmem:[%s3 + $0x368] sm:$0xff]
      %v6018 = vld [vmem:[%s3 + $0x370] sm:$0xff]
      %v6019 = vld [vmem:[%s3 + $0x378] sm:$0xff]
      %v6020 = vld [vmem:[%s3 + $0x380] sm:$0xff]
      %v6021 = vld [vmem:[%s3 + $0x388] sm:$0xff]
      %v6022 = vld [vmem:[%s3 + $0x390] sm:$0xff]
      %v6023 = vld [vmem:[%s3 + $0x398] sm:$0xff]
      %v6024 = vld [vmem:[%s3 + $0x3a0] sm:$0xff]
      %v6025 = vld [vmem:[%s3 + $0x3a8] sm:$0xff]
      %v6026 = vld [vmem:[%s3 + $0x3b0] sm:$0xff]
      %v6027 = vld [vmem:[%s3 + $0x3b8] sm:$0xff]
      %v6028 = vld [vmem:[%s3 + $0x3c0] sm:$0xff]
      %v6029 = vld [vmem:[%s3 + $0x3c8] sm:$0xff]
      %v6030 = vld [vmem:[%s3 + $0x3d0] sm:$0xff]
      %v6031 = vld [vmem:[%s3 + $0x3d8] sm:$0xff]
      %v6032 = vld [vmem:[%s3 + $0x3e0] sm:$0xff]
      %v6033 = vld [vmem:[%s3 + $0x3e8] sm:$0xff]
      %v6034 = vld [vmem:[%s3 + $0x3f0] sm:$0xff]
      %v6035 = vld [vmem:[%s3 + $0x3f8] sm:$0xff]
      %v6036 = vld [vmem:[%s3 + $0x400] sm:$0xff]
      %v6037 = vld [vmem:[%s3 + $0x408] sm:$0xff]
      %v6038 = vld [vmem:[%s3 + $0x410] sm:$0xff]
      %v6039 = vld [vmem:[%s3 + $0x418] sm:$0xff]
      %v6040 = vld [vmem:[%s3 + $0x420] sm:$0xff]
      %v6041 = vld [vmem:[%s3 + $0x428] sm:$0xff]
      %v6042 = vld [vmem:[%s3 + $0x430] sm:$0xff]
      %v6043 = vld [vmem:[%s3 + $0x438] sm:$0xff]
      %v6044 = vld [vmem:[%s3 + $0x440] sm:$0xff]
      %v6045 = vld [vmem:[%s3 + $0x448] sm:$0xff]
      %v6046 = vld [vmem:[%s3 + $0x450] sm:$0xff]
      %v6047 = vld [vmem:[%s3 + $0x458] sm:$0xff]
      %v6048 = vld [vmem:[%s3 + $0x460] sm:$0xff]
      %v6049 = vld [vmem:[%s3 + $0x468] sm:$0xff]
      %v6050 = vld [vmem:[%s3 + $0x470] sm:$0xff]
      %v6051 = vld [vmem:[%s3 + $0x478] sm:$0xff]
      %v6052 = vld [vmem:[%s3 + $0x480] sm:$0xff]
      %v6053 = vld [vmem:[%s3 + $0x488] sm:$0xff]
      %v6054 = vld [vmem:[%s3 + $0x490] sm:$0xff]
      %v6055 = vld [vmem:[%s3 + $0x498] sm:$0xff]
      %v6056 = vld [vmem:[%s3 + $0x4a0] sm:$0xff]
      %v6057 = vld [vmem:[%s3 + $0x4a8] sm:$0xff]
      %v6058 = vld [vmem:[%s3 + $0x4b0] sm:$0xff]
      %v6059 = vld [vmem:[%s3 + $0x4b8] sm:$0xff]
      %v6060 = vld [vmem:[%s3 + $0x4c0] sm:$0xff]
      %v6061 = vld [vmem:[%s3 + $0x4c8] sm:$0xff]
      %v6062 = vld [vmem:[%s3 + $0x4d0] sm:$0xff]
      %v6063 = vld [vmem:[%s3 + $0x4d8] sm:$0xff]
      %v6064 = vld [vmem:[%s3 + $0x4e0] sm:$0xff]
      %v6065 = vld [vmem:[%s3 + $0x4e8] sm:$0xff]
      %v6066 = vld [vmem:[%s3 + $0x4f0] sm:$0xff]
      %v6067 = vld [vmem:[%s3 + $0x4f8] sm:$0xff]
      %v6068 = vld [vmem:[%s3 + $0x500] sm:$0xff]
      %v6069 = vld [vmem:[%s3 + $0x508] sm:$0xff]
      %v6070 = vld [vmem:[%s3 + $0x510] sm:$0xff]
      %v6071 = vld [vmem:[%s3 + $0x518] sm:$0xff]
      %v6072 = vld [vmem:[%s3 + $0x520] sm:$0xff]
      %v6073 = vld [vmem:[%s3 + $0x528] sm:$0xff]
      %v6074 = vld [vmem:[%s3 + $0x530] sm:$0xff]
      %v6075 = vld [vmem:[%s3 + $0x538] sm:$0xff]
      %v6076 = vld [vmem:[%s3 + $0x540] sm:$0xff]
      %v6077 = vld [vmem:[%s3 + $0x548] sm:$0xff]
      %v6078 = vld [vmem:[%s3 + $0x550] sm:$0xff]
      %v6079 = vld [vmem:[%s3 + $0x558] sm:$0xff]
      %v6080 = vld [vmem:[%s3 + $0x560] sm:$0xff]
      %v6081 = vld [vmem:[%s3 + $0x568] sm:$0xff]
      %v6082 = vld [vmem:[%s3 + $0x570] sm:$0xff]
      %v6083 = vld [vmem:[%s3 + $0x578] sm:$0xff]
      %v6084 = vld [vmem:[%s3 + $0x580] sm:$0xff]
      %v6085 = vld [vmem:[%s3 + $0x588] sm:$0xff]
      %v6086 = vld [vmem:[%s3 + $0x590] sm:$0xff]
      %v6087 = vld [vmem:[%s3 + $0x598] sm:$0xff]
      %v6088 = vld [vmem:[%s3 + $0x5a0] sm:$0xff]
      %v6089 = vld [vmem:[%s3 + $0x5a8] sm:$0xff]
      %v6090 = vld [vmem:[%s3 + $0x5b0] sm:$0xff]
      %v6091 = vld [vmem:[%s3 + $0x5b8] sm:$0xff]
      %v6092 = vld [vmem:[%s3 + $0x5c0] sm:$0xff]
      %v6093 = vld [vmem:[%s3 + $0x5c8] sm:$0xff]
      %v6094 = vld [vmem:[%s3 + $0x5d0] sm:$0xff]
      %v6095 = vld [vmem:[%s3 + $0x5d8] sm:$0xff]
      %v6096 = vld [vmem:[%s3 + $0x5e0] sm:$0xff]
      %v6097 = vld [vmem:[%s3 + $0x5e8] sm:$0xff]
      %v6098 = vld [vmem:[%s3 + $0x5f0] sm:$0xff]
      %v6099 = vld [vmem:[%s3 + $0x5f8] sm:$0xff]
      %v6100 = vld [vmem:[%s3 + $0x600] sm:$0xff]
      %v6101 = vld [vmem:[%s3 + $0x608] sm:$0xff]
      %v6102 = vld [vmem:[%s3 + $0x610] sm:$0xff]
      %v6103 = vld [vmem:[%s3 + $0x618] sm:$0xff]
      %v6104 = vld [vmem:[%s3 + $0x620] sm:$0xff]
      %v6105 = vld [vmem:[%s3 + $0x628] sm:$0xff]
      %v6106 = vld [vmem:[%s3 + $0x630] sm:$0xff]
      %v6107 = vld [vmem:[%s3 + $0x638] sm:$0xff]
      %v6108 = vld [vmem:[%s3 + $0x640] sm:$0xff]
      %v6109 = vld [vmem:[%s3 + $0x648] sm:$0xff]
      %v6110 = vld [vmem:[%s3 + $0x650] sm:$0xff]
      %v6111 = vld [vmem:[%s3 + $0x658] sm:$0xff]
      %v6112 = vld [vmem:[%s3 + $0x660] sm:$0xff]
      %v6113 = vld [vmem:[%s3 + $0x668] sm:$0xff]
      %v6114 = vld [vmem:[%s3 + $0x670] sm:$0xff]
      %v6115 = vld [vmem:[%s3 + $0x678] sm:$0xff]
      %v6116 = vld [vmem:[%s3 + $0x680] sm:$0xff]
      %v6117 = vld [vmem:[%s3 + $0x688] sm:$0xff]
      %v6118 = vld [vmem:[%s3 + $0x690] sm:$0xff]
      %v6119 = vld [vmem:[%s3 + $0x698] sm:$0xff]
      %v6120 = vld [vmem:[%s3 + $0x6a0] sm:$0xff]
      %v6121 = vld [vmem:[%s3 + $0x6a8] sm:$0xff]
      %v6122 = vld [vmem:[%s3 + $0x6b0] sm:$0xff]
      %v6123 = vld [vmem:[%s3 + $0x6b8] sm:$0xff]
      %v6124 = vld [vmem:[%s3 + $0x6c0] sm:$0xff]
      %v6125 = vld [vmem:[%s3 + $0x6c8] sm:$0xff]
      %v6126 = vld [vmem:[%s3 + $0x6d0] sm:$0xff]
      %v6127 = vld [vmem:[%s3 + $0x6d8] sm:$0xff]
      %v6128 = vld [vmem:[%s3 + $0x6e0] sm:$0xff]
      %v6129 = vld [vmem:[%s3 + $0x6e8] sm:$0xff]
      %v6130 = vld [vmem:[%s3 + $0x6f0] sm:$0xff]
      %v6131 = vld [vmem:[%s3 + $0x6f8] sm:$0xff]
      %v6132 = vld [vmem:[%s3 + $0x700] sm:$0xff]
      %v6133 = vld [vmem:[%s3 + $0x708] sm:$0xff]
      %v6134 = vld [vmem:[%s3 + $0x710] sm:$0xff]
      %v6135 = vld [vmem:[%s3 + $0x718] sm:$0xff]
      %v6136 = vld [vmem:[%s3 + $0x720] sm:$0xff]
      %v6137 = vld [vmem:[%s3 + $0x728] sm:$0xff]
      %v6138 = vld [vmem:[%s3 + $0x730] sm:$0xff]
      %v6139 = vld [vmem:[%s3 + $0x738] sm:$0xff]
      %v6140 = vld [vmem:[%s3 + $0x740] sm:$0xff]
      %v6141 = vld [vmem:[%s3 + $0x748] sm:$0xff]
      %v6142 = vld [vmem:[%s3 + $0x750] sm:$0xff]
      %v6143 = vld [vmem:[%s3 + $0x758] sm:$0xff]
      %v6144 = vld [vmem:[%s3 + $0x760] sm:$0xff]
      %v6145 = vld [vmem:[%s3 + $0x768] sm:$0xff]
      %v6146 = vld [vmem:[%s3 + $0x770] sm:$0xff]
      %v6147 = vld [vmem:[%s3 + $0x778] sm:$0xff]
      %v6148 = vld [vmem:[%s3 + $0x780] sm:$0xff]
      %v6149 = vld [vmem:[%s3 + $0x788] sm:$0xff]
      %v6150 = vld [vmem:[%s3 + $0x790] sm:$0xff]
      %v6151 = vld [vmem:[%s3 + $0x798] sm:$0xff]
      %v6152 = vld [vmem:[%s3 + $0x7a0] sm:$0xff]
      %v6153 = vld [vmem:[%s3 + $0x7a8] sm:$0xff]
      %v6154 = vld [vmem:[%s3 + $0x7b0] sm:$0xff]
      %v6155 = vld [vmem:[%s3 + $0x7b8] sm:$0xff]
      %v6156 = vld [vmem:[%s3 + $0x7c0] sm:$0xff]
      %v6157 = vld [vmem:[%s3 + $0x7c8] sm:$0xff]
      %v6158 = vld [vmem:[%s3 + $0x7d0] sm:$0xff]
      %v6159 = vld [vmem:[%s3 + $0x7d8] sm:$0xff]
      %v6160 = vld [vmem:[%s3 + $0x7e0] sm:$0xff]
      %v6161 = vld [vmem:[%s3 + $0x7e8] sm:$0xff]
      %v6162 = vld [vmem:[%s3 + $0x7f0] sm:$0xff]
      %v6163 = vld [vmem:[%s3 + $0x7f8] sm:$0xff]
      %6164 = vmatprep.subr.mxu0 %v5909
      %6165 = vmatpush1.msra.mxu0 %v5908
      %6166 = vmatprep.subr.mxu0 %v5917
      %6167 = vmatpush1.msra.mxu0 %v5916
      %6168 = vmatprep.subr.mxu0 %v5925
      %6169 = vmatpush1.msra.mxu0 %v5924
      %6170 = vmatprep.subr.mxu0 %v5933
      %6171 = vmatpush1.msra.mxu0 %v5932
      %6172 = vmatprep.subr.mxu0 %v5941
      %6173 = vmatpush1.msra.mxu0 %v5940
      %6174 = vmatprep.subr.mxu0 %v5949
      %6175 = vmatpush1.msra.mxu0 %v5948
      %6176 = vmatprep.subr.mxu0 %v5957
      %6177 = vmatpush1.msra.mxu0 %v5956
      %6178 = vmatprep.subr.mxu0 %v5965
      %6179 = vmatpush1.msra.mxu0 %v5964
      %6180 = vmatprep.subr.mxu0 %v5973
      %6181 = vmatpush1.msra.mxu0 %v5972
      %6182 = vmatprep.subr.mxu0 %v5981
      %6183 = vmatpush1.msra.mxu0 %v5980
      %6184 = vmatprep.subr.mxu0 %v5989
      %6185 = vmatpush1.msra.mxu0 %v5988
      %6186 = vmatprep.subr.mxu0 %v5997
      %6187 = vmatpush1.msra.mxu0 %v5996
      %6188 = vmatprep.subr.mxu0 %v6005
      %6189 = vmatpush1.msra.mxu0 %v6004
      %6190 = vmatprep.subr.mxu0 %v6013
      %6191 = vmatpush1.msra.mxu0 %v6012
      %6192 = vmatprep.subr.mxu0 %v6021
      %6193 = vmatpush1.msra.mxu0 %v6020
      %6194 = vmatprep.subr.mxu0 %v6029
      %6195 = vmatpush1.msra.mxu0 %v6028
      %6196 = vmatprep.subr.mxu0 %v6037
      %6197 = vmatpush1.msra.mxu0 %v6036
      %6198 = vmatprep.subr.mxu0 %v6045
      %6199 = vmatpush1.msra.mxu0 %v6044
      %6200 = vmatprep.subr.mxu0 %v6053
      %6201 = vmatpush1.msra.mxu0 %v6052
      %6202 = vmatprep.subr.mxu0 %v6061
      %6203 = vmatpush1.msra.mxu0 %v6060
      %6204 = vmatprep.subr.mxu0 %v6069
      %6205 = vmatpush1.msra.mxu0 %v6068
      %6206 = vmatprep.subr.mxu0 %v6077
      %6207 = vmatpush1.msra.mxu0 %v6076
      %6208 = vmatprep.subr.mxu0 %v6085
      %6209 = vmatpush1.msra.mxu0 %v6084
      %6210 = vmatprep.subr.mxu0 %v6093
      %6211 = vmatpush1.msra.mxu0 %v6092
      %6212 = vmatprep.subr.mxu0 %v6101
      %6213 = vmatpush1.msra.mxu0 %v6100
      %6214 = vmatprep.subr.mxu0 %v6109
      %6215 = vmatpush1.msra.mxu0 %v6108
      %6216 = vmatprep.subr.mxu0 %v6117
      %6217 = vmatpush1.msra.mxu0 %v6116
      %6218 = vmatprep.subr.mxu0 %v6125
      %6219 = vmatpush1.msra.mxu0 %v6124
      %6220 = vmatprep.subr.mxu0 %v6133
      %6221 = vmatpush1.msra.mxu0 %v6132
      %6222 = vmatprep.subr.mxu0 %v6141
      %6223 = vmatpush1.msra.mxu0 %v6140
      %6224 = vmatprep.subr.mxu0 %v6149
      %6225 = vmatpush1.msra.mxu0 %v6148
      %6226 = vmatprep.subr.mxu0 %v6157
      %6227 = vmatpush1.msra.mxu0 %v6156
      %6228 = vmatprep.mubr.f32.mxu0 %v5905
      %6229 = vmatmul.mubr.f32.gmra.mrb[0].mxu0 %v5904
      %v6230 = vpop.f32.mrb[0].mxu0
      %v6231 = vadd.f32 0.0, %v6230
      %v6232 = vpop.f32.mrb[0].mxu0
      %v6233 = vadd.f32 0.0, %v6232
      %6234 = vmatprep.mubr.f32.mxu0 %v5907
      %6235 = vmatmul.mubr.f32.gmra.mrb[0].mxu0 %v5906
      %v6236 = vpop.f32.mrb[0].mxu0
      %v6237 = vadd.f32 0.0, %v6236
      %v6238 = vpop.f32.mrb[0].mxu0
      %v6239 = vadd.f32 0.0, %v6238
      %6240 = vdwg.mxu0
      %6241 = vmatprep.subr.mxu0 %v5911
      %6242 = vmatpush1.msra.mxu0 %v5910
      %6243 = vmatprep.subr.mxu0 %v5919
      %6244 = vmatpush1.msra.mxu0 %v5918
      %6245 = vmatprep.subr.mxu0 %v5927
      %6246 = vmatpush1.msra.mxu0 %v5926
      %6247 = vmatprep.subr.mxu0 %v5935
      %6248 = vmatpush1.msra.mxu0 %v5934
      %6249 = vmatprep.subr.mxu0 %v5943
      %6250 = vmatpush1.msra.mxu0 %v5942
      %6251 = vmatprep.subr.mxu0 %v5951
      %6252 = vmatpush1.msra.mxu0 %v5950
      %6253 = vmatprep.subr.mxu0 %v5959
      %6254 = vmatpush1.msra.mxu0 %v5958
      %6255 = vmatprep.subr.mxu0 %v5967
      %6256 = vmatpush1.msra.mxu0 %v5966
      %6257 = vmatprep.subr.mxu0 %v5975
      %6258 = vmatpush1.msra.mxu0 %v5974
      %6259 = vmatprep.subr.mxu0 %v5983
      %6260 = vmatpush1.msra.mxu0 %v5982
      %6261 = vmatprep.subr.mxu0 %v5991
      %6262 = vmatpush1.msra.mxu0 %v5990
      %6263 = vmatprep.subr.mxu0 %v5999
      %6264 = vmatpush1.msra.mxu0 %v5998
      %6265 = vmatprep.subr.mxu0 %v6007
      %6266 = vmatpush1.msra.mxu0 %v6006
      %6267 = vmatprep.subr.mxu0 %v6015
      %6268 = vmatpush1.msra.mxu0 %v6014
      %6269 = vmatprep.subr.mxu0 %v6023
      %6270 = vmatpush1.msra.mxu0 %v6022
      %6271 = vmatprep.subr.mxu0 %v6031
      %6272 = vmatpush1.msra.mxu0 %v6030
      %6273 = vmatprep.subr.mxu0 %v6039
      %6274 = vmatpush1.msra.mxu0 %v6038
      %6275 = vmatprep.subr.mxu0 %v6047
      %6276 = vmatpush1.msra.mxu0 %v6046
      %6277 = vmatprep.subr.mxu0 %v6055
      %6278 = vmatpush1.msra.mxu0 %v6054
      %6279 = vmatprep.subr.mxu0 %v6063
      %6280 = vmatpush1.msra.mxu0 %v6062
      %6281 = vmatprep.subr.mxu0 %v6071
      %6282 = vmatpush1.msra.mxu0 %v6070
      %6283 = vmatprep.subr.mxu0 %v6079
      %6284 = vmatpush1.msra.mxu0 %v6078
      %6285 = vmatprep.subr.mxu0 %v6087
      %6286 = vmatpush1.msra.mxu0 %v6086
      %6287 = vmatprep.subr.mxu0 %v6095
      %6288 = vmatpush1.msra.mxu0 %v6094
      %6289 = vmatprep.subr.mxu0 %v6103
      %6290 = vmatpush1.msra.mxu0 %v6102
      %6291 = vmatprep.subr.mxu0 %v6111
      %6292 = vmatpush1.msra.mxu0 %v6110
      %6293 = vmatprep.subr.mxu0 %v6119
      %6294 = vmatpush1.msra.mxu0 %v6118
      %6295 = vmatprep.subr.mxu0 %v6127
      %6296 = vmatpush1.msra.mxu0 %v6126
      %6297 = vmatprep.subr.mxu0 %v6135
      %6298 = vmatpush1.msra.mxu0 %v6134
      %6299 = vmatprep.subr.mxu0 %v6143
      %6300 = vmatpush1.msra.mxu0 %v6142
      %6301 = vmatprep.subr.mxu0 %v6151
      %6302 = vmatpush1.msra.mxu0 %v6150
      %6303 = vmatprep.subr.mxu0 %v6159
      %6304 = vmatpush1.msra.mxu0 %v6158
      %6305 = vmatprep.mubr.f32.mxu0 %v5905
      %6306 = vmatmul.mubr.f32.gmra.mrb[0].mxu0 %v5904
      %v6307 = vpop.f32.mrb[0].mxu0
      %v6308 = vadd.f32 0.0, %v6307
      %v6309 = vpop.f32.mrb[0].mxu0
      %v6310 = vadd.f32 0.0, %v6309
      %6311 = vmatprep.mubr.f32.mxu0 %v5907
      %6312 = vmatmul.mubr.f32.gmra.mrb[0].mxu0 %v5906
      %v6313 = vpop.f32.mrb[0].mxu0
      %v6314 = vadd.f32 0.0, %v6313
      %v6315 = vpop.f32.mrb[0].mxu0
      %v6316 = vadd.f32 0.0, %v6315
      %6317 = vdwg.mxu0
      %6318 = vmatprep.subr.mxu0 %v5913
      %6319 = vmatpush1.msra.mxu0 %v5912
      %6320 = vmatprep.subr.mxu0 %v5921
      %6321 = vmatpush1.msra.mxu0 %v5920
      %6322 = vmatprep.subr.mxu0 %v5929
      %6323 = vmatpush1.msra.mxu0 %v5928
      %6324 = vmatprep.subr.mxu0 %v5937
      %6325 = vmatpush1.msra.mxu0 %v5936
      %6326 = vmatprep.subr.mxu0 %v5945
      %6327 = vmatpush1.msra.mxu0 %v5944
      %6328 = vmatprep.subr.mxu0 %v5953
      %6329 = vmatpush1.msra.mxu0 %v5952
      %6330 = vmatprep.subr.mxu0 %v5961
      %6331 = vmatpush1.msra.mxu0 %v5960
      %6332 = vmatprep.subr.mxu0 %v5969
      %6333 = vmatpush1.msra.mxu0 %v5968
      %6334 = vmatprep.subr.mxu0 %v5977
      %6335 = vmatpush1.msra.mxu0 %v5976
      %6336 = vmatprep.subr.mxu0 %v5985
      %6337 = vmatpush1.msra.mxu0 %v5984
      %6338 = vmatprep.subr.mxu0 %v5993
      %6339 = vmatpush1.msra.mxu0 %v5992
      %6340 = vmatprep.subr.mxu0 %v6001
      %6341 = vmatpush1.msra.mxu0 %v6000
      %6342 = vmatprep.subr.mxu0 %v6009
      %6343 = vmatpush1.msra.mxu0 %v6008
      %6344 = vmatprep.subr.mxu0 %v6017
      %6345 = vmatpush1.msra.mxu0 %v6016
      %6346 = vmatprep.subr.mxu0 %v6025
      %6347 = vmatpush1.msra.mxu0 %v6024
      %6348 = vmatprep.subr.mxu0 %v6033
      %6349 = vmatpush1.msra.mxu0 %v6032
      %6350 = vmatprep.subr.mxu0 %v6041
      %6351 = vmatpush1.msra.mxu0 %v6040
      %6352 = vmatprep.subr.mxu0 %v6049
      %6353 = vmatpush1.msra.mxu0 %v6048
      %6354 = vmatprep.subr.mxu0 %v6057
      %6355 = vmatpush1.msra.mxu0 %v6056
      %6356 = vmatprep.subr.mxu0 %v6065
      %6357 = vmatpush1.msra.mxu0 %v6064
      %6358 = vmatprep.subr.mxu0 %v6073
      %6359 = vmatpush1.msra.mxu0 %v6072
      %6360 = vmatprep.subr.mxu0 %v6081
      %6361 = vmatpush1.msra.mxu0 %v6080
      %6362 = vmatprep.subr.mxu0 %v6089
      %6363 = vmatpush1.msra.mxu0 %v6088
      %6364 = vmatprep.subr.mxu0 %v6097
      %6365 = vmatpush1.msra.mxu0 %v6096
      %6366 = vmatprep.subr.mxu0 %v6105
      %6367 = vmatpush1.msra.mxu0 %v6104
      %6368 = vmatprep.subr.mxu0 %v6113
      %6369 = vmatpush1.msra.mxu0 %v6112
      %6370 = vmatprep.subr.mxu0 %v6121
      %6371 = vmatpush1.msra.mxu0 %v6120
      %6372 = vmatprep.subr.mxu0 %v6129
      %6373 = vmatpush1.msra.mxu0 %v6128
      %6374 = vmatprep.subr.mxu0 %v6137
      %6375 = vmatpush1.msra.mxu0 %v6136
      %6376 = vmatprep.subr.mxu0 %v6145
      %6377 = vmatpush1.msra.mxu0 %v6144
      %6378 = vmatprep.subr.mxu0 %v6153
      %6379 = vmatpush1.msra.mxu0 %v6152
      %6380 = vmatprep.subr.mxu0 %v6161
      %6381 = vmatpush1.msra.mxu0 %v6160
      %6382 = vmatprep.mubr.f32.mxu0 %v5905
      %6383 = vmatmul.mubr.f32.gmra.mrb[0].mxu0 %v5904
      %v6384 = vpop.f32.mrb[0].mxu0
      %v6385 = vadd.f32 0.0, %v6384
      %v6386 = vpop.f32.mrb[0].mxu0
      %v6387 = vadd.f32 0.0, %v6386
      %6388 = vmatprep.mubr.f32.mxu0 %v5907
      %6389 = vmatmul.mubr.f32.gmra.mrb[0].mxu0 %v5906
      %v6390 = vpop.f32.mrb[0].mxu0
      %v6391 = vadd.f32 0.0, %v6390
      %v6392 = vpop.f32.mrb[0].mxu0
      %v6393 = vadd.f32 0.0, %v6392
      %6394 = vdwg.mxu0
      %6395 = vmatprep.subr.mxu0 %v5915
      %6396 = vmatpush1.msra.mxu0 %v5914
      %6397 = vmatprep.subr.mxu0 %v5923
      %6398 = vmatpush1.msra.mxu0 %v5922
      %6399 = vmatprep.subr.mxu0 %v5931
      %6400 = vmatpush1.msra.mxu0 %v5930
      %6401 = vmatprep.subr.mxu0 %v5939
      %6402 = vmatpush1.msra.mxu0 %v5938
      %6403 = vmatprep.subr.mxu0 %v5947
      %6404 = vmatpush1.msra.mxu0 %v5946
      %6405 = vmatprep.subr.mxu0 %v5955
      %6406 = vmatpush1.msra.mxu0 %v5954
      %6407 = vmatprep.subr.mxu0 %v5963
      %6408 = vmatpush1.msra.mxu0 %v5962
      %6409 = vmatprep.subr.mxu0 %v5971
      %6410 = vmatpush1.msra.mxu0 %v5970
      %6411 = vmatprep.subr.mxu0 %v5979
      %6412 = vmatpush1.msra.mxu0 %v5978
      %6413 = vmatprep.subr.mxu0 %v5987
      %6414 = vmatpush1.msra.mxu0 %v5986
      %6415 = vmatprep.subr.mxu0 %v5995
      %6416 = vmatpush1.msra.mxu0 %v5994
      %6417 = vmatprep.subr.mxu0 %v6003
      %6418 = vmatpush1.msra.mxu0 %v6002
      %6419 = vmatprep.subr.mxu0 %v6011
      %6420 = vmatpush1.msra.mxu0 %v6010
      %6421 = vmatprep.subr.mxu0 %v6019
      %6422 = vmatpush1.msra.mxu0 %v6018
      %6423 = vmatprep.subr.mxu0 %v6027
      %6424 = vmatpush1.msra.mxu0 %v6026
      %6425 = vmatprep.subr.mxu0 %v6035
      %6426 = vmatpush1.msra.mxu0 %v6034
      %6427 = vmatprep.subr.mxu0 %v6043
      %6428 = vmatpush1.msra.mxu0 %v6042
      %6429 = vmatprep.subr.mxu0 %v6051
      %6430 = vmatpush1.msra.mxu0 %v6050
      %6431 = vmatprep.subr.mxu0 %v6059
      %6432 = vmatpush1.msra.mxu0 %v6058
      %6433 = vmatprep.subr.mxu0 %v6067
      %6434 = vmatpush1.msra.mxu0 %v6066
      %6435 = vmatprep.subr.mxu0 %v6075
      %6436 = vmatpush1.msra.mxu0 %v6074
      %6437 = vmatprep.subr.mxu0 %v6083
      %6438 = vmatpush1.msra.mxu0 %v6082
      %6439 = vmatprep.subr.mxu0 %v6091
      %6440 = vmatpush1.msra.mxu0 %v6090
      %6441 = vmatprep.subr.mxu0 %v6099
      %6442 = vmatpush1.msra.mxu0 %v6098
      %6443 = vmatprep.subr.mxu0 %v6107
      %6444 = vmatpush1.msra.mxu0 %v6106
      %6445 = vmatprep.subr.mxu0 %v6115
      %6446 = vmatpush1.msra.mxu0 %v6114
      %6447 = vmatprep.subr.mxu0 %v6123
      %6448 = vmatpush1.msra.mxu0 %v6122
      %6449 = vmatprep.subr.mxu0 %v6131
      %6450 = vmatpush1.msra.mxu0 %v6130
      %6451 = vmatprep.subr.mxu0 %v6139
      %6452 = vmatpush1.msra.mxu0 %v6138
      %6453 = vmatprep.subr.mxu0 %v6147
      %6454 = vmatpush1.msra.mxu0 %v6146
      %6455 = vmatprep.subr.mxu0 %v6155
      %6456 = vmatpush1.msra.mxu0 %v6154
      %6457 = vmatprep.subr.mxu0 %v6163
      %6458 = vmatpush1.msra.mxu0 %v6162
      %6459 = vmatprep.mubr.f32.mxu0 %v5905
      %6460 = vmatmul.mubr.f32.gmra.mrb[0].mxu0 %v5904
      %v6461 = vpop.f32.mrb[0].mxu0
      %v6462 = vadd.f32 0.0, %v6461
      %v6463 = vpop.f32.mrb[0].mxu0
      %v6464 = vadd.f32 0.0, %v6463
      %6465 = vmatprep.mubr.f32.mxu0 %v5907
      %6466 = vmatmul.mubr.f32.gmra.mrb[0].mxu0 %v5906
      %v6467 = vpop.f32.mrb[0].mxu0
      %v6468 = vadd.f32 0.0, %v6467
      %v6469 = vpop.f32.mrb[0].mxu0
      %v6470 = vadd.f32 0.0, %v6469
      %6471 = vdwg.mxu0
      %v6472 = vld [vmem:[%s17] sm:$0xff]
      %v6473 = vld [vmem:[%s17 + $0x8] sm:$0xff]
      %v6474 = vmul.f32 %v3242, %v6231
      %v6475 = vmul.f32 %v3244, %v6233
      %v6476 = vmul.f32 %v3319, %v6308
      %v6477 = vmul.f32 %v3321, %v6310
      %v6478 = vmul.f32 %v3396, %v6385
      %v6479 = vmul.f32 %v3398, %v6387
      %v6480 = vmul.f32 %v3473, %v6462
      %v6481 = vmul.f32 %v3475, %v6464
      %v6482 = vmul.f32 %v3248, %v6237
      %v6483 = vmul.f32 %v3250, %v6239
      %v6484 = vmul.f32 %v3325, %v6314
      %v6485 = vmul.f32 %v3327, %v6316
      %v6486 = vmul.f32 %v3402, %v6391
      %v6487 = vmul.f32 %v3404, %v6393
      %v6488 = vmul.f32 %v3479, %v6468
      %v6489 = vmul.f32 %v3481, %v6470
      %v6491 = vsel %vm2280, %v6472, 0
      %v6494 = vsel %vm2280, %v6473, 0
      %6496 = vmatprep.subr.mxu0 %v6475
      %6497 = vmatpush1.msra.mxu0 %v6474
      %6498 = vmatprep.subr.mxu0 %v6483
      %6499 = vmatpush1.msra.mxu0 %v6482
      %6500 = vmatprep.subr.mxu0 0.0
      %6501 = vmatpush1.msra.mxu0 0.0
      %6502 = vmatprep.subr.mxu0 0.0
      %6503 = vmatpush1.msra.mxu0 0.0
      %6504 = vmatprep.subr.mxu0 0.0
      %6505 = vmatpush1.msra.mxu0 0.0
      %6506 = vmatprep.subr.mxu0 0.0
      %6507 = vmatpush1.msra.mxu0 0.0
      %6508 = vmatprep.subr.mxu0 0.0
      %6509 = vmatpush1.msra.mxu0 0.0
      %6510 = vmatprep.subr.mxu0 0.0
      %6511 = vmatpush1.msra.mxu0 0.0
      %6512 = vmatprep.subr.mxu0 0.0
      %6513 = vmatpush1.msra.mxu0 0.0
      %6514 = vmatprep.subr.mxu0 0.0
      %6515 = vmatpush1.msra.mxu0 0.0
      %6516 = vmatprep.subr.mxu0 0.0
      %6517 = vmatpush1.msra.mxu0 0.0
      %6518 = vmatprep.subr.mxu0 0.0
      %6519 = vmatpush1.msra.mxu0 0.0
      %6520 = vmatprep.subr.mxu0 0.0
      %6521 = vmatpush1.msra.mxu0 0.0
      %6522 = vmatprep.subr.mxu0 0.0
      %6523 = vmatpush1.msra.mxu0 0.0
      %6524 = vmatprep.subr.mxu0 0.0
      %6525 = vmatpush1.msra.mxu0 0.0
      %6526 = vmatprep.subr.mxu0 0.0
      %6527 = vmatpush1.msra.mxu0 0.0
      %6528 = vmatprep.subr.mxu0 0.0
      %6529 = vmatpush1.msra.mxu0 0.0
      %6530 = vmatprep.subr.mxu0 0.0
      %6531 = vmatpush1.msra.mxu0 0.0
      %6532 = vmatprep.subr.mxu0 0.0
      %6533 = vmatpush1.msra.mxu0 0.0
      %6534 = vmatprep.subr.mxu0 0.0
      %6535 = vmatpush1.msra.mxu0 0.0
      %6536 = vmatprep.subr.mxu0 0.0
      %6537 = vmatpush1.msra.mxu0 0.0
      %6538 = vmatprep.subr.mxu0 0.0
      %6539 = vmatpush1.msra.mxu0 0.0
      %6540 = vmatprep.subr.mxu0 0.0
      %6541 = vmatpush1.msra.mxu0 0.0
      %6542 = vmatprep.subr.mxu0 0.0
      %6543 = vmatpush1.msra.mxu0 0.0
      %6544 = vmatprep.subr.mxu0 0.0
      %6545 = vmatpush1.msra.mxu0 0.0
      %6546 = vmatprep.subr.mxu0 0.0
      %6547 = vmatpush1.msra.mxu0 0.0
      %6548 = vmatprep.subr.mxu0 0.0
      %6549 = vmatpush1.msra.mxu0 0.0
      %6550 = vmatprep.subr.mxu0 0.0
      %6551 = vmatpush1.msra.mxu0 0.0
      %6552 = vmatprep.subr.mxu0 0.0
      %6553 = vmatpush1.msra.mxu0 0.0
      %6554 = vmatprep.subr.mxu0 0.0
      %6555 = vmatpush1.msra.mxu0 0.0
      %6556 = vmatprep.subr.mxu0 0.0
      %6557 = vmatpush1.msra.mxu0 0.0
      %6558 = vmatprep.subr.mxu0 0.0
      %6559 = vmatpush1.msra.mxu0 0.0
      %6560 = vmatprep.mubr.f32.mxu0 0.0
      %6561 = vmatmul.mubr.f32.gmra.mrb[0].mxu0 %v6491
      %v6562 = vpop.f32.mrb[0].mxu0
      %v6563 = vadd.f32 0.0, %v6562
      %v6564 = vpop.f32.mrb[0].mxu0
      %v6565 = vadd.f32 0.0, %v6564
      %6566 = vmatprep.mubr.f32.mxu0 0.0
      %6567 = vmatmul.mubr.f32.gmra.mrb[0].mxu0 %v6494
      %v6568 = vpop.f32.mrb[0].mxu0
      %v6569 = vadd.f32 0.0, %v6568
      %v6570 = vpop.f32.mrb[0].mxu0
      %v6571 = vadd.f32 0.0, %v6570
      %6572 = vdwg.mxu0
      %6573 = vmatprep.subr.mxu0 %v6477
      %6574 = vmatpush1.msra.mxu0 %v6476
      %6575 = vmatprep.subr.mxu0 %v6485
      %6576 = vmatpush1.msra.mxu0 %v6484
      %6577 = vmatprep.subr.mxu0 0.0
      %6578 = vmatpush1.msra.mxu0 0.0
      %6579 = vmatprep.subr.mxu0 0.0
      %6580 = vmatpush1.msra.mxu0 0.0
      %6581 = vmatprep.subr.mxu0 0.0
      %6582 = vmatpush1.msra.mxu0 0.0
      %6583 = vmatprep.subr.mxu0 0.0
      %6584 = vmatpush1.msra.mxu0 0.0
      %6585 = vmatprep.subr.mxu0 0.0
      %6586 = vmatpush1.msra.mxu0 0.0
      %6587 = vmatprep.subr.mxu0 0.0
      %6588 = vmatpush1.msra.mxu0 0.0
      %6589 = vmatprep.subr.mxu0 0.0
      %6590 = vmatpush1.msra.mxu0 0.0
      %6591 = vmatprep.subr.mxu0 0.0
      %6592 = vmatpush1.msra.mxu0 0.0
      %6593 = vmatprep.subr.mxu0 0.0
      %6594 = vmatpush1.msra.mxu0 0.0
      %6595 = vmatprep.subr.mxu0 0.0
      %6596 = vmatpush1.msra.mxu0 0.0
      %6597 = vmatprep.subr.mxu0 0.0
      %6598 = vmatpush1.msra.mxu0 0.0
      %6599 = vmatprep.subr.mxu0 0.0
      %6600 = vmatpush1.msra.mxu0 0.0
      %6601 = vmatprep.subr.mxu0 0.0
      %6602 = vmatpush1.msra.mxu0 0.0
      %6603 = vmatprep.subr.mxu0 0.0
      %6604 = vmatpush1.msra.mxu0 0.0
      %6605 = vmatprep.subr.mxu0 0.0
      %6606 = vmatpush1.msra.mxu0 0.0
      %6607 = vmatprep.subr.mxu0 0.0
      %6608 = vmatpush1.msra.mxu0 0.0
      %6609 = vmatprep.subr.mxu0 0.0
      %6610 = vmatpush1.msra.mxu0 0.0
      %6611 = vmatprep.subr.mxu0 0.0
      %6612 = vmatpush1.msra.mxu0 0.0
      %6613 = vmatprep.subr.mxu0 0.0
      %6614 = vmatpush1.msra.mxu0 0.0
      %6615 = vmatprep.subr.mxu0 0.0
      %6616 = vmatpush1.msra.mxu0 0.0
      %6617 = vmatprep.subr.mxu0 0.0
      %6618 = vmatpush1.msra.mxu0 0.0
      %6619 = vmatprep.subr.mxu0 0.0
      %6620 = vmatpush1.msra.mxu0 0.0
      %6621 = vmatprep.subr.mxu0 0.0
      %6622 = vmatpush1.msra.mxu0 0.0
      %6623 = vmatprep.subr.mxu0 0.0
      %6624 = vmatpush1.msra.mxu0 0.0
      %6625 = vmatprep.subr.mxu0 0.0
      %6626 = vmatpush1.msra.mxu0 0.0
      %6627 = vmatprep.subr.mxu0 0.0
      %6628 = vmatpush1.msra.mxu0 0.0
      %6629 = vmatprep.subr.mxu0 0.0
      %6630 = vmatpush1.msra.mxu0 0.0
      %6631 = vmatprep.subr.mxu0 0.0
      %6632 = vmatpush1.msra.mxu0 0.0
      %6633 = vmatprep.subr.mxu0 0.0
      %6634 = vmatpush1.msra.mxu0 0.0
      %6635 = vmatprep.subr.mxu0 0.0
      %6636 = vmatpush1.msra.mxu0 0.0
      %6637 = vmatprep.mubr.f32.mxu0 0.0
      %6638 = vmatmul.mubr.f32.gmra.mrb[0].mxu0 %v6491
      %v6639 = vpop.f32.mrb[0].mxu0
      %v6640 = vadd.f32 0.0, %v6639
      %v6641 = vpop.f32.mrb[0].mxu0
      %v6642 = vadd.f32 0.0, %v6641
      %6643 = vmatprep.mubr.f32.mxu0 0.0
      %6644 = vmatmul.mubr.f32.gmra.mrb[0].mxu0 %v6494
      %v6645 = vpop.f32.mrb[0].mxu0
      %v6646 = vadd.f32 0.0, %v6645
      %v6647 = vpop.f32.mrb[0].mxu0
      %v6648 = vadd.f32 0.0, %v6647
      %6649 = vdwg.mxu0
      %6650 = vmatprep.subr.mxu0 %v6479
      %6651 = vmatpush1.msra.mxu0 %v6478
      %6652 = vmatprep.subr.mxu0 %v6487
      %6653 = vmatpush1.msra.mxu0 %v6486
      %6654 = vmatprep.subr.mxu0 0.0
      %6655 = vmatpush1.msra.mxu0 0.0
      %6656 = vmatprep.subr.mxu0 0.0
      %6657 = vmatpush1.msra.mxu0 0.0
      %6658 = vmatprep.subr.mxu0 0.0
      %6659 = vmatpush1.msra.mxu0 0.0
      %6660 = vmatprep.subr.mxu0 0.0
      %6661 = vmatpush1.msra.mxu0 0.0
      %6662 = vmatprep.subr.mxu0 0.0
      %6663 = vmatpush1.msra.mxu0 0.0
      %6664 = vmatprep.subr.mxu0 0.0
      %6665 = vmatpush1.msra.mxu0 0.0
      %6666 = vmatprep.subr.mxu0 0.0
      %6667 = vmatpush1.msra.mxu0 0.0
      %6668 = vmatprep.subr.mxu0 0.0
      %6669 = vmatpush1.msra.mxu0 0.0
      %6670 = vmatprep.subr.mxu0 0.0
      %6671 = vmatpush1.msra.mxu0 0.0
      %6672 = vmatprep.subr.mxu0 0.0
      %6673 = vmatpush1.msra.mxu0 0.0
      %6674 = vmatprep.subr.mxu0 0.0
      %6675 = vmatpush1.msra.mxu0 0.0
      %6676 = vmatprep.subr.mxu0 0.0
      %6677 = vmatpush1.msra.mxu0 0.0
      %6678 = vmatprep.subr.mxu0 0.0
      %6679 = vmatpush1.msra.mxu0 0.0
      %6680 = vmatprep.subr.mxu0 0.0
      %6681 = vmatpush1.msra.mxu0 0.0
      %6682 = vmatprep.subr.mxu0 0.0
      %6683 = vmatpush1.msra.mxu0 0.0
      %6684 = vmatprep.subr.mxu0 0.0
      %6685 = vmatpush1.msra.mxu0 0.0
      %6686 = vmatprep.subr.mxu0 0.0
      %6687 = vmatpush1.msra.mxu0 0.0
      %6688 = vmatprep.subr.mxu0 0.0
      %6689 = vmatpush1.msra.mxu0 0.0
      %6690 = vmatprep.subr.mxu0 0.0
      %6691 = vmatpush1.msra.mxu0 0.0
      %6692 = vmatprep.subr.mxu0 0.0
      %6693 = vmatpush1.msra.mxu0 0.0
      %6694 = vmatprep.subr.mxu0 0.0
      %6695 = vmatpush1.msra.mxu0 0.0
      %6696 = vmatprep.subr.mxu0 0.0
      %6697 = vmatpush1.msra.mxu0 0.0
      %6698 = vmatprep.subr.mxu0 0.0
      %6699 = vmatpush1.msra.mxu0 0.0
      %6700 = vmatprep.subr.mxu0 0.0
      %6701 = vmatpush1.msra.mxu0 0.0
      %6702 = vmatprep.subr.mxu0 0.0
      %6703 = vmatpush1.msra.mxu0 0.0
      %6704 = vmatprep.subr.mxu0 0.0
      %6705 = vmatpush1.msra.mxu0 0.0
      %6706 = vmatprep.subr.mxu0 0.0
      %6707 = vmatpush1.msra.mxu0 0.0
      %6708 = vmatprep.subr.mxu0 0.0
      %6709 = vmatpush1.msra.mxu0 0.0
      %6710 = vmatprep.subr.mxu0 0.0
      %6711 = vmatpush1.msra.mxu0 0.0
      %6712 = vmatprep.subr.mxu0 0.0
      %6713 = vmatpush1.msra.mxu0 0.0
      %6714 = vmatprep.mubr.f32.mxu0 0.0
      %6715 = vmatmul.mubr.f32.gmra.mrb[0].mxu0 %v6491
      %v6716 = vpop.f32.mrb[0].mxu0
      %v6717 = vadd.f32 0.0, %v6716
      %v6718 = vpop.f32.mrb[0].mxu0
      %v6719 = vadd.f32 0.0, %v6718
      %6720 = vmatprep.mubr.f32.mxu0 0.0
      %6721 = vmatmul.mubr.f32.gmra.mrb[0].mxu0 %v6494
      %v6722 = vpop.f32.mrb[0].mxu0
      %v6723 = vadd.f32 0.0, %v6722
      %v6724 = vpop.f32.mrb[0].mxu0
      %v6725 = vadd.f32 0.0, %v6724
      %6726 = vdwg.mxu0
      %6727 = vmatprep.subr.mxu0 %v6481
      %6728 = vmatpush1.msra.mxu0 %v6480
      %6729 = vmatprep.subr.mxu0 %v6489
      %6730 = vmatpush1.msra.mxu0 %v6488
      %6731 = vmatprep.subr.mxu0 0.0
      %6732 = vmatpush1.msra.mxu0 0.0
      %6733 = vmatprep.subr.mxu0 0.0
      %6734 = vmatpush1.msra.mxu0 0.0
      %6735 = vmatprep.subr.mxu0 0.0
      %6736 = vmatpush1.msra.mxu0 0.0
      %6737 = vmatprep.subr.mxu0 0.0
      %6738 = vmatpush1.msra.mxu0 0.0
      %6739 = vmatprep.subr.mxu0 0.0
      %6740 = vmatpush1.msra.mxu0 0.0
      %6741 = vmatprep.subr.mxu0 0.0
      %6742 = vmatpush1.msra.mxu0 0.0
      %6743 = vmatprep.subr.mxu0 0.0
      %6744 = vmatpush1.msra.mxu0 0.0
      %6745 = vmatprep.subr.mxu0 0.0
      %6746 = vmatpush1.msra.mxu0 0.0
      %6747 = vmatprep.subr.mxu0 0.0
      %6748 = vmatpush1.msra.mxu0 0.0
      %6749 = vmatprep.subr.mxu0 0.0
      %6750 = vmatpush1.msra.mxu0 0.0
      %6751 = vmatprep.subr.mxu0 0.0
      %6752 = vmatpush1.msra.mxu0 0.0
      %6753 = vmatprep.subr.mxu0 0.0
      %6754 = vmatpush1.msra.mxu0 0.0
      %6755 = vmatprep.subr.mxu0 0.0
      %6756 = vmatpush1.msra.mxu0 0.0
      %6757 = vmatprep.subr.mxu0 0.0
      %6758 = vmatpush1.msra.mxu0 0.0
      %6759 = vmatprep.subr.mxu0 0.0
      %6760 = vmatpush1.msra.mxu0 0.0
      %6761 = vmatprep.subr.mxu0 0.0
      %6762 = vmatpush1.msra.mxu0 0.0
      %6763 = vmatprep.subr.mxu0 0.0
      %6764 = vmatpush1.msra.mxu0 0.0
      %6765 = vmatprep.subr.mxu0 0.0
      %6766 = vmatpush1.msra.mxu0 0.0
      %6767 = vmatprep.subr.mxu0 0.0
      %6768 = vmatpush1.msra.mxu0 0.0
      %6769 = vmatprep.subr.mxu0 0.0
      %6770 = vmatpush1.msra.mxu0 0.0
      %6771 = vmatprep.subr.mxu0 0.0
      %6772 = vmatpush1.msra.mxu0 0.0
      %6773 = vmatprep.subr.mxu0 0.0
      %6774 = vmatpush1.msra.mxu0 0.0
      %6775 = vmatprep.subr.mxu0 0.0
      %6776 = vmatpush1.msra.mxu0 0.0
      %6777 = vmatprep.subr.mxu0 0.0
      %6778 = vmatpush1.msra.mxu0 0.0
      %6779 = vmatprep.subr.mxu0 0.0
      %6780 = vmatpush1.msra.mxu0 0.0
      %6781 = vmatprep.subr.mxu0 0.0
      %6782 = vmatpush1.msra.mxu0 0.0
      %6783 = vmatprep.subr.mxu0 0.0
      %6784 = vmatpush1.msra.mxu0 0.0
      %6785 = vmatprep.subr.mxu0 0.0
      %6786 = vmatpush1.msra.mxu0 0.0
      %6787 = vmatprep.subr.mxu0 0.0
      %6788 = vmatpush1.msra.mxu0 0.0
      %6789 = vmatprep.subr.mxu0 0.0
      %6790 = vmatpush1.msra.mxu0 0.0
      %6791 = vmatprep.mubr.f32.mxu0 0.0
      %6792 = vmatmul.mubr.f32.gmra.mrb[0].mxu0 %v6491
      %v6793 = vpop.f32.mrb[0].mxu0
      %v6794 = vadd.f32 0.0, %v6793
      %v6795 = vpop.f32.mrb[0].mxu0
      %v6796 = vadd.f32 0.0, %v6795
      %6797 = vmatprep.mubr.f32.mxu0 0.0
      %6798 = vmatmul.mubr.f32.gmra.mrb[0].mxu0 %v6494
      %v6799 = vpop.f32.mrb[0].mxu0
      %v6800 = vadd.f32 0.0, %v6799
      %v6801 = vpop.f32.mrb[0].mxu0
      %v6802 = vadd.f32 0.0, %v6801
      %6803 = vdwg.mxu0
      %6804 = vst [vmem:[%s575] sm:$0xff] %v6563
      %6805 = vst [vmem:[%s575 + $0x8] sm:$0xff] %v6565
      %6806 = vst [vmem:[%s575 + $0x10] sm:$0xff] %v6640
      %6807 = vst [vmem:[%s575 + $0x18] sm:$0xff] %v6642
      %6808 = vst [vmem:[%s575 + $0x20] sm:$0xff] %v6717
      %6809 = vst [vmem:[%s575 + $0x28] sm:$0xff] %v6719
      %6810 = vst [vmem:[%s575 + $0x30] sm:$0xff] %v6794
      %6811 = vst [vmem:[%s575 + $0x38] sm:$0xff] %v6796
      %6812 = vst [vmem:[%s575 + $0x40] sm:$0xff] %v6569
      %6813 = vst [vmem:[%s575 + $0x48] sm:$0xff] %v6571
      %6814 = vst [vmem:[%s575 + $0x50] sm:$0xff] %v6646
      %6815 = vst [vmem:[%s575 + $0x58] sm:$0xff] %v6648
      %6816 = vst [vmem:[%s575 + $0x60] sm:$0xff] %v6723
      %6817 = vst [vmem:[%s575 + $0x68] sm:$0xff] %v6725
      %6818 = vst [vmem:[%s575 + $0x70] sm:$0xff] %v6800
      %6819 = vst [vmem:[%s575 + $0x78] sm:$0xff] %v6802
      %p6820 = scmp.lt.s32.totalorder %s29, 1
      %s6821 = scalar_select %p6820, %s29, 1
      %s6822 = smul.addr %s6821, 16
      %s6823 = smul.addr %s6822, 8
      %s6824 = scalar_lea.vmem %s18, %s6823
      // Predicated region
      $region93: #{attention_forward.1} parent=91 // pred_check
        %p6825 = pneg %p430
      $region94: #{attention_forward.1} parent=91 // pred_check_branch
        %6827 = sbr.rel (%p6825) target = $region96
      $region95: #{attention_forward.1} parent=91 // pred_region
        _
      $region96: #{attention_forward.1} parent=91 // pred_fallthru
        _
    $region92: #{attention_forward.1} parent=5 // pred_fallthru
      _
    %p6828 = scmp.le.s32.totalorder 2, %s24
    // Predicated region
    $region97: #{attention_forward.1} parent=5 // pred_check
      %p6829 = pneg %p6828
    $region98: #{attention_forward.1} parent=5 // pred_check_branch
      %6831 = sbr.rel (%p6829) target = $region100
    $region99: #{attention_forward.1} parent=5 // pred_region
      %s6832 = ssub.s32 %s24, 2
      // Predicated region
      $region101: #{attention_forward.1} parent=99 // pred_check
        %p6833 = pneg %p436
      $region102: #{attention_forward.1} parent=99 // pred_check_branch
        %6835 = sbr.rel (%p6833) target = $region104
      $region103: #{attention_forward.1} parent=99 // pred_region
        %p6836 = scmp.lt.s32.totalorder %s30, 1
        %s6837 = scalar_select %p6836, %s30, 1
        %s6838 = smul.addr %s6837, 16
        %s6839 = smul.addr %s6838, 8
        %s6840 = scalar_lea.vmem %s18, %s6839
      $region104: #{attention_forward.1} parent=99 // pred_fallthru
        _
    $region100: #{attention_forward.1} parent=5 // pred_fallthru
      _
  $region6: #{attention_forward.1} parent=0 // loop_footer
    %s28 = sadd.s32 1, %s24
  $region7: #{attention_forward.1} parent=0 // loop_footer_branch
    %23 = sbr.rel target = $region3
  $region8: #{attention_forward.1} parent=0 // loop_exit
    _

</llo_original>
